<compile_context>
chip_gen: v7x
topology: tpu7x:2x2x1
jax: 0.10.0
libtpu: 0.0.40
codegen_flags: <defaults>
</compile_context>

<pallas_src>
import jax
import jax.numpy as jnp
from jax.experimental import pallas as pl
from jax.experimental.pallas import tpu as pltpu


PARITIES = ((0, 0), (0, 1), (1, 0), (1, 1))
BN_EPS = 1e-5
LEAKY_SLOPE = 0.2


def _pick_tile(m, target=512):
    """Largest row tile <= target that divides m and is a multiple of 8."""
    if m <= target:
        return m
    start = target - (target % 8)
    for t in range(start, 7, -8):
        if m % t == 0:
            return t
    return m


# ----------------------------------------------------------------------------
# Pallas kernels
# ----------------------------------------------------------------------------
def _deconv_parity_kernel(c0_ref, c1_ref, c2_ref, c3_ref, w_ref, o_ref, s_ref):
    """4 parity matmuls (bf16 x bf16 -> f32) + BatchNorm sum/sumsq epilogue.

    c*_ref: (tm, 4*Cin) bf16 im2col tiles (one per output parity)
    w_ref : (4, 4*Cin, Cout) bf16 parity-packed weights
    o_ref : (tm, 4*Cout) bf16   lanes ordered (parity, channel)
    s_ref : (1, 2, 4*Cout) f32  per-tile [sum ; sum-of-squares]
    """
    cols = (c0_ref, c1_ref, c2_ref, c3_ref)
    accs = [jnp.dot(cols[p][...], w_ref[p], preferred_element_type=jnp.float32)
            for p in range(4)]
    full = jnp.concatenate(accs, axis=-1)                       # (tm, 4*Cout) f32
    o_ref[...] = full.astype(o_ref.dtype)
    s_ref[0] = jnp.concatenate(
        [jnp.sum(full, axis=0, keepdims=True),
         jnp.sum(full * full, axis=0, keepdims=True)], axis=0)  # (2, 4*Cout)


def _deconv_parity_tanh_kernel(c0_ref, c1_ref, c2_ref, c3_ref, w_ref, o_ref):
    """Final layer: 4 parity matmuls with fused Tanh epilogue (f32 out)."""
    cols = (c0_ref, c1_ref, c2_ref, c3_ref)
    accs = [jnp.dot(cols[p][...], w_ref[p], preferred_element_type=jnp.float32)
            for p in range(4)]
    o_ref[...] = jnp.tanh(jnp.concatenate(accs, axis=-1))


def _dense_taps_kernel(z_ref, w_ref, o_ref, s_ref):
    """layer_0: (N, Cin) @ (Cin, 16*Cout) — all 16 taps fused into the lanes."""
    acc = jnp.dot(z_ref[...], w_ref[...], preferred_element_type=jnp.float32)
    o_ref[...] = acc.astype(o_ref.dtype)
    s_ref[...] = jnp.concatenate(
        [jnp.sum(acc, axis=0, keepdims=True),
         jnp.sum(acc * acc, axis=0, keepdims=True)], axis=0)


def _bn_leaky_kernel(x_ref, sc_ref, sh_ref, o_ref):
    """Fused BatchNorm apply (scale/shift) + LeakyReLU(0.2)."""
    y = x_ref[...].astype(jnp.float32) * sc_ref[...] + sh_ref[...]
    o_ref[...] = jnp.where(y > 0, y, LEAKY_SLOPE * y).astype(o_ref.dtype)


# ----------------------------------------------------------------------------
# Layer wrappers (Pallas compute + thin XLA glue for windowing / placement)
# ----------------------------------------------------------------------------
def dense_all_taps(z2d, wf, cout):
    """layer_0 ConvTranspose2d(k4, s1, p0) on a 1x1 input as one matmul.

    z2d: (N, Cin) bf16; wf: (Cin, 16*Cout) bf16, lanes ordered (ky, kx, co).
    Returns (y (N, 16*Cout) bf16, stats (2, 16*Cout) f32).
    """
    n = z2d.shape[0]
    return pl.pallas_call(
        _dense_taps_kernel,
        out_shape=(jax.ShapeDtypeStruct((n, 16 * cout), jnp.bfloat16),
                   jax.ShapeDtypeStruct((2, 16 * cout), jnp.float32)),
    )(z2d, wf)


def deconv_s2_parity(x_nhwc, wp, cout, *, final_tanh=False, tile_target=512):
    """ConvTranspose2d(k=4, s=2, p=1) via the parity decomposition.

    x_nhwc: (N, H, W, Cin) bf16;  wp: (4, 4*Cin, Cout) bf16 (parity-packed).
    Returns the parity-packed output y_par of shape (N*H*W, 4*Cout) with lanes
    ordered (parity=(oy%2, ox%2), channel); for the non-final layers also the
    per-tile BatchNorm partial sums of shape (T, 2, 4*Cout).
    """
    n, h, w, cin = x_nhwc.shape
    m = n * h * w
    k4 = 4 * cin

    # im2col per parity: 2x2 window of the zero-padded input, channels stacked.
    xp = jnp.pad(x_nhwc, ((0, 0), (1, 1), (1, 1), (0, 0)))
    cols = []
    for ry, rx in PARITIES:
        parts = [xp[:, ry + d:ry + d + h, rx + e:rx + e + w, :]
                 for d in (0, 1) for e in (0, 1)]
        cols.append(jnp.concatenate(parts, axis=-1).reshape(m, k4))

    tm = _pick_tile(m, tile_target)
    grid = (m // tm,)
    col_spec = pl.BlockSpec((tm, k4), lambda i: (i, 0))
    w_spec = pl.BlockSpec((4, k4, cout), lambda i: (0, 0, 0))
    out_spec = pl.BlockSpec((tm, 4 * cout), lambda i: (i, 0))
    cparams = pltpu.CompilerParams(dimension_semantics=("parallel",))

    if final_tanh:
        return pl.pallas_call(
            _deconv_parity_tanh_kernel,
            out_shape=jax.ShapeDtypeStruct((m, 4 * cout), jnp.float32),
            grid=grid,
            in_specs=[col_spec] * 4 + [w_spec],
            out_specs=out_spec,
            compiler_params=cparams,
        )(*cols, wp)

    return pl.pallas_call(
        _deconv_parity_kernel,
        out_shape=(jax.ShapeDtypeStruct((m, 4 * cout), jnp.bfloat16),
                   jax.ShapeDtypeStruct((grid[0], 2, 4 * cout), jnp.float32)),
        grid=grid,
        in_specs=[col_spec] * 4 + [w_spec],
        out_specs=(out_spec, pl.BlockSpec((1, 2, 4 * cout), lambda i: (i, 0, 0))),
        compiler_params=cparams,
    )(*cols, wp)


def bn_scale_shift(stats, gamma, beta, groups, count):
    """Fold per-tile [sum, sumsq] partials into per-channel scale/shift (f32).

    stats: (..., 2, groups*C). Returns (1, groups*C) scale / shift, tiled to
    line up with the (parity/tap, channel) lane ordering of the activations.
    Training-mode (biased) variance, matching PyTorch BatchNorm2d.
    """
    c = gamma.shape[0]
    s = stats.reshape(-1, 2, groups, c).sum(axis=0)       # (2, groups, c)
    ssum, ssq = s[0].sum(axis=0), s[1].sum(axis=0)        # (c,)
    mean = ssum / count
    var = jnp.maximum(ssq / count - mean * mean, 0.0)
    inv = jax.lax.rsqrt(var + BN_EPS)
    scale = gamma * inv
    shift = beta - mean * scale
    scale_t = jnp.tile(scale, groups).reshape(1, groups * c)
    shift_t = jnp.tile(shift, groups).reshape(1, groups * c)
    return scale_t, shift_t


def bn_leaky_apply(y, scale_t, shift_t, *, tile_target=1024):
    """Fused y = leaky_relu(y * scale + shift) over an (M, L) bf16 activation."""
    m, l = y.shape
    tm = _pick_tile(m, tile_target)
    grid = (m // tm,)
    return pl.pallas_call(
        _bn_leaky_kernel,
        out_shape=jax.ShapeDtypeStruct((m, l), jnp.bfloat16),
        grid=grid,
        in_specs=[pl.BlockSpec((tm, l), lambda i: (i, 0)),
                  pl.BlockSpec((1, l), lambda i: (0, 0)),
                  pl.BlockSpec((1, l), lambda i: (0, 0))],
        out_specs=pl.BlockSpec((tm, l), lambda i: (i, 0)),
        compiler_params=pltpu.CompilerParams(dimension_semantics=("parallel",)),
    )(y, scale_t, shift_t)


def parity_interleave_nhwc(y_par, n, h, w, c):
    """(N*H*W, 4*C) parity-packed -> (N, 2H, 2W, C) NHWC (one XLA transpose)."""
    y = y_par.reshape(n, h, w, 2, 2, c)
    return jnp.transpose(y, (0, 1, 3, 2, 4, 5)).reshape(n, 2 * h, 2 * w, c)


def parity_interleave_nchw(y_par, n, h, w, c):
    """(N*H*W, 4*C) parity-packed -> (N, C, 2H, 2W) NCHW (one XLA transpose)."""
    y = y_par.reshape(n, h, w, 2, 2, c)
    return jnp.transpose(y, (0, 5, 1, 3, 2, 4)).reshape(n, c, 2 * h, 2 * w)


# ----------------------------------------------------------------------------
# Parameter init / weight packing (done once, outside the forward pass)
# ----------------------------------------------------------------------------
def pack_dense_taps_weight(w):
    """(Cin, Cout, 4, 4) -> (Cin, 16*Cout) bf16, lanes ordered (ky, kx, co)."""
    cin, cout = w.shape[0], w.shape[1]
    wf = jnp.transpose(w, (2, 3, 0, 1)).reshape(16, cin, cout)
    wf = jnp.transpose(wf, (1, 0, 2)).reshape(cin, 16 * cout)
    return wf.astype(jnp.bfloat16)


def pack_parity_weight(w):
    """(Cin, Cout, 4, 4) -> (4, 4*Cin, Cout) bf16 parity-packed sub-kernels.

    For output parity (ry, rx) = (oy%2, ox%2), the 2x2 window position (d, e)
    of the padded input multiplies tap w[:, :, 3-2d-ry, 3-2e-rx].
    """
    packed = []
    for ry, rx in PARITIES:
        blocks = [w[:, :, 3 - 2 * d - ry, 3 - 2 * e - rx]
                  for d in (0, 1) for e in (0, 1)]            # each (Cin, Cout)
        packed.append(jnp.concatenate(blocks, axis=0))        # (4*Cin, Cout)
    return jnp.stack(packed, axis=0).astype(jnp.bfloat16)


def init_params(key, image_size, num_channels, latent_vector_size):
    n_out = image_size
    chans = [latent_vector_size, n_out * 8, n_out * 4, n_out * 2, n_out,
             num_channels]
    keys = jax.random.split(key, 5)
    params = {}
    for i in range(5):
        cin, cout = chans[i], chans[i + 1]
        w = 0.02 * jax.random.normal(keys[i], (cin, cout, 4, 4), jnp.float32)
        params[f"w{i}"] = (pack_dense_taps_weight(w) if i == 0
                           else pack_parity_weight(w))
        if i < 4:  # BatchNorm2d affine params (PyTorch default: weight=1, bias=0)
            params[f"g{i}"] = jnp.ones((cout,), jnp.float32)
            params[f"b{i}"] = jnp.zeros((cout,), jnp.float32)
    return params


# ----------------------------------------------------------------------------
# Full generator forward
# ----------------------------------------------------------------------------
@jax.jit
def generator_forward(params, z_nchw):
    n = z_nchw.shape[0]

    # ---- layer_0: ConvTranspose2d(z, 8S, k4, s1, p0) + BN + LeakyReLU -------
    w0 = params["w0"]                                    # (z_dim, 16*C0) bf16
    c0 = w0.shape[1] // 16
    z2d = z_nchw.reshape(n, -1).astype(jnp.bfloat16)
    y, stats = dense_all_taps(z2d, w0, c0)               # (n, 16*C0) bf16
    sc, sh = bn_scale_shift(stats, params["g0"], params["b0"], 16, n * 16)
    x = bn_leaky_apply(y, sc, sh).reshape(n, 4, 4, c0)   # NHWC bf16

    # ---- layers 1..3: ConvTranspose2d(k4, s2, p1) + BN + LeakyReLU ----------
    for i in (1, 2, 3):
        wp = params[f"w{i}"]                             # (4, 4*Cin, Cout)
        cout = wp.shape[2]
        nn, h, w_, _ = x.shape
        y_par, stats = deconv_s2_parity(x, wp, cout)     # (M, 4*Cout) bf16
        sc, sh = bn_scale_shift(stats, params[f"g{i}"], params[f"b{i}"],
                                4, nn * h * w_ * 4)
        y_par = bn_leaky_apply(y_par, sc, sh)
        x = parity_interleave_nhwc(y_par, nn, h, w_, cout)   # (n, 2h, 2w, Cout)

    # ---- out: ConvTranspose2d(k4, s2, p1) + Tanh, emitted directly as NCHW --
    wp = params["w4"]
    cout = wp.shape[2]
    nn, h, w_, _ = x.shape
    y_par = deconv_s2_parity(x, wp, cout, final_tanh=True)   # (M, 4*nc) f32
    return parity_interleave_nchw(y_par, nn, h, w_, cout)    # (n, nc, 2h, 2w)


if __name__ == "__main__":
    image_size = 8          # n_out
    num_channels = 3
    latent_vector_size = 16
    batch = 2

    key = jax.random.PRNGKey(0)
    k_param, k_data = jax.random.split(key)
    params = init_params(k_param, image_size, num_channels, latent_vector_size)

    z = jax.random.normal(k_data, (batch, latent_vector_size, 1, 1),
                          dtype=jnp.float32)

    out = jax.block_until_ready(generator_forward(params, z))

    assert out.shape == (batch, num_channels, 64, 64), out.shape
    assert bool(jnp.all(jnp.isfinite(out)))
    assert bool(jnp.all(jnp.abs(out) <= 1.0 + 1e-6))  # tanh range
    print("KERNEL_OK")
</pallas_src>

<mosaic_0001>
module attributes {stable_mosaic.version = 11 : i64} {
  func.func @_dense_taps_kernel(%arg0: memref<2x16xbf16, #tpu.memory_space<vmem>>, %arg1: memref<16x1024xbf16, #tpu.memory_space<vmem>>, %arg2: memref<2x1024xbf16, #tpu.memory_space<vmem>>, %arg3: memref<2x1024xf32, #tpu.memory_space<vmem>>) attributes {dimension_semantics = [], scalar_prefetch = 0 : i64, scratch_operands = 0 : i64, tpu.core_type = #tpu.core_type<tc>} {
    %c0 = arith.constant 0 : index
    %c0_0 = arith.constant 0 : index
    %0 = vector.load %arg0[%c0, %c0_0] : memref<2x16xbf16, #tpu.memory_space<vmem>>, vector<2x16xbf16>
    %c0_1 = arith.constant 0 : index
    %c0_2 = arith.constant 0 : index
    %1 = vector.load %arg1[%c0_1, %c0_2] : memref<16x1024xbf16, #tpu.memory_space<vmem>>, vector<16x1024xbf16>
    %cst = arith.constant dense<0.000000e+00> : vector<2x1024xf32>
    %2 = tpu.matmul %0, %1, %cst {dimension_numbers = #tpu.dot_dimension_numbers<[1], [0], [0], [1], [0, 0, 1, 1], [], []>} : vector<2x16xbf16>, vector<16x1024xbf16>, vector<2x1024xf32> -> vector<2x1024xf32>
    %3 = arith.truncf %2 : vector<2x1024xf32> to vector<2x1024xbf16>
    %c0_3 = arith.constant 0 : index
    %c0_4 = arith.constant 0 : index
    %4 = vector.load %arg2[%c0_3, %c0_4] : memref<2x1024xbf16, #tpu.memory_space<vmem>>, vector<2x1024xbf16>
    tpu.vector_store %arg2[%c0_3, %c0_4], %3 {strides = array<i32>} : memref<2x1024xbf16, #tpu.memory_space<vmem>>, vector<2x1024xbf16>,
    %cst_5 = arith.constant dense<0.000000e+00> : vector<1024xf32>
    %5 = vector.multi_reduction <add>, %2, %cst_5 [0] : vector<2x1024xf32> to vector<1024xf32>
    %6 = vector.shape_cast %5 : vector<1024xf32> to vector<1x1024xf32>
    %7 = arith.mulf %2, %2 : vector<2x1024xf32>
    %cst_6 = arith.constant dense<0.000000e+00> : vector<1024xf32>
    %8 = vector.multi_reduction <add>, %7, %cst_6 [0] : vector<2x1024xf32> to vector<1024xf32>
    %9 = vector.shape_cast %8 : vector<1024xf32> to vector<1x1024xf32>
    %10 = tpu.concatenate %6, %9 in 0 : vector<1x1024xf32>, vector<1x1024xf32> -> vector<2x1024xf32>
    %c0_7 = arith.constant 0 : index
    %c0_8 = arith.constant 0 : index
    %11 = vector.load %arg3[%c0_7, %c0_8] : memref<2x1024xf32, #tpu.memory_space<vmem>>, vector<2x1024xf32>
    tpu.vector_store %arg3[%c0_7, %c0_8], %10 {strides = array<i32>} : memref<2x1024xf32, #tpu.memory_space<vmem>>, vector<2x1024xf32>,
    return
  }
}

module attributes {stable_mosaic.version = 11 : i64} {
  func.func @_bn_leaky_kernel(%arg0: i32, %arg1: memref<2x1024xbf16, #tpu.memory_space<vmem>>, %arg2: memref<1x1024xf32, #tpu.memory_space<vmem>>, %arg3: memref<1x1024xf32, #tpu.memory_space<vmem>>, %arg4: memref<2x1024xbf16, #tpu.memory_space<vmem>>) attributes {dimension_semantics = [#tpu.dimension_semantics<parallel>], iteration_bounds = array<i64: 1>, scalar_prefetch = 0 : i64, scratch_operands = 0 : i64, tpu.core_type = #tpu.core_type<tc>, window_params = [{transform_indices = @transform_0, window_bounds = array<i64: 2, 1024>}, {pipeline_mode = #tpu.pipeline_mode<synchronous>, transform_indices = @transform_1, window_bounds = array<i64: 1, 1024>}, {pipeline_mode = #tpu.pipeline_mode<synchronous>, transform_indices = @transform_2, window_bounds = array<i64: 1, 1024>}, {transform_indices = @transform_3, window_bounds = array<i64: 2, 1024>}]} {
    %c0 = arith.constant 0 : index
    %c0_0 = arith.constant 0 : index
    %0 = vector.load %arg1[%c0, %c0_0] : memref<2x1024xbf16, #tpu.memory_space<vmem>>, vector<2x1024xbf16>
    %1 = arith.extf %0 : vector<2x1024xbf16> to vector<2x1024xf32>
    %c0_1 = arith.constant 0 : index
    %c0_2 = arith.constant 0 : index
    %2 = vector.load %arg2[%c0_1, %c0_2] : memref<1x1024xf32, #tpu.memory_space<vmem>>, vector<1x1024xf32>
    %3 = vector.broadcast %2 : vector<1x1024xf32> to vector<2x1024xf32>
    %4 = arith.mulf %1, %3 : vector<2x1024xf32>
    %c0_3 = arith.constant 0 : index
    %c0_4 = arith.constant 0 : index
    %5 = vector.load %arg3[%c0_3, %c0_4] : memref<1x1024xf32, #tpu.memory_space<vmem>>, vector<1x1024xf32>
    %6 = vector.broadcast %5 : vector<1x1024xf32> to vector<2x1024xf32>
    %7 = arith.addf %4, %6 : vector<2x1024xf32>
    %cst = arith.constant 0.000000e+00 : f32
    %8 = vector.broadcast %cst : f32 to vector<2x1024xf32>
    %9 = arith.cmpf ogt, %7, %8 : vector<2x1024xf32>
    %cst_5 = arith.constant 2.000000e-01 : f32
    %10 = vector.broadcast %cst_5 : f32 to vector<2x1024xf32>
    %11 = arith.mulf %10, %7 : vector<2x1024xf32>
    %12 = arith.select %9, %7, %11 : vector<2x1024xi1>, vector<2x1024xf32>
    %13 = arith.truncf %12 : vector<2x1024xf32> to vector<2x1024xbf16>
    %c0_6 = arith.constant 0 : index
    %c0_7 = arith.constant 0 : index
    %14 = vector.load %arg4[%c0_6, %c0_7] : memref<2x1024xbf16, #tpu.memory_space<vmem>>, vector<2x1024xbf16>
    tpu.vector_store %arg4[%c0_6, %c0_7], %13 {strides = array<i32>} : memref<2x1024xbf16, #tpu.memory_space<vmem>>, vector<2x1024xbf16>,
    return
  }
  func.func @transform_0(%arg0: i32) -> (i32, i32) {
    %c0_i32 = arith.constant 0 : i32
    %c0_i32_0 = arith.constant 0 : i32
    return %arg0, %c0_i32 : i32, i32
  }
  func.func @transform_1(%arg0: i32) -> (i32, i32) {
    %c0_i32 = arith.constant 0 : i32
    %c0_i32_0 = arith.constant 0 : i32
    %c0_i32_1 = arith.constant 0 : i32
    return %c0_i32, %c0_i32_0 : i32, i32
  }
  func.func @transform_2(%arg0: i32) -> (i32, i32) {
    %c0_i32 = arith.constant 0 : i32
    %c0_i32_0 = arith.constant 0 : i32
    %c0_i32_1 = arith.constant 0 : i32
    return %c0_i32, %c0_i32_0 : i32, i32
  }
  func.func @transform_3(%arg0: i32) -> (i32, i32) {
    %c0_i32 = arith.constant 0 : i32
    %c0_i32_0 = arith.constant 0 : i32
    return %arg0, %c0_i32 : i32, i32
  }
}

module attributes {stable_mosaic.version = 11 : i64} {
  func.func @_deconv_parity_kernel(%arg0: i32, %arg1: memref<32x256xbf16, #tpu.memory_space<vmem>>, %arg2: memref<32x256xbf16, #tpu.memory_space<vmem>>, %arg3: memref<32x256xbf16, #tpu.memory_space<vmem>>, %arg4: memref<32x256xbf16, #tpu.memory_space<vmem>>, %arg5: memref<4x256x32xbf16, #tpu.memory_space<vmem>>, %arg6: memref<32x128xbf16, #tpu.memory_space<vmem>>, %arg7: memref<1x2x128xf32, #tpu.memory_space<vmem>>) attributes {dimension_semantics = [#tpu.dimension_semantics<parallel>], iteration_bounds = array<i64: 1>, scalar_prefetch = 0 : i64, scratch_operands = 0 : i64, tpu.core_type = #tpu.core_type<tc>, window_params = [{transform_indices = @transform_0, window_bounds = array<i64: 32, 256>}, {transform_indices = @transform_1, window_bounds = array<i64: 32, 256>}, {transform_indices = @transform_2, window_bounds = array<i64: 32, 256>}, {transform_indices = @transform_3, window_bounds = array<i64: 32, 256>}, {pipeline_mode = #tpu.pipeline_mode<synchronous>, transform_indices = @transform_4, window_bounds = array<i64: 4, 256, 32>}, {transform_indices = @transform_5, window_bounds = array<i64: 32, 128>}, {transform_indices = @transform_6, window_bounds = array<i64: 1, 2, 128>}]} {
    %c0 = arith.constant 0 : index
    %c0_0 = arith.constant 0 : index
    %0 = vector.load %arg1[%c0, %c0_0] : memref<32x256xbf16, #tpu.memory_space<vmem>>, vector<32x256xbf16>
    %c0_1 = arith.constant 0 : index
    %c0_2 = arith.constant 0 : index
    %c0_3 = arith.constant 0 : index
    %1 = vector.load %arg5[%c0_1, %c0_2, %c0_3] : memref<4x256x32xbf16, #tpu.memory_space<vmem>>, vector<1x256x32xbf16>
    %2 = vector.shape_cast %1 : vector<1x256x32xbf16> to vector<256x32xbf16>
    %cst = arith.constant dense<0.000000e+00> : vector<32x32xf32>
    %3 = tpu.matmul %0, %2, %cst {dimension_numbers = #tpu.dot_dimension_numbers<[1], [0], [0], [1], [0, 0, 1, 1], [], []>} : vector<32x256xbf16>, vector<256x32xbf16>, vector<32x32xf32> -> vector<32x32xf32>
    %c0_4 = arith.constant 0 : index
    %c0_5 = arith.constant 0 : index
    %4 = vector.load %arg2[%c0_4, %c0_5] : memref<32x256xbf16, #tpu.memory_space<vmem>>, vector<32x256xbf16>
    %c1 = arith.constant 1 : index
    %c0_6 = arith.constant 0 : index
    %c0_7 = arith.constant 0 : index
    %5 = vector.load %arg5[%c1, %c0_6, %c0_7] : memref<4x256x32xbf16, #tpu.memory_space<vmem>>, vector<1x256x32xbf16>
    %6 = vector.shape_cast %5 : vector<1x256x32xbf16> to vector<256x32xbf16>
    %cst_8 = arith.constant dense<0.000000e+00> : vector<32x32xf32>
    %7 = tpu.matmul %4, %6, %cst_8 {dimension_numbers = #tpu.dot_dimension_numbers<[1], [0], [0], [1], [0, 0, 1, 1], [], []>} : vector<32x256xbf16>, vector<256x32xbf16>, vector<32x32xf32> -> vector<32x32xf32>
    %c0_9 = arith.constant 0 : index
    %c0_10 = arith.constant 0 : index
    %8 = vector.load %arg3[%c0_9, %c0_10] : memref<32x256xbf16, #tpu.memory_space<vmem>>, vector<32x256xbf16>
    %c2 = arith.constant 2 : index
    %c0_11 = arith.constant 0 : index
    %c0_12 = arith.constant 0 : index
    %9 = vector.load %arg5[%c2, %c0_11, %c0_12] : memref<4x256x32xbf16, #tpu.memory_space<vmem>>, vector<1x256x32xbf16>
    %10 = vector.shape_cast %9 : vector<1x256x32xbf16> to vector<256x32xbf16>
    %cst_13 = arith.constant dense<0.000000e+00> : vector<32x32xf32>
    %11 = tpu.matmul %8, %10, %cst_13 {dimension_numbers = #tpu.dot_dimension_numbers<[1], [0], [0], [1], [0, 0, 1, 1], [], []>} : vector<32x256xbf16>, vector<256x32xbf16>, vector<32x32xf32> -> vector<32x32xf32>
    %c0_14 = arith.constant 0 : index
    %c0_15 = arith.constant 0 : index
    %12 = vector.load %arg4[%c0_14, %c0_15] : memref<32x256xbf16, #tpu.memory_space<vmem>>, vector<32x256xbf16>
    %c3 = arith.constant 3 : index
    %c0_16 = arith.constant 0 : index
    %c0_17 = arith.constant 0 : index
    %13 = vector.load %arg5[%c3, %c0_16, %c0_17] : memref<4x256x32xbf16, #tpu.memory_space<vmem>>, vector<1x256x32xbf16>
    %14 = vector.shape_cast %13 : vector<1x256x32xbf16> to vector<256x32xbf16>
    %cst_18 = arith.constant dense<0.000000e+00> : vector<32x32xf32>
    %15 = tpu.matmul %12, %14, %cst_18 {dimension_numbers = #tpu.dot_dimension_numbers<[1], [0], [0], [1], [0, 0, 1, 1], [], []>} : vector<32x256xbf16>, vector<256x32xbf16>, vector<32x32xf32> -> vector<32x32xf32>
    %16 = tpu.concatenate %3, %7, %11, %15 in 1 : vector<32x32xf32>, vector<32x32xf32>, vector<32x32xf32>, vector<32x32xf32> -> vector<32x128xf32>
    %17 = arith.truncf %16 : vector<32x128xf32> to vector<32x128xbf16>
    %c0_19 = arith.constant 0 : index
    %c0_20 = arith.constant 0 : index
    %18 = vector.load %arg6[%c0_19, %c0_20] : memref<32x128xbf16, #tpu.memory_space<vmem>>, vector<32x128xbf16>
    tpu.vector_store %arg6[%c0_19, %c0_20], %17 {strides = array<i32>} : memref<32x128xbf16, #tpu.memory_space<vmem>>, vector<32x128xbf16>,
    %cst_21 = arith.constant dense<0.000000e+00> : vector<128xf32>
    %19 = vector.multi_reduction <add>, %16, %cst_21 [0] : vector<32x128xf32> to vector<128xf32>
    %20 = vector.shape_cast %19 : vector<128xf32> to vector<1x128xf32>
    %21 = arith.mulf %16, %16 : vector<32x128xf32>
    %cst_22 = arith.constant dense<0.000000e+00> : vector<128xf32>
    %22 = vector.multi_reduction <add>, %21, %cst_22 [0] : vector<32x128xf32> to vector<128xf32>
    %23 = vector.shape_cast %22 : vector<128xf32> to vector<1x128xf32>
    %24 = tpu.concatenate %20, %23 in 0 : vector<1x128xf32>, vector<1x128xf32> -> vector<2x128xf32>
    %c0_23 = arith.constant 0 : index
    %c0_24 = arith.constant 0 : index
    %c0_25 = arith.constant 0 : index
    %25 = vector.load %arg7[%c0_23, %c0_24, %c0_25] : memref<1x2x128xf32, #tpu.memory_space<vmem>>, vector<1x2x128xf32>
    %26 = vector.shape_cast %25 : vector<1x2x128xf32> to vector<2x128xf32>
    %27 = vector.shape_cast %24 : vector<2x128xf32> to vector<1x2x128xf32>
    tpu.vector_store %arg7[%c0_23, %c0_24, %c0_25], %27 {strides = array<i32>} : memref<1x2x128xf32, #tpu.memory_space<vmem>>, vector<1x2x128xf32>,
    return
  }
  func.func @transform_0(%arg0: i32) -> (i32, i32) {
    %c0_i32 = arith.constant 0 : i32
    %c0_i32_0 = arith.constant 0 : i32
    return %arg0, %c0_i32 : i32, i32
  }
  func.func @transform_1(%arg0: i32) -> (i32, i32) {
    %c0_i32 = arith.constant 0 : i32
    %c0_i32_0 = arith.constant 0 : i32
    return %arg0, %c0_i32 : i32, i32
  }
  func.func @transform_2(%arg0: i32) -> (i32, i32) {
    %c0_i32 = arith.constant 0 : i32
    %c0_i32_0 = arith.constant 0 : i32
    return %arg0, %c0_i32 : i32, i32
  }
  func.func @transform_3(%arg0: i32) -> (i32, i32) {
    %c0_i32 = arith.constant 0 : i32
    %c0_i32_0 = arith.constant 0 : i32
    return %arg0, %c0_i32 : i32, i32
  }
  func.func @transform_4(%arg0: i32) -> (i32, i32, i32) {
    %c0_i32 = arith.constant 0 : i32
    %c0_i32_0 = arith.constant 0 : i32
    %c0_i32_1 = arith.constant 0 : i32
    %c0_i32_2 = arith.constant 0 : i32
    return %c0_i32, %c0_i32_0, %c0_i32_1 : i32, i32, i32
  }
  func.func @transform_5(%arg0: i32) -> (i32, i32) {
    %c0_i32 = arith.constant 0 : i32
    %c0_i32_0 = arith.constant 0 : i32
    return %arg0, %c0_i32 : i32, i32
  }
  func.func @transform_6(%arg0: i32) -> (i32, i32, i32) {
    %c0_i32 = arith.constant 0 : i32
    %c0_i32_0 = arith.constant 0 : i32
    %c0_i32_1 = arith.constant 0 : i32
    return %arg0, %c0_i32, %c0_i32_0 : i32, i32, i32
  }
}

module attributes {stable_mosaic.version = 11 : i64} {
  func.func @_bn_leaky_kernel(%arg0: i32, %arg1: memref<32x128xbf16, #tpu.memory_space<vmem>>, %arg2: memref<1x128xf32, #tpu.memory_space<vmem>>, %arg3: memref<1x128xf32, #tpu.memory_space<vmem>>, %arg4: memref<32x128xbf16, #tpu.memory_space<vmem>>) attributes {dimension_semantics = [#tpu.dimension_semantics<parallel>], iteration_bounds = array<i64: 1>, scalar_prefetch = 0 : i64, scratch_operands = 0 : i64, tpu.core_type = #tpu.core_type<tc>, window_params = [{transform_indices = @transform_0, window_bounds = array<i64: 32, 128>}, {pipeline_mode = #tpu.pipeline_mode<synchronous>, transform_indices = @transform_1, window_bounds = array<i64: 1, 128>}, {pipeline_mode = #tpu.pipeline_mode<synchronous>, transform_indices = @transform_2, window_bounds = array<i64: 1, 128>}, {transform_indices = @transform_3, window_bounds = array<i64: 32, 128>}]} {
    %c0 = arith.constant 0 : index
    %c0_0 = arith.constant 0 : index
    %0 = vector.load %arg1[%c0, %c0_0] : memref<32x128xbf16, #tpu.memory_space<vmem>>, vector<32x128xbf16>
    %1 = arith.extf %0 : vector<32x128xbf16> to vector<32x128xf32>
    %c0_1 = arith.constant 0 : index
    %c0_2 = arith.constant 0 : index
    %2 = vector.load %arg2[%c0_1, %c0_2] : memref<1x128xf32, #tpu.memory_space<vmem>>, vector<1x128xf32>
    %3 = vector.broadcast %2 : vector<1x128xf32> to vector<32x128xf32>
    %4 = arith.mulf %1, %3 : vector<32x128xf32>
    %c0_3 = arith.constant 0 : index
    %c0_4 = arith.constant 0 : index
    %5 = vector.load %arg3[%c0_3, %c0_4] : memref<1x128xf32, #tpu.memory_space<vmem>>, vector<1x128xf32>
    %6 = vector.broadcast %5 : vector<1x128xf32> to vector<32x128xf32>
    %7 = arith.addf %4, %6 : vector<32x128xf32>
    %cst = arith.constant 0.000000e+00 : f32
    %8 = vector.broadcast %cst : f32 to vector<32x128xf32>
    %9 = arith.cmpf ogt, %7, %8 : vector<32x128xf32>
    %cst_5 = arith.constant 2.000000e-01 : f32
    %10 = vector.broadcast %cst_5 : f32 to vector<32x128xf32>
    %11 = arith.mulf %10, %7 : vector<32x128xf32>
    %12 = arith.select %9, %7, %11 : vector<32x128xi1>, vector<32x128xf32>
    %13 = arith.truncf %12 : vector<32x128xf32> to vector<32x128xbf16>
    %c0_6 = arith.constant 0 : index
    %c0_7 = arith.constant 0 : index
    %14 = vector.load %arg4[%c0_6, %c0_7] : memref<32x128xbf16, #tpu.memory_space<vmem>>, vector<32x128xbf16>
    tpu.vector_store %arg4[%c0_6, %c0_7], %13 {strides = array<i32>} : memref<32x128xbf16, #tpu.memory_space<vmem>>, vector<32x128xbf16>,
    return
  }
  func.func @transform_0(%arg0: i32) -> (i32, i32) {
    %c0_i32 = arith.constant 0 : i32
    %c0_i32_0 = arith.constant 0 : i32
    return %arg0, %c0_i32 : i32, i32
  }
  func.func @transform_1(%arg0: i32) -> (i32, i32) {
    %c0_i32 = arith.constant 0 : i32
    %c0_i32_0 = arith.constant 0 : i32
    %c0_i32_1 = arith.constant 0 : i32
    return %c0_i32, %c0_i32_0 : i32, i32
  }
  func.func @transform_2(%arg0: i32) -> (i32, i32) {
    %c0_i32 = arith.constant 0 : i32
    %c0_i32_0 = arith.constant 0 : i32
    %c0_i32_1 = arith.constant 0 : i32
    return %c0_i32, %c0_i32_0 : i32, i32
  }
  func.func @transform_3(%arg0: i32) -> (i32, i32) {
    %c0_i32 = arith.constant 0 : i32
    %c0_i32_0 = arith.constant 0 : i32
    return %arg0, %c0_i32 : i32, i32
  }
}

module attributes {stable_mosaic.version = 11 : i64} {
  func.func @_deconv_parity_kernel(%arg0: i32, %arg1: memref<128x128xbf16, #tpu.memory_space<vmem>>, %arg2: memref<128x128xbf16, #tpu.memory_space<vmem>>, %arg3: memref<128x128xbf16, #tpu.memory_space<vmem>>, %arg4: memref<128x128xbf16, #tpu.memory_space<vmem>>, %arg5: memref<4x128x16xbf16, #tpu.memory_space<vmem>>, %arg6: memref<128x64xbf16, #tpu.memory_space<vmem>>, %arg7: memref<1x2x64xf32, #tpu.memory_space<vmem>>) attributes {dimension_semantics = [#tpu.dimension_semantics<parallel>], iteration_bounds = array<i64: 1>, scalar_prefetch = 0 : i64, scratch_operands = 0 : i64, tpu.core_type = #tpu.core_type<tc>, window_params = [{transform_indices = @transform_0, window_bounds = array<i64: 128, 128>}, {transform_indices = @transform_1, window_bounds = array<i64: 128, 128>}, {transform_indices = @transform_2, window_bounds = array<i64: 128, 128>}, {transform_indices = @transform_3, window_bounds = array<i64: 128, 128>}, {pipeline_mode = #tpu.pipeline_mode<synchronous>, transform_indices = @transform_4, window_bounds = array<i64: 4, 128, 16>}, {transform_indices = @transform_5, window_bounds = array<i64: 128, 64>}, {transform_indices = @transform_6, window_bounds = array<i64: 1, 2, 64>}]} {
    %c0 = arith.constant 0 : index
    %c0_0 = arith.constant 0 : index
    %0 = vector.load %arg1[%c0, %c0_0] : memref<128x128xbf16, #tpu.memory_space<vmem>>, vector<128x128xbf16>
    %c0_1 = arith.constant 0 : index
    %c0_2 = arith.constant 0 : index
    %c0_3 = arith.constant 0 : index
    %1 = vector.load %arg5[%c0_1, %c0_2, %c0_3] : memref<4x128x16xbf16, #tpu.memory_space<vmem>>, vector<1x128x16xbf16>
    %2 = vector.shape_cast %1 : vector<1x128x16xbf16> to vector<128x16xbf16>
    %cst = arith.constant dense<0.000000e+00> : vector<128x16xf32>
    %3 = tpu.matmul %0, %2, %cst {dimension_numbers = #tpu.dot_dimension_numbers<[1], [0], [0], [1], [0, 0, 1, 1], [], []>} : vector<128x128xbf16>, vector<128x16xbf16>, vector<128x16xf32> -> vector<128x16xf32>
    %c0_4 = arith.constant 0 : index
    %c0_5 = arith.constant 0 : index
    %4 = vector.load %arg2[%c0_4, %c0_5] : memref<128x128xbf16, #tpu.memory_space<vmem>>, vector<128x128xbf16>
    %c1 = arith.constant 1 : index
    %c0_6 = arith.constant 0 : index
    %c0_7 = arith.constant 0 : index
    %5 = vector.load %arg5[%c1, %c0_6, %c0_7] : memref<4x128x16xbf16, #tpu.memory_space<vmem>>, vector<1x128x16xbf16>
    %6 = vector.shape_cast %5 : vector<1x128x16xbf16> to vector<128x16xbf16>
    %cst_8 = arith.constant dense<0.000000e+00> : vector<128x16xf32>
    %7 = tpu.matmul %4, %6, %cst_8 {dimension_numbers = #tpu.dot_dimension_numbers<[1], [0], [0], [1], [0, 0, 1, 1], [], []>} : vector<128x128xbf16>, vector<128x16xbf16>, vector<128x16xf32> -> vector<128x16xf32>
    %c0_9 = arith.constant 0 : index
    %c0_10 = arith.constant 0 : index
    %8 = vector.load %arg3[%c0_9, %c0_10] : memref<128x128xbf16, #tpu.memory_space<vmem>>, vector<128x128xbf16>
    %c2 = arith.constant 2 : index
    %c0_11 = arith.constant 0 : index
    %c0_12 = arith.constant 0 : index
    %9 = vector.load %arg5[%c2, %c0_11, %c0_12] : memref<4x128x16xbf16, #tpu.memory_space<vmem>>, vector<1x128x16xbf16>
    %10 = vector.shape_cast %9 : vector<1x128x16xbf16> to vector<128x16xbf16>
    %cst_13 = arith.constant dense<0.000000e+00> : vector<128x16xf32>
    %11 = tpu.matmul %8, %10, %cst_13 {dimension_numbers = #tpu.dot_dimension_numbers<[1], [0], [0], [1], [0, 0, 1, 1], [], []>} : vector<128x128xbf16>, vector<128x16xbf16>, vector<128x16xf32> -> vector<128x16xf32>
    %c0_14 = arith.constant 0 : index
    %c0_15 = arith.constant 0 : index
    %12 = vector.load %arg4[%c0_14, %c0_15] : memref<128x128xbf16, #tpu.memory_space<vmem>>, vector<128x128xbf16>
    %c3 = arith.constant 3 : index
    %c0_16 = arith.constant 0 : index
    %c0_17 = arith.constant 0 : index
    %13 = vector.load %arg5[%c3, %c0_16, %c0_17] : memref<4x128x16xbf16, #tpu.memory_space<vmem>>, vector<1x128x16xbf16>
    %14 = vector.shape_cast %13 : vector<1x128x16xbf16> to vector<128x16xbf16>
    %cst_18 = arith.constant dense<0.000000e+00> : vector<128x16xf32>
    %15 = tpu.matmul %12, %14, %cst_18 {dimension_numbers = #tpu.dot_dimension_numbers<[1], [0], [0], [1], [0, 0, 1, 1], [], []>} : vector<128x128xbf16>, vector<128x16xbf16>, vector<128x16xf32> -> vector<128x16xf32>
    %16 = tpu.concatenate %3, %7, %11, %15 in 1 : vector<128x16xf32>, vector<128x16xf32>, vector<128x16xf32>, vector<128x16xf32> -> vector<128x64xf32>
    %17 = arith.truncf %16 : vector<128x64xf32> to vector<128x64xbf16>
    %c0_19 = arith.constant 0 : index
    %c0_20 = arith.constant 0 : index
    %18 = vector.load %arg6[%c0_19, %c0_20] : memref<128x64xbf16, #tpu.memory_space<vmem>>, vector<128x64xbf16>
    tpu.vector_store %arg6[%c0_19, %c0_20], %17 {strides = array<i32>} : memref<128x64xbf16, #tpu.memory_space<vmem>>, vector<128x64xbf16>,
    %cst_21 = arith.constant dense<0.000000e+00> : vector<64xf32>
    %19 = vector.multi_reduction <add>, %16, %cst_21 [0] : vector<128x64xf32> to vector<64xf32>
    %20 = vector.shape_cast %19 : vector<64xf32> to vector<1x64xf32>
    %21 = arith.mulf %16, %16 : vector<128x64xf32>
    %cst_22 = arith.constant dense<0.000000e+00> : vector<64xf32>
    %22 = vector.multi_reduction <add>, %21, %cst_22 [0] : vector<128x64xf32> to vector<64xf32>
    %23 = vector.shape_cast %22 : vector<64xf32> to vector<1x64xf32>
    %24 = tpu.concatenate %20, %23 in 0 : vector<1x64xf32>, vector<1x64xf32> -> vector<2x64xf32>
    %c0_23 = arith.constant 0 : index
    %c0_24 = arith.constant 0 : index
    %c0_25 = arith.constant 0 : index
    %25 = vector.load %arg7[%c0_23, %c0_24, %c0_25] : memref<1x2x64xf32, #tpu.memory_space<vmem>>, vector<1x2x64xf32>
    %26 = vector.shape_cast %25 : vector<1x2x64xf32> to vector<2x64xf32>
    %27 = vector.shape_cast %24 : vector<2x64xf32> to vector<1x2x64xf32>
    tpu.vector_store %arg7[%c0_23, %c0_24, %c0_25], %27 {strides = array<i32>} : memref<1x2x64xf32, #tpu.memory_space<vmem>>, vector<1x2x64xf32>,
    return
  }
  func.func @transform_0(%arg0: i32) -> (i32, i32) {
    %c0_i32 = arith.constant 0 : i32
    %c0_i32_0 = arith.constant 0 : i32
    return %arg0, %c0_i32 : i32, i32
  }
  func.func @transform_1(%arg0: i32) -> (i32, i32) {
    %c0_i32 = arith.constant 0 : i32
    %c0_i32_0 = arith.constant 0 : i32
    return %arg0, %c0_i32 : i32, i32
  }
  func.func @transform_2(%arg0: i32) -> (i32, i32) {
    %c0_i32 = arith.constant 0 : i32
    %c0_i32_0 = arith.constant 0 : i32
    return %arg0, %c0_i32 : i32, i32
  }
  func.func @transform_3(%arg0: i32) -> (i32, i32) {
    %c0_i32 = arith.constant 0 : i32
    %c0_i32_0 = arith.constant 0 : i32
    return %arg0, %c0_i32 : i32, i32
  }
  func.func @transform_4(%arg0: i32) -> (i32, i32, i32) {
    %c0_i32 = arith.constant 0 : i32
    %c0_i32_0 = arith.constant 0 : i32
    %c0_i32_1 = arith.constant 0 : i32
    %c0_i32_2 = arith.constant 0 : i32
    return %c0_i32, %c0_i32_0, %c0_i32_1 : i32, i32, i32
  }
  func.func @transform_5(%arg0: i32) -> (i32, i32) {
    %c0_i32 = arith.constant 0 : i32
    %c0_i32_0 = arith.constant 0 : i32
    return %arg0, %c0_i32 : i32, i32
  }
  func.func @transform_6(%arg0: i32) -> (i32, i32, i32) {
    %c0_i32 = arith.constant 0 : i32
    %c0_i32_0 = arith.constant 0 : i32
    %c0_i32_1 = arith.constant 0 : i32
    return %arg0, %c0_i32, %c0_i32_0 : i32, i32, i32
  }
}

module attributes {stable_mosaic.version = 11 : i64} {
  func.func @_bn_leaky_kernel(%arg0: i32, %arg1: memref<128x64xbf16, #tpu.memory_space<vmem>>, %arg2: memref<1x64xf32, #tpu.memory_space<vmem>>, %arg3: memref<1x64xf32, #tpu.memory_space<vmem>>, %arg4: memref<128x64xbf16, #tpu.memory_space<vmem>>) attributes {dimension_semantics = [#tpu.dimension_semantics<parallel>], iteration_bounds = array<i64: 1>, scalar_prefetch = 0 : i64, scratch_operands = 0 : i64, tpu.core_type = #tpu.core_type<tc>, window_params = [{transform_indices = @transform_0, window_bounds = array<i64: 128, 64>}, {pipeline_mode = #tpu.pipeline_mode<synchronous>, transform_indices = @transform_1, window_bounds = array<i64: 1, 64>}, {pipeline_mode = #tpu.pipeline_mode<synchronous>, transform_indices = @transform_2, window_bounds = array<i64: 1, 64>}, {transform_indices = @transform_3, window_bounds = array<i64: 128, 64>}]} {
    %c0 = arith.constant 0 : index
    %c0_0 = arith.constant 0 : index
    %0 = vector.load %arg1[%c0, %c0_0] : memref<128x64xbf16, #tpu.memory_space<vmem>>, vector<128x64xbf16>
    %1 = arith.extf %0 : vector<128x64xbf16> to vector<128x64xf32>
    %c0_1 = arith.constant 0 : index
    %c0_2 = arith.constant 0 : index
    %2 = vector.load %arg2[%c0_1, %c0_2] : memref<1x64xf32, #tpu.memory_space<vmem>>, vector<1x64xf32>
    %3 = vector.broadcast %2 : vector<1x64xf32> to vector<128x64xf32>
    %4 = arith.mulf %1, %3 : vector<128x64xf32>
    %c0_3 = arith.constant 0 : index
    %c0_4 = arith.constant 0 : index
    %5 = vector.load %arg3[%c0_3, %c0_4] : memref<1x64xf32, #tpu.memory_space<vmem>>, vector<1x64xf32>
    %6 = vector.broadcast %5 : vector<1x64xf32> to vector<128x64xf32>
    %7 = arith.addf %4, %6 : vector<128x64xf32>
    %cst = arith.constant 0.000000e+00 : f32
    %8 = vector.broadcast %cst : f32 to vector<128x64xf32>
    %9 = arith.cmpf ogt, %7, %8 : vector<128x64xf32>
    %cst_5 = arith.constant 2.000000e-01 : f32
    %10 = vector.broadcast %cst_5 : f32 to vector<128x64xf32>
    %11 = arith.mulf %10, %7 : vector<128x64xf32>
    %12 = arith.select %9, %7, %11 : vector<128x64xi1>, vector<128x64xf32>
    %13 = arith.truncf %12 : vector<128x64xf32> to vector<128x64xbf16>
    %c0_6 = arith.constant 0 : index
    %c0_7 = arith.constant 0 : index
    %14 = vector.load %arg4[%c0_6, %c0_7] : memref<128x64xbf16, #tpu.memory_space<vmem>>, vector<128x64xbf16>
    tpu.vector_store %arg4[%c0_6, %c0_7], %13 {strides = array<i32>} : memref<128x64xbf16, #tpu.memory_space<vmem>>, vector<128x64xbf16>,
    return
  }
  func.func @transform_0(%arg0: i32) -> (i32, i32) {
    %c0_i32 = arith.constant 0 : i32
    %c0_i32_0 = arith.constant 0 : i32
    return %arg0, %c0_i32 : i32, i32
  }
  func.func @transform_1(%arg0: i32) -> (i32, i32) {
    %c0_i32 = arith.constant 0 : i32
    %c0_i32_0 = arith.constant 0 : i32
    %c0_i32_1 = arith.constant 0 : i32
    return %c0_i32, %c0_i32_0 : i32, i32
  }
  func.func @transform_2(%arg0: i32) -> (i32, i32) {
    %c0_i32 = arith.constant 0 : i32
    %c0_i32_0 = arith.constant 0 : i32
    %c0_i32_1 = arith.constant 0 : i32
    return %c0_i32, %c0_i32_0 : i32, i32
  }
  func.func @transform_3(%arg0: i32) -> (i32, i32) {
    %c0_i32 = arith.constant 0 : i32
    %c0_i32_0 = arith.constant 0 : i32
    return %arg0, %c0_i32 : i32, i32
  }
}

module attributes {stable_mosaic.version = 11 : i64} {
  func.func @_deconv_parity_kernel(%arg0: i32, %arg1: memref<512x64xbf16, #tpu.memory_space<vmem>>, %arg2: memref<512x64xbf16, #tpu.memory_space<vmem>>, %arg3: memref<512x64xbf16, #tpu.memory_space<vmem>>, %arg4: memref<512x64xbf16, #tpu.memory_space<vmem>>, %arg5: memref<4x64x8xbf16, #tpu.memory_space<vmem>>, %arg6: memref<512x32xbf16, #tpu.memory_space<vmem>>, %arg7: memref<1x2x32xf32, #tpu.memory_space<vmem>>) attributes {dimension_semantics = [#tpu.dimension_semantics<parallel>], iteration_bounds = array<i64: 1>, scalar_prefetch = 0 : i64, scratch_operands = 0 : i64, tpu.core_type = #tpu.core_type<tc>, window_params = [{transform_indices = @transform_0, window_bounds = array<i64: 512, 64>}, {transform_indices = @transform_1, window_bounds = array<i64: 512, 64>}, {transform_indices = @transform_2, window_bounds = array<i64: 512, 64>}, {transform_indices = @transform_3, window_bounds = array<i64: 512, 64>}, {pipeline_mode = #tpu.pipeline_mode<synchronous>, transform_indices = @transform_4, window_bounds = array<i64: 4, 64, 8>}, {transform_indices = @transform_5, window_bounds = array<i64: 512, 32>}, {transform_indices = @transform_6, window_bounds = array<i64: 1, 2, 32>}]} {
    %c0 = arith.constant 0 : index
    %c0_0 = arith.constant 0 : index
    %0 = vector.load %arg1[%c0, %c0_0] : memref<512x64xbf16, #tpu.memory_space<vmem>>, vector<512x64xbf16>
    %c0_1 = arith.constant 0 : index
    %c0_2 = arith.constant 0 : index
    %c0_3 = arith.constant 0 : index
    %1 = vector.load %arg5[%c0_1, %c0_2, %c0_3] : memref<4x64x8xbf16, #tpu.memory_space<vmem>>, vector<1x64x8xbf16>
    %2 = vector.shape_cast %1 : vector<1x64x8xbf16> to vector<64x8xbf16>
    %cst = arith.constant dense<0.000000e+00> : vector<512x8xf32>
    %3 = tpu.matmul %0, %2, %cst {dimension_numbers = #tpu.dot_dimension_numbers<[1], [0], [0], [1], [0, 0, 1, 1], [], []>} : vector<512x64xbf16>, vector<64x8xbf16>, vector<512x8xf32> -> vector<512x8xf32>
    %c0_4 = arith.constant 0 : index
    %c0_5 = arith.constant 0 : index
    %4 = vector.load %arg2[%c0_4, %c0_5] : memref<512x64xbf16, #tpu.memory_space<vmem>>, vector<512x64xbf16>
    %c1 = arith.constant 1 : index
    %c0_6 = arith.constant 0 : index
    %c0_7 = arith.constant 0 : index
    %5 = vector.load %arg5[%c1, %c0_6, %c0_7] : memref<4x64x8xbf16, #tpu.memory_space<vmem>>, vector<1x64x8xbf16>
    %6 = vector.shape_cast %5 : vector<1x64x8xbf16> to vector<64x8xbf16>
    %cst_8 = arith.constant dense<0.000000e+00> : vector<512x8xf32>
    %7 = tpu.matmul %4, %6, %cst_8 {dimension_numbers = #tpu.dot_dimension_numbers<[1], [0], [0], [1], [0, 0, 1, 1], [], []>} : vector<512x64xbf16>, vector<64x8xbf16>, vector<512x8xf32> -> vector<512x8xf32>
    %c0_9 = arith.constant 0 : index
    %c0_10 = arith.constant 0 : index
    %8 = vector.load %arg3[%c0_9, %c0_10] : memref<512x64xbf16, #tpu.memory_space<vmem>>, vector<512x64xbf16>
    %c2 = arith.constant 2 : index
    %c0_11 = arith.constant 0 : index
    %c0_12 = arith.constant 0 : index
    %9 = vector.load %arg5[%c2, %c0_11, %c0_12] : memref<4x64x8xbf16, #tpu.memory_space<vmem>>, vector<1x64x8xbf16>
    %10 = vector.shape_cast %9 : vector<1x64x8xbf16> to vector<64x8xbf16>
    %cst_13 = arith.constant dense<0.000000e+00> : vector<512x8xf32>
    %11 = tpu.matmul %8, %10, %cst_13 {dimension_numbers = #tpu.dot_dimension_numbers<[1], [0], [0], [1], [0, 0, 1, 1], [], []>} : vector<512x64xbf16>, vector<64x8xbf16>, vector<512x8xf32> -> vector<512x8xf32>
    %c0_14 = arith.constant 0 : index
    %c0_15 = arith.constant 0 : index
    %12 = vector.load %arg4[%c0_14, %c0_15] : memref<512x64xbf16, #tpu.memory_space<vmem>>, vector<512x64xbf16>
    %c3 = arith.constant 3 : index
    %c0_16 = arith.constant 0 : index
    %c0_17 = arith.constant 0 : index
    %13 = vector.load %arg5[%c3, %c0_16, %c0_17] : memref<4x64x8xbf16, #tpu.memory_space<vmem>>, vector<1x64x8xbf16>
    %14 = vector.shape_cast %13 : vector<1x64x8xbf16> to vector<64x8xbf16>
    %cst_18 = arith.constant dense<0.000000e+00> : vector<512x8xf32>
    %15 = tpu.matmul %12, %14, %cst_18 {dimension_numbers = #tpu.dot_dimension_numbers<[1], [0], [0], [1], [0, 0, 1, 1], [], []>} : vector<512x64xbf16>, vector<64x8xbf16>, vector<512x8xf32> -> vector<512x8xf32>
    %16 = tpu.concatenate %3, %7, %11, %15 in 1 : vector<512x8xf32>, vector<512x8xf32>, vector<512x8xf32>, vector<512x8xf32> -> vector<512x32xf32>
    %17 = arith.truncf %16 : vector<512x32xf32> to vector<512x32xbf16>
    %c0_19 = arith.constant 0 : index
    %c0_20 = arith.constant 0 : index
    %18 = vector.load %arg6[%c0_19, %c0_20] : memref<512x32xbf16, #tpu.memory_space<vmem>>, vector<512x32xbf16>
    tpu.vector_store %arg6[%c0_19, %c0_20], %17 {strides = array<i32>} : memref<512x32xbf16, #tpu.memory_space<vmem>>, vector<512x32xbf16>,
    %cst_21 = arith.constant dense<0.000000e+00> : vector<32xf32>
    %19 = vector.multi_reduction <add>, %16, %cst_21 [0] : vector<512x32xf32> to vector<32xf32>
    %20 = vector.shape_cast %19 : vector<32xf32> to vector<1x32xf32>
    %21 = arith.mulf %16, %16 : vector<512x32xf32>
    %cst_22 = arith.constant dense<0.000000e+00> : vector<32xf32>
    %22 = vector.multi_reduction <add>, %21, %cst_22 [0] : vector<512x32xf32> to vector<32xf32>
    %23 = vector.shape_cast %22 : vector<32xf32> to vector<1x32xf32>
    %24 = tpu.concatenate %20, %23 in 0 : vector<1x32xf32>, vector<1x32xf32> -> vector<2x32xf32>
    %c0_23 = arith.constant 0 : index
    %c0_24 = arith.constant 0 : index
    %c0_25 = arith.constant 0 : index
    %25 = vector.load %arg7[%c0_23, %c0_24, %c0_25] : memref<1x2x32xf32, #tpu.memory_space<vmem>>, vector<1x2x32xf32>
    %26 = vector.shape_cast %25 : vector<1x2x32xf32> to vector<2x32xf32>
    %27 = vector.shape_cast %24 : vector<2x32xf32> to vector<1x2x32xf32>
    tpu.vector_store %arg7[%c0_23, %c0_24, %c0_25], %27 {strides = array<i32>} : memref<1x2x32xf32, #tpu.memory_space<vmem>>, vector<1x2x32xf32>,
    return
  }
  func.func @transform_0(%arg0: i32) -> (i32, i32) {
    %c0_i32 = arith.constant 0 : i32
    %c0_i32_0 = arith.constant 0 : i32
    return %arg0, %c0_i32 : i32, i32
  }
  func.func @transform_1(%arg0: i32) -> (i32, i32) {
    %c0_i32 = arith.constant 0 : i32
    %c0_i32_0 = arith.constant 0 : i32
    return %arg0, %c0_i32 : i32, i32
  }
  func.func @transform_2(%arg0: i32) -> (i32, i32) {
    %c0_i32 = arith.constant 0 : i32
    %c0_i32_0 = arith.constant 0 : i32
    return %arg0, %c0_i32 : i32, i32
  }
  func.func @transform_3(%arg0: i32) -> (i32, i32) {
    %c0_i32 = arith.constant 0 : i32
    %c0_i32_0 = arith.constant 0 : i32
    return %arg0, %c0_i32 : i32, i32
  }
  func.func @transform_4(%arg0: i32) -> (i32, i32, i32) {
    %c0_i32 = arith.constant 0 : i32
    %c0_i32_0 = arith.constant 0 : i32
    %c0_i32_1 = arith.constant 0 : i32
    %c0_i32_2 = arith.constant 0 : i32
    return %c0_i32, %c0_i32_0, %c0_i32_1 : i32, i32, i32
  }
  func.func @transform_5(%arg0: i32) -> (i32, i32) {
    %c0_i32 = arith.constant 0 : i32
    %c0_i32_0 = arith.constant 0 : i32
    return %arg0, %c0_i32 : i32, i32
  }
  func.func @transform_6(%arg0: i32) -> (i32, i32, i32) {
    %c0_i32 = arith.constant 0 : i32
    %c0_i32_0 = arith.constant 0 : i32
    %c0_i32_1 = arith.constant 0 : i32
    return %arg0, %c0_i32, %c0_i32_0 : i32, i32, i32
  }
}

module attributes {stable_mosaic.version = 11 : i64} {
  func.func @_bn_leaky_kernel(%arg0: i32, %arg1: memref<512x32xbf16, #tpu.memory_space<vmem>>, %arg2: memref<1x32xf32, #tpu.memory_space<vmem>>, %arg3: memref<1x32xf32, #tpu.memory_space<vmem>>, %arg4: memref<512x32xbf16, #tpu.memory_space<vmem>>) attributes {dimension_semantics = [#tpu.dimension_semantics<parallel>], iteration_bounds = array<i64: 1>, scalar_prefetch = 0 : i64, scratch_operands = 0 : i64, tpu.core_type = #tpu.core_type<tc>, window_params = [{transform_indices = @transform_0, window_bounds = array<i64: 512, 32>}, {pipeline_mode = #tpu.pipeline_mode<synchronous>, transform_indices = @transform_1, window_bounds = array<i64: 1, 32>}, {pipeline_mode = #tpu.pipeline_mode<synchronous>, transform_indices = @transform_2, window_bounds = array<i64: 1, 32>}, {transform_indices = @transform_3, window_bounds = array<i64: 512, 32>}]} {
    %c0 = arith.constant 0 : index
    %c0_0 = arith.constant 0 : index
    %0 = vector.load %arg1[%c0, %c0_0] : memref<512x32xbf16, #tpu.memory_space<vmem>>, vector<512x32xbf16>
    %1 = arith.extf %0 : vector<512x32xbf16> to vector<512x32xf32>
    %c0_1 = arith.constant 0 : index
    %c0_2 = arith.constant 0 : index
    %2 = vector.load %arg2[%c0_1, %c0_2] : memref<1x32xf32, #tpu.memory_space<vmem>>, vector<1x32xf32>
    %3 = vector.broadcast %2 : vector<1x32xf32> to vector<512x32xf32>
    %4 = arith.mulf %1, %3 : vector<512x32xf32>
    %c0_3 = arith.constant 0 : index
    %c0_4 = arith.constant 0 : index
    %5 = vector.load %arg3[%c0_3, %c0_4] : memref<1x32xf32, #tpu.memory_space<vmem>>, vector<1x32xf32>
    %6 = vector.broadcast %5 : vector<1x32xf32> to vector<512x32xf32>
    %7 = arith.addf %4, %6 : vector<512x32xf32>
    %cst = arith.constant 0.000000e+00 : f32
    %8 = vector.broadcast %cst : f32 to vector<512x32xf32>
    %9 = arith.cmpf ogt, %7, %8 : vector<512x32xf32>
    %cst_5 = arith.constant 2.000000e-01 : f32
    %10 = vector.broadcast %cst_5 : f32 to vector<512x32xf32>
    %11 = arith.mulf %10, %7 : vector<512x32xf32>
    %12 = arith.select %9, %7, %11 : vector<512x32xi1>, vector<512x32xf32>
    %13 = arith.truncf %12 : vector<512x32xf32> to vector<512x32xbf16>
    %c0_6 = arith.constant 0 : index
    %c0_7 = arith.constant 0 : index
    %14 = vector.load %arg4[%c0_6, %c0_7] : memref<512x32xbf16, #tpu.memory_space<vmem>>, vector<512x32xbf16>
    tpu.vector_store %arg4[%c0_6, %c0_7], %13 {strides = array<i32>} : memref<512x32xbf16, #tpu.memory_space<vmem>>, vector<512x32xbf16>,
    return
  }
  func.func @transform_0(%arg0: i32) -> (i32, i32) {
    %c0_i32 = arith.constant 0 : i32
    %c0_i32_0 = arith.constant 0 : i32
    return %arg0, %c0_i32 : i32, i32
  }
  func.func @transform_1(%arg0: i32) -> (i32, i32) {
    %c0_i32 = arith.constant 0 : i32
    %c0_i32_0 = arith.constant 0 : i32
    %c0_i32_1 = arith.constant 0 : i32
    return %c0_i32, %c0_i32_0 : i32, i32
  }
  func.func @transform_2(%arg0: i32) -> (i32, i32) {
    %c0_i32 = arith.constant 0 : i32
    %c0_i32_0 = arith.constant 0 : i32
    %c0_i32_1 = arith.constant 0 : i32
    return %c0_i32, %c0_i32_0 : i32, i32
  }
  func.func @transform_3(%arg0: i32) -> (i32, i32) {
    %c0_i32 = arith.constant 0 : i32
    %c0_i32_0 = arith.constant 0 : i32
    return %arg0, %c0_i32 : i32, i32
  }
}

module attributes {stable_mosaic.version = 11 : i64} {
  func.func @_deconv_parity_tanh_kernel(%arg0: i32, %arg1: memref<512x32xbf16, #tpu.memory_space<vmem>>, %arg2: memref<512x32xbf16, #tpu.memory_space<vmem>>, %arg3: memref<512x32xbf16, #tpu.memory_space<vmem>>, %arg4: memref<512x32xbf16, #tpu.memory_space<vmem>>, %arg5: memref<4x32x3xbf16, #tpu.memory_space<vmem>>, %arg6: memref<512x12xf32, #tpu.memory_space<vmem>>) attributes {dimension_semantics = [#tpu.dimension_semantics<parallel>], iteration_bounds = array<i64: 4>, scalar_prefetch = 0 : i64, scratch_operands = 0 : i64, tpu.core_type = #tpu.core_type<tc>, window_params = [{transform_indices = @transform_0, window_bounds = array<i64: 512, 32>}, {transform_indices = @transform_1, window_bounds = array<i64: 512, 32>}, {transform_indices = @transform_2, window_bounds = array<i64: 512, 32>}, {transform_indices = @transform_3, window_bounds = array<i64: 512, 32>}, {pipeline_mode = #tpu.pipeline_mode<synchronous>, transform_indices = @transform_4, window_bounds = array<i64: 4, 32, 3>}, {transform_indices = @transform_5, window_bounds = array<i64: 512, 12>}]} {
    %c0 = arith.constant 0 : index
    %c0_0 = arith.constant 0 : index
    %0 = vector.load %arg1[%c0, %c0_0] : memref<512x32xbf16, #tpu.memory_space<vmem>>, vector<512x32xbf16>
    %c0_1 = arith.constant 0 : index
    %c0_2 = arith.constant 0 : index
    %c0_3 = arith.constant 0 : index
    %1 = vector.load %arg5[%c0_1, %c0_2, %c0_3] : memref<4x32x3xbf16, #tpu.memory_space<vmem>>, vector<1x32x3xbf16>
    %2 = vector.shape_cast %1 : vector<1x32x3xbf16> to vector<32x3xbf16>
    %cst = arith.constant dense<0.000000e+00> : vector<512x3xf32>
    %3 = tpu.matmul %0, %2, %cst {dimension_numbers = #tpu.dot_dimension_numbers<[1], [0], [0], [1], [0, 0, 1, 1], [], []>} : vector<512x32xbf16>, vector<32x3xbf16>, vector<512x3xf32> -> vector<512x3xf32>
    %c0_4 = arith.constant 0 : index
    %c0_5 = arith.constant 0 : index
    %4 = vector.load %arg2[%c0_4, %c0_5] : memref<512x32xbf16, #tpu.memory_space<vmem>>, vector<512x32xbf16>
    %c1 = arith.constant 1 : index
    %c0_6 = arith.constant 0 : index
    %c0_7 = arith.constant 0 : index
    %5 = vector.load %arg5[%c1, %c0_6, %c0_7] : memref<4x32x3xbf16, #tpu.memory_space<vmem>>, vector<1x32x3xbf16>
    %6 = vector.shape_cast %5 : vector<1x32x3xbf16> to vector<32x3xbf16>
    %cst_8 = arith.constant dense<0.000000e+00> : vector<512x3xf32>
    %7 = tpu.matmul %4, %6, %cst_8 {dimension_numbers = #tpu.dot_dimension_numbers<[1], [0], [0], [1], [0, 0, 1, 1], [], []>} : vector<512x32xbf16>, vector<32x3xbf16>, vector<512x3xf32> -> vector<512x3xf32>
    %c0_9 = arith.constant 0 : index
    %c0_10 = arith.constant 0 : index
    %8 = vector.load %arg3[%c0_9, %c0_10] : memref<512x32xbf16, #tpu.memory_space<vmem>>, vector<512x32xbf16>
    %c2 = arith.constant 2 : index
    %c0_11 = arith.constant 0 : index
    %c0_12 = arith.constant 0 : index
    %9 = vector.load %arg5[%c2, %c0_11, %c0_12] : memref<4x32x3xbf16, #tpu.memory_space<vmem>>, vector<1x32x3xbf16>
    %10 = vector.shape_cast %9 : vector<1x32x3xbf16> to vector<32x3xbf16>
    %cst_13 = arith.constant dense<0.000000e+00> : vector<512x3xf32>
    %11 = tpu.matmul %8, %10, %cst_13 {dimension_numbers = #tpu.dot_dimension_numbers<[1], [0], [0], [1], [0, 0, 1, 1], [], []>} : vector<512x32xbf16>, vector<32x3xbf16>, vector<512x3xf32> -> vector<512x3xf32>
    %c0_14 = arith.constant 0 : index
    %c0_15 = arith.constant 0 : index
    %12 = vector.load %arg4[%c0_14, %c0_15] : memref<512x32xbf16, #tpu.memory_space<vmem>>, vector<512x32xbf16>
    %c3 = arith.constant 3 : index
    %c0_16 = arith.constant 0 : index
    %c0_17 = arith.constant 0 : index
    %13 = vector.load %arg5[%c3, %c0_16, %c0_17] : memref<4x32x3xbf16, #tpu.memory_space<vmem>>, vector<1x32x3xbf16>
    %14 = vector.shape_cast %13 : vector<1x32x3xbf16> to vector<32x3xbf16>
    %cst_18 = arith.constant dense<0.000000e+00> : vector<512x3xf32>
    %15 = tpu.matmul %12, %14, %cst_18 {dimension_numbers = #tpu.dot_dimension_numbers<[1], [0], [0], [1], [0, 0, 1, 1], [], []>} : vector<512x32xbf16>, vector<32x3xbf16>, vector<512x3xf32> -> vector<512x3xf32>
    %16 = tpu.concatenate %3, %7, %11, %15 in 1 : vector<512x3xf32>, vector<512x3xf32>, vector<512x3xf32>, vector<512x3xf32> -> vector<512x12xf32>
    %17 = math.tanh %16 : vector<512x12xf32>
    %c0_19 = arith.constant 0 : index
    %c0_20 = arith.constant 0 : index
    %18 = vector.load %arg6[%c0_19, %c0_20] : memref<512x12xf32, #tpu.memory_space<vmem>>, vector<512x12xf32>
    tpu.vector_store %arg6[%c0_19, %c0_20], %17 {strides = array<i32>} : memref<512x12xf32, #tpu.memory_space<vmem>>, vector<512x12xf32>,
    return
  }
  func.func @transform_0(%arg0: i32) -> (i32, i32) {
    %c0_i32 = arith.constant 0 : i32
    %c0_i32_0 = arith.constant 0 : i32
    return %arg0, %c0_i32 : i32, i32
  }
  func.func @transform_1(%arg0: i32) -> (i32, i32) {
    %c0_i32 = arith.constant 0 : i32
    %c0_i32_0 = arith.constant 0 : i32
    return %arg0, %c0_i32 : i32, i32
  }
  func.func @transform_2(%arg0: i32) -> (i32, i32) {
    %c0_i32 = arith.constant 0 : i32
    %c0_i32_0 = arith.constant 0 : i32
    return %arg0, %c0_i32 : i32, i32
  }
  func.func @transform_3(%arg0: i32) -> (i32, i32) {
    %c0_i32 = arith.constant 0 : i32
    %c0_i32_0 = arith.constant 0 : i32
    return %arg0, %c0_i32 : i32, i32
  }
  func.func @transform_4(%arg0: i32) -> (i32, i32, i32) {
    %c0_i32 = arith.constant 0 : i32
    %c0_i32_0 = arith.constant 0 : i32
    %c0_i32_1 = arith.constant 0 : i32
    %c0_i32_2 = arith.constant 0 : i32
    return %c0_i32, %c0_i32_0, %c0_i32_1 : i32, i32, i32
  }
  func.func @transform_5(%arg0: i32) -> (i32, i32) {
    %c0_i32 = arith.constant 0 : i32
    %c0_i32_0 = arith.constant 0 : i32
    return %arg0, %c0_i32 : i32, i32
  }
}

</mosaic_0001>

<llo_original>
// kernel: squeeze.8
$region0: #{squeeze.8}
  %s0 = inlined_call_operand.vmem [shape: f32[1024], index: 0, kind: input, shape index: {}]
  %s1 = inlined_call_operand.vmem [shape: f32[16,64], index: 1, kind: output, shape index: {}]
  %v2 = vld [vmem:[%s0] sm:$0xff]
  %vm3 = vcmask 523264
  %4 = vst.msk [vmem:[%s1] ss:$2 sm:$0xff] %vm3, %v2
  %v5 = vld [vmem:[%s0] sm:$0xff]
  %6 = vrot.lane.b32.xlu0 %v5, 64
  %v7 = vpop.permute.xlu0 %6
  %vm8 = vcmask 523264
  %s9 = scalar_lea.vmem %s1, 1
  %10 = vst.msk [vmem:[%s9] ss:$2 sm:$0xff] %vm8, %v7

// kernel: tile.43
$region0: #{tile.43}
  #allocation0 [shape = 's32[1]{0}', space=sflag, size = 0x4, scoped, tag = 'scoped memory for tile.43']
  %s0 = inlined_call_operand.vmem [shape: f32[64], index: 0, kind: input, shape index: {}]
  %s1 = inlined_call_operand.vmem [shape: f32[16,64], index: 1, kind: output, shape index: {}]
  // Predicated region
  $region2: #{tile.43} parent=0 // pred_check
    _
  $region3: #{tile.43} parent=0 // pred_check_branch
    %3 = sbr.rel (0) target = $region5
  $region4: #{tile.43} parent=0 // pred_region
    _
  $region5: #{tile.43} parent=0 // pred_fallthru
    _
  %v4 = vld [vmem:[%s0] ss:$0 sm:$0xff]
  %5 = vst [vmem:[%s1] sm:$0xff] %v4
  %s6 = scalar_lea.vmem %s1, 8
  %7 = vst [vmem:[%s6] sm:$0xff] %v4

// kernel: tile.44
$region0: #{tile.44}
  %s0 = inlined_call_operand.vmem [shape: f32[16,64], index: 0, kind: input, shape index: {}]
  %s1 = inlined_call_operand.vmem [shape: f32[1,1024], index: 1, kind: output, shape index: {}]
  $region1: #{tile.44} parent=0
    #allocation0 [shape = 'u8[32768]{0}', space=vmem, size = 0x8000, scoped, tag = 'scoped mem for output reshape']
    %v2 = vld [vmem:[%s0] ss:$2 sm:$0xff]
    %vm3 = vcmask 523264
    %4 = vst.msk [vmem:[#allocation0] ss:$8 sm:$0xf] %vm3, %v2
    %5 = vst.msk [vmem:[#allocation0] ss:$8 sm:$0xf0] %vm3, %v2
    %s6 = scalar_lea.vmem %s0, 1
    %v7 = vld [vmem:[%s6] ss:$2 sm:$0xff]
    %8 = vrot.lane.b32.xlu0 %v7, 64
    %v9 = vpop.permute.xlu0 %8
    %vm10 = vcmask 1048064
    %11 = vst.msk [vmem:[#allocation0] ss:$8 sm:$0xf] %vm10, %v9
    %12 = vst.msk [vmem:[#allocation0] ss:$8 sm:$0xf0] %vm10, %v9
    %s14 = sshllo.u32 0, 1
    %v16 = vld [vmem:[#allocation0] sm:%s14]
    %s17 = sshllo.u32 0, 1
    %18 = vst [vmem:[%s1] sm:%s17] %v16
    %s19 = scalar_lea.vmem [#allocation0], 8
    %v20 = vld [vmem:[%s19] sm:%s14]
    %s21 = sshllo.u32 0, 1
    %s22 = scalar_lea.vmem %s1, 1
    %23 = vst [vmem:[%s22] sm:%s21] %v20
    %s24 = scalar_lea.vmem [#allocation0], 16
    %v25 = vld [vmem:[%s24] sm:%s14]
    %s26 = sshllo.u32 0, 1
    %s27 = smul.addr 1, 2
    %s28 = scalar_lea.vmem %s1, %s27
    %29 = vst [vmem:[%s28] sm:%s26] %v25
    %s30 = scalar_lea.vmem [#allocation0], 24
    %v31 = vld [vmem:[%s30] sm:%s14]
    %s32 = sshllo.u32 0, 1
    %s33 = smul.addr 1, 3
    %s34 = scalar_lea.vmem %s1, %s33
    %35 = vst [vmem:[%s34] sm:%s32] %v31
    %s36 = scalar_lea.vmem [#allocation0], 32
    %v37 = vld [vmem:[%s36] sm:%s14]
    %s38 = sshllo.u32 0, 1
    %s39 = smul.addr 1, 4
    %s40 = scalar_lea.vmem %s1, %s39
    %41 = vst [vmem:[%s40] sm:%s38] %v37
    %s42 = scalar_lea.vmem [#allocation0], 40
    %v43 = vld [vmem:[%s42] sm:%s14]
    %s44 = sshllo.u32 0, 1
    %s45 = smul.addr 1, 5
    %s46 = scalar_lea.vmem %s1, %s45
    %47 = vst [vmem:[%s46] sm:%s44] %v43
    %s48 = scalar_lea.vmem [#allocation0], 48
    %v49 = vld [vmem:[%s48] sm:%s14]
    %s50 = sshllo.u32 0, 1
    %s51 = smul.addr 1, 6
    %s52 = scalar_lea.vmem %s1, %s51
    %53 = vst [vmem:[%s52] sm:%s50] %v49
    %s54 = scalar_lea.vmem [#allocation0], 56
    %v55 = vld [vmem:[%s54] sm:%s14]
    %s56 = sshllo.u32 0, 1
    %s57 = smul.addr 1, 7
    %s58 = scalar_lea.vmem %s1, %s57
    %59 = vst [vmem:[%s58] sm:%s56] %v55

// kernel: generator_forward.10
$region0: #{generator_forward.10}
  #allocation0 [shape = 'u32[]', space=smem, size = 0x4, offset = 0x4, fixed_abs, tag = 'smem constant byte address 0x4 - core index']
  #allocation1 [shape = 'u32[144,128]{1,0:T(1,128)}', space=vmem, size = 0x12000, scoped, tag = 'internal scratch']
  %s0 = inlined_call_operand.vmem [shape: bf16[2,1024], index: 0, kind: input, shape index: {}]
  %s1 = inlined_call_operand.vmem [shape: f32[1,1024], index: 1, kind: input, shape index: {}]
  %s2 = inlined_call_operand.vmem [shape: f32[1,1024], index: 2, kind: input, shape index: {}]
  %s3 = inlined_call_operand.vmem [shape: bf16[2,1024], index: 3, kind: output, shape index: {}]
  %s4 = sld [smem:[#allocation0]]
  $region22: #{generator_forward.10} parent=0
    _
  %s6 = ssub.s32 1, %s4
  %s7 = scalar_select 0, %s6, %s4
  // Predicated region
  $region2: #{generator_forward.10} parent=0 // pred_check
    _
  $region3: #{generator_forward.10} parent=0 // pred_check_branch
    %9 = sbr.rel (0) target = $region5
  $region4: #{generator_forward.10} parent=0 // pred_region
    _
  $region5: #{generator_forward.10} parent=0 // pred_fallthru
    _
  // Predicated region
  $region6: #{generator_forward.10} parent=0 // pred_check
    _
  $region7: #{generator_forward.10} parent=0 // pred_check_branch
    %11 = sbr.rel (0) target = $region9
  $region8: #{generator_forward.10} parent=0 // pred_region
    _
  $region9: #{generator_forward.10} parent=0 // pred_fallthru
    _
  // Predicated region
  $region10: #{generator_forward.10} parent=0 // pred_check
    _
  $region11: #{generator_forward.10} parent=0 // pred_check_branch
    %13 = sbr.rel (0) target = $region13
  $region12: #{generator_forward.10} parent=0 // pred_region
    _
  $region13: #{generator_forward.10} parent=0 // pred_fallthru
    _
  %v14 = vld [vmem:[%s0] sm:$0xff]
  %v15 = vunpack.c.l.bf16 %v14
  %v16 = vunpack.c.h.bf16 %v14
  %v17 = vld [vmem:[%s1] sm:$0xff]
  %v19 = vlaneseq
  %v20 = vshrl.u32 %v19, 7
  %v21 = vsub.s32 0, %v20
  %v22 = vrot.slane %v17, %v21
  %v23 = vlaneseq
  %v24 = vshrl.u32 %v23, 7
  %v25 = vsub.s32 1, %v24
  %v26 = vrot.slane %v17, %v25
  %v27 = vlaneseq
  %v28 = vshrl.u32 %v27, 7
  %v29 = vsub.s32 2, %v28
  %v30 = vrot.slane %v17, %v29
  %v31 = vlaneseq
  %v32 = vshrl.u32 %v31, 7
  %v33 = vsub.s32 3, %v32
  %v34 = vrot.slane %v17, %v33
  %v35 = vlaneseq
  %v36 = vshrl.u32 %v35, 7
  %v37 = vsub.s32 4, %v36
  %v38 = vrot.slane %v17, %v37
  %v39 = vlaneseq
  %v40 = vshrl.u32 %v39, 7
  %v41 = vsub.s32 5, %v40
  %v42 = vrot.slane %v17, %v41
  %v43 = vlaneseq
  %v44 = vshrl.u32 %v43, 7
  %v45 = vsub.s32 6, %v44
  %v46 = vrot.slane %v17, %v45
  %v47 = vlaneseq
  %v48 = vshrl.u32 %v47, 7
  %v49 = vsub.s32 7, %v48
  %v50 = vrot.slane %v17, %v49
  %v51 = vcombine.low %v22, %v26
  %v52 = vcombine.low %v30, %v34
  %v54 = vunpack.c.l.s4 1983009808
  %v55 = vunpack.c.0.s8 %v54
  %v56 = vlaneseq
  %v57 = vshrl.u32 %v56, 7
  %v58 = vsub.s32 %v55, %v57
  %v59 = vrot.slane %v51, %v58
  %v61 = vunpack.c.l.s4 1983009808
  %v62 = vunpack.c.0.s8 %v61
  %v63 = vlaneseq
  %v64 = vshrl.u32 %v63, 7
  %v65 = vsub.s32 %v62, %v64
  %v66 = vrot.slane %v52, %v65
  %v67 = vcombine.low %v59, %v66
  %v68 = vcombine.low %v38, %v42
  %v69 = vcombine.low %v46, %v50
  %v71 = vunpack.c.l.s4 1983009808
  %v72 = vunpack.c.0.s8 %v71
  %v73 = vlaneseq
  %v74 = vshrl.u32 %v73, 7
  %v75 = vsub.s32 %v72, %v74
  %v76 = vrot.slane %v68, %v75
  %v78 = vunpack.c.l.s4 1983009808
  %v79 = vunpack.c.0.s8 %v78
  %v80 = vlaneseq
  %v81 = vshrl.u32 %v80, 7
  %v82 = vsub.s32 %v79, %v81
  %v83 = vrot.slane %v69, %v82
  %v84 = vcombine.low %v76, %v83
  %v87 = vmul.f32 %v15, %v67
  %v88 = vmul.f32 %v16, %v84
  %v89 = vld [vmem:[%s2] sm:$0xff]
  %v91 = vlaneseq
  %v92 = vshrl.u32 %v91, 7
  %v93 = vsub.s32 0, %v92
  %v94 = vrot.slane %v89, %v93
  %v95 = vlaneseq
  %v96 = vshrl.u32 %v95, 7
  %v97 = vsub.s32 1, %v96
  %v98 = vrot.slane %v89, %v97
  %v99 = vlaneseq
  %v100 = vshrl.u32 %v99, 7
  %v101 = vsub.s32 2, %v100
  %v102 = vrot.slane %v89, %v101
  %v103 = vlaneseq
  %v104 = vshrl.u32 %v103, 7
  %v105 = vsub.s32 3, %v104
  %v106 = vrot.slane %v89, %v105
  %v107 = vlaneseq
  %v108 = vshrl.u32 %v107, 7
  %v109 = vsub.s32 4, %v108
  %v110 = vrot.slane %v89, %v109
  %v111 = vlaneseq
  %v112 = vshrl.u32 %v111, 7
  %v113 = vsub.s32 5, %v112
  %v114 = vrot.slane %v89, %v113
  %v115 = vlaneseq
  %v116 = vshrl.u32 %v115, 7
  %v117 = vsub.s32 6, %v116
  %v118 = vrot.slane %v89, %v117
  %v119 = vlaneseq
  %v120 = vshrl.u32 %v119, 7
  %v121 = vsub.s32 7, %v120
  %v122 = vrot.slane %v89, %v121
  %v123 = vcombine.low %v94, %v98
  %v124 = vcombine.low %v102, %v106
  %v126 = vunpack.c.l.s4 1983009808
  %v127 = vunpack.c.0.s8 %v126
  %v128 = vlaneseq
  %v129 = vshrl.u32 %v128, 7
  %v130 = vsub.s32 %v127, %v129
  %v131 = vrot.slane %v123, %v130
  %v133 = vunpack.c.l.s4 1983009808
  %v134 = vunpack.c.0.s8 %v133
  %v135 = vlaneseq
  %v136 = vshrl.u32 %v135, 7
  %v137 = vsub.s32 %v134, %v136
  %v138 = vrot.slane %v124, %v137
  %v139 = vcombine.low %v131, %v138
  %v140 = vcombine.low %v110, %v114
  %v141 = vcombine.low %v118, %v122
  %v143 = vunpack.c.l.s4 1983009808
  %v144 = vunpack.c.0.s8 %v143
  %v145 = vlaneseq
  %v146 = vshrl.u32 %v145, 7
  %v147 = vsub.s32 %v144, %v146
  %v148 = vrot.slane %v140, %v147
  %v150 = vunpack.c.l.s4 1983009808
  %v151 = vunpack.c.0.s8 %v150
  %v152 = vlaneseq
  %v153 = vshrl.u32 %v152, 7
  %v154 = vsub.s32 %v151, %v153
  %v155 = vrot.slane %v141, %v154
  %v156 = vcombine.low %v148, %v155
  %v159 = vadd.f32 %v87, %v139
  %v160 = vadd.f32 %v88, %v156
  %vm161 = vcmp.gt.f32.partialorder %v159, 0.0
  %vm162 = vcmp.gt.f32.partialorder %v160, 0.0
  %v163 = vmul.f32 %v159, 0.2
  %v164 = vmul.f32 %v160, 0.2
  %v165 = vsel %vm161, %v159, %v163
  %v166 = vsel %vm162, %v160, %v164
  %v169 = vcombine.high %v165, %v165
  %v171 = vunpack.c.l.s4 1983009808
  %v172 = vunpack.c.0.s8 %v171
  %v173 = vlaneseq
  %v174 = vshrl.u32 %v173, 7
  %v175 = vsub.s32 %v172, %v174
  %v176 = vrot.slane %v165, %v175
  %v178 = vunpack.c.l.s4 1983009808
  %v179 = vunpack.c.0.s8 %v178
  %v180 = vlaneseq
  %v181 = vshrl.u32 %v180, 7
  %v182 = vsub.s32 %v179, %v181
  %v183 = vrot.slane %v169, %v182
  %v184 = vcombine.high %v176, %v176
  %v185 = vcombine.high %v183, %v183
  %v186 = vcombine.high %v166, %v166
  %v188 = vunpack.c.l.s4 1983009808
  %v189 = vunpack.c.0.s8 %v188
  %v190 = vlaneseq
  %v191 = vshrl.u32 %v190, 7
  %v192 = vsub.s32 %v189, %v191
  %v193 = vrot.slane %v166, %v192
  %v195 = vunpack.c.l.s4 1983009808
  %v196 = vunpack.c.0.s8 %v195
  %v197 = vlaneseq
  %v198 = vshrl.u32 %v197, 7
  %v199 = vsub.s32 %v196, %v198
  %v200 = vrot.slane %v186, %v199
  %v201 = vcombine.high %v193, %v193
  %v202 = vcombine.high %v200, %v200
  %v211 = vpack.c.bf16 %v176, %v176
  %v212 = vpack.c.bf16 %v184, %v184
  %v213 = vpack.c.bf16 %v183, %v183
  %v214 = vpack.c.bf16 %v185, %v185
  %v215 = vpack.c.bf16 %v193, %v193
  %v216 = vpack.c.bf16 %v201, %v201
  %v217 = vpack.c.bf16 %v200, %v200
  %v218 = vpack.c.bf16 %v202, %v202
  %v227 = vcombine.low %v211, %v212
  %v228 = vcombine.low %v213, %v214
  %v229 = vcombine.low %v215, %v216
  %v230 = vcombine.low %v217, %v218
  %v232 = vunpack.c.l.s4 1966171168
  %v233 = vunpack.c.0.s8 %v232
  %v234 = vlaneseq
  %v235 = vshrl.u32 %v234, 7
  %v236 = vsub.s32 %v233, %v235
  %v237 = vrot.slane %v227, %v236
  %v239 = vunpack.c.l.s4 1966171168
  %v240 = vunpack.c.0.s8 %v239
  %v241 = vlaneseq
  %v242 = vshrl.u32 %v241, 7
  %v243 = vsub.s32 %v240, %v242
  %v244 = vrot.slane %v228, %v243
  %v246 = vunpack.c.l.s4 1966171168
  %v247 = vunpack.c.0.s8 %v246
  %v248 = vlaneseq
  %v249 = vshrl.u32 %v248, 7
  %v250 = vsub.s32 %v247, %v249
  %v251 = vrot.slane %v229, %v250
  %v253 = vunpack.c.l.s4 1966171168
  %v254 = vunpack.c.0.s8 %v253
  %v255 = vlaneseq
  %v256 = vshrl.u32 %v255, 7
  %v257 = vsub.s32 %v254, %v256
  %v258 = vrot.slane %v230, %v257
  %v259 = vcombine.low %v237, %v244
  %v260 = vcombine.low %v251, %v258
  %v262 = vunpack.c.l.s4 1966171168
  %v263 = vunpack.c.0.s8 %v262
  %v264 = vlaneseq
  %v265 = vshrl.u32 %v264, 7
  %v266 = vsub.s32 %v263, %v265
  %v267 = vrot.slane %v259, %v266
  %v269 = vunpack.c.l.s4 1966171168
  %v270 = vunpack.c.0.s8 %v269
  %v271 = vlaneseq
  %v272 = vshrl.u32 %v271, 7
  %v273 = vsub.s32 %v270, %v272
  %v274 = vrot.slane %v260, %v273
  %v275 = vcombine.low %v267, %v274
  %277 = vst [vmem:[%s3] sm:$0xff] %v275
  // Predicated region
  $region14: #{generator_forward.10} parent=0 // pred_check
    _
  $region15: #{generator_forward.10} parent=0 // pred_check_branch
    %279 = sbr.rel (0) target = $region17
  $region16: #{generator_forward.10} parent=0 // pred_region
    _
  $region17: #{generator_forward.10} parent=0 // pred_fallthru
    _
  // Predicated region
  $region18: #{generator_forward.10} parent=0 // pred_check
    _
  $region19: #{generator_forward.10} parent=0 // pred_check_branch
    %281 = sbr.rel (0) target = $region21
  $region20: #{generator_forward.10} parent=0 // pred_region
    _
  $region21: #{generator_forward.10} parent=0 // pred_fallthru
    _

// kernel: generator_forward.9
$region0: #{generator_forward.9}
  #allocation0 [shape = 'u32[]', space=smem, size = 0x4, offset = 0x4, fixed_abs, tag = 'smem constant byte address 0x4 - core index']
  #allocation1 [shape = 'u32[144,128]{1,0:T(1,128)}', space=vmem, size = 0x12000, scoped, tag = 'internal scratch']
  %s0 = inlined_call_operand.vmem [shape: bf16[2,16], index: 0, kind: input, shape index: {}]
  %s1 = inlined_call_operand.hbm [shape: bf16[16,1024], index: 1, kind: input, shape index: {}]
  %s2 = inlined_call_operand.vmem [shape: bf16[2,1024], index: 2, kind: output, shape index: {0}]
  %s3 = inlined_call_operand.vmem [shape: f32[2,1024], index: 3, kind: output, shape index: {1}]
  %4 = xla_tuple %s2, %s3
  %s5 = sld [smem:[#allocation0]]
  $region30: #{generator_forward.9} parent=0
    _
  %s7 = ssub.s32 1, %s5
  %s8 = scalar_select 0, %s7, %s5
  $region1: #{generator_forward.9} parent=0
    #allocation2 [shape = 'u8[32768]{0}', space=vmem, size = 0x8000, scoped, tag = 'input window, operand 1, single buffered']
    #allocation3 [shape = 's32[1]{0}', space=sflag, size = 0x4, scoped, tag = 'scoped memory for generator_forward.9']
    %9 = vsyncpa [#allocation3], 0
    // Predicated region
    $region2: #{generator_forward.9} parent=1 // pred_check
      _
    $region3: #{generator_forward.9} parent=1 // pred_check_branch
      %11 = sbr.rel (0) target = $region5
    $region4: #{generator_forward.9} parent=1 // pred_region
      _
    $region5: #{generator_forward.9} parent=1 // pred_fallthru
      _
    // Predicated region
    $region6: #{generator_forward.9} parent=1 // pred_check
      _
    $region7: #{generator_forward.9} parent=1 // pred_check_branch
      %13 = sbr.rel (0) target = $region9
    $region8: #{generator_forward.9} parent=1 // pred_region
      %s15 = ssub.s32 1024, 1024
      %16 = vsyncadd [#allocation3], %s15
      %s17 = sshll.u32 [#allocation2], 4
      %s18 = int_to_ptr.vmem [resolvable:$true] %s17
      %23 = dma.hbm_to_vmem [thread:$0]  %s1, 1024, %s18, [#allocation3], 512, 512, 32
    $region9: #{generator_forward.9} parent=1 // pred_fallthru
      _
    // Predicated region
    $region10: #{generator_forward.9} parent=1 // pred_check
      _
    $region11: #{generator_forward.9} parent=1 // pred_check_branch
      %25 = sbr.rel (0) target = $region13
    $region12: #{generator_forward.9} parent=1 // pred_region
      %26 = dma.done [#allocation3], 1024
    $region13: #{generator_forward.9} parent=1 // pred_fallthru
      _
    %v28 = vld [vmem:[%s0] sm:$0x1]
    %v29 = vld [vmem:[#allocation2] sm:$0xff]
    %v30 = vld [vmem:[#allocation2 + $0x8] sm:$0xff]
    %v31 = vld [vmem:[#allocation2 + $0x10] sm:$0xff]
    %v32 = vld [vmem:[#allocation2 + $0x18] sm:$0xff]
    %v33 = vld [vmem:[#allocation2 + $0x20] sm:$0xff]
    %v34 = vld [vmem:[#allocation2 + $0x28] sm:$0xff]
    %v35 = vld [vmem:[#allocation2 + $0x30] sm:$0xff]
    %v36 = vld [vmem:[#allocation2 + $0x38] sm:$0xff]
    %v45 = vunpack.c.l.b16 %v29
    %v46 = vunpack.c.h.b16 %v29
    %v47 = vunpack.c.l.b16 %v30
    %v48 = vunpack.c.h.b16 %v30
    %v49 = vunpack.c.l.b16 %v31
    %v50 = vunpack.c.h.b16 %v31
    %v51 = vunpack.c.l.b16 %v32
    %v52 = vunpack.c.h.b16 %v32
    %v53 = vunpack.c.l.b16 %v33
    %v54 = vunpack.c.h.b16 %v33
    %v55 = vunpack.c.l.b16 %v34
    %v56 = vunpack.c.h.b16 %v34
    %v57 = vunpack.c.l.b16 %v35
    %v58 = vunpack.c.h.b16 %v35
    %v59 = vunpack.c.l.b16 %v36
    %v60 = vunpack.c.h.b16 %v36
    %v61 = vpack.c.b16 %v53, %v45
    %v62 = vpack.c.b16 %v54, %v46
    %v63 = vpack.c.b16 %v55, %v47
    %v64 = vpack.c.b16 %v56, %v48
    %v65 = vpack.c.b16 %v57, %v49
    %v66 = vpack.c.b16 %v58, %v50
    %v67 = vpack.c.b16 %v59, %v51
    %v68 = vpack.c.b16 %v60, %v52
    %vm77 = vcmask 130048
    %v79 = vsel %vm77, %v28, 0
    %81 = vmatprep.subr.bf16.mxu0 %v62
    %82 = vmatpush1.bf16.msra.mxu0 %v61
    %83 = vmatprep.subr.bf16.mxu0 0
    %84 = vmatpush1.bf16.msra.mxu0 0
    %85 = vmatprep.subr.bf16.mxu0 0
    %86 = vmatpush1.bf16.msra.mxu0 0
    %87 = vmatprep.subr.bf16.mxu0 0
    %88 = vmatpush1.bf16.msra.mxu0 0
    %89 = vmatprep.subr.bf16.mxu0 0
    %90 = vmatpush1.bf16.msra.mxu0 0
    %91 = vmatprep.subr.bf16.mxu0 0
    %92 = vmatpush1.bf16.msra.mxu0 0
    %93 = vmatprep.subr.bf16.mxu0 0
    %94 = vmatpush1.bf16.msra.mxu0 0
    %95 = vmatprep.subr.bf16.mxu0 0
    %96 = vmatpush1.bf16.msra.mxu0 0
    %97 = vmatprep.subr.bf16.mxu0 0
    %98 = vmatpush1.bf16.msra.mxu0 0
    %99 = vmatprep.subr.bf16.mxu0 0
    %100 = vmatpush1.bf16.msra.mxu0 0
    %101 = vmatprep.subr.bf16.mxu0 0
    %102 = vmatpush1.bf16.msra.mxu0 0
    %103 = vmatprep.subr.bf16.mxu0 0
    %104 = vmatpush1.bf16.msra.mxu0 0
    %105 = vmatprep.subr.bf16.mxu0 0
    %106 = vmatpush1.bf16.msra.mxu0 0
    %107 = vmatprep.subr.bf16.mxu0 0
    %108 = vmatpush1.bf16.msra.mxu0 0
    %109 = vmatprep.subr.bf16.mxu0 0
    %110 = vmatpush1.bf16.msra.mxu0 0
    %111 = vmatprep.subr.bf16.mxu0 0
    %112 = vmatpush1.bf16.msra.mxu0 0
    %113 = vmatprep.mubr.bf16.mxu0 0
    %114 = vmatmul.mubr.bf16.gmra.mrb[0].mxu0 %v79
    %v115 = vpop.f32.mrb[0].mxu0
    %v116 = vadd.f32 0.0, %v115
    %v117 = vpop.f32.mrb[0].mxu0
    %v118 = vadd.f32 0.0, %v117
    %v119 = vpop.f32.mrb[0].mxu0
    %v120 = vpop.f32.mrb[0].mxu0
    %121 = vdwg.mxu0
    %122 = vmatprep.subr.bf16.mxu0 %v64
    %123 = vmatpush1.bf16.msra.mxu0 %v63
    %124 = vmatprep.subr.bf16.mxu0 0
    %125 = vmatpush1.bf16.msra.mxu0 0
    %126 = vmatprep.subr.bf16.mxu0 0
    %127 = vmatpush1.bf16.msra.mxu0 0
    %128 = vmatprep.subr.bf16.mxu0 0
    %129 = vmatpush1.bf16.msra.mxu0 0
    %130 = vmatprep.subr.bf16.mxu0 0
    %131 = vmatpush1.bf16.msra.mxu0 0
    %132 = vmatprep.subr.bf16.mxu0 0
    %133 = vmatpush1.bf16.msra.mxu0 0
    %134 = vmatprep.subr.bf16.mxu0 0
    %135 = vmatpush1.bf16.msra.mxu0 0
    %136 = vmatprep.subr.bf16.mxu0 0
    %137 = vmatpush1.bf16.msra.mxu0 0
    %138 = vmatprep.subr.bf16.mxu0 0
    %139 = vmatpush1.bf16.msra.mxu0 0
    %140 = vmatprep.subr.bf16.mxu0 0
    %141 = vmatpush1.bf16.msra.mxu0 0
    %142 = vmatprep.subr.bf16.mxu0 0
    %143 = vmatpush1.bf16.msra.mxu0 0
    %144 = vmatprep.subr.bf16.mxu0 0
    %145 = vmatpush1.bf16.msra.mxu0 0
    %146 = vmatprep.subr.bf16.mxu0 0
    %147 = vmatpush1.bf16.msra.mxu0 0
    %148 = vmatprep.subr.bf16.mxu0 0
    %149 = vmatpush1.bf16.msra.mxu0 0
    %150 = vmatprep.subr.bf16.mxu0 0
    %151 = vmatpush1.bf16.msra.mxu0 0
    %152 = vmatprep.subr.bf16.mxu0 0
    %153 = vmatpush1.bf16.msra.mxu0 0
    %154 = vmatprep.mubr.bf16.mxu0 0
    %155 = vmatmul.mubr.bf16.gmra.mrb[0].mxu0 %v79
    %v156 = vpop.f32.mrb[0].mxu0
    %v157 = vadd.f32 0.0, %v156
    %v158 = vpop.f32.mrb[0].mxu0
    %v159 = vadd.f32 0.0, %v158
    %v160 = vpop.f32.mrb[0].mxu0
    %v161 = vpop.f32.mrb[0].mxu0
    %162 = vdwg.mxu0
    %163 = vmatprep.subr.bf16.mxu0 %v66
    %164 = vmatpush1.bf16.msra.mxu0 %v65
    %165 = vmatprep.subr.bf16.mxu0 0
    %166 = vmatpush1.bf16.msra.mxu0 0
    %167 = vmatprep.subr.bf16.mxu0 0
    %168 = vmatpush1.bf16.msra.mxu0 0
    %169 = vmatprep.subr.bf16.mxu0 0
    %170 = vmatpush1.bf16.msra.mxu0 0
    %171 = vmatprep.subr.bf16.mxu0 0
    %172 = vmatpush1.bf16.msra.mxu0 0
    %173 = vmatprep.subr.bf16.mxu0 0
    %174 = vmatpush1.bf16.msra.mxu0 0
    %175 = vmatprep.subr.bf16.mxu0 0
    %176 = vmatpush1.bf16.msra.mxu0 0
    %177 = vmatprep.subr.bf16.mxu0 0
    %178 = vmatpush1.bf16.msra.mxu0 0
    %179 = vmatprep.subr.bf16.mxu0 0
    %180 = vmatpush1.bf16.msra.mxu0 0
    %181 = vmatprep.subr.bf16.mxu0 0
    %182 = vmatpush1.bf16.msra.mxu0 0
    %183 = vmatprep.subr.bf16.mxu0 0
    %184 = vmatpush1.bf16.msra.mxu0 0
    %185 = vmatprep.subr.bf16.mxu0 0
    %186 = vmatpush1.bf16.msra.mxu0 0
    %187 = vmatprep.subr.bf16.mxu0 0
    %188 = vmatpush1.bf16.msra.mxu0 0
    %189 = vmatprep.subr.bf16.mxu0 0
    %190 = vmatpush1.bf16.msra.mxu0 0
    %191 = vmatprep.subr.bf16.mxu0 0
    %192 = vmatpush1.bf16.msra.mxu0 0
    %193 = vmatprep.subr.bf16.mxu0 0
    %194 = vmatpush1.bf16.msra.mxu0 0
    %195 = vmatprep.mubr.bf16.mxu0 0
    %196 = vmatmul.mubr.bf16.gmra.mrb[0].mxu0 %v79
    %v197 = vpop.f32.mrb[0].mxu0
    %v198 = vadd.f32 0.0, %v197
    %v199 = vpop.f32.mrb[0].mxu0
    %v200 = vadd.f32 0.0, %v199
    %v201 = vpop.f32.mrb[0].mxu0
    %v202 = vpop.f32.mrb[0].mxu0
    %203 = vdwg.mxu0
    %204 = vmatprep.subr.bf16.mxu0 %v68
    %205 = vmatpush1.bf16.msra.mxu0 %v67
    %206 = vmatprep.subr.bf16.mxu0 0
    %207 = vmatpush1.bf16.msra.mxu0 0
    %208 = vmatprep.subr.bf16.mxu0 0
    %209 = vmatpush1.bf16.msra.mxu0 0
    %210 = vmatprep.subr.bf16.mxu0 0
    %211 = vmatpush1.bf16.msra.mxu0 0
    %212 = vmatprep.subr.bf16.mxu0 0
    %213 = vmatpush1.bf16.msra.mxu0 0
    %214 = vmatprep.subr.bf16.mxu0 0
    %215 = vmatpush1.bf16.msra.mxu0 0
    %216 = vmatprep.subr.bf16.mxu0 0
    %217 = vmatpush1.bf16.msra.mxu0 0
    %218 = vmatprep.subr.bf16.mxu0 0
    %219 = vmatpush1.bf16.msra.mxu0 0
    %220 = vmatprep.subr.bf16.mxu0 0
    %221 = vmatpush1.bf16.msra.mxu0 0
    %222 = vmatprep.subr.bf16.mxu0 0
    %223 = vmatpush1.bf16.msra.mxu0 0
    %224 = vmatprep.subr.bf16.mxu0 0
    %225 = vmatpush1.bf16.msra.mxu0 0
    %226 = vmatprep.subr.bf16.mxu0 0
    %227 = vmatpush1.bf16.msra.mxu0 0
    %228 = vmatprep.subr.bf16.mxu0 0
    %229 = vmatpush1.bf16.msra.mxu0 0
    %230 = vmatprep.subr.bf16.mxu0 0
    %231 = vmatpush1.bf16.msra.mxu0 0
    %232 = vmatprep.subr.bf16.mxu0 0
    %233 = vmatpush1.bf16.msra.mxu0 0
    %234 = vmatprep.subr.bf16.mxu0 0
    %235 = vmatpush1.bf16.msra.mxu0 0
    %236 = vmatprep.mubr.bf16.mxu0 0
    %237 = vmatmul.mubr.bf16.gmra.mrb[0].mxu0 %v79
    %v238 = vpop.f32.mrb[0].mxu0
    %v239 = vadd.f32 0.0, %v238
    %v240 = vpop.f32.mrb[0].mxu0
    %v241 = vadd.f32 0.0, %v240
    %v242 = vpop.f32.mrb[0].mxu0
    %v243 = vpop.f32.mrb[0].mxu0
    %244 = vdwg.mxu0
    %v245 = vpack.c.bf16 %v116, %v116
    %v246 = vpack.c.bf16 %v118, %v118
    %v247 = vpack.c.bf16 %v157, %v157
    %v248 = vpack.c.bf16 %v159, %v159
    %v249 = vpack.c.bf16 %v198, %v198
    %v250 = vpack.c.bf16 %v200, %v200
    %v251 = vpack.c.bf16 %v239, %v239
    %v252 = vpack.c.bf16 %v241, %v241
    %v261 = vcombine.low %v245, %v246
    %v262 = vcombine.low %v247, %v248
    %v263 = vcombine.low %v249, %v250
    %v264 = vcombine.low %v251, %v252
    %v266 = vunpack.c.l.s4 1966171168
    %v267 = vunpack.c.0.s8 %v266
    %v268 = vlaneseq
    %v269 = vshrl.u32 %v268, 7
    %v270 = vsub.s32 %v267, %v269
    %v271 = vrot.slane %v261, %v270
    %v273 = vunpack.c.l.s4 1966171168
    %v274 = vunpack.c.0.s8 %v273
    %v275 = vlaneseq
    %v276 = vshrl.u32 %v275, 7
    %v277 = vsub.s32 %v274, %v276
    %v278 = vrot.slane %v262, %v277
    %v280 = vunpack.c.l.s4 1966171168
    %v281 = vunpack.c.0.s8 %v280
    %v282 = vlaneseq
    %v283 = vshrl.u32 %v282, 7
    %v284 = vsub.s32 %v281, %v283
    %v285 = vrot.slane %v263, %v284
    %v287 = vunpack.c.l.s4 1966171168
    %v288 = vunpack.c.0.s8 %v287
    %v289 = vlaneseq
    %v290 = vshrl.u32 %v289, 7
    %v291 = vsub.s32 %v288, %v290
    %v292 = vrot.slane %v264, %v291
    %v293 = vcombine.low %v271, %v278
    %v294 = vcombine.low %v285, %v292
    %v296 = vunpack.c.l.s4 1966171168
    %v297 = vunpack.c.0.s8 %v296
    %v298 = vlaneseq
    %v299 = vshrl.u32 %v298, 7
    %v300 = vsub.s32 %v297, %v299
    %v301 = vrot.slane %v293, %v300
    %v303 = vunpack.c.l.s4 1966171168
    %v304 = vunpack.c.0.s8 %v303
    %v305 = vlaneseq
    %v306 = vshrl.u32 %v305, 7
    %v307 = vsub.s32 %v304, %v306
    %v308 = vrot.slane %v294, %v307
    %v309 = vcombine.low %v301, %v308
    %311 = vst [vmem:[%s2] sm:$0xff] %v309
    %vm312 = vcmask 1041408
    %v313 = vsel %vm312, %v116, 0.0
    %v314 = vrot.slane %v313, 4
    %v315 = vadd.f32 %v313, %v314
    %v316 = vrot.slane %v315, 2
    %v317 = vadd.f32 %v315, %v316
    %v318 = vrot.slane %v317, 1
    %v319 = vadd.f32 %v317, %v318
    %v320 = vsel %vm312, %v118, 0.0
    %v321 = vrot.slane %v320, 4
    %v322 = vadd.f32 %v320, %v321
    %v323 = vrot.slane %v322, 2
    %v324 = vadd.f32 %v322, %v323
    %v325 = vrot.slane %v324, 1
    %v326 = vadd.f32 %v324, %v325
    %v327 = vsel %vm312, %v157, 0.0
    %v328 = vrot.slane %v327, 4
    %v329 = vadd.f32 %v327, %v328
    %v330 = vrot.slane %v329, 2
    %v331 = vadd.f32 %v329, %v330
    %v332 = vrot.slane %v331, 1
    %v333 = vadd.f32 %v331, %v332
    %v334 = vsel %vm312, %v159, 0.0
    %v335 = vrot.slane %v334, 4
    %v336 = vadd.f32 %v334, %v335
    %v337 = vrot.slane %v336, 2
    %v338 = vadd.f32 %v336, %v337
    %v339 = vrot.slane %v338, 1
    %v340 = vadd.f32 %v338, %v339
    %v341 = vsel %vm312, %v198, 0.0
    %v342 = vrot.slane %v341, 4
    %v343 = vadd.f32 %v341, %v342
    %v344 = vrot.slane %v343, 2
    %v345 = vadd.f32 %v343, %v344
    %v346 = vrot.slane %v345, 1
    %v347 = vadd.f32 %v345, %v346
    %v348 = vsel %vm312, %v200, 0.0
    %v349 = vrot.slane %v348, 4
    %v350 = vadd.f32 %v348, %v349
    %v351 = vrot.slane %v350, 2
    %v352 = vadd.f32 %v350, %v351
    %v353 = vrot.slane %v352, 1
    %v354 = vadd.f32 %v352, %v353
    %v355 = vsel %vm312, %v239, 0.0
    %v356 = vrot.slane %v355, 4
    %v357 = vadd.f32 %v355, %v356
    %v358 = vrot.slane %v357, 2
    %v359 = vadd.f32 %v357, %v358
    %v360 = vrot.slane %v359, 1
    %v361 = vadd.f32 %v359, %v360
    %v362 = vsel %vm312, %v241, 0.0
    %v363 = vrot.slane %v362, 4
    %v364 = vadd.f32 %v362, %v363
    %v365 = vrot.slane %v364, 2
    %v366 = vadd.f32 %v364, %v365
    %v367 = vrot.slane %v366, 1
    %v368 = vadd.f32 %v366, %v367
    %v369 = vmul.f32 %v116, %v116
    %v370 = vmul.f32 %v118, %v118
    %v371 = vmul.f32 %v157, %v157
    %v372 = vmul.f32 %v159, %v159
    %v373 = vmul.f32 %v198, %v198
    %v374 = vmul.f32 %v200, %v200
    %v375 = vmul.f32 %v239, %v239
    %v376 = vmul.f32 %v241, %v241
    %v377 = vsel %vm312, %v369, 0.0
    %v378 = vrot.slane %v377, 4
    %v379 = vadd.f32 %v377, %v378
    %v380 = vrot.slane %v379, 2
    %v381 = vadd.f32 %v379, %v380
    %v382 = vrot.slane %v381, 1
    %v383 = vadd.f32 %v381, %v382
    %v384 = vsel %vm312, %v370, 0.0
    %v385 = vrot.slane %v384, 4
    %v386 = vadd.f32 %v384, %v385
    %v387 = vrot.slane %v386, 2
    %v388 = vadd.f32 %v386, %v387
    %v389 = vrot.slane %v388, 1
    %v390 = vadd.f32 %v388, %v389
    %v391 = vsel %vm312, %v371, 0.0
    %v392 = vrot.slane %v391, 4
    %v393 = vadd.f32 %v391, %v392
    %v394 = vrot.slane %v393, 2
    %v395 = vadd.f32 %v393, %v394
    %v396 = vrot.slane %v395, 1
    %v397 = vadd.f32 %v395, %v396
    %v398 = vsel %vm312, %v372, 0.0
    %v399 = vrot.slane %v398, 4
    %v400 = vadd.f32 %v398, %v399
    %v401 = vrot.slane %v400, 2
    %v402 = vadd.f32 %v400, %v401
    %v403 = vrot.slane %v402, 1
    %v404 = vadd.f32 %v402, %v403
    %v405 = vsel %vm312, %v373, 0.0
    %v406 = vrot.slane %v405, 4
    %v407 = vadd.f32 %v405, %v406
    %v408 = vrot.slane %v407, 2
    %v409 = vadd.f32 %v407, %v408
    %v410 = vrot.slane %v409, 1
    %v411 = vadd.f32 %v409, %v410
    %v412 = vsel %vm312, %v374, 0.0
    %v413 = vrot.slane %v412, 4
    %v414 = vadd.f32 %v412, %v413
    %v415 = vrot.slane %v414, 2
    %v416 = vadd.f32 %v414, %v415
    %v417 = vrot.slane %v416, 1
    %v418 = vadd.f32 %v416, %v417
    %v419 = vsel %vm312, %v375, 0.0
    %v420 = vrot.slane %v419, 4
    %v421 = vadd.f32 %v419, %v420
    %v422 = vrot.slane %v421, 2
    %v423 = vadd.f32 %v421, %v422
    %v424 = vrot.slane %v423, 1
    %v425 = vadd.f32 %v423, %v424
    %v426 = vsel %vm312, %v376, 0.0
    %v427 = vrot.slane %v426, 4
    %v428 = vadd.f32 %v426, %v427
    %v429 = vrot.slane %v428, 2
    %v430 = vadd.f32 %v428, %v429
    %v431 = vrot.slane %v430, 1
    %v432 = vadd.f32 %v430, %v431
    %vm433 = vcmask 1040384
    %v434 = vsel %vm433, %v319, %v383
    %v435 = vsel %vm433, %v326, %v390
    %v436 = vsel %vm433, %v333, %v397
    %v437 = vsel %vm433, %v340, %v404
    %v438 = vsel %vm433, %v347, %v411
    %v439 = vsel %vm433, %v354, %v418
    %v440 = vsel %vm433, %v361, %v425
    %v441 = vsel %vm433, %v368, %v432
    %v450 = vcombine.low %v434, %v435
    %v451 = vcombine.low %v436, %v437
    %v453 = vunpack.c.l.s4 1983009808
    %v454 = vunpack.c.0.s8 %v453
    %v455 = vlaneseq
    %v456 = vshrl.u32 %v455, 7
    %v457 = vsub.s32 %v454, %v456
    %v458 = vrot.slane %v450, %v457
    %v460 = vunpack.c.l.s4 1983009808
    %v461 = vunpack.c.0.s8 %v460
    %v462 = vlaneseq
    %v463 = vshrl.u32 %v462, 7
    %v464 = vsub.s32 %v461, %v463
    %v465 = vrot.slane %v451, %v464
    %v466 = vcombine.low %v458, %v465
    %v467 = vcombine.low %v438, %v439
    %v468 = vcombine.low %v440, %v441
    %v470 = vunpack.c.l.s4 1983009808
    %v471 = vunpack.c.0.s8 %v470
    %v472 = vlaneseq
    %v473 = vshrl.u32 %v472, 7
    %v474 = vsub.s32 %v471, %v473
    %v475 = vrot.slane %v467, %v474
    %v477 = vunpack.c.l.s4 1983009808
    %v478 = vunpack.c.0.s8 %v477
    %v479 = vlaneseq
    %v480 = vshrl.u32 %v479, 7
    %v481 = vsub.s32 %v478, %v480
    %v482 = vrot.slane %v468, %v481
    %v483 = vcombine.low %v475, %v482
    %486 = vst [vmem:[%s3] sm:$0xff] %v466
    %487 = vst [vmem:[%s3 + $0x8] sm:$0xff] %v483
    // Predicated region
    $region14: #{generator_forward.9} parent=1 // pred_check
      _
    $region15: #{generator_forward.9} parent=1 // pred_check_branch
      %489 = sbr.rel (0) target = $region17
    $region16: #{generator_forward.9} parent=1 // pred_region
      _
    $region17: #{generator_forward.9} parent=1 // pred_fallthru
      _
    // Predicated region
    $region18: #{generator_forward.9} parent=1 // pred_check
      _
    $region19: #{generator_forward.9} parent=1 // pred_check_branch
      %491 = sbr.rel (0) target = $region21
    $region20: #{generator_forward.9} parent=1 // pred_region
      _
    $region21: #{generator_forward.9} parent=1 // pred_fallthru
      _
    // Predicated region
    $region22: #{generator_forward.9} parent=1 // pred_check
      _
    $region23: #{generator_forward.9} parent=1 // pred_check_branch
      %493 = sbr.rel (0) target = $region25
    $region24: #{generator_forward.9} parent=1 // pred_region
      _
    $region25: #{generator_forward.9} parent=1 // pred_fallthru
      _
    // Predicated region
    $region26: #{generator_forward.9} parent=1 // pred_check
      _
    $region27: #{generator_forward.9} parent=1 // pred_check_branch
      %495 = sbr.rel (0) target = $region29
    $region28: #{generator_forward.9} parent=1 // pred_region
      _
    $region29: #{generator_forward.9} parent=1 // pred_fallthru
      _
    %496 = vsyncpa [#allocation3], 1

// kernel: squeeze.10
$region0: #{squeeze.10}
  %s0 = inlined_call_operand.vmem [shape: f32[128], index: 0, kind: input, shape index: {}]
  %s1 = inlined_call_operand.vmem [shape: f32[4,32], index: 1, kind: output, shape index: {}]
  $region1: #{squeeze.10} parent=0
    #allocation0 [shape = 'u8[4096]{0}', space=vmem, size = 0x1000, scoped, tag = 'scoped mem for output reshape']
    #allocation1 [shape = 'u8[4096]{0}', space=vmem, size = 0x1000, scoped, tag = 'scoped mem for input reshape']
    %s3 = sshllo.u32 0, 1
    %v4 = vld [vmem:[%s0] sm:%s3]
    %5 = vst [vmem:[#allocation1] sm:%s3] %v4
    %v6 = vld [vmem:[#allocation1] sm:$0x1]
    %vm7 = vcmask 261120
    %8 = vst.msk [vmem:[#allocation0] sm:$0x1] %vm7, %v6
    %v9 = vld [vmem:[#allocation1] sm:$0x1]
    %10 = vrot.lane.b32.xlu0 %v9, 96
    %v11 = vpop.permute.xlu0 %10
    %vm12 = vcmask 261120
    %s13 = scalar_lea.vmem [#allocation0], 1
    %14 = vst.msk [vmem:[%s13] sm:$0x1] %vm12, %v11
    %v15 = vld [vmem:[#allocation1] sm:$0x1]
    %16 = vrot.lane.b32.xlu0 %v15, 64
    %v17 = vpop.permute.xlu0 %16
    %vm18 = vcmask 261120
    %s19 = scalar_lea.vmem [#allocation0], 2
    %20 = vst.msk [vmem:[%s19] sm:$0x1] %vm18, %v17
    %v21 = vld [vmem:[#allocation1] sm:$0x1]
    %22 = vrot.lane.b32.xlu0 %v21, 32
    %v23 = vpop.permute.xlu0 %22
    %vm24 = vcmask 261120
    %s25 = scalar_lea.vmem [#allocation0], 3
    %26 = vst.msk [vmem:[%s25] sm:$0x1] %vm24, %v23
    %s28 = sshllo.u32 0, 4
    %v30 = vld [vmem:[#allocation0] sm:%s28]
    %s31 = sshllo.u32 0, 4
    %32 = vst [vmem:[%s1] sm:%s31] %v30

// kernel: tile.53
$region0: #{tile.53}
  #allocation0 [shape = 's32[1]{0}', space=sflag, size = 0x4, scoped, tag = 'scoped memory for tile.53']
  %s0 = inlined_call_operand.vmem [shape: f32[32], index: 0, kind: input, shape index: {}]
  %s1 = inlined_call_operand.vmem [shape: f32[4,32], index: 1, kind: output, shape index: {}]
  // Predicated region
  $region2: #{tile.53} parent=0 // pred_check
    _
  $region3: #{tile.53} parent=0 // pred_check_branch
    %3 = sbr.rel (0) target = $region5
  $region4: #{tile.53} parent=0 // pred_region
    _
  $region5: #{tile.53} parent=0 // pred_fallthru
    _
  %v4 = vld [vmem:[%s0] ss:$0 sm:$0xff]
  %5 = vst [vmem:[%s1] sm:$0xf] %v4

// kernel: tile.54
$region0: #{tile.54}
  %s0 = inlined_call_operand.vmem [shape: f32[4,32], index: 0, kind: input, shape index: {}]
  %s1 = inlined_call_operand.vmem [shape: f32[1,128], index: 1, kind: output, shape index: {}]
  $region1: #{tile.54} parent=0
    #allocation0 [shape = 'u8[4096]{0}', space=vmem, size = 0x1000, scoped, tag = 'scoped mem for output reshape']
    #allocation1 [shape = 'u8[4096]{0}', space=vmem, size = 0x1000, scoped, tag = 'scoped mem for input reshape']
    %s3 = sshllo.u32 0, 4
    %v4 = vld [vmem:[%s0] sm:%s3]
    %5 = vst [vmem:[#allocation1] sm:%s3] %v4
    %v6 = vld [vmem:[#allocation1] sm:$0x1]
    %vm7 = vcmask 261120
    %8 = vst.msk [vmem:[#allocation0] sm:$0x1] %vm7, %v6
    %s9 = scalar_lea.vmem [#allocation1], 3
    %v10 = vld [vmem:[%s9] sm:$0x1]
    %11 = vrot.lane.b32.xlu0 %v10, 96
    %v12 = vpop.permute.xlu0 %11
    %vm13 = vcmask 1048320
    %14 = vst.msk [vmem:[#allocation0] sm:$0x1] %vm13, %v12
    %s15 = scalar_lea.vmem [#allocation1], 2
    %v16 = vld [vmem:[%s15] sm:$0x1]
    %17 = vrot.lane.b32.xlu0 %v16, 64
    %v18 = vpop.permute.xlu0 %17
    %vm19 = vcmask 785920
    %20 = vst.msk [vmem:[#allocation0] sm:$0x1] %vm19, %v18
    %s21 = scalar_lea.vmem [#allocation1], 1
    %v22 = vld [vmem:[%s21] sm:$0x1]
    %23 = vrot.lane.b32.xlu0 %v22, 32
    %v24 = vpop.permute.xlu0 %23
    %vm25 = vcmask 523520
    %26 = vst.msk [vmem:[#allocation0] sm:$0x1] %vm25, %v24
    %s28 = sshllo.u32 0, 1
    %v30 = vld [vmem:[#allocation0] sm:%s28]
    %s31 = sshllo.u32 0, 1
    %32 = vst [vmem:[%s1] sm:%s31] %v30

// kernel: generator_forward.12
$region0: #{generator_forward.12}
  #allocation0 [shape = 'u32[]', space=smem, size = 0x4, offset = 0x4, fixed_abs, tag = 'smem constant byte address 0x4 - core index']
  #allocation1 [shape = 'u32[144,128]{1,0:T(1,128)}', space=vmem, size = 0x12000, scoped, tag = 'internal scratch']
  %s0 = inlined_call_operand.vmem [shape: bf16[32,128], index: 0, kind: input, shape index: {}]
  %s1 = inlined_call_operand.vmem [shape: f32[1,128], index: 1, kind: input, shape index: {}]
  %s2 = inlined_call_operand.vmem [shape: f32[1,128], index: 2, kind: input, shape index: {}]
  %s3 = inlined_call_operand.vmem [shape: bf16[32,128], index: 3, kind: output, shape index: {}]
  %s4 = sld [smem:[#allocation0]]
  $region22: #{generator_forward.12} parent=0
    _
  %s6 = ssub.s32 1, %s4
  %s7 = scalar_select 0, %s6, %s4
  // Predicated region
  $region2: #{generator_forward.12} parent=0 // pred_check
    _
  $region3: #{generator_forward.12} parent=0 // pred_check_branch
    %9 = sbr.rel (0) target = $region5
  $region4: #{generator_forward.12} parent=0 // pred_region
    _
  $region5: #{generator_forward.12} parent=0 // pred_fallthru
    _
  // Predicated region
  $region6: #{generator_forward.12} parent=0 // pred_check
    _
  $region7: #{generator_forward.12} parent=0 // pred_check_branch
    %11 = sbr.rel (0) target = $region9
  $region8: #{generator_forward.12} parent=0 // pred_region
    _
  $region9: #{generator_forward.12} parent=0 // pred_fallthru
    _
  // Predicated region
  $region10: #{generator_forward.12} parent=0 // pred_check
    _
  $region11: #{generator_forward.12} parent=0 // pred_check_branch
    %13 = sbr.rel (0) target = $region13
  $region12: #{generator_forward.12} parent=0 // pred_region
    _
  $region13: #{generator_forward.12} parent=0 // pred_fallthru
    _
  %v14 = vld [vmem:[%s0] sm:$0xf]
  %v15 = vld [vmem:[%s0 + $0x4] sm:$0xf]
  %v16 = vld [vmem:[%s0 + $0x8] sm:$0xf]
  %v17 = vld [vmem:[%s0 + $0xc] sm:$0xf]
  %v18 = vunpack.c.l.bf16 %v14
  %v19 = vunpack.c.l.bf16 %v15
  %v20 = vunpack.c.l.bf16 %v16
  %v21 = vunpack.c.l.bf16 %v17
  %v22 = vld [vmem:[%s1] sm:$0x1]
  %v24 = vlaneseq
  %v25 = vshrl.u32 %v24, 7
  %v26 = vsub.s32 0, %v25
  %v27 = vrot.slane %v22, %v26
  %v29 = vmul.f32 %v18, %v27
  %v30 = vmul.f32 %v19, %v27
  %v31 = vmul.f32 %v20, %v27
  %v32 = vmul.f32 %v21, %v27
  %v33 = vld [vmem:[%s2] sm:$0x1]
  %v35 = vlaneseq
  %v36 = vshrl.u32 %v35, 7
  %v37 = vsub.s32 0, %v36
  %v38 = vrot.slane %v33, %v37
  %v40 = vadd.f32 %v29, %v38
  %v41 = vadd.f32 %v30, %v38
  %v42 = vadd.f32 %v31, %v38
  %v43 = vadd.f32 %v32, %v38
  %vm44 = vcmp.gt.f32.partialorder %v40, 0.0
  %vm45 = vcmp.gt.f32.partialorder %v41, 0.0
  %vm46 = vcmp.gt.f32.partialorder %v42, 0.0
  %vm47 = vcmp.gt.f32.partialorder %v43, 0.0
  %v48 = vmul.f32 %v40, 0.2
  %v49 = vmul.f32 %v41, 0.2
  %v50 = vmul.f32 %v42, 0.2
  %v51 = vmul.f32 %v43, 0.2
  %v52 = vsel %vm44, %v40, %v48
  %v53 = vsel %vm45, %v41, %v49
  %v54 = vsel %vm46, %v42, %v50
  %v55 = vsel %vm47, %v43, %v51
  %v56 = vpack.c.bf16 %v53, %v52
  %v57 = vpack.c.bf16 %v55, %v54
  %v60 = vunpack.c.l.b16 %v56
  %v61 = vunpack.c.h.b16 %v56
  %v62 = vunpack.c.l.b16 %v57
  %v63 = vunpack.c.h.b16 %v57
  %v64 = vpack.c.b16 %v60, %v60
  %v65 = vpack.c.b16 %v61, %v61
  %v66 = vpack.c.b16 %v62, %v62
  %v67 = vpack.c.b16 %v63, %v63
  %72 = vst [vmem:[%s3] sm:$0xf] %v64
  %73 = vst [vmem:[%s3 + $0x4] sm:$0xf] %v65
  %74 = vst [vmem:[%s3 + $0x8] sm:$0xf] %v66
  %75 = vst [vmem:[%s3 + $0xc] sm:$0xf] %v67
  // Predicated region
  $region14: #{generator_forward.12} parent=0 // pred_check
    _
  $region15: #{generator_forward.12} parent=0 // pred_check_branch
    %77 = sbr.rel (0) target = $region17
  $region16: #{generator_forward.12} parent=0 // pred_region
    _
  $region17: #{generator_forward.12} parent=0 // pred_fallthru
    _
  // Predicated region
  $region18: #{generator_forward.12} parent=0 // pred_check
    _
  $region19: #{generator_forward.12} parent=0 // pred_check_branch
    %79 = sbr.rel (0) target = $region21
  $region20: #{generator_forward.12} parent=0 // pred_region
    _
  $region21: #{generator_forward.12} parent=0 // pred_fallthru
    _

// kernel: generator_forward.11
$region0: #{generator_forward.11}
  #allocation0 [shape = 'u32[]', space=smem, size = 0x4, offset = 0x4, fixed_abs, tag = 'smem constant byte address 0x4 - core index']
  #allocation1 [shape = 'u32[144,128]{1,0:T(1,128)}', space=vmem, size = 0x12000, scoped, tag = 'internal scratch']
  %s0 = inlined_call_operand.vmem [shape: bf16[32,256], index: 0, kind: input, shape index: {}]
  %s1 = inlined_call_operand.vmem [shape: bf16[32,256], index: 1, kind: input, shape index: {}]
  %s2 = inlined_call_operand.vmem [shape: bf16[32,256], index: 2, kind: input, shape index: {}]
  %s3 = inlined_call_operand.vmem [shape: bf16[32,256], index: 3, kind: input, shape index: {}]
  %s4 = inlined_call_operand.vmem [shape: bf16[4,256,32], index: 4, kind: input, shape index: {}]
  %s5 = inlined_call_operand.vmem [shape: bf16[32,128], index: 5, kind: output, shape index: {0}]
  %s6 = inlined_call_operand.vmem [shape: f32[1,2,128], index: 6, kind: output, shape index: {1}]
  %7 = xla_tuple %s5, %s6
  %s8 = sld [smem:[#allocation0]]
  $region38: #{generator_forward.11} parent=0
    _
  %s10 = ssub.s32 1, %s8
  %s11 = scalar_select 0, %s10, %s8
  // Predicated region
  $region2: #{generator_forward.11} parent=0 // pred_check
    _
  $region3: #{generator_forward.11} parent=0 // pred_check_branch
    %13 = sbr.rel (0) target = $region5
  $region4: #{generator_forward.11} parent=0 // pred_region
    _
  $region5: #{generator_forward.11} parent=0 // pred_fallthru
    _
  // Predicated region
  $region6: #{generator_forward.11} parent=0 // pred_check
    _
  $region7: #{generator_forward.11} parent=0 // pred_check_branch
    %15 = sbr.rel (0) target = $region9
  $region8: #{generator_forward.11} parent=0 // pred_region
    _
  $region9: #{generator_forward.11} parent=0 // pred_fallthru
    _
  // Predicated region
  $region10: #{generator_forward.11} parent=0 // pred_check
    _
  $region11: #{generator_forward.11} parent=0 // pred_check_branch
    %17 = sbr.rel (0) target = $region13
  $region12: #{generator_forward.11} parent=0 // pred_region
    _
  $region13: #{generator_forward.11} parent=0 // pred_fallthru
    _
  // Predicated region
  $region14: #{generator_forward.11} parent=0 // pred_check
    _
  $region15: #{generator_forward.11} parent=0 // pred_check_branch
    %19 = sbr.rel (0) target = $region17
  $region16: #{generator_forward.11} parent=0 // pred_region
    _
  $region17: #{generator_forward.11} parent=0 // pred_fallthru
    _
  // Predicated region
  $region18: #{generator_forward.11} parent=0 // pred_check
    _
  $region19: #{generator_forward.11} parent=0 // pred_check_branch
    %21 = sbr.rel (0) target = $region21
  $region20: #{generator_forward.11} parent=0 // pred_region
    _
  $region21: #{generator_forward.11} parent=0 // pred_fallthru
    _
  %v23 = vld [vmem:[%s0] sm:$0xff]
  %v24 = vld [vmem:[%s0 + $0x8] sm:$0xff]
  %v25 = vld [vmem:[%s0 + $0x10] sm:$0xff]
  %v26 = vld [vmem:[%s0 + $0x18] sm:$0xff]
  %v27 = vld [vmem:[%s4] sm:$0xf]
  %v28 = vld [vmem:[%s4 + $0x4] sm:$0xf]
  %v29 = vld [vmem:[%s4 + $0x8] sm:$0xf]
  %v30 = vld [vmem:[%s4 + $0xc] sm:$0xf]
  %v31 = vld [vmem:[%s4 + $0x10] sm:$0xf]
  %v32 = vld [vmem:[%s4 + $0x14] sm:$0xf]
  %v33 = vld [vmem:[%s4 + $0x18] sm:$0xf]
  %v34 = vld [vmem:[%s4 + $0x1c] sm:$0xf]
  %v35 = vld [vmem:[%s4 + $0x20] sm:$0xf]
  %v36 = vld [vmem:[%s4 + $0x24] sm:$0xf]
  %v37 = vld [vmem:[%s4 + $0x28] sm:$0xf]
  %v38 = vld [vmem:[%s4 + $0x2c] sm:$0xf]
  %v39 = vld [vmem:[%s4 + $0x30] sm:$0xf]
  %v40 = vld [vmem:[%s4 + $0x34] sm:$0xf]
  %v41 = vld [vmem:[%s4 + $0x38] sm:$0xf]
  %v42 = vld [vmem:[%s4 + $0x3c] sm:$0xf]
  %v43 = vld [vmem:[%s4 + $0x40] sm:$0xf]
  %v44 = vld [vmem:[%s4 + $0x44] sm:$0xf]
  %v45 = vld [vmem:[%s4 + $0x48] sm:$0xf]
  %v46 = vld [vmem:[%s4 + $0x4c] sm:$0xf]
  %v47 = vld [vmem:[%s4 + $0x50] sm:$0xf]
  %v48 = vld [vmem:[%s4 + $0x54] sm:$0xf]
  %v49 = vld [vmem:[%s4 + $0x58] sm:$0xf]
  %v50 = vld [vmem:[%s4 + $0x5c] sm:$0xf]
  %v51 = vld [vmem:[%s4 + $0x60] sm:$0xf]
  %v52 = vld [vmem:[%s4 + $0x64] sm:$0xf]
  %v53 = vld [vmem:[%s4 + $0x68] sm:$0xf]
  %v54 = vld [vmem:[%s4 + $0x6c] sm:$0xf]
  %v55 = vld [vmem:[%s4 + $0x70] sm:$0xf]
  %v56 = vld [vmem:[%s4 + $0x74] sm:$0xf]
  %v57 = vld [vmem:[%s4 + $0x78] sm:$0xf]
  %v58 = vld [vmem:[%s4 + $0x7c] sm:$0xf]
  %v63 = vunpack.c.l.b16 %v23
  %v64 = vunpack.c.h.b16 %v23
  %v65 = vunpack.c.l.b16 %v24
  %v66 = vunpack.c.h.b16 %v24
  %v67 = vunpack.c.l.b16 %v25
  %v68 = vunpack.c.h.b16 %v25
  %v69 = vunpack.c.l.b16 %v26
  %v70 = vunpack.c.h.b16 %v26
  %v71 = vpack.c.b16 %v65, %v63
  %v72 = vpack.c.b16 %v66, %v64
  %v73 = vpack.c.b16 %v69, %v67
  %v74 = vpack.c.b16 %v70, %v68
  %v111 = vunpack.c.l.b16 %v27
  %v112 = vunpack.c.l.b16 %v28
  %v113 = vunpack.c.l.b16 %v29
  %v114 = vunpack.c.l.b16 %v30
  %v115 = vunpack.c.l.b16 %v31
  %v116 = vunpack.c.l.b16 %v32
  %v117 = vunpack.c.l.b16 %v33
  %v118 = vunpack.c.l.b16 %v34
  %v119 = vunpack.c.l.b16 %v35
  %v120 = vunpack.c.l.b16 %v36
  %v121 = vunpack.c.l.b16 %v37
  %v122 = vunpack.c.l.b16 %v38
  %v123 = vunpack.c.l.b16 %v39
  %v124 = vunpack.c.l.b16 %v40
  %v125 = vunpack.c.l.b16 %v41
  %v126 = vunpack.c.l.b16 %v42
  %v127 = vunpack.c.l.b16 %v43
  %v128 = vunpack.c.l.b16 %v44
  %v129 = vunpack.c.l.b16 %v45
  %v130 = vunpack.c.l.b16 %v46
  %v131 = vunpack.c.l.b16 %v47
  %v132 = vunpack.c.l.b16 %v48
  %v133 = vunpack.c.l.b16 %v49
  %v134 = vunpack.c.l.b16 %v50
  %v135 = vunpack.c.l.b16 %v51
  %v136 = vunpack.c.l.b16 %v52
  %v137 = vunpack.c.l.b16 %v53
  %v138 = vunpack.c.l.b16 %v54
  %v139 = vunpack.c.l.b16 %v55
  %v140 = vunpack.c.l.b16 %v56
  %v141 = vunpack.c.l.b16 %v57
  %v142 = vunpack.c.l.b16 %v58
  %v143 = vpack.c.b16 %v112, %v111
  %v144 = vpack.c.b16 %v114, %v113
  %v145 = vpack.c.b16 %v116, %v115
  %v146 = vpack.c.b16 %v118, %v117
  %v147 = vpack.c.b16 %v120, %v119
  %v148 = vpack.c.b16 %v122, %v121
  %v149 = vpack.c.b16 %v124, %v123
  %v150 = vpack.c.b16 %v126, %v125
  %v151 = vpack.c.b16 %v128, %v127
  %v152 = vpack.c.b16 %v130, %v129
  %v153 = vpack.c.b16 %v132, %v131
  %v154 = vpack.c.b16 %v134, %v133
  %v155 = vpack.c.b16 %v136, %v135
  %v156 = vpack.c.b16 %v138, %v137
  %v157 = vpack.c.b16 %v140, %v139
  %v158 = vpack.c.b16 %v142, %v141
  %175 = vmatprep.subr.bf16.mxu0 0
  %176 = vmatpush1.bf16.msra.mxu0 %v143
  %177 = vmatprep.subr.bf16.mxu0 0
  %178 = vmatpush1.bf16.msra.mxu0 %v144
  %179 = vmatprep.subr.bf16.mxu0 0
  %180 = vmatpush1.bf16.msra.mxu0 %v145
  %181 = vmatprep.subr.bf16.mxu0 0
  %182 = vmatpush1.bf16.msra.mxu0 %v146
  %183 = vmatprep.subr.bf16.mxu0 0
  %184 = vmatpush1.bf16.msra.mxu0 %v147
  %185 = vmatprep.subr.bf16.mxu0 0
  %186 = vmatpush1.bf16.msra.mxu0 %v148
  %187 = vmatprep.subr.bf16.mxu0 0
  %188 = vmatpush1.bf16.msra.mxu0 %v149
  %189 = vmatprep.subr.bf16.mxu0 0
  %190 = vmatpush1.bf16.msra.mxu0 %v150
  %191 = vmatprep.subr.bf16.mxu0 0
  %192 = vmatpush1.bf16.msra.mxu0 %v151
  %193 = vmatprep.subr.bf16.mxu0 0
  %194 = vmatpush1.bf16.msra.mxu0 %v152
  %195 = vmatprep.subr.bf16.mxu0 0
  %196 = vmatpush1.bf16.msra.mxu0 %v153
  %197 = vmatprep.subr.bf16.mxu0 0
  %198 = vmatpush1.bf16.msra.mxu0 %v154
  %199 = vmatprep.subr.bf16.mxu0 0
  %200 = vmatpush1.bf16.msra.mxu0 %v155
  %201 = vmatprep.subr.bf16.mxu0 0
  %202 = vmatpush1.bf16.msra.mxu0 %v156
  %203 = vmatprep.subr.bf16.mxu0 0
  %204 = vmatpush1.bf16.msra.mxu0 %v157
  %205 = vmatprep.subr.bf16.mxu0 0
  %206 = vmatpush1.bf16.msra.mxu0 %v158
  %207 = vmatprep.mubr.bf16.mxu0 %v72
  %208 = vmatmul.mubr.bf16.gmra.mrb[0].mxu0 %v71
  %v209 = vpop.f32.mrb[0].mxu0
  %v210 = vadd.f32 0.0, %v209
  %v211 = vpop.f32.mrb[0].mxu0
  %v212 = vpop.f32.mrb[0].mxu0
  %v213 = vadd.f32 0.0, %v212
  %v214 = vpop.f32.mrb[0].mxu0
  %215 = vmatprep.mubr.bf16.mxu0 %v74
  %216 = vmatmul.mubr.bf16.gmra.mrb[0].mxu0 %v73
  %v217 = vpop.f32.mrb[0].mxu0
  %v218 = vadd.f32 0.0, %v217
  %v219 = vpop.f32.mrb[0].mxu0
  %v220 = vpop.f32.mrb[0].mxu0
  %v221 = vadd.f32 0.0, %v220
  %v222 = vpop.f32.mrb[0].mxu0
  %223 = vdwg.mxu0
  %v224 = vld [vmem:[%s1] sm:$0xff]
  %v225 = vld [vmem:[%s1 + $0x8] sm:$0xff]
  %v226 = vld [vmem:[%s1 + $0x10] sm:$0xff]
  %v227 = vld [vmem:[%s1 + $0x18] sm:$0xff]
  %s228 = scalar_lea.vmem %s4, 128
  %v229 = vld [vmem:[%s228] sm:$0xf]
  %v230 = vld [vmem:[%s228 + $0x4] sm:$0xf]
  %v231 = vld [vmem:[%s228 + $0x8] sm:$0xf]
  %v232 = vld [vmem:[%s228 + $0xc] sm:$0xf]
  %v233 = vld [vmem:[%s228 + $0x10] sm:$0xf]
  %v234 = vld [vmem:[%s228 + $0x14] sm:$0xf]
  %v235 = vld [vmem:[%s228 + $0x18] sm:$0xf]
  %v236 = vld [vmem:[%s228 + $0x1c] sm:$0xf]
  %v237 = vld [vmem:[%s228 + $0x20] sm:$0xf]
  %v238 = vld [vmem:[%s228 + $0x24] sm:$0xf]
  %v239 = vld [vmem:[%s228 + $0x28] sm:$0xf]
  %v240 = vld [vmem:[%s228 + $0x2c] sm:$0xf]
  %v241 = vld [vmem:[%s228 + $0x30] sm:$0xf]
  %v242 = vld [vmem:[%s228 + $0x34] sm:$0xf]
  %v243 = vld [vmem:[%s228 + $0x38] sm:$0xf]
  %v244 = vld [vmem:[%s228 + $0x3c] sm:$0xf]
  %v245 = vld [vmem:[%s228 + $0x40] sm:$0xf]
  %v246 = vld [vmem:[%s228 + $0x44] sm:$0xf]
  %v247 = vld [vmem:[%s228 + $0x48] sm:$0xf]
  %v248 = vld [vmem:[%s228 + $0x4c] sm:$0xf]
  %v249 = vld [vmem:[%s228 + $0x50] sm:$0xf]
  %v250 = vld [vmem:[%s228 + $0x54] sm:$0xf]
  %v251 = vld [vmem:[%s228 + $0x58] sm:$0xf]
  %v252 = vld [vmem:[%s228 + $0x5c] sm:$0xf]
  %v253 = vld [vmem:[%s228 + $0x60] sm:$0xf]
  %v254 = vld [vmem:[%s228 + $0x64] sm:$0xf]
  %v255 = vld [vmem:[%s228 + $0x68] sm:$0xf]
  %v256 = vld [vmem:[%s228 + $0x6c] sm:$0xf]
  %v257 = vld [vmem:[%s228 + $0x70] sm:$0xf]
  %v258 = vld [vmem:[%s228 + $0x74] sm:$0xf]
  %v259 = vld [vmem:[%s228 + $0x78] sm:$0xf]
  %v260 = vld [vmem:[%s228 + $0x7c] sm:$0xf]
  %v265 = vunpack.c.l.b16 %v224
  %v266 = vunpack.c.h.b16 %v224
  %v267 = vunpack.c.l.b16 %v225
  %v268 = vunpack.c.h.b16 %v225
  %v269 = vunpack.c.l.b16 %v226
  %v270 = vunpack.c.h.b16 %v226
  %v271 = vunpack.c.l.b16 %v227
  %v272 = vunpack.c.h.b16 %v227
  %v273 = vpack.c.b16 %v267, %v265
  %v274 = vpack.c.b16 %v268, %v266
  %v275 = vpack.c.b16 %v271, %v269
  %v276 = vpack.c.b16 %v272, %v270
  %v313 = vunpack.c.l.b16 %v229
  %v314 = vunpack.c.l.b16 %v230
  %v315 = vunpack.c.l.b16 %v231
  %v316 = vunpack.c.l.b16 %v232
  %v317 = vunpack.c.l.b16 %v233
  %v318 = vunpack.c.l.b16 %v234
  %v319 = vunpack.c.l.b16 %v235
  %v320 = vunpack.c.l.b16 %v236
  %v321 = vunpack.c.l.b16 %v237
  %v322 = vunpack.c.l.b16 %v238
  %v323 = vunpack.c.l.b16 %v239
  %v324 = vunpack.c.l.b16 %v240
  %v325 = vunpack.c.l.b16 %v241
  %v326 = vunpack.c.l.b16 %v242
  %v327 = vunpack.c.l.b16 %v243
  %v328 = vunpack.c.l.b16 %v244
  %v329 = vunpack.c.l.b16 %v245
  %v330 = vunpack.c.l.b16 %v246
  %v331 = vunpack.c.l.b16 %v247
  %v332 = vunpack.c.l.b16 %v248
  %v333 = vunpack.c.l.b16 %v249
  %v334 = vunpack.c.l.b16 %v250
  %v335 = vunpack.c.l.b16 %v251
  %v336 = vunpack.c.l.b16 %v252
  %v337 = vunpack.c.l.b16 %v253
  %v338 = vunpack.c.l.b16 %v254
  %v339 = vunpack.c.l.b16 %v255
  %v340 = vunpack.c.l.b16 %v256
  %v341 = vunpack.c.l.b16 %v257
  %v342 = vunpack.c.l.b16 %v258
  %v343 = vunpack.c.l.b16 %v259
  %v344 = vunpack.c.l.b16 %v260
  %v345 = vpack.c.b16 %v314, %v313
  %v346 = vpack.c.b16 %v316, %v315
  %v347 = vpack.c.b16 %v318, %v317
  %v348 = vpack.c.b16 %v320, %v319
  %v349 = vpack.c.b16 %v322, %v321
  %v350 = vpack.c.b16 %v324, %v323
  %v351 = vpack.c.b16 %v326, %v325
  %v352 = vpack.c.b16 %v328, %v327
  %v353 = vpack.c.b16 %v330, %v329
  %v354 = vpack.c.b16 %v332, %v331
  %v355 = vpack.c.b16 %v334, %v333
  %v356 = vpack.c.b16 %v336, %v335
  %v357 = vpack.c.b16 %v338, %v337
  %v358 = vpack.c.b16 %v340, %v339
  %v359 = vpack.c.b16 %v342, %v341
  %v360 = vpack.c.b16 %v344, %v343
  %377 = vmatprep.subr.bf16.mxu0 0
  %378 = vmatpush1.bf16.msra.mxu0 %v345
  %379 = vmatprep.subr.bf16.mxu0 0
  %380 = vmatpush1.bf16.msra.mxu0 %v346
  %381 = vmatprep.subr.bf16.mxu0 0
  %382 = vmatpush1.bf16.msra.mxu0 %v347
  %383 = vmatprep.subr.bf16.mxu0 0
  %384 = vmatpush1.bf16.msra.mxu0 %v348
  %385 = vmatprep.subr.bf16.mxu0 0
  %386 = vmatpush1.bf16.msra.mxu0 %v349
  %387 = vmatprep.subr.bf16.mxu0 0
  %388 = vmatpush1.bf16.msra.mxu0 %v350
  %389 = vmatprep.subr.bf16.mxu0 0
  %390 = vmatpush1.bf16.msra.mxu0 %v351
  %391 = vmatprep.subr.bf16.mxu0 0
  %392 = vmatpush1.bf16.msra.mxu0 %v352
  %393 = vmatprep.subr.bf16.mxu0 0
  %394 = vmatpush1.bf16.msra.mxu0 %v353
  %395 = vmatprep.subr.bf16.mxu0 0
  %396 = vmatpush1.bf16.msra.mxu0 %v354
  %397 = vmatprep.subr.bf16.mxu0 0
  %398 = vmatpush1.bf16.msra.mxu0 %v355
  %399 = vmatprep.subr.bf16.mxu0 0
  %400 = vmatpush1.bf16.msra.mxu0 %v356
  %401 = vmatprep.subr.bf16.mxu0 0
  %402 = vmatpush1.bf16.msra.mxu0 %v357
  %403 = vmatprep.subr.bf16.mxu0 0
  %404 = vmatpush1.bf16.msra.mxu0 %v358
  %405 = vmatprep.subr.bf16.mxu0 0
  %406 = vmatpush1.bf16.msra.mxu0 %v359
  %407 = vmatprep.subr.bf16.mxu0 0
  %408 = vmatpush1.bf16.msra.mxu0 %v360
  %409 = vmatprep.mubr.bf16.mxu0 %v274
  %410 = vmatmul.mubr.bf16.gmra.mrb[0].mxu0 %v273
  %v411 = vpop.f32.mrb[0].mxu0
  %v412 = vadd.f32 0.0, %v411
  %v413 = vpop.f32.mrb[0].mxu0
  %v414 = vpop.f32.mrb[0].mxu0
  %v415 = vadd.f32 0.0, %v414
  %v416 = vpop.f32.mrb[0].mxu0
  %417 = vmatprep.mubr.bf16.mxu0 %v276
  %418 = vmatmul.mubr.bf16.gmra.mrb[0].mxu0 %v275
  %v419 = vpop.f32.mrb[0].mxu0
  %v420 = vadd.f32 0.0, %v419
  %v421 = vpop.f32.mrb[0].mxu0
  %v422 = vpop.f32.mrb[0].mxu0
  %v423 = vadd.f32 0.0, %v422
  %v424 = vpop.f32.mrb[0].mxu0
  %425 = vdwg.mxu0
  %v426 = vld [vmem:[%s2] sm:$0xff]
  %v427 = vld [vmem:[%s2 + $0x8] sm:$0xff]
  %v428 = vld [vmem:[%s2 + $0x10] sm:$0xff]
  %v429 = vld [vmem:[%s2 + $0x18] sm:$0xff]
  %s430 = scalar_lea.vmem %s4, 256
  %v431 = vld [vmem:[%s430] sm:$0xf]
  %v432 = vld [vmem:[%s430 + $0x4] sm:$0xf]
  %v433 = vld [vmem:[%s430 + $0x8] sm:$0xf]
  %v434 = vld [vmem:[%s430 + $0xc] sm:$0xf]
  %v435 = vld [vmem:[%s430 + $0x10] sm:$0xf]
  %v436 = vld [vmem:[%s430 + $0x14] sm:$0xf]
  %v437 = vld [vmem:[%s430 + $0x18] sm:$0xf]
  %v438 = vld [vmem:[%s430 + $0x1c] sm:$0xf]
  %v439 = vld [vmem:[%s430 + $0x20] sm:$0xf]
  %v440 = vld [vmem:[%s430 + $0x24] sm:$0xf]
  %v441 = vld [vmem:[%s430 + $0x28] sm:$0xf]
  %v442 = vld [vmem:[%s430 + $0x2c] sm:$0xf]
  %v443 = vld [vmem:[%s430 + $0x30] sm:$0xf]
  %v444 = vld [vmem:[%s430 + $0x34] sm:$0xf]
  %v445 = vld [vmem:[%s430 + $0x38] sm:$0xf]
  %v446 = vld [vmem:[%s430 + $0x3c] sm:$0xf]
  %v447 = vld [vmem:[%s430 + $0x40] sm:$0xf]
  %v448 = vld [vmem:[%s430 + $0x44] sm:$0xf]
  %v449 = vld [vmem:[%s430 + $0x48] sm:$0xf]
  %v450 = vld [vmem:[%s430 + $0x4c] sm:$0xf]
  %v451 = vld [vmem:[%s430 + $0x50] sm:$0xf]
  %v452 = vld [vmem:[%s430 + $0x54] sm:$0xf]
  %v453 = vld [vmem:[%s430 + $0x58] sm:$0xf]
  %v454 = vld [vmem:[%s430 + $0x5c] sm:$0xf]
  %v455 = vld [vmem:[%s430 + $0x60] sm:$0xf]
  %v456 = vld [vmem:[%s430 + $0x64] sm:$0xf]
  %v457 = vld [vmem:[%s430 + $0x68] sm:$0xf]
  %v458 = vld [vmem:[%s430 + $0x6c] sm:$0xf]
  %v459 = vld [vmem:[%s430 + $0x70] sm:$0xf]
  %v460 = vld [vmem:[%s430 + $0x74] sm:$0xf]
  %v461 = vld [vmem:[%s430 + $0x78] sm:$0xf]
  %v462 = vld [vmem:[%s430 + $0x7c] sm:$0xf]
  %v467 = vunpack.c.l.b16 %v426
  %v468 = vunpack.c.h.b16 %v426
  %v469 = vunpack.c.l.b16 %v427
  %v470 = vunpack.c.h.b16 %v427
  %v471 = vunpack.c.l.b16 %v428
  %v472 = vunpack.c.h.b16 %v428
  %v473 = vunpack.c.l.b16 %v429
  %v474 = vunpack.c.h.b16 %v429
  %v475 = vpack.c.b16 %v469, %v467
  %v476 = vpack.c.b16 %v470, %v468
  %v477 = vpack.c.b16 %v473, %v471
  %v478 = vpack.c.b16 %v474, %v472
  %v515 = vunpack.c.l.b16 %v431
  %v516 = vunpack.c.l.b16 %v432
  %v517 = vunpack.c.l.b16 %v433
  %v518 = vunpack.c.l.b16 %v434
  %v519 = vunpack.c.l.b16 %v435
  %v520 = vunpack.c.l.b16 %v436
  %v521 = vunpack.c.l.b16 %v437
  %v522 = vunpack.c.l.b16 %v438
  %v523 = vunpack.c.l.b16 %v439
  %v524 = vunpack.c.l.b16 %v440
  %v525 = vunpack.c.l.b16 %v441
  %v526 = vunpack.c.l.b16 %v442
  %v527 = vunpack.c.l.b16 %v443
  %v528 = vunpack.c.l.b16 %v444
  %v529 = vunpack.c.l.b16 %v445
  %v530 = vunpack.c.l.b16 %v446
  %v531 = vunpack.c.l.b16 %v447
  %v532 = vunpack.c.l.b16 %v448
  %v533 = vunpack.c.l.b16 %v449
  %v534 = vunpack.c.l.b16 %v450
  %v535 = vunpack.c.l.b16 %v451
  %v536 = vunpack.c.l.b16 %v452
  %v537 = vunpack.c.l.b16 %v453
  %v538 = vunpack.c.l.b16 %v454
  %v539 = vunpack.c.l.b16 %v455
  %v540 = vunpack.c.l.b16 %v456
  %v541 = vunpack.c.l.b16 %v457
  %v542 = vunpack.c.l.b16 %v458
  %v543 = vunpack.c.l.b16 %v459
  %v544 = vunpack.c.l.b16 %v460
  %v545 = vunpack.c.l.b16 %v461
  %v546 = vunpack.c.l.b16 %v462
  %v547 = vpack.c.b16 %v516, %v515
  %v548 = vpack.c.b16 %v518, %v517
  %v549 = vpack.c.b16 %v520, %v519
  %v550 = vpack.c.b16 %v522, %v521
  %v551 = vpack.c.b16 %v524, %v523
  %v552 = vpack.c.b16 %v526, %v525
  %v553 = vpack.c.b16 %v528, %v527
  %v554 = vpack.c.b16 %v530, %v529
  %v555 = vpack.c.b16 %v532, %v531
  %v556 = vpack.c.b16 %v534, %v533
  %v557 = vpack.c.b16 %v536, %v535
  %v558 = vpack.c.b16 %v538, %v537
  %v559 = vpack.c.b16 %v540, %v539
  %v560 = vpack.c.b16 %v542, %v541
  %v561 = vpack.c.b16 %v544, %v543
  %v562 = vpack.c.b16 %v546, %v545
  %579 = vmatprep.subr.bf16.mxu0 0
  %580 = vmatpush1.bf16.msra.mxu0 %v547
  %581 = vmatprep.subr.bf16.mxu0 0
  %582 = vmatpush1.bf16.msra.mxu0 %v548
  %583 = vmatprep.subr.bf16.mxu0 0
  %584 = vmatpush1.bf16.msra.mxu0 %v549
  %585 = vmatprep.subr.bf16.mxu0 0
  %586 = vmatpush1.bf16.msra.mxu0 %v550
  %587 = vmatprep.subr.bf16.mxu0 0
  %588 = vmatpush1.bf16.msra.mxu0 %v551
  %589 = vmatprep.subr.bf16.mxu0 0
  %590 = vmatpush1.bf16.msra.mxu0 %v552
  %591 = vmatprep.subr.bf16.mxu0 0
  %592 = vmatpush1.bf16.msra.mxu0 %v553
  %593 = vmatprep.subr.bf16.mxu0 0
  %594 = vmatpush1.bf16.msra.mxu0 %v554
  %595 = vmatprep.subr.bf16.mxu0 0
  %596 = vmatpush1.bf16.msra.mxu0 %v555
  %597 = vmatprep.subr.bf16.mxu0 0
  %598 = vmatpush1.bf16.msra.mxu0 %v556
  %599 = vmatprep.subr.bf16.mxu0 0
  %600 = vmatpush1.bf16.msra.mxu0 %v557
  %601 = vmatprep.subr.bf16.mxu0 0
  %602 = vmatpush1.bf16.msra.mxu0 %v558
  %603 = vmatprep.subr.bf16.mxu0 0
  %604 = vmatpush1.bf16.msra.mxu0 %v559
  %605 = vmatprep.subr.bf16.mxu0 0
  %606 = vmatpush1.bf16.msra.mxu0 %v560
  %607 = vmatprep.subr.bf16.mxu0 0
  %608 = vmatpush1.bf16.msra.mxu0 %v561
  %609 = vmatprep.subr.bf16.mxu0 0
  %610 = vmatpush1.bf16.msra.mxu0 %v562
  %611 = vmatprep.mubr.bf16.mxu0 %v476
  %612 = vmatmul.mubr.bf16.gmra.mrb[0].mxu0 %v475
  %v613 = vpop.f32.mrb[0].mxu0
  %v614 = vadd.f32 0.0, %v613
  %v615 = vpop.f32.mrb[0].mxu0
  %v616 = vpop.f32.mrb[0].mxu0
  %v617 = vadd.f32 0.0, %v616
  %v618 = vpop.f32.mrb[0].mxu0
  %619 = vmatprep.mubr.bf16.mxu0 %v478
  %620 = vmatmul.mubr.bf16.gmra.mrb[0].mxu0 %v477
  %v621 = vpop.f32.mrb[0].mxu0
  %v622 = vadd.f32 0.0, %v621
  %v623 = vpop.f32.mrb[0].mxu0
  %v624 = vpop.f32.mrb[0].mxu0
  %v625 = vadd.f32 0.0, %v624
  %v626 = vpop.f32.mrb[0].mxu0
  %627 = vdwg.mxu0
  %v628 = vld [vmem:[%s3] sm:$0xff]
  %v629 = vld [vmem:[%s3 + $0x8] sm:$0xff]
  %v630 = vld [vmem:[%s3 + $0x10] sm:$0xff]
  %v631 = vld [vmem:[%s3 + $0x18] sm:$0xff]
  %s632 = scalar_lea.vmem %s4, 384
  %v633 = vld [vmem:[%s632] sm:$0xf]
  %v634 = vld [vmem:[%s632 + $0x4] sm:$0xf]
  %v635 = vld [vmem:[%s632 + $0x8] sm:$0xf]
  %v636 = vld [vmem:[%s632 + $0xc] sm:$0xf]
  %v637 = vld [vmem:[%s632 + $0x10] sm:$0xf]
  %v638 = vld [vmem:[%s632 + $0x14] sm:$0xf]
  %v639 = vld [vmem:[%s632 + $0x18] sm:$0xf]
  %v640 = vld [vmem:[%s632 + $0x1c] sm:$0xf]
  %v641 = vld [vmem:[%s632 + $0x20] sm:$0xf]
  %v642 = vld [vmem:[%s632 + $0x24] sm:$0xf]
  %v643 = vld [vmem:[%s632 + $0x28] sm:$0xf]
  %v644 = vld [vmem:[%s632 + $0x2c] sm:$0xf]
  %v645 = vld [vmem:[%s632 + $0x30] sm:$0xf]
  %v646 = vld [vmem:[%s632 + $0x34] sm:$0xf]
  %v647 = vld [vmem:[%s632 + $0x38] sm:$0xf]
  %v648 = vld [vmem:[%s632 + $0x3c] sm:$0xf]
  %v649 = vld [vmem:[%s632 + $0x40] sm:$0xf]
  %v650 = vld [vmem:[%s632 + $0x44] sm:$0xf]
  %v651 = vld [vmem:[%s632 + $0x48] sm:$0xf]
  %v652 = vld [vmem:[%s632 + $0x4c] sm:$0xf]
  %v653 = vld [vmem:[%s632 + $0x50] sm:$0xf]
  %v654 = vld [vmem:[%s632 + $0x54] sm:$0xf]
  %v655 = vld [vmem:[%s632 + $0x58] sm:$0xf]
  %v656 = vld [vmem:[%s632 + $0x5c] sm:$0xf]
  %v657 = vld [vmem:[%s632 + $0x60] sm:$0xf]
  %v658 = vld [vmem:[%s632 + $0x64] sm:$0xf]
  %v659 = vld [vmem:[%s632 + $0x68] sm:$0xf]
  %v660 = vld [vmem:[%s632 + $0x6c] sm:$0xf]
  %v661 = vld [vmem:[%s632 + $0x70] sm:$0xf]
  %v662 = vld [vmem:[%s632 + $0x74] sm:$0xf]
  %v663 = vld [vmem:[%s632 + $0x78] sm:$0xf]
  %v664 = vld [vmem:[%s632 + $0x7c] sm:$0xf]
  %v669 = vunpack.c.l.b16 %v628
  %v670 = vunpack.c.h.b16 %v628
  %v671 = vunpack.c.l.b16 %v629
  %v672 = vunpack.c.h.b16 %v629
  %v673 = vunpack.c.l.b16 %v630
  %v674 = vunpack.c.h.b16 %v630
  %v675 = vunpack.c.l.b16 %v631
  %v676 = vunpack.c.h.b16 %v631
  %v677 = vpack.c.b16 %v671, %v669
  %v678 = vpack.c.b16 %v672, %v670
  %v679 = vpack.c.b16 %v675, %v673
  %v680 = vpack.c.b16 %v676, %v674
  %v717 = vunpack.c.l.b16 %v633
  %v718 = vunpack.c.l.b16 %v634
  %v719 = vunpack.c.l.b16 %v635
  %v720 = vunpack.c.l.b16 %v636
  %v721 = vunpack.c.l.b16 %v637
  %v722 = vunpack.c.l.b16 %v638
  %v723 = vunpack.c.l.b16 %v639
  %v724 = vunpack.c.l.b16 %v640
  %v725 = vunpack.c.l.b16 %v641
  %v726 = vunpack.c.l.b16 %v642
  %v727 = vunpack.c.l.b16 %v643
  %v728 = vunpack.c.l.b16 %v644
  %v729 = vunpack.c.l.b16 %v645
  %v730 = vunpack.c.l.b16 %v646
  %v731 = vunpack.c.l.b16 %v647
  %v732 = vunpack.c.l.b16 %v648
  %v733 = vunpack.c.l.b16 %v649
  %v734 = vunpack.c.l.b16 %v650
  %v735 = vunpack.c.l.b16 %v651
  %v736 = vunpack.c.l.b16 %v652
  %v737 = vunpack.c.l.b16 %v653
  %v738 = vunpack.c.l.b16 %v654
  %v739 = vunpack.c.l.b16 %v655
  %v740 = vunpack.c.l.b16 %v656
  %v741 = vunpack.c.l.b16 %v657
  %v742 = vunpack.c.l.b16 %v658
  %v743 = vunpack.c.l.b16 %v659
  %v744 = vunpack.c.l.b16 %v660
  %v745 = vunpack.c.l.b16 %v661
  %v746 = vunpack.c.l.b16 %v662
  %v747 = vunpack.c.l.b16 %v663
  %v748 = vunpack.c.l.b16 %v664
  %v749 = vpack.c.b16 %v718, %v717
  %v750 = vpack.c.b16 %v720, %v719
  %v751 = vpack.c.b16 %v722, %v721
  %v752 = vpack.c.b16 %v724, %v723
  %v753 = vpack.c.b16 %v726, %v725
  %v754 = vpack.c.b16 %v728, %v727
  %v755 = vpack.c.b16 %v730, %v729
  %v756 = vpack.c.b16 %v732, %v731
  %v757 = vpack.c.b16 %v734, %v733
  %v758 = vpack.c.b16 %v736, %v735
  %v759 = vpack.c.b16 %v738, %v737
  %v760 = vpack.c.b16 %v740, %v739
  %v761 = vpack.c.b16 %v742, %v741
  %v762 = vpack.c.b16 %v744, %v743
  %v763 = vpack.c.b16 %v746, %v745
  %v764 = vpack.c.b16 %v748, %v747
  %781 = vmatprep.subr.bf16.mxu0 0
  %782 = vmatpush1.bf16.msra.mxu0 %v749
  %783 = vmatprep.subr.bf16.mxu0 0
  %784 = vmatpush1.bf16.msra.mxu0 %v750
  %785 = vmatprep.subr.bf16.mxu0 0
  %786 = vmatpush1.bf16.msra.mxu0 %v751
  %787 = vmatprep.subr.bf16.mxu0 0
  %788 = vmatpush1.bf16.msra.mxu0 %v752
  %789 = vmatprep.subr.bf16.mxu0 0
  %790 = vmatpush1.bf16.msra.mxu0 %v753
  %791 = vmatprep.subr.bf16.mxu0 0
  %792 = vmatpush1.bf16.msra.mxu0 %v754
  %793 = vmatprep.subr.bf16.mxu0 0
  %794 = vmatpush1.bf16.msra.mxu0 %v755
  %795 = vmatprep.subr.bf16.mxu0 0
  %796 = vmatpush1.bf16.msra.mxu0 %v756
  %797 = vmatprep.subr.bf16.mxu0 0
  %798 = vmatpush1.bf16.msra.mxu0 %v757
  %799 = vmatprep.subr.bf16.mxu0 0
  %800 = vmatpush1.bf16.msra.mxu0 %v758
  %801 = vmatprep.subr.bf16.mxu0 0
  %802 = vmatpush1.bf16.msra.mxu0 %v759
  %803 = vmatprep.subr.bf16.mxu0 0
  %804 = vmatpush1.bf16.msra.mxu0 %v760
  %805 = vmatprep.subr.bf16.mxu0 0
  %806 = vmatpush1.bf16.msra.mxu0 %v761
  %807 = vmatprep.subr.bf16.mxu0 0
  %808 = vmatpush1.bf16.msra.mxu0 %v762
  %809 = vmatprep.subr.bf16.mxu0 0
  %810 = vmatpush1.bf16.msra.mxu0 %v763
  %811 = vmatprep.subr.bf16.mxu0 0
  %812 = vmatpush1.bf16.msra.mxu0 %v764
  %813 = vmatprep.mubr.bf16.mxu0 %v678
  %814 = vmatmul.mubr.bf16.gmra.mrb[0].mxu0 %v677
  %v815 = vpop.f32.mrb[0].mxu0
  %v816 = vadd.f32 0.0, %v815
  %v817 = vpop.f32.mrb[0].mxu0
  %v818 = vpop.f32.mrb[0].mxu0
  %v819 = vadd.f32 0.0, %v818
  %v820 = vpop.f32.mrb[0].mxu0
  %821 = vmatprep.mubr.bf16.mxu0 %v680
  %822 = vmatmul.mubr.bf16.gmra.mrb[0].mxu0 %v679
  %v823 = vpop.f32.mrb[0].mxu0
  %v824 = vadd.f32 0.0, %v823
  %v825 = vpop.f32.mrb[0].mxu0
  %v826 = vpop.f32.mrb[0].mxu0
  %v827 = vadd.f32 0.0, %v826
  %v828 = vpop.f32.mrb[0].mxu0
  %829 = vdwg.mxu0
  %834 = vrot.lane.b32.xlu0 %v412, 32
  %v835 = vpop.permute.xlu0 %834
  %836 = vrot.lane.b32.xlu0 %v415, 32
  %v837 = vpop.permute.xlu0 %836
  %838 = vrot.lane.b32.xlu0 %v420, 32
  %v839 = vpop.permute.xlu0 %838
  %840 = vrot.lane.b32.xlu0 %v423, 32
  %v841 = vpop.permute.xlu0 %840
  %850 = vrot.lane.b32.xlu0 %v614, 64
  %v851 = vpop.permute.xlu0 %850
  %852 = vrot.lane.b32.xlu0 %v617, 64
  %v853 = vpop.permute.xlu0 %852
  %854 = vrot.lane.b32.xlu0 %v622, 64
  %v855 = vpop.permute.xlu0 %854
  %856 = vrot.lane.b32.xlu0 %v625, 64
  %v857 = vpop.permute.xlu0 %856
  %866 = vrot.lane.b32.xlu0 %v816, 96
  %v867 = vpop.permute.xlu0 %866
  %868 = vrot.lane.b32.xlu0 %v819, 96
  %v869 = vpop.permute.xlu0 %868
  %870 = vrot.lane.b32.xlu0 %v824, 96
  %v871 = vpop.permute.xlu0 %870
  %872 = vrot.lane.b32.xlu0 %v827, 96
  %v873 = vpop.permute.xlu0 %872
  %vm878 = vcmask 261120
  %v879 = vsel %vm878, %v210, %v835
  %v880 = vsel %vm878, %v213, %v837
  %v881 = vsel %vm878, %v218, %v839
  %v882 = vsel %vm878, %v221, %v841
  %vm883 = vcmask 523264
  %v884 = vsel %vm883, %v879, %v851
  %v885 = vsel %vm883, %v880, %v853
  %v886 = vsel %vm883, %v881, %v855
  %v887 = vsel %vm883, %v882, %v857
  %vm888 = vcmask 785408
  %v889 = vsel %vm888, %v884, %v867
  %v890 = vsel %vm888, %v885, %v869
  %v891 = vsel %vm888, %v886, %v871
  %v892 = vsel %vm888, %v887, %v873
  %v893 = vpack.c.bf16 %v890, %v889
  %v894 = vpack.c.bf16 %v892, %v891
  %v897 = vunpack.c.l.b16 %v893
  %v898 = vunpack.c.h.b16 %v893
  %v899 = vunpack.c.l.b16 %v894
  %v900 = vunpack.c.h.b16 %v894
  %v901 = vpack.c.b16 %v897, %v897
  %v902 = vpack.c.b16 %v898, %v898
  %v903 = vpack.c.b16 %v899, %v899
  %v904 = vpack.c.b16 %v900, %v900
  %909 = vst [vmem:[%s5] sm:$0xf] %v901
  %910 = vst [vmem:[%s5 + $0x4] sm:$0xf] %v902
  %911 = vst [vmem:[%s5 + $0x8] sm:$0xf] %v903
  %912 = vst [vmem:[%s5 + $0xc] sm:$0xf] %v904
  %v913 = vadd.f32 %v889, %v890
  %v914 = vadd.f32 %v913, %v891
  %v915 = vadd.f32 %v914, %v892
  %v916 = vrot.slane %v915, 4
  %v917 = vadd.f32 %v915, %v916
  %v918 = vrot.slane %v917, 2
  %v919 = vadd.f32 %v917, %v918
  %v920 = vrot.slane %v919, 1
  %v921 = vadd.f32 %v919, %v920
  %v922 = vmul.f32 %v889, %v889
  %v923 = vmul.f32 %v890, %v890
  %v924 = vmul.f32 %v891, %v891
  %v925 = vmul.f32 %v892, %v892
  %v926 = vadd.f32 %v922, %v923
  %v927 = vadd.f32 %v926, %v924
  %v928 = vadd.f32 %v927, %v925
  %v929 = vrot.slane %v928, 4
  %v930 = vadd.f32 %v928, %v929
  %v931 = vrot.slane %v930, 2
  %v932 = vadd.f32 %v930, %v931
  %v933 = vrot.slane %v932, 1
  %v934 = vadd.f32 %v932, %v933
  %vm935 = vcmask 1040384
  %v936 = vsel %vm935, %v921, %v934
  %937 = vst [vmem:[%s6] sm:$0x3] %v936
  // Predicated region
  $region22: #{generator_forward.11} parent=0 // pred_check
    _
  $region23: #{generator_forward.11} parent=0 // pred_check_branch
    %939 = sbr.rel (0) target = $region25
  $region24: #{generator_forward.11} parent=0 // pred_region
    _
  $region25: #{generator_forward.11} parent=0 // pred_fallthru
    _
  // Predicated region
  $region26: #{generator_forward.11} parent=0 // pred_check
    _
  $region27: #{generator_forward.11} parent=0 // pred_check_branch
    %941 = sbr.rel (0) target = $region29
  $region28: #{generator_forward.11} parent=0 // pred_region
    _
  $region29: #{generator_forward.11} parent=0 // pred_fallthru
    _
  // Predicated region
  $region30: #{generator_forward.11} parent=0 // pred_check
    _
  $region31: #{generator_forward.11} parent=0 // pred_check_branch
    %943 = sbr.rel (0) target = $region33
  $region32: #{generator_forward.11} parent=0 // pred_region
    _
  $region33: #{generator_forward.11} parent=0 // pred_fallthru
    _
  // Predicated region
  $region34: #{generator_forward.11} parent=0 // pred_check
    _
  $region35: #{generator_forward.11} parent=0 // pred_check_branch
    %945 = sbr.rel (0) target = $region37
  $region36: #{generator_forward.11} parent=0 // pred_region
    _
  $region37: #{generator_forward.11} parent=0 // pred_fallthru
    _

// kernel: squeeze.12
$region0: #{squeeze.12}
  %s0 = inlined_call_operand.vmem [shape: f32[64], index: 0, kind: input, shape index: {}]
  %s1 = inlined_call_operand.vmem [shape: f32[4,16], index: 1, kind: output, shape index: {}]
  $region1: #{squeeze.12} parent=0
    #allocation0 [shape = 'u8[4096]{0}', space=vmem, size = 0x1000, scoped, tag = 'scoped mem for output reshape']
    #allocation1 [shape = 'u8[4096]{0}', space=vmem, size = 0x1000, scoped, tag = 'scoped mem for input reshape']
    %s3 = sshllo.u32 0, 1
    %v4 = vld [vmem:[%s0] sm:%s3]
    %5 = vst [vmem:[#allocation1] sm:%s3] %v4
    %v6 = vld [vmem:[#allocation1] sm:$0x1]
    %vm7 = vcmask 130048
    %8 = vst.msk [vmem:[#allocation0] sm:$0x1] %vm7, %v6
    %v9 = vld [vmem:[#allocation1] sm:$0x1]
    %10 = vrot.lane.b32.xlu0 %v9, 112
    %v11 = vpop.permute.xlu0 %10
    %vm12 = vcmask 130048
    %s13 = scalar_lea.vmem [#allocation0], 1
    %14 = vst.msk [vmem:[%s13] sm:$0x1] %vm12, %v11
    %v15 = vld [vmem:[#allocation1] sm:$0x1]
    %16 = vrot.lane.b32.xlu0 %v15, 96
    %v17 = vpop.permute.xlu0 %16
    %vm18 = vcmask 130048
    %s19 = scalar_lea.vmem [#allocation0], 2
    %20 = vst.msk [vmem:[%s19] sm:$0x1] %vm18, %v17
    %v21 = vld [vmem:[#allocation1] sm:$0x1]
    %22 = vrot.lane.b32.xlu0 %v21, 80
    %v23 = vpop.permute.xlu0 %22
    %vm24 = vcmask 130048
    %s25 = scalar_lea.vmem [#allocation0], 3
    %26 = vst.msk [vmem:[%s25] sm:$0x1] %vm24, %v23
    %s28 = sshllo.u32 0, 4
    %v30 = vld [vmem:[#allocation0] sm:%s28]
    %s31 = sshllo.u32 0, 4
    %32 = vst [vmem:[%s1] sm:%s31] %v30

// kernel: tile.63
$region0: #{tile.63}
  #allocation0 [shape = 's32[1]{0}', space=sflag, size = 0x4, scoped, tag = 'scoped memory for tile.63']
  %s0 = inlined_call_operand.vmem [shape: f32[16], index: 0, kind: input, shape index: {}]
  %s1 = inlined_call_operand.vmem [shape: f32[4,16], index: 1, kind: output, shape index: {}]
  // Predicated region
  $region2: #{tile.63} parent=0 // pred_check
    _
  $region3: #{tile.63} parent=0 // pred_check_branch
    %3 = sbr.rel (0) target = $region5
  $region4: #{tile.63} parent=0 // pred_region
    _
  $region5: #{tile.63} parent=0 // pred_fallthru
    _
  %v4 = vld [vmem:[%s0] ss:$0 sm:$0xff]
  %5 = vst [vmem:[%s1] sm:$0xf] %v4

// kernel: tile.64
$region0: #{tile.64}
  %s0 = inlined_call_operand.vmem [shape: f32[4,16], index: 0, kind: input, shape index: {}]
  %s1 = inlined_call_operand.vmem [shape: f32[1,64], index: 1, kind: output, shape index: {}]
  $region1: #{tile.64} parent=0
    #allocation0 [shape = 'u8[4096]{0}', space=vmem, size = 0x1000, scoped, tag = 'scoped mem for output reshape']
    #allocation1 [shape = 'u8[4096]{0}', space=vmem, size = 0x1000, scoped, tag = 'scoped mem for input reshape']
    %s3 = sshllo.u32 0, 4
    %v4 = vld [vmem:[%s0] sm:%s3]
    %5 = vst [vmem:[#allocation1] sm:%s3] %v4
    %v6 = vld [vmem:[#allocation1] sm:$0x1]
    %vm7 = vcmask 130048
    %8 = vst.msk [vmem:[#allocation0] sm:$0x1] %vm7, %v6
    %s9 = scalar_lea.vmem [#allocation1], 3
    %v10 = vld [vmem:[%s9] sm:$0x1]
    %11 = vrot.lane.b32.xlu0 %v10, 48
    %v12 = vpop.permute.xlu0 %11
    %vm13 = vcmask 523648
    %14 = vst.msk [vmem:[#allocation0] sm:$0x1] %vm13, %v12
    %s15 = scalar_lea.vmem [#allocation1], 2
    %v16 = vld [vmem:[%s15] sm:$0x1]
    %17 = vrot.lane.b32.xlu0 %v16, 32
    %v18 = vpop.permute.xlu0 %17
    %vm19 = vcmask 392448
    %20 = vst.msk [vmem:[#allocation0] sm:$0x1] %vm19, %v18
    %s21 = scalar_lea.vmem [#allocation1], 1
    %v22 = vld [vmem:[%s21] sm:$0x1]
    %23 = vrot.lane.b32.xlu0 %v22, 16
    %v24 = vpop.permute.xlu0 %23
    %vm25 = vcmask 261248
    %26 = vst.msk [vmem:[#allocation0] sm:$0x1] %vm25, %v24
    %s28 = sshllo.u32 0, 1
    %v30 = vld [vmem:[#allocation0] sm:%s28]
    %s31 = sshllo.u32 0, 1
    %32 = vst [vmem:[%s1] sm:%s31] %v30

// kernel: generator_forward.14
$region0: #{generator_forward.14}
  #allocation0 [shape = 'u32[]', space=smem, size = 0x4, offset = 0x4, fixed_abs, tag = 'smem constant byte address 0x4 - core index']
  #allocation1 [shape = 'u32[144,128]{1,0:T(1,128)}', space=vmem, size = 0x12000, scoped, tag = 'internal scratch']
  %s0 = inlined_call_operand.vmem [shape: bf16[128,64], index: 0, kind: input, shape index: {}]
  %s1 = inlined_call_operand.vmem [shape: f32[1,64], index: 1, kind: input, shape index: {}]
  %s2 = inlined_call_operand.vmem [shape: f32[1,64], index: 2, kind: input, shape index: {}]
  %s3 = inlined_call_operand.vmem [shape: bf16[128,64], index: 3, kind: output, shape index: {}]
  %s4 = sld [smem:[#allocation0]]
  $region22: #{generator_forward.14} parent=0
    _
  %s6 = ssub.s32 1, %s4
  %s7 = scalar_select 0, %s6, %s4
  // Predicated region
  $region2: #{generator_forward.14} parent=0 // pred_check
    _
  $region3: #{generator_forward.14} parent=0 // pred_check_branch
    %9 = sbr.rel (0) target = $region5
  $region4: #{generator_forward.14} parent=0 // pred_region
    _
  $region5: #{generator_forward.14} parent=0 // pred_fallthru
    _
  // Predicated region
  $region6: #{generator_forward.14} parent=0 // pred_check
    _
  $region7: #{generator_forward.14} parent=0 // pred_check_branch
    %11 = sbr.rel (0) target = $region9
  $region8: #{generator_forward.14} parent=0 // pred_region
    _
  $region9: #{generator_forward.14} parent=0 // pred_fallthru
    _
  // Predicated region
  $region10: #{generator_forward.14} parent=0 // pred_check
    _
  $region11: #{generator_forward.14} parent=0 // pred_check_branch
    %13 = sbr.rel (0) target = $region13
  $region12: #{generator_forward.14} parent=0 // pred_region
    _
  $region13: #{generator_forward.14} parent=0 // pred_fallthru
    _
  %v14 = vld [vmem:[%s0] sm:$0xf]
  %v15 = vld [vmem:[%s0 + $0x4] sm:$0xf]
  %v16 = vld [vmem:[%s0 + $0x8] sm:$0xf]
  %v17 = vld [vmem:[%s0 + $0xc] sm:$0xf]
  %v18 = vld [vmem:[%s0 + $0x10] sm:$0xf]
  %v19 = vld [vmem:[%s0 + $0x14] sm:$0xf]
  %v20 = vld [vmem:[%s0 + $0x18] sm:$0xf]
  %v21 = vld [vmem:[%s0 + $0x1c] sm:$0xf]
  %v22 = vld [vmem:[%s0 + $0x20] sm:$0xf]
  %v23 = vld [vmem:[%s0 + $0x24] sm:$0xf]
  %v24 = vld [vmem:[%s0 + $0x28] sm:$0xf]
  %v25 = vld [vmem:[%s0 + $0x2c] sm:$0xf]
  %v26 = vld [vmem:[%s0 + $0x30] sm:$0xf]
  %v27 = vld [vmem:[%s0 + $0x34] sm:$0xf]
  %v28 = vld [vmem:[%s0 + $0x38] sm:$0xf]
  %v29 = vld [vmem:[%s0 + $0x3c] sm:$0xf]
  %v30 = vunpack.c.l.bf16 %v14
  %v31 = vunpack.c.l.bf16 %v15
  %v32 = vunpack.c.l.bf16 %v16
  %v33 = vunpack.c.l.bf16 %v17
  %v34 = vunpack.c.l.bf16 %v18
  %v35 = vunpack.c.l.bf16 %v19
  %v36 = vunpack.c.l.bf16 %v20
  %v37 = vunpack.c.l.bf16 %v21
  %v38 = vunpack.c.l.bf16 %v22
  %v39 = vunpack.c.l.bf16 %v23
  %v40 = vunpack.c.l.bf16 %v24
  %v41 = vunpack.c.l.bf16 %v25
  %v42 = vunpack.c.l.bf16 %v26
  %v43 = vunpack.c.l.bf16 %v27
  %v44 = vunpack.c.l.bf16 %v28
  %v45 = vunpack.c.l.bf16 %v29
  %v46 = vld [vmem:[%s1] sm:$0x1]
  %v48 = vlaneseq
  %v49 = vshrl.u32 %v48, 7
  %v50 = vsub.s32 0, %v49
  %v51 = vrot.slane %v46, %v50
  %v53 = vmul.f32 %v30, %v51
  %v54 = vmul.f32 %v31, %v51
  %v55 = vmul.f32 %v32, %v51
  %v56 = vmul.f32 %v33, %v51
  %v57 = vmul.f32 %v34, %v51
  %v58 = vmul.f32 %v35, %v51
  %v59 = vmul.f32 %v36, %v51
  %v60 = vmul.f32 %v37, %v51
  %v61 = vmul.f32 %v38, %v51
  %v62 = vmul.f32 %v39, %v51
  %v63 = vmul.f32 %v40, %v51
  %v64 = vmul.f32 %v41, %v51
  %v65 = vmul.f32 %v42, %v51
  %v66 = vmul.f32 %v43, %v51
  %v67 = vmul.f32 %v44, %v51
  %v68 = vmul.f32 %v45, %v51
  %v69 = vld [vmem:[%s2] sm:$0x1]
  %v71 = vlaneseq
  %v72 = vshrl.u32 %v71, 7
  %v73 = vsub.s32 0, %v72
  %v74 = vrot.slane %v69, %v73
  %v76 = vadd.f32 %v53, %v74
  %v77 = vadd.f32 %v54, %v74
  %v78 = vadd.f32 %v55, %v74
  %v79 = vadd.f32 %v56, %v74
  %v80 = vadd.f32 %v57, %v74
  %v81 = vadd.f32 %v58, %v74
  %v82 = vadd.f32 %v59, %v74
  %v83 = vadd.f32 %v60, %v74
  %v84 = vadd.f32 %v61, %v74
  %v85 = vadd.f32 %v62, %v74
  %v86 = vadd.f32 %v63, %v74
  %v87 = vadd.f32 %v64, %v74
  %v88 = vadd.f32 %v65, %v74
  %v89 = vadd.f32 %v66, %v74
  %v90 = vadd.f32 %v67, %v74
  %v91 = vadd.f32 %v68, %v74
  %vm92 = vcmp.gt.f32.partialorder %v76, 0.0
  %vm93 = vcmp.gt.f32.partialorder %v77, 0.0
  %vm94 = vcmp.gt.f32.partialorder %v78, 0.0
  %vm95 = vcmp.gt.f32.partialorder %v79, 0.0
  %vm96 = vcmp.gt.f32.partialorder %v80, 0.0
  %vm97 = vcmp.gt.f32.partialorder %v81, 0.0
  %vm98 = vcmp.gt.f32.partialorder %v82, 0.0
  %vm99 = vcmp.gt.f32.partialorder %v83, 0.0
  %vm100 = vcmp.gt.f32.partialorder %v84, 0.0
  %vm101 = vcmp.gt.f32.partialorder %v85, 0.0
  %vm102 = vcmp.gt.f32.partialorder %v86, 0.0
  %vm103 = vcmp.gt.f32.partialorder %v87, 0.0
  %vm104 = vcmp.gt.f32.partialorder %v88, 0.0
  %vm105 = vcmp.gt.f32.partialorder %v89, 0.0
  %vm106 = vcmp.gt.f32.partialorder %v90, 0.0
  %vm107 = vcmp.gt.f32.partialorder %v91, 0.0
  %v108 = vmul.f32 %v76, 0.2
  %v109 = vmul.f32 %v77, 0.2
  %v110 = vmul.f32 %v78, 0.2
  %v111 = vmul.f32 %v79, 0.2
  %v112 = vmul.f32 %v80, 0.2
  %v113 = vmul.f32 %v81, 0.2
  %v114 = vmul.f32 %v82, 0.2
  %v115 = vmul.f32 %v83, 0.2
  %v116 = vmul.f32 %v84, 0.2
  %v117 = vmul.f32 %v85, 0.2
  %v118 = vmul.f32 %v86, 0.2
  %v119 = vmul.f32 %v87, 0.2
  %v120 = vmul.f32 %v88, 0.2
  %v121 = vmul.f32 %v89, 0.2
  %v122 = vmul.f32 %v90, 0.2
  %v123 = vmul.f32 %v91, 0.2
  %v124 = vsel %vm92, %v76, %v108
  %v125 = vsel %vm93, %v77, %v109
  %v126 = vsel %vm94, %v78, %v110
  %v127 = vsel %vm95, %v79, %v111
  %v128 = vsel %vm96, %v80, %v112
  %v129 = vsel %vm97, %v81, %v113
  %v130 = vsel %vm98, %v82, %v114
  %v131 = vsel %vm99, %v83, %v115
  %v132 = vsel %vm100, %v84, %v116
  %v133 = vsel %vm101, %v85, %v117
  %v134 = vsel %vm102, %v86, %v118
  %v135 = vsel %vm103, %v87, %v119
  %v136 = vsel %vm104, %v88, %v120
  %v137 = vsel %vm105, %v89, %v121
  %v138 = vsel %vm106, %v90, %v122
  %v139 = vsel %vm107, %v91, %v123
  %v140 = vpack.c.bf16 %v125, %v124
  %v141 = vpack.c.bf16 %v127, %v126
  %v142 = vpack.c.bf16 %v129, %v128
  %v143 = vpack.c.bf16 %v131, %v130
  %v144 = vpack.c.bf16 %v133, %v132
  %v145 = vpack.c.bf16 %v135, %v134
  %v146 = vpack.c.bf16 %v137, %v136
  %v147 = vpack.c.bf16 %v139, %v138
  %v156 = vunpack.c.l.b16 %v140
  %v157 = vunpack.c.h.b16 %v140
  %v158 = vunpack.c.l.b16 %v141
  %v159 = vunpack.c.h.b16 %v141
  %v160 = vunpack.c.l.b16 %v142
  %v161 = vunpack.c.h.b16 %v142
  %v162 = vunpack.c.l.b16 %v143
  %v163 = vunpack.c.h.b16 %v143
  %v164 = vunpack.c.l.b16 %v144
  %v165 = vunpack.c.h.b16 %v144
  %v166 = vunpack.c.l.b16 %v145
  %v167 = vunpack.c.h.b16 %v145
  %v168 = vunpack.c.l.b16 %v146
  %v169 = vunpack.c.h.b16 %v146
  %v170 = vunpack.c.l.b16 %v147
  %v171 = vunpack.c.h.b16 %v147
  %v172 = vpack.c.b16 %v156, %v156
  %v173 = vpack.c.b16 %v157, %v157
  %v174 = vpack.c.b16 %v158, %v158
  %v175 = vpack.c.b16 %v159, %v159
  %v176 = vpack.c.b16 %v160, %v160
  %v177 = vpack.c.b16 %v161, %v161
  %v178 = vpack.c.b16 %v162, %v162
  %v179 = vpack.c.b16 %v163, %v163
  %v180 = vpack.c.b16 %v164, %v164
  %v181 = vpack.c.b16 %v165, %v165
  %v182 = vpack.c.b16 %v166, %v166
  %v183 = vpack.c.b16 %v167, %v167
  %v184 = vpack.c.b16 %v168, %v168
  %v185 = vpack.c.b16 %v169, %v169
  %v186 = vpack.c.b16 %v170, %v170
  %v187 = vpack.c.b16 %v171, %v171
  %vm204 = vcmask 519168
  %205 = vst.msk [vmem:[%s3] sm:$0xf] %vm204, %v172
  %206 = vst.msk [vmem:[%s3 + $0x4] sm:$0xf] %vm204, %v173
  %207 = vst.msk [vmem:[%s3 + $0x8] sm:$0xf] %vm204, %v174
  %208 = vst.msk [vmem:[%s3 + $0xc] sm:$0xf] %vm204, %v175
  %209 = vst.msk [vmem:[%s3 + $0x10] sm:$0xf] %vm204, %v176
  %210 = vst.msk [vmem:[%s3 + $0x14] sm:$0xf] %vm204, %v177
  %211 = vst.msk [vmem:[%s3 + $0x18] sm:$0xf] %vm204, %v178
  %212 = vst.msk [vmem:[%s3 + $0x1c] sm:$0xf] %vm204, %v179
  %213 = vst.msk [vmem:[%s3 + $0x20] sm:$0xf] %vm204, %v180
  %214 = vst.msk [vmem:[%s3 + $0x24] sm:$0xf] %vm204, %v181
  %215 = vst.msk [vmem:[%s3 + $0x28] sm:$0xf] %vm204, %v182
  %216 = vst.msk [vmem:[%s3 + $0x2c] sm:$0xf] %vm204, %v183
  %217 = vst.msk [vmem:[%s3 + $0x30] sm:$0xf] %vm204, %v184
  %218 = vst.msk [vmem:[%s3 + $0x34] sm:$0xf] %vm204, %v185
  %219 = vst.msk [vmem:[%s3 + $0x38] sm:$0xf] %vm204, %v186
  %220 = vst.msk [vmem:[%s3 + $0x3c] sm:$0xf] %vm204, %v187
  // Predicated region
  $region14: #{generator_forward.14} parent=0 // pred_check
    _
  $region15: #{generator_forward.14} parent=0 // pred_check_branch
    %222 = sbr.rel (0) target = $region17
  $region16: #{generator_forward.14} parent=0 // pred_region
    _
  $region17: #{generator_forward.14} parent=0 // pred_fallthru
    _
  // Predicated region
  $region18: #{generator_forward.14} parent=0 // pred_check
    _
  $region19: #{generator_forward.14} parent=0 // pred_check_branch
    %224 = sbr.rel (0) target = $region21
  $region20: #{generator_forward.14} parent=0 // pred_region
    _
  $region21: #{generator_forward.14} parent=0 // pred_fallthru
    _

// kernel: generator_forward.13
$region0: #{generator_forward.13}
  #allocation0 [shape = 'u32[]', space=smem, size = 0x4, offset = 0x4, fixed_abs, tag = 'smem constant byte address 0x4 - core index']
  #allocation1 [shape = 'u32[144,128]{1,0:T(1,128)}', space=vmem, size = 0x12000, scoped, tag = 'internal scratch']
  %s0 = inlined_call_operand.vmem [shape: bf16[128,128], index: 0, kind: input, shape index: {}]
  %s1 = inlined_call_operand.vmem [shape: bf16[128,128], index: 1, kind: input, shape index: {}]
  %s2 = inlined_call_operand.vmem [shape: bf16[128,128], index: 2, kind: input, shape index: {}]
  %s3 = inlined_call_operand.vmem [shape: bf16[128,128], index: 3, kind: input, shape index: {}]
  %s4 = inlined_call_operand.vmem [shape: bf16[4,128,16], index: 4, kind: input, shape index: {}]
  %s5 = inlined_call_operand.vmem [shape: bf16[128,64], index: 5, kind: output, shape index: {0}]
  %s6 = inlined_call_operand.vmem [shape: f32[1,2,64], index: 6, kind: output, shape index: {1}]
  %7 = xla_tuple %s5, %s6
  %s8 = sld [smem:[#allocation0]]
  $region38: #{generator_forward.13} parent=0
    _
  %s10 = ssub.s32 1, %s8
  %s11 = scalar_select 0, %s10, %s8
  // Predicated region
  $region2: #{generator_forward.13} parent=0 // pred_check
    _
  $region3: #{generator_forward.13} parent=0 // pred_check_branch
    %13 = sbr.rel (0) target = $region5
  $region4: #{generator_forward.13} parent=0 // pred_region
    _
  $region5: #{generator_forward.13} parent=0 // pred_fallthru
    _
  // Predicated region
  $region6: #{generator_forward.13} parent=0 // pred_check
    _
  $region7: #{generator_forward.13} parent=0 // pred_check_branch
    %15 = sbr.rel (0) target = $region9
  $region8: #{generator_forward.13} parent=0 // pred_region
    _
  $region9: #{generator_forward.13} parent=0 // pred_fallthru
    _
  // Predicated region
  $region10: #{generator_forward.13} parent=0 // pred_check
    _
  $region11: #{generator_forward.13} parent=0 // pred_check_branch
    %17 = sbr.rel (0) target = $region13
  $region12: #{generator_forward.13} parent=0 // pred_region
    _
  $region13: #{generator_forward.13} parent=0 // pred_fallthru
    _
  // Predicated region
  $region14: #{generator_forward.13} parent=0 // pred_check
    _
  $region15: #{generator_forward.13} parent=0 // pred_check_branch
    %19 = sbr.rel (0) target = $region17
  $region16: #{generator_forward.13} parent=0 // pred_region
    _
  $region17: #{generator_forward.13} parent=0 // pred_fallthru
    _
  // Predicated region
  $region18: #{generator_forward.13} parent=0 // pred_check
    _
  $region19: #{generator_forward.13} parent=0 // pred_check_branch
    %21 = sbr.rel (0) target = $region21
  $region20: #{generator_forward.13} parent=0 // pred_region
    _
  $region21: #{generator_forward.13} parent=0 // pred_fallthru
    _
  %v23 = vld [vmem:[%s0] sm:$0xf]
  %v24 = vld [vmem:[%s0 + $0x4] sm:$0xf]
  %v25 = vld [vmem:[%s0 + $0x8] sm:$0xf]
  %v26 = vld [vmem:[%s0 + $0xc] sm:$0xf]
  %v27 = vld [vmem:[%s0 + $0x10] sm:$0xf]
  %v28 = vld [vmem:[%s0 + $0x14] sm:$0xf]
  %v29 = vld [vmem:[%s0 + $0x18] sm:$0xf]
  %v30 = vld [vmem:[%s0 + $0x1c] sm:$0xf]
  %v31 = vld [vmem:[%s0 + $0x20] sm:$0xf]
  %v32 = vld [vmem:[%s0 + $0x24] sm:$0xf]
  %v33 = vld [vmem:[%s0 + $0x28] sm:$0xf]
  %v34 = vld [vmem:[%s0 + $0x2c] sm:$0xf]
  %v35 = vld [vmem:[%s0 + $0x30] sm:$0xf]
  %v36 = vld [vmem:[%s0 + $0x34] sm:$0xf]
  %v37 = vld [vmem:[%s0 + $0x38] sm:$0xf]
  %v38 = vld [vmem:[%s0 + $0x3c] sm:$0xf]
  %v39 = vld [vmem:[%s4] sm:$0xf]
  %v40 = vld [vmem:[%s4 + $0x4] sm:$0xf]
  %v41 = vld [vmem:[%s4 + $0x8] sm:$0xf]
  %v42 = vld [vmem:[%s4 + $0xc] sm:$0xf]
  %v43 = vld [vmem:[%s4 + $0x10] sm:$0xf]
  %v44 = vld [vmem:[%s4 + $0x14] sm:$0xf]
  %v45 = vld [vmem:[%s4 + $0x18] sm:$0xf]
  %v46 = vld [vmem:[%s4 + $0x1c] sm:$0xf]
  %v47 = vld [vmem:[%s4 + $0x20] sm:$0xf]
  %v48 = vld [vmem:[%s4 + $0x24] sm:$0xf]
  %v49 = vld [vmem:[%s4 + $0x28] sm:$0xf]
  %v50 = vld [vmem:[%s4 + $0x2c] sm:$0xf]
  %v51 = vld [vmem:[%s4 + $0x30] sm:$0xf]
  %v52 = vld [vmem:[%s4 + $0x34] sm:$0xf]
  %v53 = vld [vmem:[%s4 + $0x38] sm:$0xf]
  %v54 = vld [vmem:[%s4 + $0x3c] sm:$0xf]
  %v71 = vunpack.c.l.b16 %v23
  %v72 = vunpack.c.l.b16 %v24
  %v73 = vunpack.c.l.b16 %v25
  %v74 = vunpack.c.l.b16 %v26
  %v75 = vunpack.c.l.b16 %v27
  %v76 = vunpack.c.l.b16 %v28
  %v77 = vunpack.c.l.b16 %v29
  %v78 = vunpack.c.l.b16 %v30
  %v79 = vunpack.c.l.b16 %v31
  %v80 = vunpack.c.l.b16 %v32
  %v81 = vunpack.c.l.b16 %v33
  %v82 = vunpack.c.l.b16 %v34
  %v83 = vunpack.c.l.b16 %v35
  %v84 = vunpack.c.l.b16 %v36
  %v85 = vunpack.c.l.b16 %v37
  %v86 = vunpack.c.l.b16 %v38
  %v87 = vpack.c.b16 %v72, %v71
  %v88 = vpack.c.b16 %v74, %v73
  %v89 = vpack.c.b16 %v76, %v75
  %v90 = vpack.c.b16 %v78, %v77
  %v91 = vpack.c.b16 %v80, %v79
  %v92 = vpack.c.b16 %v82, %v81
  %v93 = vpack.c.b16 %v84, %v83
  %v94 = vpack.c.b16 %v86, %v85
  %v119 = vunpack.c.l.b16 %v39
  %v120 = vunpack.c.l.b16 %v40
  %v121 = vunpack.c.l.b16 %v41
  %v122 = vunpack.c.l.b16 %v42
  %v123 = vunpack.c.l.b16 %v43
  %v124 = vunpack.c.l.b16 %v44
  %v125 = vunpack.c.l.b16 %v45
  %v126 = vunpack.c.l.b16 %v46
  %v127 = vunpack.c.l.b16 %v47
  %v128 = vunpack.c.l.b16 %v48
  %v129 = vunpack.c.l.b16 %v49
  %v130 = vunpack.c.l.b16 %v50
  %v131 = vunpack.c.l.b16 %v51
  %v132 = vunpack.c.l.b16 %v52
  %v133 = vunpack.c.l.b16 %v53
  %v134 = vunpack.c.l.b16 %v54
  %v135 = vpack.c.b16 %v120, %v119
  %v136 = vpack.c.b16 %v122, %v121
  %v137 = vpack.c.b16 %v124, %v123
  %v138 = vpack.c.b16 %v126, %v125
  %v139 = vpack.c.b16 %v128, %v127
  %v140 = vpack.c.b16 %v130, %v129
  %v141 = vpack.c.b16 %v132, %v131
  %v142 = vpack.c.b16 %v134, %v133
  %151 = vmatprep.subr.bf16.mxu0 0
  %152 = vmatpush1.bf16.msra.mxu0 %v135
  %153 = vmatprep.subr.bf16.mxu0 0
  %154 = vmatpush1.bf16.msra.mxu0 %v136
  %155 = vmatprep.subr.bf16.mxu0 0
  %156 = vmatpush1.bf16.msra.mxu0 %v137
  %157 = vmatprep.subr.bf16.mxu0 0
  %158 = vmatpush1.bf16.msra.mxu0 %v138
  %159 = vmatprep.subr.bf16.mxu0 0
  %160 = vmatpush1.bf16.msra.mxu0 %v139
  %161 = vmatprep.subr.bf16.mxu0 0
  %162 = vmatpush1.bf16.msra.mxu0 %v140
  %163 = vmatprep.subr.bf16.mxu0 0
  %164 = vmatpush1.bf16.msra.mxu0 %v141
  %165 = vmatprep.subr.bf16.mxu0 0
  %166 = vmatpush1.bf16.msra.mxu0 %v142
  %167 = vmatprep.subr.bf16.mxu0 0
  %168 = vmatpush1.bf16.msra.mxu0 0
  %169 = vmatprep.subr.bf16.mxu0 0
  %170 = vmatpush1.bf16.msra.mxu0 0
  %171 = vmatprep.subr.bf16.mxu0 0
  %172 = vmatpush1.bf16.msra.mxu0 0
  %173 = vmatprep.subr.bf16.mxu0 0
  %174 = vmatpush1.bf16.msra.mxu0 0
  %175 = vmatprep.subr.bf16.mxu0 0
  %176 = vmatpush1.bf16.msra.mxu0 0
  %177 = vmatprep.subr.bf16.mxu0 0
  %178 = vmatpush1.bf16.msra.mxu0 0
  %179 = vmatprep.subr.bf16.mxu0 0
  %180 = vmatpush1.bf16.msra.mxu0 0
  %181 = vmatprep.subr.bf16.mxu0 0
  %182 = vmatpush1.bf16.msra.mxu0 0
  %183 = vmatprep.mubr.bf16.mxu0 0
  %184 = vmatmul.mubr.bf16.gmra.mrb[0].mxu0 %v87
  %v185 = vpop.f32.mrb[0].mxu0
  %v186 = vadd.f32 0.0, %v185
  %v187 = vpop.f32.mrb[0].mxu0
  %v188 = vpop.f32.mrb[0].mxu0
  %v189 = vadd.f32 0.0, %v188
  %v190 = vpop.f32.mrb[0].mxu0
  %191 = vmatprep.mubr.bf16.mxu0 0
  %192 = vmatmul.mubr.bf16.gmra.mrb[0].mxu0 %v88
  %v193 = vpop.f32.mrb[0].mxu0
  %v194 = vadd.f32 0.0, %v193
  %v195 = vpop.f32.mrb[0].mxu0
  %v196 = vpop.f32.mrb[0].mxu0
  %v197 = vadd.f32 0.0, %v196
  %v198 = vpop.f32.mrb[0].mxu0
  %199 = vmatprep.mubr.bf16.mxu0 0
  %200 = vmatmul.mubr.bf16.gmra.mrb[0].mxu0 %v89
  %v201 = vpop.f32.mrb[0].mxu0
  %v202 = vadd.f32 0.0, %v201
  %v203 = vpop.f32.mrb[0].mxu0
  %v204 = vpop.f32.mrb[0].mxu0
  %v205 = vadd.f32 0.0, %v204
  %v206 = vpop.f32.mrb[0].mxu0
  %207 = vmatprep.mubr.bf16.mxu0 0
  %208 = vmatmul.mubr.bf16.gmra.mrb[0].mxu0 %v90
  %v209 = vpop.f32.mrb[0].mxu0
  %v210 = vadd.f32 0.0, %v209
  %v211 = vpop.f32.mrb[0].mxu0
  %v212 = vpop.f32.mrb[0].mxu0
  %v213 = vadd.f32 0.0, %v212
  %v214 = vpop.f32.mrb[0].mxu0
  %215 = vmatprep.mubr.bf16.mxu0 0
  %216 = vmatmul.mubr.bf16.gmra.mrb[0].mxu0 %v91
  %v217 = vpop.f32.mrb[0].mxu0
  %v218 = vadd.f32 0.0, %v217
  %v219 = vpop.f32.mrb[0].mxu0
  %v220 = vpop.f32.mrb[0].mxu0
  %v221 = vadd.f32 0.0, %v220
  %v222 = vpop.f32.mrb[0].mxu0
  %223 = vmatprep.mubr.bf16.mxu0 0
  %224 = vmatmul.mubr.bf16.gmra.mrb[0].mxu0 %v92
  %v225 = vpop.f32.mrb[0].mxu0
  %v226 = vadd.f32 0.0, %v225
  %v227 = vpop.f32.mrb[0].mxu0
  %v228 = vpop.f32.mrb[0].mxu0
  %v229 = vadd.f32 0.0, %v228
  %v230 = vpop.f32.mrb[0].mxu0
  %231 = vmatprep.mubr.bf16.mxu0 0
  %232 = vmatmul.mubr.bf16.gmra.mrb[0].mxu0 %v93
  %v233 = vpop.f32.mrb[0].mxu0
  %v234 = vadd.f32 0.0, %v233
  %v235 = vpop.f32.mrb[0].mxu0
  %v236 = vpop.f32.mrb[0].mxu0
  %v237 = vadd.f32 0.0, %v236
  %v238 = vpop.f32.mrb[0].mxu0
  %239 = vmatprep.mubr.bf16.mxu0 0
  %240 = vmatmul.mubr.bf16.gmra.mrb[0].mxu0 %v94
  %v241 = vpop.f32.mrb[0].mxu0
  %v242 = vadd.f32 0.0, %v241
  %v243 = vpop.f32.mrb[0].mxu0
  %v244 = vpop.f32.mrb[0].mxu0
  %v245 = vadd.f32 0.0, %v244
  %v246 = vpop.f32.mrb[0].mxu0
  %247 = vdwg.mxu0
  %v248 = vld [vmem:[%s1] sm:$0xf]
  %v249 = vld [vmem:[%s1 + $0x4] sm:$0xf]
  %v250 = vld [vmem:[%s1 + $0x8] sm:$0xf]
  %v251 = vld [vmem:[%s1 + $0xc] sm:$0xf]
  %v252 = vld [vmem:[%s1 + $0x10] sm:$0xf]
  %v253 = vld [vmem:[%s1 + $0x14] sm:$0xf]
  %v254 = vld [vmem:[%s1 + $0x18] sm:$0xf]
  %v255 = vld [vmem:[%s1 + $0x1c] sm:$0xf]
  %v256 = vld [vmem:[%s1 + $0x20] sm:$0xf]
  %v257 = vld [vmem:[%s1 + $0x24] sm:$0xf]
  %v258 = vld [vmem:[%s1 + $0x28] sm:$0xf]
  %v259 = vld [vmem:[%s1 + $0x2c] sm:$0xf]
  %v260 = vld [vmem:[%s1 + $0x30] sm:$0xf]
  %v261 = vld [vmem:[%s1 + $0x34] sm:$0xf]
  %v262 = vld [vmem:[%s1 + $0x38] sm:$0xf]
  %v263 = vld [vmem:[%s1 + $0x3c] sm:$0xf]
  %s264 = scalar_lea.vmem %s4, 64
  %v265 = vld [vmem:[%s264] sm:$0xf]
  %v266 = vld [vmem:[%s264 + $0x4] sm:$0xf]
  %v267 = vld [vmem:[%s264 + $0x8] sm:$0xf]
  %v268 = vld [vmem:[%s264 + $0xc] sm:$0xf]
  %v269 = vld [vmem:[%s264 + $0x10] sm:$0xf]
  %v270 = vld [vmem:[%s264 + $0x14] sm:$0xf]
  %v271 = vld [vmem:[%s264 + $0x18] sm:$0xf]
  %v272 = vld [vmem:[%s264 + $0x1c] sm:$0xf]
  %v273 = vld [vmem:[%s264 + $0x20] sm:$0xf]
  %v274 = vld [vmem:[%s264 + $0x24] sm:$0xf]
  %v275 = vld [vmem:[%s264 + $0x28] sm:$0xf]
  %v276 = vld [vmem:[%s264 + $0x2c] sm:$0xf]
  %v277 = vld [vmem:[%s264 + $0x30] sm:$0xf]
  %v278 = vld [vmem:[%s264 + $0x34] sm:$0xf]
  %v279 = vld [vmem:[%s264 + $0x38] sm:$0xf]
  %v280 = vld [vmem:[%s264 + $0x3c] sm:$0xf]
  %v297 = vunpack.c.l.b16 %v248
  %v298 = vunpack.c.l.b16 %v249
  %v299 = vunpack.c.l.b16 %v250
  %v300 = vunpack.c.l.b16 %v251
  %v301 = vunpack.c.l.b16 %v252
  %v302 = vunpack.c.l.b16 %v253
  %v303 = vunpack.c.l.b16 %v254
  %v304 = vunpack.c.l.b16 %v255
  %v305 = vunpack.c.l.b16 %v256
  %v306 = vunpack.c.l.b16 %v257
  %v307 = vunpack.c.l.b16 %v258
  %v308 = vunpack.c.l.b16 %v259
  %v309 = vunpack.c.l.b16 %v260
  %v310 = vunpack.c.l.b16 %v261
  %v311 = vunpack.c.l.b16 %v262
  %v312 = vunpack.c.l.b16 %v263
  %v313 = vpack.c.b16 %v298, %v297
  %v314 = vpack.c.b16 %v300, %v299
  %v315 = vpack.c.b16 %v302, %v301
  %v316 = vpack.c.b16 %v304, %v303
  %v317 = vpack.c.b16 %v306, %v305
  %v318 = vpack.c.b16 %v308, %v307
  %v319 = vpack.c.b16 %v310, %v309
  %v320 = vpack.c.b16 %v312, %v311
  %v345 = vunpack.c.l.b16 %v265
  %v346 = vunpack.c.l.b16 %v266
  %v347 = vunpack.c.l.b16 %v267
  %v348 = vunpack.c.l.b16 %v268
  %v349 = vunpack.c.l.b16 %v269
  %v350 = vunpack.c.l.b16 %v270
  %v351 = vunpack.c.l.b16 %v271
  %v352 = vunpack.c.l.b16 %v272
  %v353 = vunpack.c.l.b16 %v273
  %v354 = vunpack.c.l.b16 %v274
  %v355 = vunpack.c.l.b16 %v275
  %v356 = vunpack.c.l.b16 %v276
  %v357 = vunpack.c.l.b16 %v277
  %v358 = vunpack.c.l.b16 %v278
  %v359 = vunpack.c.l.b16 %v279
  %v360 = vunpack.c.l.b16 %v280
  %v361 = vpack.c.b16 %v346, %v345
  %v362 = vpack.c.b16 %v348, %v347
  %v363 = vpack.c.b16 %v350, %v349
  %v364 = vpack.c.b16 %v352, %v351
  %v365 = vpack.c.b16 %v354, %v353
  %v366 = vpack.c.b16 %v356, %v355
  %v367 = vpack.c.b16 %v358, %v357
  %v368 = vpack.c.b16 %v360, %v359
  %377 = vmatprep.subr.bf16.mxu0 0
  %378 = vmatpush1.bf16.msra.mxu0 %v361
  %379 = vmatprep.subr.bf16.mxu0 0
  %380 = vmatpush1.bf16.msra.mxu0 %v362
  %381 = vmatprep.subr.bf16.mxu0 0
  %382 = vmatpush1.bf16.msra.mxu0 %v363
  %383 = vmatprep.subr.bf16.mxu0 0
  %384 = vmatpush1.bf16.msra.mxu0 %v364
  %385 = vmatprep.subr.bf16.mxu0 0
  %386 = vmatpush1.bf16.msra.mxu0 %v365
  %387 = vmatprep.subr.bf16.mxu0 0
  %388 = vmatpush1.bf16.msra.mxu0 %v366
  %389 = vmatprep.subr.bf16.mxu0 0
  %390 = vmatpush1.bf16.msra.mxu0 %v367
  %391 = vmatprep.subr.bf16.mxu0 0
  %392 = vmatpush1.bf16.msra.mxu0 %v368
  %393 = vmatprep.subr.bf16.mxu0 0
  %394 = vmatpush1.bf16.msra.mxu0 0
  %395 = vmatprep.subr.bf16.mxu0 0
  %396 = vmatpush1.bf16.msra.mxu0 0
  %397 = vmatprep.subr.bf16.mxu0 0
  %398 = vmatpush1.bf16.msra.mxu0 0
  %399 = vmatprep.subr.bf16.mxu0 0
  %400 = vmatpush1.bf16.msra.mxu0 0
  %401 = vmatprep.subr.bf16.mxu0 0
  %402 = vmatpush1.bf16.msra.mxu0 0
  %403 = vmatprep.subr.bf16.mxu0 0
  %404 = vmatpush1.bf16.msra.mxu0 0
  %405 = vmatprep.subr.bf16.mxu0 0
  %406 = vmatpush1.bf16.msra.mxu0 0
  %407 = vmatprep.subr.bf16.mxu0 0
  %408 = vmatpush1.bf16.msra.mxu0 0
  %409 = vmatprep.mubr.bf16.mxu0 0
  %410 = vmatmul.mubr.bf16.gmra.mrb[0].mxu0 %v313
  %v411 = vpop.f32.mrb[0].mxu0
  %v412 = vadd.f32 0.0, %v411
  %v413 = vpop.f32.mrb[0].mxu0
  %v414 = vpop.f32.mrb[0].mxu0
  %v415 = vadd.f32 0.0, %v414
  %v416 = vpop.f32.mrb[0].mxu0
  %417 = vmatprep.mubr.bf16.mxu0 0
  %418 = vmatmul.mubr.bf16.gmra.mrb[0].mxu0 %v314
  %v419 = vpop.f32.mrb[0].mxu0
  %v420 = vadd.f32 0.0, %v419
  %v421 = vpop.f32.mrb[0].mxu0
  %v422 = vpop.f32.mrb[0].mxu0
  %v423 = vadd.f32 0.0, %v422
  %v424 = vpop.f32.mrb[0].mxu0
  %425 = vmatprep.mubr.bf16.mxu0 0
  %426 = vmatmul.mubr.bf16.gmra.mrb[0].mxu0 %v315
  %v427 = vpop.f32.mrb[0].mxu0
  %v428 = vadd.f32 0.0, %v427
  %v429 = vpop.f32.mrb[0].mxu0
  %v430 = vpop.f32.mrb[0].mxu0
  %v431 = vadd.f32 0.0, %v430
  %v432 = vpop.f32.mrb[0].mxu0
  %433 = vmatprep.mubr.bf16.mxu0 0
  %434 = vmatmul.mubr.bf16.gmra.mrb[0].mxu0 %v316
  %v435 = vpop.f32.mrb[0].mxu0
  %v436 = vadd.f32 0.0, %v435
  %v437 = vpop.f32.mrb[0].mxu0
  %v438 = vpop.f32.mrb[0].mxu0
  %v439 = vadd.f32 0.0, %v438
  %v440 = vpop.f32.mrb[0].mxu0
  %441 = vmatprep.mubr.bf16.mxu0 0
  %442 = vmatmul.mubr.bf16.gmra.mrb[0].mxu0 %v317
  %v443 = vpop.f32.mrb[0].mxu0
  %v444 = vadd.f32 0.0, %v443
  %v445 = vpop.f32.mrb[0].mxu0
  %v446 = vpop.f32.mrb[0].mxu0
  %v447 = vadd.f32 0.0, %v446
  %v448 = vpop.f32.mrb[0].mxu0
  %449 = vmatprep.mubr.bf16.mxu0 0
  %450 = vmatmul.mubr.bf16.gmra.mrb[0].mxu0 %v318
  %v451 = vpop.f32.mrb[0].mxu0
  %v452 = vadd.f32 0.0, %v451
  %v453 = vpop.f32.mrb[0].mxu0
  %v454 = vpop.f32.mrb[0].mxu0
  %v455 = vadd.f32 0.0, %v454
  %v456 = vpop.f32.mrb[0].mxu0
  %457 = vmatprep.mubr.bf16.mxu0 0
  %458 = vmatmul.mubr.bf16.gmra.mrb[0].mxu0 %v319
  %v459 = vpop.f32.mrb[0].mxu0
  %v460 = vadd.f32 0.0, %v459
  %v461 = vpop.f32.mrb[0].mxu0
  %v462 = vpop.f32.mrb[0].mxu0
  %v463 = vadd.f32 0.0, %v462
  %v464 = vpop.f32.mrb[0].mxu0
  %465 = vmatprep.mubr.bf16.mxu0 0
  %466 = vmatmul.mubr.bf16.gmra.mrb[0].mxu0 %v320
  %v467 = vpop.f32.mrb[0].mxu0
  %v468 = vadd.f32 0.0, %v467
  %v469 = vpop.f32.mrb[0].mxu0
  %v470 = vpop.f32.mrb[0].mxu0
  %v471 = vadd.f32 0.0, %v470
  %v472 = vpop.f32.mrb[0].mxu0
  %473 = vdwg.mxu0
  %v474 = vld [vmem:[%s2] sm:$0xf]
  %v475 = vld [vmem:[%s2 + $0x4] sm:$0xf]
  %v476 = vld [vmem:[%s2 + $0x8] sm:$0xf]
  %v477 = vld [vmem:[%s2 + $0xc] sm:$0xf]
  %v478 = vld [vmem:[%s2 + $0x10] sm:$0xf]
  %v479 = vld [vmem:[%s2 + $0x14] sm:$0xf]
  %v480 = vld [vmem:[%s2 + $0x18] sm:$0xf]
  %v481 = vld [vmem:[%s2 + $0x1c] sm:$0xf]
  %v482 = vld [vmem:[%s2 + $0x20] sm:$0xf]
  %v483 = vld [vmem:[%s2 + $0x24] sm:$0xf]
  %v484 = vld [vmem:[%s2 + $0x28] sm:$0xf]
  %v485 = vld [vmem:[%s2 + $0x2c] sm:$0xf]
  %v486 = vld [vmem:[%s2 + $0x30] sm:$0xf]
  %v487 = vld [vmem:[%s2 + $0x34] sm:$0xf]
  %v488 = vld [vmem:[%s2 + $0x38] sm:$0xf]
  %v489 = vld [vmem:[%s2 + $0x3c] sm:$0xf]
  %s490 = scalar_lea.vmem %s4, 128
  %v491 = vld [vmem:[%s490] sm:$0xf]
  %v492 = vld [vmem:[%s490 + $0x4] sm:$0xf]
  %v493 = vld [vmem:[%s490 + $0x8] sm:$0xf]
  %v494 = vld [vmem:[%s490 + $0xc] sm:$0xf]
  %v495 = vld [vmem:[%s490 + $0x10] sm:$0xf]
  %v496 = vld [vmem:[%s490 + $0x14] sm:$0xf]
  %v497 = vld [vmem:[%s490 + $0x18] sm:$0xf]
  %v498 = vld [vmem:[%s490 + $0x1c] sm:$0xf]
  %v499 = vld [vmem:[%s490 + $0x20] sm:$0xf]
  %v500 = vld [vmem:[%s490 + $0x24] sm:$0xf]
  %v501 = vld [vmem:[%s490 + $0x28] sm:$0xf]
  %v502 = vld [vmem:[%s490 + $0x2c] sm:$0xf]
  %v503 = vld [vmem:[%s490 + $0x30] sm:$0xf]
  %v504 = vld [vmem:[%s490 + $0x34] sm:$0xf]
  %v505 = vld [vmem:[%s490 + $0x38] sm:$0xf]
  %v506 = vld [vmem:[%s490 + $0x3c] sm:$0xf]
  %v523 = vunpack.c.l.b16 %v474
  %v524 = vunpack.c.l.b16 %v475
  %v525 = vunpack.c.l.b16 %v476
  %v526 = vunpack.c.l.b16 %v477
  %v527 = vunpack.c.l.b16 %v478
  %v528 = vunpack.c.l.b16 %v479
  %v529 = vunpack.c.l.b16 %v480
  %v530 = vunpack.c.l.b16 %v481
  %v531 = vunpack.c.l.b16 %v482
  %v532 = vunpack.c.l.b16 %v483
  %v533 = vunpack.c.l.b16 %v484
  %v534 = vunpack.c.l.b16 %v485
  %v535 = vunpack.c.l.b16 %v486
  %v536 = vunpack.c.l.b16 %v487
  %v537 = vunpack.c.l.b16 %v488
  %v538 = vunpack.c.l.b16 %v489
  %v539 = vpack.c.b16 %v524, %v523
  %v540 = vpack.c.b16 %v526, %v525
  %v541 = vpack.c.b16 %v528, %v527
  %v542 = vpack.c.b16 %v530, %v529
  %v543 = vpack.c.b16 %v532, %v531
  %v544 = vpack.c.b16 %v534, %v533
  %v545 = vpack.c.b16 %v536, %v535
  %v546 = vpack.c.b16 %v538, %v537
  %v571 = vunpack.c.l.b16 %v491
  %v572 = vunpack.c.l.b16 %v492
  %v573 = vunpack.c.l.b16 %v493
  %v574 = vunpack.c.l.b16 %v494
  %v575 = vunpack.c.l.b16 %v495
  %v576 = vunpack.c.l.b16 %v496
  %v577 = vunpack.c.l.b16 %v497
  %v578 = vunpack.c.l.b16 %v498
  %v579 = vunpack.c.l.b16 %v499
  %v580 = vunpack.c.l.b16 %v500
  %v581 = vunpack.c.l.b16 %v501
  %v582 = vunpack.c.l.b16 %v502
  %v583 = vunpack.c.l.b16 %v503
  %v584 = vunpack.c.l.b16 %v504
  %v585 = vunpack.c.l.b16 %v505
  %v586 = vunpack.c.l.b16 %v506
  %v587 = vpack.c.b16 %v572, %v571
  %v588 = vpack.c.b16 %v574, %v573
  %v589 = vpack.c.b16 %v576, %v575
  %v590 = vpack.c.b16 %v578, %v577
  %v591 = vpack.c.b16 %v580, %v579
  %v592 = vpack.c.b16 %v582, %v581
  %v593 = vpack.c.b16 %v584, %v583
  %v594 = vpack.c.b16 %v586, %v585
  %603 = vmatprep.subr.bf16.mxu0 0
  %604 = vmatpush1.bf16.msra.mxu0 %v587
  %605 = vmatprep.subr.bf16.mxu0 0
  %606 = vmatpush1.bf16.msra.mxu0 %v588
  %607 = vmatprep.subr.bf16.mxu0 0
  %608 = vmatpush1.bf16.msra.mxu0 %v589
  %609 = vmatprep.subr.bf16.mxu0 0
  %610 = vmatpush1.bf16.msra.mxu0 %v590
  %611 = vmatprep.subr.bf16.mxu0 0
  %612 = vmatpush1.bf16.msra.mxu0 %v591
  %613 = vmatprep.subr.bf16.mxu0 0
  %614 = vmatpush1.bf16.msra.mxu0 %v592
  %615 = vmatprep.subr.bf16.mxu0 0
  %616 = vmatpush1.bf16.msra.mxu0 %v593
  %617 = vmatprep.subr.bf16.mxu0 0
  %618 = vmatpush1.bf16.msra.mxu0 %v594
  %619 = vmatprep.subr.bf16.mxu0 0
  %620 = vmatpush1.bf16.msra.mxu0 0
  %621 = vmatprep.subr.bf16.mxu0 0
  %622 = vmatpush1.bf16.msra.mxu0 0
  %623 = vmatprep.subr.bf16.mxu0 0
  %624 = vmatpush1.bf16.msra.mxu0 0
  %625 = vmatprep.subr.bf16.mxu0 0
  %626 = vmatpush1.bf16.msra.mxu0 0
  %627 = vmatprep.subr.bf16.mxu0 0
  %628 = vmatpush1.bf16.msra.mxu0 0
  %629 = vmatprep.subr.bf16.mxu0 0
  %630 = vmatpush1.bf16.msra.mxu0 0
  %631 = vmatprep.subr.bf16.mxu0 0
  %632 = vmatpush1.bf16.msra.mxu0 0
  %633 = vmatprep.subr.bf16.mxu0 0
  %634 = vmatpush1.bf16.msra.mxu0 0
  %635 = vmatprep.mubr.bf16.mxu0 0
  %636 = vmatmul.mubr.bf16.gmra.mrb[0].mxu0 %v539
  %v637 = vpop.f32.mrb[0].mxu0
  %v638 = vadd.f32 0.0, %v637
  %v639 = vpop.f32.mrb[0].mxu0
  %v640 = vpop.f32.mrb[0].mxu0
  %v641 = vadd.f32 0.0, %v640
  %v642 = vpop.f32.mrb[0].mxu0
  %643 = vmatprep.mubr.bf16.mxu0 0
  %644 = vmatmul.mubr.bf16.gmra.mrb[0].mxu0 %v540
  %v645 = vpop.f32.mrb[0].mxu0
  %v646 = vadd.f32 0.0, %v645
  %v647 = vpop.f32.mrb[0].mxu0
  %v648 = vpop.f32.mrb[0].mxu0
  %v649 = vadd.f32 0.0, %v648
  %v650 = vpop.f32.mrb[0].mxu0
  %651 = vmatprep.mubr.bf16.mxu0 0
  %652 = vmatmul.mubr.bf16.gmra.mrb[0].mxu0 %v541
  %v653 = vpop.f32.mrb[0].mxu0
  %v654 = vadd.f32 0.0, %v653
  %v655 = vpop.f32.mrb[0].mxu0
  %v656 = vpop.f32.mrb[0].mxu0
  %v657 = vadd.f32 0.0, %v656
  %v658 = vpop.f32.mrb[0].mxu0
  %659 = vmatprep.mubr.bf16.mxu0 0
  %660 = vmatmul.mubr.bf16.gmra.mrb[0].mxu0 %v542
  %v661 = vpop.f32.mrb[0].mxu0
  %v662 = vadd.f32 0.0, %v661
  %v663 = vpop.f32.mrb[0].mxu0
  %v664 = vpop.f32.mrb[0].mxu0
  %v665 = vadd.f32 0.0, %v664
  %v666 = vpop.f32.mrb[0].mxu0
  %667 = vmatprep.mubr.bf16.mxu0 0
  %668 = vmatmul.mubr.bf16.gmra.mrb[0].mxu0 %v543
  %v669 = vpop.f32.mrb[0].mxu0
  %v670 = vadd.f32 0.0, %v669
  %v671 = vpop.f32.mrb[0].mxu0
  %v672 = vpop.f32.mrb[0].mxu0
  %v673 = vadd.f32 0.0, %v672
  %v674 = vpop.f32.mrb[0].mxu0
  %675 = vmatprep.mubr.bf16.mxu0 0
  %676 = vmatmul.mubr.bf16.gmra.mrb[0].mxu0 %v544
  %v677 = vpop.f32.mrb[0].mxu0
  %v678 = vadd.f32 0.0, %v677
  %v679 = vpop.f32.mrb[0].mxu0
  %v680 = vpop.f32.mrb[0].mxu0
  %v681 = vadd.f32 0.0, %v680
  %v682 = vpop.f32.mrb[0].mxu0
  %683 = vmatprep.mubr.bf16.mxu0 0
  %684 = vmatmul.mubr.bf16.gmra.mrb[0].mxu0 %v545
  %v685 = vpop.f32.mrb[0].mxu0
  %v686 = vadd.f32 0.0, %v685
  %v687 = vpop.f32.mrb[0].mxu0
  %v688 = vpop.f32.mrb[0].mxu0
  %v689 = vadd.f32 0.0, %v688
  %v690 = vpop.f32.mrb[0].mxu0
  %691 = vmatprep.mubr.bf16.mxu0 0
  %692 = vmatmul.mubr.bf16.gmra.mrb[0].mxu0 %v546
  %v693 = vpop.f32.mrb[0].mxu0
  %v694 = vadd.f32 0.0, %v693
  %v695 = vpop.f32.mrb[0].mxu0
  %v696 = vpop.f32.mrb[0].mxu0
  %v697 = vadd.f32 0.0, %v696
  %v698 = vpop.f32.mrb[0].mxu0
  %699 = vdwg.mxu0
  %v700 = vld [vmem:[%s3] sm:$0xf]
  %v701 = vld [vmem:[%s3 + $0x4] sm:$0xf]
  %v702 = vld [vmem:[%s3 + $0x8] sm:$0xf]
  %v703 = vld [vmem:[%s3 + $0xc] sm:$0xf]
  %v704 = vld [vmem:[%s3 + $0x10] sm:$0xf]
  %v705 = vld [vmem:[%s3 + $0x14] sm:$0xf]
  %v706 = vld [vmem:[%s3 + $0x18] sm:$0xf]
  %v707 = vld [vmem:[%s3 + $0x1c] sm:$0xf]
  %v708 = vld [vmem:[%s3 + $0x20] sm:$0xf]
  %v709 = vld [vmem:[%s3 + $0x24] sm:$0xf]
  %v710 = vld [vmem:[%s3 + $0x28] sm:$0xf]
  %v711 = vld [vmem:[%s3 + $0x2c] sm:$0xf]
  %v712 = vld [vmem:[%s3 + $0x30] sm:$0xf]
  %v713 = vld [vmem:[%s3 + $0x34] sm:$0xf]
  %v714 = vld [vmem:[%s3 + $0x38] sm:$0xf]
  %v715 = vld [vmem:[%s3 + $0x3c] sm:$0xf]
  %s716 = scalar_lea.vmem %s4, 192
  %v717 = vld [vmem:[%s716] sm:$0xf]
  %v718 = vld [vmem:[%s716 + $0x4] sm:$0xf]
  %v719 = vld [vmem:[%s716 + $0x8] sm:$0xf]
  %v720 = vld [vmem:[%s716 + $0xc] sm:$0xf]
  %v721 = vld [vmem:[%s716 + $0x10] sm:$0xf]
  %v722 = vld [vmem:[%s716 + $0x14] sm:$0xf]
  %v723 = vld [vmem:[%s716 + $0x18] sm:$0xf]
  %v724 = vld [vmem:[%s716 + $0x1c] sm:$0xf]
  %v725 = vld [vmem:[%s716 + $0x20] sm:$0xf]
  %v726 = vld [vmem:[%s716 + $0x24] sm:$0xf]
  %v727 = vld [vmem:[%s716 + $0x28] sm:$0xf]
  %v728 = vld [vmem:[%s716 + $0x2c] sm:$0xf]
  %v729 = vld [vmem:[%s716 + $0x30] sm:$0xf]
  %v730 = vld [vmem:[%s716 + $0x34] sm:$0xf]
  %v731 = vld [vmem:[%s716 + $0x38] sm:$0xf]
  %v732 = vld [vmem:[%s716 + $0x3c] sm:$0xf]
  %v749 = vunpack.c.l.b16 %v700
  %v750 = vunpack.c.l.b16 %v701
  %v751 = vunpack.c.l.b16 %v702
  %v752 = vunpack.c.l.b16 %v703
  %v753 = vunpack.c.l.b16 %v704
  %v754 = vunpack.c.l.b16 %v705
  %v755 = vunpack.c.l.b16 %v706
  %v756 = vunpack.c.l.b16 %v707
  %v757 = vunpack.c.l.b16 %v708
  %v758 = vunpack.c.l.b16 %v709
  %v759 = vunpack.c.l.b16 %v710
  %v760 = vunpack.c.l.b16 %v711
  %v761 = vunpack.c.l.b16 %v712
  %v762 = vunpack.c.l.b16 %v713
  %v763 = vunpack.c.l.b16 %v714
  %v764 = vunpack.c.l.b16 %v715
  %v765 = vpack.c.b16 %v750, %v749
  %v766 = vpack.c.b16 %v752, %v751
  %v767 = vpack.c.b16 %v754, %v753
  %v768 = vpack.c.b16 %v756, %v755
  %v769 = vpack.c.b16 %v758, %v757
  %v770 = vpack.c.b16 %v760, %v759
  %v771 = vpack.c.b16 %v762, %v761
  %v772 = vpack.c.b16 %v764, %v763
  %v797 = vunpack.c.l.b16 %v717
  %v798 = vunpack.c.l.b16 %v718
  %v799 = vunpack.c.l.b16 %v719
  %v800 = vunpack.c.l.b16 %v720
  %v801 = vunpack.c.l.b16 %v721
  %v802 = vunpack.c.l.b16 %v722
  %v803 = vunpack.c.l.b16 %v723
  %v804 = vunpack.c.l.b16 %v724
  %v805 = vunpack.c.l.b16 %v725
  %v806 = vunpack.c.l.b16 %v726
  %v807 = vunpack.c.l.b16 %v727
  %v808 = vunpack.c.l.b16 %v728
  %v809 = vunpack.c.l.b16 %v729
  %v810 = vunpack.c.l.b16 %v730
  %v811 = vunpack.c.l.b16 %v731
  %v812 = vunpack.c.l.b16 %v732
  %v813 = vpack.c.b16 %v798, %v797
  %v814 = vpack.c.b16 %v800, %v799
  %v815 = vpack.c.b16 %v802, %v801
  %v816 = vpack.c.b16 %v804, %v803
  %v817 = vpack.c.b16 %v806, %v805
  %v818 = vpack.c.b16 %v808, %v807
  %v819 = vpack.c.b16 %v810, %v809
  %v820 = vpack.c.b16 %v812, %v811
  %829 = vmatprep.subr.bf16.mxu0 0
  %830 = vmatpush1.bf16.msra.mxu0 %v813
  %831 = vmatprep.subr.bf16.mxu0 0
  %832 = vmatpush1.bf16.msra.mxu0 %v814
  %833 = vmatprep.subr.bf16.mxu0 0
  %834 = vmatpush1.bf16.msra.mxu0 %v815
  %835 = vmatprep.subr.bf16.mxu0 0
  %836 = vmatpush1.bf16.msra.mxu0 %v816
  %837 = vmatprep.subr.bf16.mxu0 0
  %838 = vmatpush1.bf16.msra.mxu0 %v817
  %839 = vmatprep.subr.bf16.mxu0 0
  %840 = vmatpush1.bf16.msra.mxu0 %v818
  %841 = vmatprep.subr.bf16.mxu0 0
  %842 = vmatpush1.bf16.msra.mxu0 %v819
  %843 = vmatprep.subr.bf16.mxu0 0
  %844 = vmatpush1.bf16.msra.mxu0 %v820
  %845 = vmatprep.subr.bf16.mxu0 0
  %846 = vmatpush1.bf16.msra.mxu0 0
  %847 = vmatprep.subr.bf16.mxu0 0
  %848 = vmatpush1.bf16.msra.mxu0 0
  %849 = vmatprep.subr.bf16.mxu0 0
  %850 = vmatpush1.bf16.msra.mxu0 0
  %851 = vmatprep.subr.bf16.mxu0 0
  %852 = vmatpush1.bf16.msra.mxu0 0
  %853 = vmatprep.subr.bf16.mxu0 0
  %854 = vmatpush1.bf16.msra.mxu0 0
  %855 = vmatprep.subr.bf16.mxu0 0
  %856 = vmatpush1.bf16.msra.mxu0 0
  %857 = vmatprep.subr.bf16.mxu0 0
  %858 = vmatpush1.bf16.msra.mxu0 0
  %859 = vmatprep.subr.bf16.mxu0 0
  %860 = vmatpush1.bf16.msra.mxu0 0
  %861 = vmatprep.mubr.bf16.mxu0 0
  %862 = vmatmul.mubr.bf16.gmra.mrb[0].mxu0 %v765
  %v863 = vpop.f32.mrb[0].mxu0
  %v864 = vadd.f32 0.0, %v863
  %v865 = vpop.f32.mrb[0].mxu0
  %v866 = vpop.f32.mrb[0].mxu0
  %v867 = vadd.f32 0.0, %v866
  %v868 = vpop.f32.mrb[0].mxu0
  %869 = vmatprep.mubr.bf16.mxu0 0
  %870 = vmatmul.mubr.bf16.gmra.mrb[0].mxu0 %v766
  %v871 = vpop.f32.mrb[0].mxu0
  %v872 = vadd.f32 0.0, %v871
  %v873 = vpop.f32.mrb[0].mxu0
  %v874 = vpop.f32.mrb[0].mxu0
  %v875 = vadd.f32 0.0, %v874
  %v876 = vpop.f32.mrb[0].mxu0
  %877 = vmatprep.mubr.bf16.mxu0 0
  %878 = vmatmul.mubr.bf16.gmra.mrb[0].mxu0 %v767
  %v879 = vpop.f32.mrb[0].mxu0
  %v880 = vadd.f32 0.0, %v879
  %v881 = vpop.f32.mrb[0].mxu0
  %v882 = vpop.f32.mrb[0].mxu0
  %v883 = vadd.f32 0.0, %v882
  %v884 = vpop.f32.mrb[0].mxu0
  %885 = vmatprep.mubr.bf16.mxu0 0
  %886 = vmatmul.mubr.bf16.gmra.mrb[0].mxu0 %v768
  %v887 = vpop.f32.mrb[0].mxu0
  %v888 = vadd.f32 0.0, %v887
  %v889 = vpop.f32.mrb[0].mxu0
  %v890 = vpop.f32.mrb[0].mxu0
  %v891 = vadd.f32 0.0, %v890
  %v892 = vpop.f32.mrb[0].mxu0
  %893 = vmatprep.mubr.bf16.mxu0 0
  %894 = vmatmul.mubr.bf16.gmra.mrb[0].mxu0 %v769
  %v895 = vpop.f32.mrb[0].mxu0
  %v896 = vadd.f32 0.0, %v895
  %v897 = vpop.f32.mrb[0].mxu0
  %v898 = vpop.f32.mrb[0].mxu0
  %v899 = vadd.f32 0.0, %v898
  %v900 = vpop.f32.mrb[0].mxu0
  %901 = vmatprep.mubr.bf16.mxu0 0
  %902 = vmatmul.mubr.bf16.gmra.mrb[0].mxu0 %v770
  %v903 = vpop.f32.mrb[0].mxu0
  %v904 = vadd.f32 0.0, %v903
  %v905 = vpop.f32.mrb[0].mxu0
  %v906 = vpop.f32.mrb[0].mxu0
  %v907 = vadd.f32 0.0, %v906
  %v908 = vpop.f32.mrb[0].mxu0
  %909 = vmatprep.mubr.bf16.mxu0 0
  %910 = vmatmul.mubr.bf16.gmra.mrb[0].mxu0 %v771
  %v911 = vpop.f32.mrb[0].mxu0
  %v912 = vadd.f32 0.0, %v911
  %v913 = vpop.f32.mrb[0].mxu0
  %v914 = vpop.f32.mrb[0].mxu0
  %v915 = vadd.f32 0.0, %v914
  %v916 = vpop.f32.mrb[0].mxu0
  %917 = vmatprep.mubr.bf16.mxu0 0
  %918 = vmatmul.mubr.bf16.gmra.mrb[0].mxu0 %v772
  %v919 = vpop.f32.mrb[0].mxu0
  %v920 = vadd.f32 0.0, %v919
  %v921 = vpop.f32.mrb[0].mxu0
  %v922 = vpop.f32.mrb[0].mxu0
  %v923 = vadd.f32 0.0, %v922
  %v924 = vpop.f32.mrb[0].mxu0
  %925 = vdwg.mxu0
  %942 = vrot.lane.b32.xlu0 %v412, 16
  %v943 = vpop.permute.xlu0 %942
  %944 = vrot.lane.b32.xlu0 %v415, 16
  %v945 = vpop.permute.xlu0 %944
  %946 = vrot.lane.b32.xlu0 %v420, 16
  %v947 = vpop.permute.xlu0 %946
  %948 = vrot.lane.b32.xlu0 %v423, 16
  %v949 = vpop.permute.xlu0 %948
  %950 = vrot.lane.b32.xlu0 %v428, 16
  %v951 = vpop.permute.xlu0 %950
  %952 = vrot.lane.b32.xlu0 %v431, 16
  %v953 = vpop.permute.xlu0 %952
  %954 = vrot.lane.b32.xlu0 %v436, 16
  %v955 = vpop.permute.xlu0 %954
  %956 = vrot.lane.b32.xlu0 %v439, 16
  %v957 = vpop.permute.xlu0 %956
  %958 = vrot.lane.b32.xlu0 %v444, 16
  %v959 = vpop.permute.xlu0 %958
  %960 = vrot.lane.b32.xlu0 %v447, 16
  %v961 = vpop.permute.xlu0 %960
  %962 = vrot.lane.b32.xlu0 %v452, 16
  %v963 = vpop.permute.xlu0 %962
  %964 = vrot.lane.b32.xlu0 %v455, 16
  %v965 = vpop.permute.xlu0 %964
  %966 = vrot.lane.b32.xlu0 %v460, 16
  %v967 = vpop.permute.xlu0 %966
  %968 = vrot.lane.b32.xlu0 %v463, 16
  %v969 = vpop.permute.xlu0 %968
  %970 = vrot.lane.b32.xlu0 %v468, 16
  %v971 = vpop.permute.xlu0 %970
  %972 = vrot.lane.b32.xlu0 %v471, 16
  %v973 = vpop.permute.xlu0 %972
  %1006 = vrot.lane.b32.xlu0 %v638, 32
  %v1007 = vpop.permute.xlu0 %1006
  %1008 = vrot.lane.b32.xlu0 %v641, 32
  %v1009 = vpop.permute.xlu0 %1008
  %1010 = vrot.lane.b32.xlu0 %v646, 32
  %v1011 = vpop.permute.xlu0 %1010
  %1012 = vrot.lane.b32.xlu0 %v649, 32
  %v1013 = vpop.permute.xlu0 %1012
  %1014 = vrot.lane.b32.xlu0 %v654, 32
  %v1015 = vpop.permute.xlu0 %1014
  %1016 = vrot.lane.b32.xlu0 %v657, 32
  %v1017 = vpop.permute.xlu0 %1016
  %1018 = vrot.lane.b32.xlu0 %v662, 32
  %v1019 = vpop.permute.xlu0 %1018
  %1020 = vrot.lane.b32.xlu0 %v665, 32
  %v1021 = vpop.permute.xlu0 %1020
  %1022 = vrot.lane.b32.xlu0 %v670, 32
  %v1023 = vpop.permute.xlu0 %1022
  %1024 = vrot.lane.b32.xlu0 %v673, 32
  %v1025 = vpop.permute.xlu0 %1024
  %1026 = vrot.lane.b32.xlu0 %v678, 32
  %v1027 = vpop.permute.xlu0 %1026
  %1028 = vrot.lane.b32.xlu0 %v681, 32
  %v1029 = vpop.permute.xlu0 %1028
  %1030 = vrot.lane.b32.xlu0 %v686, 32
  %v1031 = vpop.permute.xlu0 %1030
  %1032 = vrot.lane.b32.xlu0 %v689, 32
  %v1033 = vpop.permute.xlu0 %1032
  %1034 = vrot.lane.b32.xlu0 %v694, 32
  %v1035 = vpop.permute.xlu0 %1034
  %1036 = vrot.lane.b32.xlu0 %v697, 32
  %v1037 = vpop.permute.xlu0 %1036
  %1070 = vrot.lane.b32.xlu0 %v864, 48
  %v1071 = vpop.permute.xlu0 %1070
  %1072 = vrot.lane.b32.xlu0 %v867, 48
  %v1073 = vpop.permute.xlu0 %1072
  %1074 = vrot.lane.b32.xlu0 %v872, 48
  %v1075 = vpop.permute.xlu0 %1074
  %1076 = vrot.lane.b32.xlu0 %v875, 48
  %v1077 = vpop.permute.xlu0 %1076
  %1078 = vrot.lane.b32.xlu0 %v880, 48
  %v1079 = vpop.permute.xlu0 %1078
  %1080 = vrot.lane.b32.xlu0 %v883, 48
  %v1081 = vpop.permute.xlu0 %1080
  %1082 = vrot.lane.b32.xlu0 %v888, 48
  %v1083 = vpop.permute.xlu0 %1082
  %1084 = vrot.lane.b32.xlu0 %v891, 48
  %v1085 = vpop.permute.xlu0 %1084
  %1086 = vrot.lane.b32.xlu0 %v896, 48
  %v1087 = vpop.permute.xlu0 %1086
  %1088 = vrot.lane.b32.xlu0 %v899, 48
  %v1089 = vpop.permute.xlu0 %1088
  %1090 = vrot.lane.b32.xlu0 %v904, 48
  %v1091 = vpop.permute.xlu0 %1090
  %1092 = vrot.lane.b32.xlu0 %v907, 48
  %v1093 = vpop.permute.xlu0 %1092
  %1094 = vrot.lane.b32.xlu0 %v912, 48
  %v1095 = vpop.permute.xlu0 %1094
  %1096 = vrot.lane.b32.xlu0 %v915, 48
  %v1097 = vpop.permute.xlu0 %1096
  %1098 = vrot.lane.b32.xlu0 %v920, 48
  %v1099 = vpop.permute.xlu0 %1098
  %1100 = vrot.lane.b32.xlu0 %v923, 48
  %v1101 = vpop.permute.xlu0 %1100
  %vm1118 = vcmask 130048
  %v1119 = vsel %vm1118, %v186, %v943
  %v1120 = vsel %vm1118, %v189, %v945
  %v1121 = vsel %vm1118, %v194, %v947
  %v1122 = vsel %vm1118, %v197, %v949
  %v1123 = vsel %vm1118, %v202, %v951
  %v1124 = vsel %vm1118, %v205, %v953
  %v1125 = vsel %vm1118, %v210, %v955
  %v1126 = vsel %vm1118, %v213, %v957
  %v1127 = vsel %vm1118, %v218, %v959
  %v1128 = vsel %vm1118, %v221, %v961
  %v1129 = vsel %vm1118, %v226, %v963
  %v1130 = vsel %vm1118, %v229, %v965
  %v1131 = vsel %vm1118, %v234, %v967
  %v1132 = vsel %vm1118, %v237, %v969
  %v1133 = vsel %vm1118, %v242, %v971
  %v1134 = vsel %vm1118, %v245, %v973
  %vm1135 = vcmask 261120
  %v1136 = vsel %vm1135, %v1119, %v1007
  %v1137 = vsel %vm1135, %v1120, %v1009
  %v1138 = vsel %vm1135, %v1121, %v1011
  %v1139 = vsel %vm1135, %v1122, %v1013
  %v1140 = vsel %vm1135, %v1123, %v1015
  %v1141 = vsel %vm1135, %v1124, %v1017
  %v1142 = vsel %vm1135, %v1125, %v1019
  %v1143 = vsel %vm1135, %v1126, %v1021
  %v1144 = vsel %vm1135, %v1127, %v1023
  %v1145 = vsel %vm1135, %v1128, %v1025
  %v1146 = vsel %vm1135, %v1129, %v1027
  %v1147 = vsel %vm1135, %v1130, %v1029
  %v1148 = vsel %vm1135, %v1131, %v1031
  %v1149 = vsel %vm1135, %v1132, %v1033
  %v1150 = vsel %vm1135, %v1133, %v1035
  %v1151 = vsel %vm1135, %v1134, %v1037
  %vm1152 = vcmask 392192
  %v1153 = vsel %vm1152, %v1136, %v1071
  %v1154 = vsel %vm1152, %v1137, %v1073
  %v1155 = vsel %vm1152, %v1138, %v1075
  %v1156 = vsel %vm1152, %v1139, %v1077
  %v1157 = vsel %vm1152, %v1140, %v1079
  %v1158 = vsel %vm1152, %v1141, %v1081
  %v1159 = vsel %vm1152, %v1142, %v1083
  %v1160 = vsel %vm1152, %v1143, %v1085
  %v1161 = vsel %vm1152, %v1144, %v1087
  %v1162 = vsel %vm1152, %v1145, %v1089
  %v1163 = vsel %vm1152, %v1146, %v1091
  %v1164 = vsel %vm1152, %v1147, %v1093
  %v1165 = vsel %vm1152, %v1148, %v1095
  %v1166 = vsel %vm1152, %v1149, %v1097
  %v1167 = vsel %vm1152, %v1150, %v1099
  %v1168 = vsel %vm1152, %v1151, %v1101
  %v1169 = vpack.c.bf16 %v1154, %v1153
  %v1170 = vpack.c.bf16 %v1156, %v1155
  %v1171 = vpack.c.bf16 %v1158, %v1157
  %v1172 = vpack.c.bf16 %v1160, %v1159
  %v1173 = vpack.c.bf16 %v1162, %v1161
  %v1174 = vpack.c.bf16 %v1164, %v1163
  %v1175 = vpack.c.bf16 %v1166, %v1165
  %v1176 = vpack.c.bf16 %v1168, %v1167
  %v1185 = vunpack.c.l.b16 %v1169
  %v1186 = vunpack.c.h.b16 %v1169
  %v1187 = vunpack.c.l.b16 %v1170
  %v1188 = vunpack.c.h.b16 %v1170
  %v1189 = vunpack.c.l.b16 %v1171
  %v1190 = vunpack.c.h.b16 %v1171
  %v1191 = vunpack.c.l.b16 %v1172
  %v1192 = vunpack.c.h.b16 %v1172
  %v1193 = vunpack.c.l.b16 %v1173
  %v1194 = vunpack.c.h.b16 %v1173
  %v1195 = vunpack.c.l.b16 %v1174
  %v1196 = vunpack.c.h.b16 %v1174
  %v1197 = vunpack.c.l.b16 %v1175
  %v1198 = vunpack.c.h.b16 %v1175
  %v1199 = vunpack.c.l.b16 %v1176
  %v1200 = vunpack.c.h.b16 %v1176
  %v1201 = vpack.c.b16 %v1185, %v1185
  %v1202 = vpack.c.b16 %v1186, %v1186
  %v1203 = vpack.c.b16 %v1187, %v1187
  %v1204 = vpack.c.b16 %v1188, %v1188
  %v1205 = vpack.c.b16 %v1189, %v1189
  %v1206 = vpack.c.b16 %v1190, %v1190
  %v1207 = vpack.c.b16 %v1191, %v1191
  %v1208 = vpack.c.b16 %v1192, %v1192
  %v1209 = vpack.c.b16 %v1193, %v1193
  %v1210 = vpack.c.b16 %v1194, %v1194
  %v1211 = vpack.c.b16 %v1195, %v1195
  %v1212 = vpack.c.b16 %v1196, %v1196
  %v1213 = vpack.c.b16 %v1197, %v1197
  %v1214 = vpack.c.b16 %v1198, %v1198
  %v1215 = vpack.c.b16 %v1199, %v1199
  %v1216 = vpack.c.b16 %v1200, %v1200
  %vm1233 = vcmask 519168
  %1234 = vst.msk [vmem:[%s5] sm:$0xf] %vm1233, %v1201
  %1235 = vst.msk [vmem:[%s5 + $0x4] sm:$0xf] %vm1233, %v1202
  %1236 = vst.msk [vmem:[%s5 + $0x8] sm:$0xf] %vm1233, %v1203
  %1237 = vst.msk [vmem:[%s5 + $0xc] sm:$0xf] %vm1233, %v1204
  %1238 = vst.msk [vmem:[%s5 + $0x10] sm:$0xf] %vm1233, %v1205
  %1239 = vst.msk [vmem:[%s5 + $0x14] sm:$0xf] %vm1233, %v1206
  %1240 = vst.msk [vmem:[%s5 + $0x18] sm:$0xf] %vm1233, %v1207
  %1241 = vst.msk [vmem:[%s5 + $0x1c] sm:$0xf] %vm1233, %v1208
  %1242 = vst.msk [vmem:[%s5 + $0x20] sm:$0xf] %vm1233, %v1209
  %1243 = vst.msk [vmem:[%s5 + $0x24] sm:$0xf] %vm1233, %v1210
  %1244 = vst.msk [vmem:[%s5 + $0x28] sm:$0xf] %vm1233, %v1211
  %1245 = vst.msk [vmem:[%s5 + $0x2c] sm:$0xf] %vm1233, %v1212
  %1246 = vst.msk [vmem:[%s5 + $0x30] sm:$0xf] %vm1233, %v1213
  %1247 = vst.msk [vmem:[%s5 + $0x34] sm:$0xf] %vm1233, %v1214
  %1248 = vst.msk [vmem:[%s5 + $0x38] sm:$0xf] %vm1233, %v1215
  %1249 = vst.msk [vmem:[%s5 + $0x3c] sm:$0xf] %vm1233, %v1216
  %vm1250 = vcmask 523264
  %v1251 = vsel %vm1250, %v1153, 0.0
  %v1252 = vsel %vm1250, %v1154, 0.0
  %v1253 = vadd.f32 %v1251, %v1252
  %v1254 = vsel %vm1250, %v1155, 0.0
  %v1255 = vadd.f32 %v1253, %v1254
  %v1256 = vsel %vm1250, %v1156, 0.0
  %v1257 = vadd.f32 %v1255, %v1256
  %v1258 = vsel %vm1250, %v1157, 0.0
  %v1259 = vadd.f32 %v1257, %v1258
  %v1260 = vsel %vm1250, %v1158, 0.0
  %v1261 = vadd.f32 %v1259, %v1260
  %v1262 = vsel %vm1250, %v1159, 0.0
  %v1263 = vadd.f32 %v1261, %v1262
  %v1264 = vsel %vm1250, %v1160, 0.0
  %v1265 = vadd.f32 %v1263, %v1264
  %v1266 = vsel %vm1250, %v1161, 0.0
  %v1267 = vadd.f32 %v1265, %v1266
  %v1268 = vsel %vm1250, %v1162, 0.0
  %v1269 = vadd.f32 %v1267, %v1268
  %v1270 = vsel %vm1250, %v1163, 0.0
  %v1271 = vadd.f32 %v1269, %v1270
  %v1272 = vsel %vm1250, %v1164, 0.0
  %v1273 = vadd.f32 %v1271, %v1272
  %v1274 = vsel %vm1250, %v1165, 0.0
  %v1275 = vadd.f32 %v1273, %v1274
  %v1276 = vsel %vm1250, %v1166, 0.0
  %v1277 = vadd.f32 %v1275, %v1276
  %v1278 = vsel %vm1250, %v1167, 0.0
  %v1279 = vadd.f32 %v1277, %v1278
  %v1280 = vsel %vm1250, %v1168, 0.0
  %v1281 = vadd.f32 %v1279, %v1280
  %v1282 = vrot.slane %v1281, 4
  %v1283 = vadd.f32 %v1281, %v1282
  %v1284 = vrot.slane %v1283, 2
  %v1285 = vadd.f32 %v1283, %v1284
  %v1286 = vrot.slane %v1285, 1
  %v1287 = vadd.f32 %v1285, %v1286
  %v1288 = vmul.f32 %v1153, %v1153
  %v1289 = vmul.f32 %v1154, %v1154
  %v1290 = vmul.f32 %v1155, %v1155
  %v1291 = vmul.f32 %v1156, %v1156
  %v1292 = vmul.f32 %v1157, %v1157
  %v1293 = vmul.f32 %v1158, %v1158
  %v1294 = vmul.f32 %v1159, %v1159
  %v1295 = vmul.f32 %v1160, %v1160
  %v1296 = vmul.f32 %v1161, %v1161
  %v1297 = vmul.f32 %v1162, %v1162
  %v1298 = vmul.f32 %v1163, %v1163
  %v1299 = vmul.f32 %v1164, %v1164
  %v1300 = vmul.f32 %v1165, %v1165
  %v1301 = vmul.f32 %v1166, %v1166
  %v1302 = vmul.f32 %v1167, %v1167
  %v1303 = vmul.f32 %v1168, %v1168
  %v1304 = vsel %vm1250, %v1288, 0.0
  %v1305 = vsel %vm1250, %v1289, 0.0
  %v1306 = vadd.f32 %v1304, %v1305
  %v1307 = vsel %vm1250, %v1290, 0.0
  %v1308 = vadd.f32 %v1306, %v1307
  %v1309 = vsel %vm1250, %v1291, 0.0
  %v1310 = vadd.f32 %v1308, %v1309
  %v1311 = vsel %vm1250, %v1292, 0.0
  %v1312 = vadd.f32 %v1310, %v1311
  %v1313 = vsel %vm1250, %v1293, 0.0
  %v1314 = vadd.f32 %v1312, %v1313
  %v1315 = vsel %vm1250, %v1294, 0.0
  %v1316 = vadd.f32 %v1314, %v1315
  %v1317 = vsel %vm1250, %v1295, 0.0
  %v1318 = vadd.f32 %v1316, %v1317
  %v1319 = vsel %vm1250, %v1296, 0.0
  %v1320 = vadd.f32 %v1318, %v1319
  %v1321 = vsel %vm1250, %v1297, 0.0
  %v1322 = vadd.f32 %v1320, %v1321
  %v1323 = vsel %vm1250, %v1298, 0.0
  %v1324 = vadd.f32 %v1322, %v1323
  %v1325 = vsel %vm1250, %v1299, 0.0
  %v1326 = vadd.f32 %v1324, %v1325
  %v1327 = vsel %vm1250, %v1300, 0.0
  %v1328 = vadd.f32 %v1326, %v1327
  %v1329 = vsel %vm1250, %v1301, 0.0
  %v1330 = vadd.f32 %v1328, %v1329
  %v1331 = vsel %vm1250, %v1302, 0.0
  %v1332 = vadd.f32 %v1330, %v1331
  %v1333 = vsel %vm1250, %v1303, 0.0
  %v1334 = vadd.f32 %v1332, %v1333
  %v1335 = vrot.slane %v1334, 4
  %v1336 = vadd.f32 %v1334, %v1335
  %v1337 = vrot.slane %v1336, 2
  %v1338 = vadd.f32 %v1336, %v1337
  %v1339 = vrot.slane %v1338, 1
  %v1340 = vadd.f32 %v1338, %v1339
  %vm1341 = vcmask 1040384
  %v1342 = vsel %vm1341, %v1287, %v1340
  %vm1343 = vcmask 517120
  %1344 = vst.msk [vmem:[%s6] sm:$0x3] %vm1343, %v1342
  // Predicated region
  $region22: #{generator_forward.13} parent=0 // pred_check
    _
  $region23: #{generator_forward.13} parent=0 // pred_check_branch
    %1346 = sbr.rel (0) target = $region25
  $region24: #{generator_forward.13} parent=0 // pred_region
    _
  $region25: #{generator_forward.13} parent=0 // pred_fallthru
    _
  // Predicated region
  $region26: #{generator_forward.13} parent=0 // pred_check
    _
  $region27: #{generator_forward.13} parent=0 // pred_check_branch
    %1348 = sbr.rel (0) target = $region29
  $region28: #{generator_forward.13} parent=0 // pred_region
    _
  $region29: #{generator_forward.13} parent=0 // pred_fallthru
    _
  // Predicated region
  $region30: #{generator_forward.13} parent=0 // pred_check
    _
  $region31: #{generator_forward.13} parent=0 // pred_check_branch
    %1350 = sbr.rel (0) target = $region33
  $region32: #{generator_forward.13} parent=0 // pred_region
    _
  $region33: #{generator_forward.13} parent=0 // pred_fallthru
    _
  // Predicated region
  $region34: #{generator_forward.13} parent=0 // pred_check
    _
  $region35: #{generator_forward.13} parent=0 // pred_check_branch
    %1352 = sbr.rel (0) target = $region37
  $region36: #{generator_forward.13} parent=0 // pred_region
    _
  $region37: #{generator_forward.13} parent=0 // pred_fallthru
    _

// kernel: squeeze.14
$region0: #{squeeze.14}
  %s0 = inlined_call_operand.vmem [shape: f32[32], index: 0, kind: input, shape index: {}]
  %s1 = inlined_call_operand.vmem [shape: f32[4,8], index: 1, kind: output, shape index: {}]
  $region1: #{squeeze.14} parent=0
    #allocation0 [shape = 'u8[4096]{0}', space=vmem, size = 0x1000, scoped, tag = 'scoped mem for output reshape']
    #allocation1 [shape = 'u8[4096]{0}', space=vmem, size = 0x1000, scoped, tag = 'scoped mem for input reshape']
    %s3 = sshllo.u32 0, 1
    %v4 = vld [vmem:[%s0] sm:%s3]
    %5 = vst [vmem:[#allocation1] sm:%s3] %v4
    %v6 = vld [vmem:[#allocation1] sm:$0x1]
    %vm7 = vcmask 64512
    %8 = vst.msk [vmem:[#allocation0] sm:$0x1] %vm7, %v6
    %v9 = vld [vmem:[#allocation1] sm:$0x1]
    %10 = vrot.lane.b32.xlu0 %v9, 120
    %v11 = vpop.permute.xlu0 %10
    %vm12 = vcmask 64512
    %s13 = scalar_lea.vmem [#allocation0], 1
    %14 = vst.msk [vmem:[%s13] sm:$0x1] %vm12, %v11
    %v15 = vld [vmem:[#allocation1] sm:$0x1]
    %16 = vrot.lane.b32.xlu0 %v15, 112
    %v17 = vpop.permute.xlu0 %16
    %vm18 = vcmask 64512
    %s19 = scalar_lea.vmem [#allocation0], 2
    %20 = vst.msk [vmem:[%s19] sm:$0x1] %vm18, %v17
    %v21 = vld [vmem:[#allocation1] sm:$0x1]
    %22 = vrot.lane.b32.xlu0 %v21, 104
    %v23 = vpop.permute.xlu0 %22
    %vm24 = vcmask 64512
    %s25 = scalar_lea.vmem [#allocation0], 3
    %26 = vst.msk [vmem:[%s25] sm:$0x1] %vm24, %v23
    %s28 = sshllo.u32 0, 4
    %v30 = vld [vmem:[#allocation0] sm:%s28]
    %s31 = sshllo.u32 0, 4
    %32 = vst [vmem:[%s1] sm:%s31] %v30

// kernel: tile.73
$region0: #{tile.73}
  #allocation0 [shape = 's32[1]{0}', space=sflag, size = 0x4, scoped, tag = 'scoped memory for tile.73']
  %s0 = inlined_call_operand.vmem [shape: f32[8], index: 0, kind: input, shape index: {}]
  %s1 = inlined_call_operand.vmem [shape: f32[4,8], index: 1, kind: output, shape index: {}]
  // Predicated region
  $region2: #{tile.73} parent=0 // pred_check
    _
  $region3: #{tile.73} parent=0 // pred_check_branch
    %3 = sbr.rel (0) target = $region5
  $region4: #{tile.73} parent=0 // pred_region
    _
  $region5: #{tile.73} parent=0 // pred_fallthru
    _
  %v4 = vld [vmem:[%s0] ss:$0 sm:$0xff]
  %5 = vst [vmem:[%s1] sm:$0xf] %v4

// kernel: tile.74
$region0: #{tile.74}
  %s0 = inlined_call_operand.vmem [shape: f32[4,8], index: 0, kind: input, shape index: {}]
  %s1 = inlined_call_operand.vmem [shape: f32[1,32], index: 1, kind: output, shape index: {}]
  $region1: #{tile.74} parent=0
    #allocation0 [shape = 'u8[4096]{0}', space=vmem, size = 0x1000, scoped, tag = 'scoped mem for output reshape']
    #allocation1 [shape = 'u8[4096]{0}', space=vmem, size = 0x1000, scoped, tag = 'scoped mem for input reshape']
    %s3 = sshllo.u32 0, 4
    %v4 = vld [vmem:[%s0] sm:%s3]
    %5 = vst [vmem:[#allocation1] sm:%s3] %v4
    %v6 = vld [vmem:[#allocation1] sm:$0x1]
    %vm7 = vcmask 64512
    %8 = vst.msk [vmem:[#allocation0] sm:$0x1] %vm7, %v6
    %s9 = scalar_lea.vmem [#allocation1], 3
    %v10 = vld [vmem:[%s9] sm:$0x1]
    %11 = vrot.lane.b32.xlu0 %v10, 24
    %v12 = vpop.permute.xlu0 %11
    %vm13 = vcmask 261312
    %14 = vst.msk [vmem:[#allocation0] sm:$0x1] %vm13, %v12
    %s15 = scalar_lea.vmem [#allocation1], 2
    %v16 = vld [vmem:[%s15] sm:$0x1]
    %17 = vrot.lane.b32.xlu0 %v16, 16
    %v18 = vpop.permute.xlu0 %17
    %vm19 = vcmask 195712
    %20 = vst.msk [vmem:[#allocation0] sm:$0x1] %vm19, %v18
    %s21 = scalar_lea.vmem [#allocation1], 1
    %v22 = vld [vmem:[%s21] sm:$0x1]
    %23 = vrot.lane.b32.xlu0 %v22, 8
    %v24 = vpop.permute.xlu0 %23
    %vm25 = vcmask 130112
    %26 = vst.msk [vmem:[#allocation0] sm:$0x1] %vm25, %v24
    %s28 = sshllo.u32 0, 1
    %v30 = vld [vmem:[#allocation0] sm:%s28]
    %s31 = sshllo.u32 0, 1
    %32 = vst [vmem:[%s1] sm:%s31] %v30

// kernel: generator_forward.16
$region0: #{generator_forward.16}
  #allocation0 [shape = 'u32[]', space=smem, size = 0x4, offset = 0x4, fixed_abs, tag = 'smem constant byte address 0x4 - core index']
  #allocation1 [shape = 'u32[144,128]{1,0:T(1,128)}', space=vmem, size = 0x12000, scoped, tag = 'internal scratch']
  %s0 = inlined_call_operand.vmem [shape: bf16[512,32], index: 0, kind: input, shape index: {}]
  %s1 = inlined_call_operand.vmem [shape: f32[1,32], index: 1, kind: input, shape index: {}]
  %s2 = inlined_call_operand.vmem [shape: f32[1,32], index: 2, kind: input, shape index: {}]
  %s3 = inlined_call_operand.vmem [shape: bf16[512,32], index: 3, kind: output, shape index: {}]
  %s4 = sld [smem:[#allocation0]]
  $region22: #{generator_forward.16} parent=0
    _
  %s6 = ssub.s32 1, %s4
  %s7 = scalar_select 0, %s6, %s4
  // Predicated region
  $region2: #{generator_forward.16} parent=0 // pred_check
    _
  $region3: #{generator_forward.16} parent=0 // pred_check_branch
    %9 = sbr.rel (0) target = $region5
  $region4: #{generator_forward.16} parent=0 // pred_region
    _
  $region5: #{generator_forward.16} parent=0 // pred_fallthru
    _
  // Predicated region
  $region6: #{generator_forward.16} parent=0 // pred_check
    _
  $region7: #{generator_forward.16} parent=0 // pred_check_branch
    %11 = sbr.rel (0) target = $region9
  $region8: #{generator_forward.16} parent=0 // pred_region
    _
  $region9: #{generator_forward.16} parent=0 // pred_fallthru
    _
  // Predicated region
  $region10: #{generator_forward.16} parent=0 // pred_check
    _
  $region11: #{generator_forward.16} parent=0 // pred_check_branch
    %13 = sbr.rel (0) target = $region13
  $region12: #{generator_forward.16} parent=0 // pred_region
    _
  $region13: #{generator_forward.16} parent=0 // pred_fallthru
    _
  %v14 = vld [vmem:[%s0] sm:$0xf]
  %v15 = vld [vmem:[%s0 + $0x4] sm:$0xf]
  %v16 = vld [vmem:[%s0 + $0x8] sm:$0xf]
  %v17 = vld [vmem:[%s0 + $0xc] sm:$0xf]
  %v18 = vld [vmem:[%s0 + $0x10] sm:$0xf]
  %v19 = vld [vmem:[%s0 + $0x14] sm:$0xf]
  %v20 = vld [vmem:[%s0 + $0x18] sm:$0xf]
  %v21 = vld [vmem:[%s0 + $0x1c] sm:$0xf]
  %v22 = vld [vmem:[%s0 + $0x20] sm:$0xf]
  %v23 = vld [vmem:[%s0 + $0x24] sm:$0xf]
  %v24 = vld [vmem:[%s0 + $0x28] sm:$0xf]
  %v25 = vld [vmem:[%s0 + $0x2c] sm:$0xf]
  %v26 = vld [vmem:[%s0 + $0x30] sm:$0xf]
  %v27 = vld [vmem:[%s0 + $0x34] sm:$0xf]
  %v28 = vld [vmem:[%s0 + $0x38] sm:$0xf]
  %v29 = vld [vmem:[%s0 + $0x3c] sm:$0xf]
  %v30 = vld [vmem:[%s0 + $0x40] sm:$0xf]
  %v31 = vld [vmem:[%s0 + $0x44] sm:$0xf]
  %v32 = vld [vmem:[%s0 + $0x48] sm:$0xf]
  %v33 = vld [vmem:[%s0 + $0x4c] sm:$0xf]
  %v34 = vld [vmem:[%s0 + $0x50] sm:$0xf]
  %v35 = vld [vmem:[%s0 + $0x54] sm:$0xf]
  %v36 = vld [vmem:[%s0 + $0x58] sm:$0xf]
  %v37 = vld [vmem:[%s0 + $0x5c] sm:$0xf]
  %v38 = vld [vmem:[%s0 + $0x60] sm:$0xf]
  %v39 = vld [vmem:[%s0 + $0x64] sm:$0xf]
  %v40 = vld [vmem:[%s0 + $0x68] sm:$0xf]
  %v41 = vld [vmem:[%s0 + $0x6c] sm:$0xf]
  %v42 = vld [vmem:[%s0 + $0x70] sm:$0xf]
  %v43 = vld [vmem:[%s0 + $0x74] sm:$0xf]
  %v44 = vld [vmem:[%s0 + $0x78] sm:$0xf]
  %v45 = vld [vmem:[%s0 + $0x7c] sm:$0xf]
  %v46 = vld [vmem:[%s0 + $0x80] sm:$0xf]
  %v47 = vld [vmem:[%s0 + $0x84] sm:$0xf]
  %v48 = vld [vmem:[%s0 + $0x88] sm:$0xf]
  %v49 = vld [vmem:[%s0 + $0x8c] sm:$0xf]
  %v50 = vld [vmem:[%s0 + $0x90] sm:$0xf]
  %v51 = vld [vmem:[%s0 + $0x94] sm:$0xf]
  %v52 = vld [vmem:[%s0 + $0x98] sm:$0xf]
  %v53 = vld [vmem:[%s0 + $0x9c] sm:$0xf]
  %v54 = vld [vmem:[%s0 + $0xa0] sm:$0xf]
  %v55 = vld [vmem:[%s0 + $0xa4] sm:$0xf]
  %v56 = vld [vmem:[%s0 + $0xa8] sm:$0xf]
  %v57 = vld [vmem:[%s0 + $0xac] sm:$0xf]
  %v58 = vld [vmem:[%s0 + $0xb0] sm:$0xf]
  %v59 = vld [vmem:[%s0 + $0xb4] sm:$0xf]
  %v60 = vld [vmem:[%s0 + $0xb8] sm:$0xf]
  %v61 = vld [vmem:[%s0 + $0xbc] sm:$0xf]
  %v62 = vld [vmem:[%s0 + $0xc0] sm:$0xf]
  %v63 = vld [vmem:[%s0 + $0xc4] sm:$0xf]
  %v64 = vld [vmem:[%s0 + $0xc8] sm:$0xf]
  %v65 = vld [vmem:[%s0 + $0xcc] sm:$0xf]
  %v66 = vld [vmem:[%s0 + $0xd0] sm:$0xf]
  %v67 = vld [vmem:[%s0 + $0xd4] sm:$0xf]
  %v68 = vld [vmem:[%s0 + $0xd8] sm:$0xf]
  %v69 = vld [vmem:[%s0 + $0xdc] sm:$0xf]
  %v70 = vld [vmem:[%s0 + $0xe0] sm:$0xf]
  %v71 = vld [vmem:[%s0 + $0xe4] sm:$0xf]
  %v72 = vld [vmem:[%s0 + $0xe8] sm:$0xf]
  %v73 = vld [vmem:[%s0 + $0xec] sm:$0xf]
  %v74 = vld [vmem:[%s0 + $0xf0] sm:$0xf]
  %v75 = vld [vmem:[%s0 + $0xf4] sm:$0xf]
  %v76 = vld [vmem:[%s0 + $0xf8] sm:$0xf]
  %v77 = vld [vmem:[%s0 + $0xfc] sm:$0xf]
  %v78 = vunpack.c.l.bf16 %v14
  %v79 = vunpack.c.l.bf16 %v15
  %v80 = vunpack.c.l.bf16 %v16
  %v81 = vunpack.c.l.bf16 %v17
  %v82 = vunpack.c.l.bf16 %v18
  %v83 = vunpack.c.l.bf16 %v19
  %v84 = vunpack.c.l.bf16 %v20
  %v85 = vunpack.c.l.bf16 %v21
  %v86 = vunpack.c.l.bf16 %v22
  %v87 = vunpack.c.l.bf16 %v23
  %v88 = vunpack.c.l.bf16 %v24
  %v89 = vunpack.c.l.bf16 %v25
  %v90 = vunpack.c.l.bf16 %v26
  %v91 = vunpack.c.l.bf16 %v27
  %v92 = vunpack.c.l.bf16 %v28
  %v93 = vunpack.c.l.bf16 %v29
  %v94 = vunpack.c.l.bf16 %v30
  %v95 = vunpack.c.l.bf16 %v31
  %v96 = vunpack.c.l.bf16 %v32
  %v97 = vunpack.c.l.bf16 %v33
  %v98 = vunpack.c.l.bf16 %v34
  %v99 = vunpack.c.l.bf16 %v35
  %v100 = vunpack.c.l.bf16 %v36
  %v101 = vunpack.c.l.bf16 %v37
  %v102 = vunpack.c.l.bf16 %v38
  %v103 = vunpack.c.l.bf16 %v39
  %v104 = vunpack.c.l.bf16 %v40
  %v105 = vunpack.c.l.bf16 %v41
  %v106 = vunpack.c.l.bf16 %v42
  %v107 = vunpack.c.l.bf16 %v43
  %v108 = vunpack.c.l.bf16 %v44
  %v109 = vunpack.c.l.bf16 %v45
  %v110 = vunpack.c.l.bf16 %v46
  %v111 = vunpack.c.l.bf16 %v47
  %v112 = vunpack.c.l.bf16 %v48
  %v113 = vunpack.c.l.bf16 %v49
  %v114 = vunpack.c.l.bf16 %v50
  %v115 = vunpack.c.l.bf16 %v51
  %v116 = vunpack.c.l.bf16 %v52
  %v117 = vunpack.c.l.bf16 %v53
  %v118 = vunpack.c.l.bf16 %v54
  %v119 = vunpack.c.l.bf16 %v55
  %v120 = vunpack.c.l.bf16 %v56
  %v121 = vunpack.c.l.bf16 %v57
  %v122 = vunpack.c.l.bf16 %v58
  %v123 = vunpack.c.l.bf16 %v59
  %v124 = vunpack.c.l.bf16 %v60
  %v125 = vunpack.c.l.bf16 %v61
  %v126 = vunpack.c.l.bf16 %v62
  %v127 = vunpack.c.l.bf16 %v63
  %v128 = vunpack.c.l.bf16 %v64
  %v129 = vunpack.c.l.bf16 %v65
  %v130 = vunpack.c.l.bf16 %v66
  %v131 = vunpack.c.l.bf16 %v67
  %v132 = vunpack.c.l.bf16 %v68
  %v133 = vunpack.c.l.bf16 %v69
  %v134 = vunpack.c.l.bf16 %v70
  %v135 = vunpack.c.l.bf16 %v71
  %v136 = vunpack.c.l.bf16 %v72
  %v137 = vunpack.c.l.bf16 %v73
  %v138 = vunpack.c.l.bf16 %v74
  %v139 = vunpack.c.l.bf16 %v75
  %v140 = vunpack.c.l.bf16 %v76
  %v141 = vunpack.c.l.bf16 %v77
  %v142 = vld [vmem:[%s1] sm:$0x1]
  %v144 = vlaneseq
  %v145 = vshrl.u32 %v144, 7
  %v146 = vsub.s32 0, %v145
  %v147 = vrot.slane %v142, %v146
  %v149 = vmul.f32 %v78, %v147
  %v150 = vmul.f32 %v79, %v147
  %v151 = vmul.f32 %v80, %v147
  %v152 = vmul.f32 %v81, %v147
  %v153 = vmul.f32 %v82, %v147
  %v154 = vmul.f32 %v83, %v147
  %v155 = vmul.f32 %v84, %v147
  %v156 = vmul.f32 %v85, %v147
  %v157 = vmul.f32 %v86, %v147
  %v158 = vmul.f32 %v87, %v147
  %v159 = vmul.f32 %v88, %v147
  %v160 = vmul.f32 %v89, %v147
  %v161 = vmul.f32 %v90, %v147
  %v162 = vmul.f32 %v91, %v147
  %v163 = vmul.f32 %v92, %v147
  %v164 = vmul.f32 %v93, %v147
  %v165 = vmul.f32 %v94, %v147
  %v166 = vmul.f32 %v95, %v147
  %v167 = vmul.f32 %v96, %v147
  %v168 = vmul.f32 %v97, %v147
  %v169 = vmul.f32 %v98, %v147
  %v170 = vmul.f32 %v99, %v147
  %v171 = vmul.f32 %v100, %v147
  %v172 = vmul.f32 %v101, %v147
  %v173 = vmul.f32 %v102, %v147
  %v174 = vmul.f32 %v103, %v147
  %v175 = vmul.f32 %v104, %v147
  %v176 = vmul.f32 %v105, %v147
  %v177 = vmul.f32 %v106, %v147
  %v178 = vmul.f32 %v107, %v147
  %v179 = vmul.f32 %v108, %v147
  %v180 = vmul.f32 %v109, %v147
  %v181 = vmul.f32 %v110, %v147
  %v182 = vmul.f32 %v111, %v147
  %v183 = vmul.f32 %v112, %v147
  %v184 = vmul.f32 %v113, %v147
  %v185 = vmul.f32 %v114, %v147
  %v186 = vmul.f32 %v115, %v147
  %v187 = vmul.f32 %v116, %v147
  %v188 = vmul.f32 %v117, %v147
  %v189 = vmul.f32 %v118, %v147
  %v190 = vmul.f32 %v119, %v147
  %v191 = vmul.f32 %v120, %v147
  %v192 = vmul.f32 %v121, %v147
  %v193 = vmul.f32 %v122, %v147
  %v194 = vmul.f32 %v123, %v147
  %v195 = vmul.f32 %v124, %v147
  %v196 = vmul.f32 %v125, %v147
  %v197 = vmul.f32 %v126, %v147
  %v198 = vmul.f32 %v127, %v147
  %v199 = vmul.f32 %v128, %v147
  %v200 = vmul.f32 %v129, %v147
  %v201 = vmul.f32 %v130, %v147
  %v202 = vmul.f32 %v131, %v147
  %v203 = vmul.f32 %v132, %v147
  %v204 = vmul.f32 %v133, %v147
  %v205 = vmul.f32 %v134, %v147
  %v206 = vmul.f32 %v135, %v147
  %v207 = vmul.f32 %v136, %v147
  %v208 = vmul.f32 %v137, %v147
  %v209 = vmul.f32 %v138, %v147
  %v210 = vmul.f32 %v139, %v147
  %v211 = vmul.f32 %v140, %v147
  %v212 = vmul.f32 %v141, %v147
  %v213 = vld [vmem:[%s2] sm:$0x1]
  %v215 = vlaneseq
  %v216 = vshrl.u32 %v215, 7
  %v217 = vsub.s32 0, %v216
  %v218 = vrot.slane %v213, %v217
  %v220 = vadd.f32 %v149, %v218
  %v221 = vadd.f32 %v150, %v218
  %v222 = vadd.f32 %v151, %v218
  %v223 = vadd.f32 %v152, %v218
  %v224 = vadd.f32 %v153, %v218
  %v225 = vadd.f32 %v154, %v218
  %v226 = vadd.f32 %v155, %v218
  %v227 = vadd.f32 %v156, %v218
  %v228 = vadd.f32 %v157, %v218
  %v229 = vadd.f32 %v158, %v218
  %v230 = vadd.f32 %v159, %v218
  %v231 = vadd.f32 %v160, %v218
  %v232 = vadd.f32 %v161, %v218
  %v233 = vadd.f32 %v162, %v218
  %v234 = vadd.f32 %v163, %v218
  %v235 = vadd.f32 %v164, %v218
  %v236 = vadd.f32 %v165, %v218
  %v237 = vadd.f32 %v166, %v218
  %v238 = vadd.f32 %v167, %v218
  %v239 = vadd.f32 %v168, %v218
  %v240 = vadd.f32 %v169, %v218
  %v241 = vadd.f32 %v170, %v218
  %v242 = vadd.f32 %v171, %v218
  %v243 = vadd.f32 %v172, %v218
  %v244 = vadd.f32 %v173, %v218
  %v245 = vadd.f32 %v174, %v218
  %v246 = vadd.f32 %v175, %v218
  %v247 = vadd.f32 %v176, %v218
  %v248 = vadd.f32 %v177, %v218
  %v249 = vadd.f32 %v178, %v218
  %v250 = vadd.f32 %v179, %v218
  %v251 = vadd.f32 %v180, %v218
  %v252 = vadd.f32 %v181, %v218
  %v253 = vadd.f32 %v182, %v218
  %v254 = vadd.f32 %v183, %v218
  %v255 = vadd.f32 %v184, %v218
  %v256 = vadd.f32 %v185, %v218
  %v257 = vadd.f32 %v186, %v218
  %v258 = vadd.f32 %v187, %v218
  %v259 = vadd.f32 %v188, %v218
  %v260 = vadd.f32 %v189, %v218
  %v261 = vadd.f32 %v190, %v218
  %v262 = vadd.f32 %v191, %v218
  %v263 = vadd.f32 %v192, %v218
  %v264 = vadd.f32 %v193, %v218
  %v265 = vadd.f32 %v194, %v218
  %v266 = vadd.f32 %v195, %v218
  %v267 = vadd.f32 %v196, %v218
  %v268 = vadd.f32 %v197, %v218
  %v269 = vadd.f32 %v198, %v218
  %v270 = vadd.f32 %v199, %v218
  %v271 = vadd.f32 %v200, %v218
  %v272 = vadd.f32 %v201, %v218
  %v273 = vadd.f32 %v202, %v218
  %v274 = vadd.f32 %v203, %v218
  %v275 = vadd.f32 %v204, %v218
  %v276 = vadd.f32 %v205, %v218
  %v277 = vadd.f32 %v206, %v218
  %v278 = vadd.f32 %v207, %v218
  %v279 = vadd.f32 %v208, %v218
  %v280 = vadd.f32 %v209, %v218
  %v281 = vadd.f32 %v210, %v218
  %v282 = vadd.f32 %v211, %v218
  %v283 = vadd.f32 %v212, %v218
  %vm284 = vcmp.gt.f32.partialorder %v220, 0.0
  %vm285 = vcmp.gt.f32.partialorder %v221, 0.0
  %vm286 = vcmp.gt.f32.partialorder %v222, 0.0
  %vm287 = vcmp.gt.f32.partialorder %v223, 0.0
  %vm288 = vcmp.gt.f32.partialorder %v224, 0.0
  %vm289 = vcmp.gt.f32.partialorder %v225, 0.0
  %vm290 = vcmp.gt.f32.partialorder %v226, 0.0
  %vm291 = vcmp.gt.f32.partialorder %v227, 0.0
  %vm292 = vcmp.gt.f32.partialorder %v228, 0.0
  %vm293 = vcmp.gt.f32.partialorder %v229, 0.0
  %vm294 = vcmp.gt.f32.partialorder %v230, 0.0
  %vm295 = vcmp.gt.f32.partialorder %v231, 0.0
  %vm296 = vcmp.gt.f32.partialorder %v232, 0.0
  %vm297 = vcmp.gt.f32.partialorder %v233, 0.0
  %vm298 = vcmp.gt.f32.partialorder %v234, 0.0
  %vm299 = vcmp.gt.f32.partialorder %v235, 0.0
  %vm300 = vcmp.gt.f32.partialorder %v236, 0.0
  %vm301 = vcmp.gt.f32.partialorder %v237, 0.0
  %vm302 = vcmp.gt.f32.partialorder %v238, 0.0
  %vm303 = vcmp.gt.f32.partialorder %v239, 0.0
  %vm304 = vcmp.gt.f32.partialorder %v240, 0.0
  %vm305 = vcmp.gt.f32.partialorder %v241, 0.0
  %vm306 = vcmp.gt.f32.partialorder %v242, 0.0
  %vm307 = vcmp.gt.f32.partialorder %v243, 0.0
  %vm308 = vcmp.gt.f32.partialorder %v244, 0.0
  %vm309 = vcmp.gt.f32.partialorder %v245, 0.0
  %vm310 = vcmp.gt.f32.partialorder %v246, 0.0
  %vm311 = vcmp.gt.f32.partialorder %v247, 0.0
  %vm312 = vcmp.gt.f32.partialorder %v248, 0.0
  %vm313 = vcmp.gt.f32.partialorder %v249, 0.0
  %vm314 = vcmp.gt.f32.partialorder %v250, 0.0
  %vm315 = vcmp.gt.f32.partialorder %v251, 0.0
  %vm316 = vcmp.gt.f32.partialorder %v252, 0.0
  %vm317 = vcmp.gt.f32.partialorder %v253, 0.0
  %vm318 = vcmp.gt.f32.partialorder %v254, 0.0
  %vm319 = vcmp.gt.f32.partialorder %v255, 0.0
  %vm320 = vcmp.gt.f32.partialorder %v256, 0.0
  %vm321 = vcmp.gt.f32.partialorder %v257, 0.0
  %vm322 = vcmp.gt.f32.partialorder %v258, 0.0
  %vm323 = vcmp.gt.f32.partialorder %v259, 0.0
  %vm324 = vcmp.gt.f32.partialorder %v260, 0.0
  %vm325 = vcmp.gt.f32.partialorder %v261, 0.0
  %vm326 = vcmp.gt.f32.partialorder %v262, 0.0
  %vm327 = vcmp.gt.f32.partialorder %v263, 0.0
  %vm328 = vcmp.gt.f32.partialorder %v264, 0.0
  %vm329 = vcmp.gt.f32.partialorder %v265, 0.0
  %vm330 = vcmp.gt.f32.partialorder %v266, 0.0
  %vm331 = vcmp.gt.f32.partialorder %v267, 0.0
  %vm332 = vcmp.gt.f32.partialorder %v268, 0.0
  %vm333 = vcmp.gt.f32.partialorder %v269, 0.0
  %vm334 = vcmp.gt.f32.partialorder %v270, 0.0
  %vm335 = vcmp.gt.f32.partialorder %v271, 0.0
  %vm336 = vcmp.gt.f32.partialorder %v272, 0.0
  %vm337 = vcmp.gt.f32.partialorder %v273, 0.0
  %vm338 = vcmp.gt.f32.partialorder %v274, 0.0
  %vm339 = vcmp.gt.f32.partialorder %v275, 0.0
  %vm340 = vcmp.gt.f32.partialorder %v276, 0.0
  %vm341 = vcmp.gt.f32.partialorder %v277, 0.0
  %vm342 = vcmp.gt.f32.partialorder %v278, 0.0
  %vm343 = vcmp.gt.f32.partialorder %v279, 0.0
  %vm344 = vcmp.gt.f32.partialorder %v280, 0.0
  %vm345 = vcmp.gt.f32.partialorder %v281, 0.0
  %vm346 = vcmp.gt.f32.partialorder %v282, 0.0
  %vm347 = vcmp.gt.f32.partialorder %v283, 0.0
  %v348 = vmul.f32 %v220, 0.2
  %v349 = vmul.f32 %v221, 0.2
  %v350 = vmul.f32 %v222, 0.2
  %v351 = vmul.f32 %v223, 0.2
  %v352 = vmul.f32 %v224, 0.2
  %v353 = vmul.f32 %v225, 0.2
  %v354 = vmul.f32 %v226, 0.2
  %v355 = vmul.f32 %v227, 0.2
  %v356 = vmul.f32 %v228, 0.2
  %v357 = vmul.f32 %v229, 0.2
  %v358 = vmul.f32 %v230, 0.2
  %v359 = vmul.f32 %v231, 0.2
  %v360 = vmul.f32 %v232, 0.2
  %v361 = vmul.f32 %v233, 0.2
  %v362 = vmul.f32 %v234, 0.2
  %v363 = vmul.f32 %v235, 0.2
  %v364 = vmul.f32 %v236, 0.2
  %v365 = vmul.f32 %v237, 0.2
  %v366 = vmul.f32 %v238, 0.2
  %v367 = vmul.f32 %v239, 0.2
  %v368 = vmul.f32 %v240, 0.2
  %v369 = vmul.f32 %v241, 0.2
  %v370 = vmul.f32 %v242, 0.2
  %v371 = vmul.f32 %v243, 0.2
  %v372 = vmul.f32 %v244, 0.2
  %v373 = vmul.f32 %v245, 0.2
  %v374 = vmul.f32 %v246, 0.2
  %v375 = vmul.f32 %v247, 0.2
  %v376 = vmul.f32 %v248, 0.2
  %v377 = vmul.f32 %v249, 0.2
  %v378 = vmul.f32 %v250, 0.2
  %v379 = vmul.f32 %v251, 0.2
  %v380 = vmul.f32 %v252, 0.2
  %v381 = vmul.f32 %v253, 0.2
  %v382 = vmul.f32 %v254, 0.2
  %v383 = vmul.f32 %v255, 0.2
  %v384 = vmul.f32 %v256, 0.2
  %v385 = vmul.f32 %v257, 0.2
  %v386 = vmul.f32 %v258, 0.2
  %v387 = vmul.f32 %v259, 0.2
  %v388 = vmul.f32 %v260, 0.2
  %v389 = vmul.f32 %v261, 0.2
  %v390 = vmul.f32 %v262, 0.2
  %v391 = vmul.f32 %v263, 0.2
  %v392 = vmul.f32 %v264, 0.2
  %v393 = vmul.f32 %v265, 0.2
  %v394 = vmul.f32 %v266, 0.2
  %v395 = vmul.f32 %v267, 0.2
  %v396 = vmul.f32 %v268, 0.2
  %v397 = vmul.f32 %v269, 0.2
  %v398 = vmul.f32 %v270, 0.2
  %v399 = vmul.f32 %v271, 0.2
  %v400 = vmul.f32 %v272, 0.2
  %v401 = vmul.f32 %v273, 0.2
  %v402 = vmul.f32 %v274, 0.2
  %v403 = vmul.f32 %v275, 0.2
  %v404 = vmul.f32 %v276, 0.2
  %v405 = vmul.f32 %v277, 0.2
  %v406 = vmul.f32 %v278, 0.2
  %v407 = vmul.f32 %v279, 0.2
  %v408 = vmul.f32 %v280, 0.2
  %v409 = vmul.f32 %v281, 0.2
  %v410 = vmul.f32 %v282, 0.2
  %v411 = vmul.f32 %v283, 0.2
  %v412 = vsel %vm284, %v220, %v348
  %v413 = vsel %vm285, %v221, %v349
  %v414 = vsel %vm286, %v222, %v350
  %v415 = vsel %vm287, %v223, %v351
  %v416 = vsel %vm288, %v224, %v352
  %v417 = vsel %vm289, %v225, %v353
  %v418 = vsel %vm290, %v226, %v354
  %v419 = vsel %vm291, %v227, %v355
  %v420 = vsel %vm292, %v228, %v356
  %v421 = vsel %vm293, %v229, %v357
  %v422 = vsel %vm294, %v230, %v358
  %v423 = vsel %vm295, %v231, %v359
  %v424 = vsel %vm296, %v232, %v360
  %v425 = vsel %vm297, %v233, %v361
  %v426 = vsel %vm298, %v234, %v362
  %v427 = vsel %vm299, %v235, %v363
  %v428 = vsel %vm300, %v236, %v364
  %v429 = vsel %vm301, %v237, %v365
  %v430 = vsel %vm302, %v238, %v366
  %v431 = vsel %vm303, %v239, %v367
  %v432 = vsel %vm304, %v240, %v368
  %v433 = vsel %vm305, %v241, %v369
  %v434 = vsel %vm306, %v242, %v370
  %v435 = vsel %vm307, %v243, %v371
  %v436 = vsel %vm308, %v244, %v372
  %v437 = vsel %vm309, %v245, %v373
  %v438 = vsel %vm310, %v246, %v374
  %v439 = vsel %vm311, %v247, %v375
  %v440 = vsel %vm312, %v248, %v376
  %v441 = vsel %vm313, %v249, %v377
  %v442 = vsel %vm314, %v250, %v378
  %v443 = vsel %vm315, %v251, %v379
  %v444 = vsel %vm316, %v252, %v380
  %v445 = vsel %vm317, %v253, %v381
  %v446 = vsel %vm318, %v254, %v382
  %v447 = vsel %vm319, %v255, %v383
  %v448 = vsel %vm320, %v256, %v384
  %v449 = vsel %vm321, %v257, %v385
  %v450 = vsel %vm322, %v258, %v386
  %v451 = vsel %vm323, %v259, %v387
  %v452 = vsel %vm324, %v260, %v388
  %v453 = vsel %vm325, %v261, %v389
  %v454 = vsel %vm326, %v262, %v390
  %v455 = vsel %vm327, %v263, %v391
  %v456 = vsel %vm328, %v264, %v392
  %v457 = vsel %vm329, %v265, %v393
  %v458 = vsel %vm330, %v266, %v394
  %v459 = vsel %vm331, %v267, %v395
  %v460 = vsel %vm332, %v268, %v396
  %v461 = vsel %vm333, %v269, %v397
  %v462 = vsel %vm334, %v270, %v398
  %v463 = vsel %vm335, %v271, %v399
  %v464 = vsel %vm336, %v272, %v400
  %v465 = vsel %vm337, %v273, %v401
  %v466 = vsel %vm338, %v274, %v402
  %v467 = vsel %vm339, %v275, %v403
  %v468 = vsel %vm340, %v276, %v404
  %v469 = vsel %vm341, %v277, %v405
  %v470 = vsel %vm342, %v278, %v406
  %v471 = vsel %vm343, %v279, %v407
  %v472 = vsel %vm344, %v280, %v408
  %v473 = vsel %vm345, %v281, %v409
  %v474 = vsel %vm346, %v282, %v410
  %v475 = vsel %vm347, %v283, %v411
  %v476 = vpack.c.bf16 %v413, %v412
  %v477 = vpack.c.bf16 %v415, %v414
  %v478 = vpack.c.bf16 %v417, %v416
  %v479 = vpack.c.bf16 %v419, %v418
  %v480 = vpack.c.bf16 %v421, %v420
  %v481 = vpack.c.bf16 %v423, %v422
  %v482 = vpack.c.bf16 %v425, %v424
  %v483 = vpack.c.bf16 %v427, %v426
  %v484 = vpack.c.bf16 %v429, %v428
  %v485 = vpack.c.bf16 %v431, %v430
  %v486 = vpack.c.bf16 %v433, %v432
  %v487 = vpack.c.bf16 %v435, %v434
  %v488 = vpack.c.bf16 %v437, %v436
  %v489 = vpack.c.bf16 %v439, %v438
  %v490 = vpack.c.bf16 %v441, %v440
  %v491 = vpack.c.bf16 %v443, %v442
  %v492 = vpack.c.bf16 %v445, %v444
  %v493 = vpack.c.bf16 %v447, %v446
  %v494 = vpack.c.bf16 %v449, %v448
  %v495 = vpack.c.bf16 %v451, %v450
  %v496 = vpack.c.bf16 %v453, %v452
  %v497 = vpack.c.bf16 %v455, %v454
  %v498 = vpack.c.bf16 %v457, %v456
  %v499 = vpack.c.bf16 %v459, %v458
  %v500 = vpack.c.bf16 %v461, %v460
  %v501 = vpack.c.bf16 %v463, %v462
  %v502 = vpack.c.bf16 %v465, %v464
  %v503 = vpack.c.bf16 %v467, %v466
  %v504 = vpack.c.bf16 %v469, %v468
  %v505 = vpack.c.bf16 %v471, %v470
  %v506 = vpack.c.bf16 %v473, %v472
  %v507 = vpack.c.bf16 %v475, %v474
  %v540 = vunpack.c.l.b16 %v476
  %v541 = vunpack.c.h.b16 %v476
  %v542 = vunpack.c.l.b16 %v477
  %v543 = vunpack.c.h.b16 %v477
  %v544 = vunpack.c.l.b16 %v478
  %v545 = vunpack.c.h.b16 %v478
  %v546 = vunpack.c.l.b16 %v479
  %v547 = vunpack.c.h.b16 %v479
  %v548 = vunpack.c.l.b16 %v480
  %v549 = vunpack.c.h.b16 %v480
  %v550 = vunpack.c.l.b16 %v481
  %v551 = vunpack.c.h.b16 %v481
  %v552 = vunpack.c.l.b16 %v482
  %v553 = vunpack.c.h.b16 %v482
  %v554 = vunpack.c.l.b16 %v483
  %v555 = vunpack.c.h.b16 %v483
  %v556 = vunpack.c.l.b16 %v484
  %v557 = vunpack.c.h.b16 %v484
  %v558 = vunpack.c.l.b16 %v485
  %v559 = vunpack.c.h.b16 %v485
  %v560 = vunpack.c.l.b16 %v486
  %v561 = vunpack.c.h.b16 %v486
  %v562 = vunpack.c.l.b16 %v487
  %v563 = vunpack.c.h.b16 %v487
  %v564 = vunpack.c.l.b16 %v488
  %v565 = vunpack.c.h.b16 %v488
  %v566 = vunpack.c.l.b16 %v489
  %v567 = vunpack.c.h.b16 %v489
  %v568 = vunpack.c.l.b16 %v490
  %v569 = vunpack.c.h.b16 %v490
  %v570 = vunpack.c.l.b16 %v491
  %v571 = vunpack.c.h.b16 %v491
  %v572 = vunpack.c.l.b16 %v492
  %v573 = vunpack.c.h.b16 %v492
  %v574 = vunpack.c.l.b16 %v493
  %v575 = vunpack.c.h.b16 %v493
  %v576 = vunpack.c.l.b16 %v494
  %v577 = vunpack.c.h.b16 %v494
  %v578 = vunpack.c.l.b16 %v495
  %v579 = vunpack.c.h.b16 %v495
  %v580 = vunpack.c.l.b16 %v496
  %v581 = vunpack.c.h.b16 %v496
  %v582 = vunpack.c.l.b16 %v497
  %v583 = vunpack.c.h.b16 %v497
  %v584 = vunpack.c.l.b16 %v498
  %v585 = vunpack.c.h.b16 %v498
  %v586 = vunpack.c.l.b16 %v499
  %v587 = vunpack.c.h.b16 %v499
  %v588 = vunpack.c.l.b16 %v500
  %v589 = vunpack.c.h.b16 %v500
  %v590 = vunpack.c.l.b16 %v501
  %v591 = vunpack.c.h.b16 %v501
  %v592 = vunpack.c.l.b16 %v502
  %v593 = vunpack.c.h.b16 %v502
  %v594 = vunpack.c.l.b16 %v503
  %v595 = vunpack.c.h.b16 %v503
  %v596 = vunpack.c.l.b16 %v504
  %v597 = vunpack.c.h.b16 %v504
  %v598 = vunpack.c.l.b16 %v505
  %v599 = vunpack.c.h.b16 %v505
  %v600 = vunpack.c.l.b16 %v506
  %v601 = vunpack.c.h.b16 %v506
  %v602 = vunpack.c.l.b16 %v507
  %v603 = vunpack.c.h.b16 %v507
  %v604 = vpack.c.b16 %v540, %v540
  %v605 = vpack.c.b16 %v541, %v541
  %v606 = vpack.c.b16 %v542, %v542
  %v607 = vpack.c.b16 %v543, %v543
  %v608 = vpack.c.b16 %v544, %v544
  %v609 = vpack.c.b16 %v545, %v545
  %v610 = vpack.c.b16 %v546, %v546
  %v611 = vpack.c.b16 %v547, %v547
  %v612 = vpack.c.b16 %v548, %v548
  %v613 = vpack.c.b16 %v549, %v549
  %v614 = vpack.c.b16 %v550, %v550
  %v615 = vpack.c.b16 %v551, %v551
  %v616 = vpack.c.b16 %v552, %v552
  %v617 = vpack.c.b16 %v553, %v553
  %v618 = vpack.c.b16 %v554, %v554
  %v619 = vpack.c.b16 %v555, %v555
  %v620 = vpack.c.b16 %v556, %v556
  %v621 = vpack.c.b16 %v557, %v557
  %v622 = vpack.c.b16 %v558, %v558
  %v623 = vpack.c.b16 %v559, %v559
  %v624 = vpack.c.b16 %v560, %v560
  %v625 = vpack.c.b16 %v561, %v561
  %v626 = vpack.c.b16 %v562, %v562
  %v627 = vpack.c.b16 %v563, %v563
  %v628 = vpack.c.b16 %v564, %v564
  %v629 = vpack.c.b16 %v565, %v565
  %v630 = vpack.c.b16 %v566, %v566
  %v631 = vpack.c.b16 %v567, %v567
  %v632 = vpack.c.b16 %v568, %v568
  %v633 = vpack.c.b16 %v569, %v569
  %v634 = vpack.c.b16 %v570, %v570
  %v635 = vpack.c.b16 %v571, %v571
  %v636 = vpack.c.b16 %v572, %v572
  %v637 = vpack.c.b16 %v573, %v573
  %v638 = vpack.c.b16 %v574, %v574
  %v639 = vpack.c.b16 %v575, %v575
  %v640 = vpack.c.b16 %v576, %v576
  %v641 = vpack.c.b16 %v577, %v577
  %v642 = vpack.c.b16 %v578, %v578
  %v643 = vpack.c.b16 %v579, %v579
  %v644 = vpack.c.b16 %v580, %v580
  %v645 = vpack.c.b16 %v581, %v581
  %v646 = vpack.c.b16 %v582, %v582
  %v647 = vpack.c.b16 %v583, %v583
  %v648 = vpack.c.b16 %v584, %v584
  %v649 = vpack.c.b16 %v585, %v585
  %v650 = vpack.c.b16 %v586, %v586
  %v651 = vpack.c.b16 %v587, %v587
  %v652 = vpack.c.b16 %v588, %v588
  %v653 = vpack.c.b16 %v589, %v589
  %v654 = vpack.c.b16 %v590, %v590
  %v655 = vpack.c.b16 %v591, %v591
  %v656 = vpack.c.b16 %v592, %v592
  %v657 = vpack.c.b16 %v593, %v593
  %v658 = vpack.c.b16 %v594, %v594
  %v659 = vpack.c.b16 %v595, %v595
  %v660 = vpack.c.b16 %v596, %v596
  %v661 = vpack.c.b16 %v597, %v597
  %v662 = vpack.c.b16 %v598, %v598
  %v663 = vpack.c.b16 %v599, %v599
  %v664 = vpack.c.b16 %v600, %v600
  %v665 = vpack.c.b16 %v601, %v601
  %v666 = vpack.c.b16 %v602, %v602
  %v667 = vpack.c.b16 %v603, %v603
  %vm732 = vcmask 257024
  %733 = vst.msk [vmem:[%s3] sm:$0xf] %vm732, %v604
  %734 = vst.msk [vmem:[%s3 + $0x4] sm:$0xf] %vm732, %v605
  %735 = vst.msk [vmem:[%s3 + $0x8] sm:$0xf] %vm732, %v606
  %736 = vst.msk [vmem:[%s3 + $0xc] sm:$0xf] %vm732, %v607
  %737 = vst.msk [vmem:[%s3 + $0x10] sm:$0xf] %vm732, %v608
  %738 = vst.msk [vmem:[%s3 + $0x14] sm:$0xf] %vm732, %v609
  %739 = vst.msk [vmem:[%s3 + $0x18] sm:$0xf] %vm732, %v610
  %740 = vst.msk [vmem:[%s3 + $0x1c] sm:$0xf] %vm732, %v611
  %741 = vst.msk [vmem:[%s3 + $0x20] sm:$0xf] %vm732, %v612
  %742 = vst.msk [vmem:[%s3 + $0x24] sm:$0xf] %vm732, %v613
  %743 = vst.msk [vmem:[%s3 + $0x28] sm:$0xf] %vm732, %v614
  %744 = vst.msk [vmem:[%s3 + $0x2c] sm:$0xf] %vm732, %v615
  %745 = vst.msk [vmem:[%s3 + $0x30] sm:$0xf] %vm732, %v616
  %746 = vst.msk [vmem:[%s3 + $0x34] sm:$0xf] %vm732, %v617
  %747 = vst.msk [vmem:[%s3 + $0x38] sm:$0xf] %vm732, %v618
  %748 = vst.msk [vmem:[%s3 + $0x3c] sm:$0xf] %vm732, %v619
  %749 = vst.msk [vmem:[%s3 + $0x40] sm:$0xf] %vm732, %v620
  %750 = vst.msk [vmem:[%s3 + $0x44] sm:$0xf] %vm732, %v621
  %751 = vst.msk [vmem:[%s3 + $0x48] sm:$0xf] %vm732, %v622
  %752 = vst.msk [vmem:[%s3 + $0x4c] sm:$0xf] %vm732, %v623
  %753 = vst.msk [vmem:[%s3 + $0x50] sm:$0xf] %vm732, %v624
  %754 = vst.msk [vmem:[%s3 + $0x54] sm:$0xf] %vm732, %v625
  %755 = vst.msk [vmem:[%s3 + $0x58] sm:$0xf] %vm732, %v626
  %756 = vst.msk [vmem:[%s3 + $0x5c] sm:$0xf] %vm732, %v627
  %757 = vst.msk [vmem:[%s3 + $0x60] sm:$0xf] %vm732, %v628
  %758 = vst.msk [vmem:[%s3 + $0x64] sm:$0xf] %vm732, %v629
  %759 = vst.msk [vmem:[%s3 + $0x68] sm:$0xf] %vm732, %v630
  %760 = vst.msk [vmem:[%s3 + $0x6c] sm:$0xf] %vm732, %v631
  %761 = vst.msk [vmem:[%s3 + $0x70] sm:$0xf] %vm732, %v632
  %762 = vst.msk [vmem:[%s3 + $0x74] sm:$0xf] %vm732, %v633
  %763 = vst.msk [vmem:[%s3 + $0x78] sm:$0xf] %vm732, %v634
  %764 = vst.msk [vmem:[%s3 + $0x7c] sm:$0xf] %vm732, %v635
  %765 = vst.msk [vmem:[%s3 + $0x80] sm:$0xf] %vm732, %v636
  %766 = vst.msk [vmem:[%s3 + $0x84] sm:$0xf] %vm732, %v637
  %767 = vst.msk [vmem:[%s3 + $0x88] sm:$0xf] %vm732, %v638
  %768 = vst.msk [vmem:[%s3 + $0x8c] sm:$0xf] %vm732, %v639
  %769 = vst.msk [vmem:[%s3 + $0x90] sm:$0xf] %vm732, %v640
  %770 = vst.msk [vmem:[%s3 + $0x94] sm:$0xf] %vm732, %v641
  %771 = vst.msk [vmem:[%s3 + $0x98] sm:$0xf] %vm732, %v642
  %772 = vst.msk [vmem:[%s3 + $0x9c] sm:$0xf] %vm732, %v643
  %773 = vst.msk [vmem:[%s3 + $0xa0] sm:$0xf] %vm732, %v644
  %774 = vst.msk [vmem:[%s3 + $0xa4] sm:$0xf] %vm732, %v645
  %775 = vst.msk [vmem:[%s3 + $0xa8] sm:$0xf] %vm732, %v646
  %776 = vst.msk [vmem:[%s3 + $0xac] sm:$0xf] %vm732, %v647
  %777 = vst.msk [vmem:[%s3 + $0xb0] sm:$0xf] %vm732, %v648
  %778 = vst.msk [vmem:[%s3 + $0xb4] sm:$0xf] %vm732, %v649
  %779 = vst.msk [vmem:[%s3 + $0xb8] sm:$0xf] %vm732, %v650
  %780 = vst.msk [vmem:[%s3 + $0xbc] sm:$0xf] %vm732, %v651
  %781 = vst.msk [vmem:[%s3 + $0xc0] sm:$0xf] %vm732, %v652
  %782 = vst.msk [vmem:[%s3 + $0xc4] sm:$0xf] %vm732, %v653
  %783 = vst.msk [vmem:[%s3 + $0xc8] sm:$0xf] %vm732, %v654
  %784 = vst.msk [vmem:[%s3 + $0xcc] sm:$0xf] %vm732, %v655
  %785 = vst.msk [vmem:[%s3 + $0xd0] sm:$0xf] %vm732, %v656
  %786 = vst.msk [vmem:[%s3 + $0xd4] sm:$0xf] %vm732, %v657
  %787 = vst.msk [vmem:[%s3 + $0xd8] sm:$0xf] %vm732, %v658
  %788 = vst.msk [vmem:[%s3 + $0xdc] sm:$0xf] %vm732, %v659
  %789 = vst.msk [vmem:[%s3 + $0xe0] sm:$0xf] %vm732, %v660
  %790 = vst.msk [vmem:[%s3 + $0xe4] sm:$0xf] %vm732, %v661
  %791 = vst.msk [vmem:[%s3 + $0xe8] sm:$0xf] %vm732, %v662
  %792 = vst.msk [vmem:[%s3 + $0xec] sm:$0xf] %vm732, %v663
  %793 = vst.msk [vmem:[%s3 + $0xf0] sm:$0xf] %vm732, %v664
  %794 = vst.msk [vmem:[%s3 + $0xf4] sm:$0xf] %vm732, %v665
  %795 = vst.msk [vmem:[%s3 + $0xf8] sm:$0xf] %vm732, %v666
  %796 = vst.msk [vmem:[%s3 + $0xfc] sm:$0xf] %vm732, %v667
  // Predicated region
  $region14: #{generator_forward.16} parent=0 // pred_check
    _
  $region15: #{generator_forward.16} parent=0 // pred_check_branch
    %798 = sbr.rel (0) target = $region17
  $region16: #{generator_forward.16} parent=0 // pred_region
    _
  $region17: #{generator_forward.16} parent=0 // pred_fallthru
    _
  // Predicated region
  $region18: #{generator_forward.16} parent=0 // pred_check
    _
  $region19: #{generator_forward.16} parent=0 // pred_check_branch
    %800 = sbr.rel (0) target = $region21
  $region20: #{generator_forward.16} parent=0 // pred_region
    _
  $region21: #{generator_forward.16} parent=0 // pred_fallthru
    _

// kernel: generator_forward.15
$region0: #{generator_forward.15}
  #allocation0 [shape = 'u32[]', space=smem, size = 0x4, offset = 0x4, fixed_abs, tag = 'smem constant byte address 0x4 - core index']
  #allocation1 [shape = 'u32[144,128]{1,0:T(1,128)}', space=vmem, size = 0x12000, scoped, tag = 'internal scratch']
  %s0 = inlined_call_operand.vmem [shape: bf16[512,64], index: 0, kind: input, shape index: {}]
  %s1 = inlined_call_operand.vmem [shape: bf16[512,64], index: 1, kind: input, shape index: {}]
  %s2 = inlined_call_operand.vmem [shape: bf16[512,64], index: 2, kind: input, shape index: {}]
  %s3 = inlined_call_operand.vmem [shape: bf16[512,64], index: 3, kind: input, shape index: {}]
  %s4 = inlined_call_operand.vmem [shape: bf16[4,64,8], index: 4, kind: input, shape index: {}]
  %s5 = inlined_call_operand.vmem [shape: bf16[512,32], index: 5, kind: output, shape index: {0}]
  %s6 = inlined_call_operand.vmem [shape: f32[1,2,32], index: 6, kind: output, shape index: {1}]
  %7 = xla_tuple %s5, %s6
  %s8 = sld [smem:[#allocation0]]
  $region38: #{generator_forward.15} parent=0
    _
  %s10 = ssub.s32 1, %s8
  %s11 = scalar_select 0, %s10, %s8
  // Predicated region
  $region2: #{generator_forward.15} parent=0 // pred_check
    _
  $region3: #{generator_forward.15} parent=0 // pred_check_branch
    %13 = sbr.rel (0) target = $region5
  $region4: #{generator_forward.15} parent=0 // pred_region
    _
  $region5: #{generator_forward.15} parent=0 // pred_fallthru
    _
  // Predicated region
  $region6: #{generator_forward.15} parent=0 // pred_check
    _
  $region7: #{generator_forward.15} parent=0 // pred_check_branch
    %15 = sbr.rel (0) target = $region9
  $region8: #{generator_forward.15} parent=0 // pred_region
    _
  $region9: #{generator_forward.15} parent=0 // pred_fallthru
    _
  // Predicated region
  $region10: #{generator_forward.15} parent=0 // pred_check
    _
  $region11: #{generator_forward.15} parent=0 // pred_check_branch
    %17 = sbr.rel (0) target = $region13
  $region12: #{generator_forward.15} parent=0 // pred_region
    _
  $region13: #{generator_forward.15} parent=0 // pred_fallthru
    _
  // Predicated region
  $region14: #{generator_forward.15} parent=0 // pred_check
    _
  $region15: #{generator_forward.15} parent=0 // pred_check_branch
    %19 = sbr.rel (0) target = $region17
  $region16: #{generator_forward.15} parent=0 // pred_region
    _
  $region17: #{generator_forward.15} parent=0 // pred_fallthru
    _
  // Predicated region
  $region18: #{generator_forward.15} parent=0 // pred_check
    _
  $region19: #{generator_forward.15} parent=0 // pred_check_branch
    %21 = sbr.rel (0) target = $region21
  $region20: #{generator_forward.15} parent=0 // pred_region
    _
  $region21: #{generator_forward.15} parent=0 // pred_fallthru
    _
  %v23 = vld [vmem:[%s0] sm:$0xf]
  %v24 = vld [vmem:[%s0 + $0x4] sm:$0xf]
  %v25 = vld [vmem:[%s0 + $0x8] sm:$0xf]
  %v26 = vld [vmem:[%s0 + $0xc] sm:$0xf]
  %v27 = vld [vmem:[%s0 + $0x10] sm:$0xf]
  %v28 = vld [vmem:[%s0 + $0x14] sm:$0xf]
  %v29 = vld [vmem:[%s0 + $0x18] sm:$0xf]
  %v30 = vld [vmem:[%s0 + $0x1c] sm:$0xf]
  %v31 = vld [vmem:[%s0 + $0x20] sm:$0xf]
  %v32 = vld [vmem:[%s0 + $0x24] sm:$0xf]
  %v33 = vld [vmem:[%s0 + $0x28] sm:$0xf]
  %v34 = vld [vmem:[%s0 + $0x2c] sm:$0xf]
  %v35 = vld [vmem:[%s0 + $0x30] sm:$0xf]
  %v36 = vld [vmem:[%s0 + $0x34] sm:$0xf]
  %v37 = vld [vmem:[%s0 + $0x38] sm:$0xf]
  %v38 = vld [vmem:[%s0 + $0x3c] sm:$0xf]
  %v39 = vld [vmem:[%s0 + $0x40] sm:$0xf]
  %v40 = vld [vmem:[%s0 + $0x44] sm:$0xf]
  %v41 = vld [vmem:[%s0 + $0x48] sm:$0xf]
  %v42 = vld [vmem:[%s0 + $0x4c] sm:$0xf]
  %v43 = vld [vmem:[%s0 + $0x50] sm:$0xf]
  %v44 = vld [vmem:[%s0 + $0x54] sm:$0xf]
  %v45 = vld [vmem:[%s0 + $0x58] sm:$0xf]
  %v46 = vld [vmem:[%s0 + $0x5c] sm:$0xf]
  %v47 = vld [vmem:[%s0 + $0x60] sm:$0xf]
  %v48 = vld [vmem:[%s0 + $0x64] sm:$0xf]
  %v49 = vld [vmem:[%s0 + $0x68] sm:$0xf]
  %v50 = vld [vmem:[%s0 + $0x6c] sm:$0xf]
  %v51 = vld [vmem:[%s0 + $0x70] sm:$0xf]
  %v52 = vld [vmem:[%s0 + $0x74] sm:$0xf]
  %v53 = vld [vmem:[%s0 + $0x78] sm:$0xf]
  %v54 = vld [vmem:[%s0 + $0x7c] sm:$0xf]
  %v55 = vld [vmem:[%s0 + $0x80] sm:$0xf]
  %v56 = vld [vmem:[%s0 + $0x84] sm:$0xf]
  %v57 = vld [vmem:[%s0 + $0x88] sm:$0xf]
  %v58 = vld [vmem:[%s0 + $0x8c] sm:$0xf]
  %v59 = vld [vmem:[%s0 + $0x90] sm:$0xf]
  %v60 = vld [vmem:[%s0 + $0x94] sm:$0xf]
  %v61 = vld [vmem:[%s0 + $0x98] sm:$0xf]
  %v62 = vld [vmem:[%s0 + $0x9c] sm:$0xf]
  %v63 = vld [vmem:[%s0 + $0xa0] sm:$0xf]
  %v64 = vld [vmem:[%s0 + $0xa4] sm:$0xf]
  %v65 = vld [vmem:[%s0 + $0xa8] sm:$0xf]
  %v66 = vld [vmem:[%s0 + $0xac] sm:$0xf]
  %v67 = vld [vmem:[%s0 + $0xb0] sm:$0xf]
  %v68 = vld [vmem:[%s0 + $0xb4] sm:$0xf]
  %v69 = vld [vmem:[%s0 + $0xb8] sm:$0xf]
  %v70 = vld [vmem:[%s0 + $0xbc] sm:$0xf]
  %v71 = vld [vmem:[%s0 + $0xc0] sm:$0xf]
  %v72 = vld [vmem:[%s0 + $0xc4] sm:$0xf]
  %v73 = vld [vmem:[%s0 + $0xc8] sm:$0xf]
  %v74 = vld [vmem:[%s0 + $0xcc] sm:$0xf]
  %v75 = vld [vmem:[%s0 + $0xd0] sm:$0xf]
  %v76 = vld [vmem:[%s0 + $0xd4] sm:$0xf]
  %v77 = vld [vmem:[%s0 + $0xd8] sm:$0xf]
  %v78 = vld [vmem:[%s0 + $0xdc] sm:$0xf]
  %v79 = vld [vmem:[%s0 + $0xe0] sm:$0xf]
  %v80 = vld [vmem:[%s0 + $0xe4] sm:$0xf]
  %v81 = vld [vmem:[%s0 + $0xe8] sm:$0xf]
  %v82 = vld [vmem:[%s0 + $0xec] sm:$0xf]
  %v83 = vld [vmem:[%s0 + $0xf0] sm:$0xf]
  %v84 = vld [vmem:[%s0 + $0xf4] sm:$0xf]
  %v85 = vld [vmem:[%s0 + $0xf8] sm:$0xf]
  %v86 = vld [vmem:[%s0 + $0xfc] sm:$0xf]
  %v87 = vld [vmem:[%s4] sm:$0xf]
  %v88 = vld [vmem:[%s4 + $0x4] sm:$0xf]
  %v89 = vld [vmem:[%s4 + $0x8] sm:$0xf]
  %v90 = vld [vmem:[%s4 + $0xc] sm:$0xf]
  %v91 = vld [vmem:[%s4 + $0x10] sm:$0xf]
  %v92 = vld [vmem:[%s4 + $0x14] sm:$0xf]
  %v93 = vld [vmem:[%s4 + $0x18] sm:$0xf]
  %v94 = vld [vmem:[%s4 + $0x1c] sm:$0xf]
  %v159 = vunpack.c.l.b16 %v23
  %v160 = vunpack.c.l.b16 %v24
  %v161 = vunpack.c.l.b16 %v25
  %v162 = vunpack.c.l.b16 %v26
  %v163 = vunpack.c.l.b16 %v27
  %v164 = vunpack.c.l.b16 %v28
  %v165 = vunpack.c.l.b16 %v29
  %v166 = vunpack.c.l.b16 %v30
  %v167 = vunpack.c.l.b16 %v31
  %v168 = vunpack.c.l.b16 %v32
  %v169 = vunpack.c.l.b16 %v33
  %v170 = vunpack.c.l.b16 %v34
  %v171 = vunpack.c.l.b16 %v35
  %v172 = vunpack.c.l.b16 %v36
  %v173 = vunpack.c.l.b16 %v37
  %v174 = vunpack.c.l.b16 %v38
  %v175 = vunpack.c.l.b16 %v39
  %v176 = vunpack.c.l.b16 %v40
  %v177 = vunpack.c.l.b16 %v41
  %v178 = vunpack.c.l.b16 %v42
  %v179 = vunpack.c.l.b16 %v43
  %v180 = vunpack.c.l.b16 %v44
  %v181 = vunpack.c.l.b16 %v45
  %v182 = vunpack.c.l.b16 %v46
  %v183 = vunpack.c.l.b16 %v47
  %v184 = vunpack.c.l.b16 %v48
  %v185 = vunpack.c.l.b16 %v49
  %v186 = vunpack.c.l.b16 %v50
  %v187 = vunpack.c.l.b16 %v51
  %v188 = vunpack.c.l.b16 %v52
  %v189 = vunpack.c.l.b16 %v53
  %v190 = vunpack.c.l.b16 %v54
  %v191 = vunpack.c.l.b16 %v55
  %v192 = vunpack.c.l.b16 %v56
  %v193 = vunpack.c.l.b16 %v57
  %v194 = vunpack.c.l.b16 %v58
  %v195 = vunpack.c.l.b16 %v59
  %v196 = vunpack.c.l.b16 %v60
  %v197 = vunpack.c.l.b16 %v61
  %v198 = vunpack.c.l.b16 %v62
  %v199 = vunpack.c.l.b16 %v63
  %v200 = vunpack.c.l.b16 %v64
  %v201 = vunpack.c.l.b16 %v65
  %v202 = vunpack.c.l.b16 %v66
  %v203 = vunpack.c.l.b16 %v67
  %v204 = vunpack.c.l.b16 %v68
  %v205 = vunpack.c.l.b16 %v69
  %v206 = vunpack.c.l.b16 %v70
  %v207 = vunpack.c.l.b16 %v71
  %v208 = vunpack.c.l.b16 %v72
  %v209 = vunpack.c.l.b16 %v73
  %v210 = vunpack.c.l.b16 %v74
  %v211 = vunpack.c.l.b16 %v75
  %v212 = vunpack.c.l.b16 %v76
  %v213 = vunpack.c.l.b16 %v77
  %v214 = vunpack.c.l.b16 %v78
  %v215 = vunpack.c.l.b16 %v79
  %v216 = vunpack.c.l.b16 %v80
  %v217 = vunpack.c.l.b16 %v81
  %v218 = vunpack.c.l.b16 %v82
  %v219 = vunpack.c.l.b16 %v83
  %v220 = vunpack.c.l.b16 %v84
  %v221 = vunpack.c.l.b16 %v85
  %v222 = vunpack.c.l.b16 %v86
  %v223 = vpack.c.b16 %v160, %v159
  %v224 = vpack.c.b16 %v162, %v161
  %v225 = vpack.c.b16 %v164, %v163
  %v226 = vpack.c.b16 %v166, %v165
  %v227 = vpack.c.b16 %v168, %v167
  %v228 = vpack.c.b16 %v170, %v169
  %v229 = vpack.c.b16 %v172, %v171
  %v230 = vpack.c.b16 %v174, %v173
  %v231 = vpack.c.b16 %v176, %v175
  %v232 = vpack.c.b16 %v178, %v177
  %v233 = vpack.c.b16 %v180, %v179
  %v234 = vpack.c.b16 %v182, %v181
  %v235 = vpack.c.b16 %v184, %v183
  %v236 = vpack.c.b16 %v186, %v185
  %v237 = vpack.c.b16 %v188, %v187
  %v238 = vpack.c.b16 %v190, %v189
  %v239 = vpack.c.b16 %v192, %v191
  %v240 = vpack.c.b16 %v194, %v193
  %v241 = vpack.c.b16 %v196, %v195
  %v242 = vpack.c.b16 %v198, %v197
  %v243 = vpack.c.b16 %v200, %v199
  %v244 = vpack.c.b16 %v202, %v201
  %v245 = vpack.c.b16 %v204, %v203
  %v246 = vpack.c.b16 %v206, %v205
  %v247 = vpack.c.b16 %v208, %v207
  %v248 = vpack.c.b16 %v210, %v209
  %v249 = vpack.c.b16 %v212, %v211
  %v250 = vpack.c.b16 %v214, %v213
  %v251 = vpack.c.b16 %v216, %v215
  %v252 = vpack.c.b16 %v218, %v217
  %v253 = vpack.c.b16 %v220, %v219
  %v254 = vpack.c.b16 %v222, %v221
  %v263 = vunpack.c.l.b16 %v87
  %v264 = vunpack.c.l.b16 %v88
  %v265 = vunpack.c.l.b16 %v89
  %v266 = vunpack.c.l.b16 %v90
  %v267 = vunpack.c.l.b16 %v91
  %v268 = vunpack.c.l.b16 %v92
  %v269 = vunpack.c.l.b16 %v93
  %v270 = vunpack.c.l.b16 %v94
  %v271 = vpack.c.b16 %v264, %v263
  %v272 = vpack.c.b16 %v266, %v265
  %v273 = vpack.c.b16 %v268, %v267
  %v274 = vpack.c.b16 %v270, %v269
  %vm279 = vcmask 523264
  %v281 = vsel %vm279, %v223, 0
  %v284 = vsel %vm279, %v224, 0
  %v287 = vsel %vm279, %v225, 0
  %v290 = vsel %vm279, %v226, 0
  %v293 = vsel %vm279, %v227, 0
  %v296 = vsel %vm279, %v228, 0
  %v299 = vsel %vm279, %v229, 0
  %v302 = vsel %vm279, %v230, 0
  %v305 = vsel %vm279, %v231, 0
  %v308 = vsel %vm279, %v232, 0
  %v311 = vsel %vm279, %v233, 0
  %v314 = vsel %vm279, %v234, 0
  %v317 = vsel %vm279, %v235, 0
  %v320 = vsel %vm279, %v236, 0
  %v323 = vsel %vm279, %v237, 0
  %v326 = vsel %vm279, %v238, 0
  %v329 = vsel %vm279, %v239, 0
  %v332 = vsel %vm279, %v240, 0
  %v335 = vsel %vm279, %v241, 0
  %v338 = vsel %vm279, %v242, 0
  %v341 = vsel %vm279, %v243, 0
  %v344 = vsel %vm279, %v244, 0
  %v347 = vsel %vm279, %v245, 0
  %v350 = vsel %vm279, %v246, 0
  %v353 = vsel %vm279, %v247, 0
  %v356 = vsel %vm279, %v248, 0
  %v359 = vsel %vm279, %v249, 0
  %v362 = vsel %vm279, %v250, 0
  %v365 = vsel %vm279, %v251, 0
  %v368 = vsel %vm279, %v252, 0
  %v371 = vsel %vm279, %v253, 0
  %v374 = vsel %vm279, %v254, 0
  %376 = vmatprep.subr.bf16.mxu0 0
  %377 = vmatpush1.bf16.msra.mxu0 %v271
  %378 = vmatprep.subr.bf16.mxu0 0
  %379 = vmatpush1.bf16.msra.mxu0 %v272
  %380 = vmatprep.subr.bf16.mxu0 0
  %381 = vmatpush1.bf16.msra.mxu0 %v273
  %382 = vmatprep.subr.bf16.mxu0 0
  %383 = vmatpush1.bf16.msra.mxu0 %v274
  %384 = vmatprep.subr.bf16.mxu0 0
  %385 = vmatpush1.bf16.msra.mxu0 0
  %386 = vmatprep.subr.bf16.mxu0 0
  %387 = vmatpush1.bf16.msra.mxu0 0
  %388 = vmatprep.subr.bf16.mxu0 0
  %389 = vmatpush1.bf16.msra.mxu0 0
  %390 = vmatprep.subr.bf16.mxu0 0
  %391 = vmatpush1.bf16.msra.mxu0 0
  %392 = vmatprep.subr.bf16.mxu0 0
  %393 = vmatpush1.bf16.msra.mxu0 0
  %394 = vmatprep.subr.bf16.mxu0 0
  %395 = vmatpush1.bf16.msra.mxu0 0
  %396 = vmatprep.subr.bf16.mxu0 0
  %397 = vmatpush1.bf16.msra.mxu0 0
  %398 = vmatprep.subr.bf16.mxu0 0
  %399 = vmatpush1.bf16.msra.mxu0 0
  %400 = vmatprep.subr.bf16.mxu0 0
  %401 = vmatpush1.bf16.msra.mxu0 0
  %402 = vmatprep.subr.bf16.mxu0 0
  %403 = vmatpush1.bf16.msra.mxu0 0
  %404 = vmatprep.subr.bf16.mxu0 0
  %405 = vmatpush1.bf16.msra.mxu0 0
  %406 = vmatprep.subr.bf16.mxu0 0
  %407 = vmatpush1.bf16.msra.mxu0 0
  %408 = vmatprep.mubr.bf16.mxu0 0
  %409 = vmatmul.mubr.bf16.gmra.mrb[0].mxu0 %v281
  %v410 = vpop.f32.mrb[0].mxu0
  %v411 = vadd.f32 0.0, %v410
  %v412 = vpop.f32.mrb[0].mxu0
  %v413 = vpop.f32.mrb[0].mxu0
  %v414 = vadd.f32 0.0, %v413
  %v415 = vpop.f32.mrb[0].mxu0
  %416 = vmatprep.mubr.bf16.mxu0 0
  %417 = vmatmul.mubr.bf16.gmra.mrb[0].mxu0 %v284
  %v418 = vpop.f32.mrb[0].mxu0
  %v419 = vadd.f32 0.0, %v418
  %v420 = vpop.f32.mrb[0].mxu0
  %v421 = vpop.f32.mrb[0].mxu0
  %v422 = vadd.f32 0.0, %v421
  %v423 = vpop.f32.mrb[0].mxu0
  %424 = vmatprep.mubr.bf16.mxu0 0
  %425 = vmatmul.mubr.bf16.gmra.mrb[0].mxu0 %v287
  %v426 = vpop.f32.mrb[0].mxu0
  %v427 = vadd.f32 0.0, %v426
  %v428 = vpop.f32.mrb[0].mxu0
  %v429 = vpop.f32.mrb[0].mxu0
  %v430 = vadd.f32 0.0, %v429
  %v431 = vpop.f32.mrb[0].mxu0
  %432 = vmatprep.mubr.bf16.mxu0 0
  %433 = vmatmul.mubr.bf16.gmra.mrb[0].mxu0 %v290
  %v434 = vpop.f32.mrb[0].mxu0
  %v435 = vadd.f32 0.0, %v434
  %v436 = vpop.f32.mrb[0].mxu0
  %v437 = vpop.f32.mrb[0].mxu0
  %v438 = vadd.f32 0.0, %v437
  %v439 = vpop.f32.mrb[0].mxu0
  %440 = vmatprep.mubr.bf16.mxu0 0
  %441 = vmatmul.mubr.bf16.gmra.mrb[0].mxu0 %v293
  %v442 = vpop.f32.mrb[0].mxu0
  %v443 = vadd.f32 0.0, %v442
  %v444 = vpop.f32.mrb[0].mxu0
  %v445 = vpop.f32.mrb[0].mxu0
  %v446 = vadd.f32 0.0, %v445
  %v447 = vpop.f32.mrb[0].mxu0
  %448 = vmatprep.mubr.bf16.mxu0 0
  %449 = vmatmul.mubr.bf16.gmra.mrb[0].mxu0 %v296
  %v450 = vpop.f32.mrb[0].mxu0
  %v451 = vadd.f32 0.0, %v450
  %v452 = vpop.f32.mrb[0].mxu0
  %v453 = vpop.f32.mrb[0].mxu0
  %v454 = vadd.f32 0.0, %v453
  %v455 = vpop.f32.mrb[0].mxu0
  %456 = vmatprep.mubr.bf16.mxu0 0
  %457 = vmatmul.mubr.bf16.gmra.mrb[0].mxu0 %v299
  %v458 = vpop.f32.mrb[0].mxu0
  %v459 = vadd.f32 0.0, %v458
  %v460 = vpop.f32.mrb[0].mxu0
  %v461 = vpop.f32.mrb[0].mxu0
  %v462 = vadd.f32 0.0, %v461
  %v463 = vpop.f32.mrb[0].mxu0
  %464 = vmatprep.mubr.bf16.mxu0 0
  %465 = vmatmul.mubr.bf16.gmra.mrb[0].mxu0 %v302
  %v466 = vpop.f32.mrb[0].mxu0
  %v467 = vadd.f32 0.0, %v466
  %v468 = vpop.f32.mrb[0].mxu0
  %v469 = vpop.f32.mrb[0].mxu0
  %v470 = vadd.f32 0.0, %v469
  %v471 = vpop.f32.mrb[0].mxu0
  %472 = vmatprep.mubr.bf16.mxu0 0
  %473 = vmatmul.mubr.bf16.gmra.mrb[0].mxu0 %v305
  %v474 = vpop.f32.mrb[0].mxu0
  %v475 = vadd.f32 0.0, %v474
  %v476 = vpop.f32.mrb[0].mxu0
  %v477 = vpop.f32.mrb[0].mxu0
  %v478 = vadd.f32 0.0, %v477
  %v479 = vpop.f32.mrb[0].mxu0
  %480 = vmatprep.mubr.bf16.mxu0 0
  %481 = vmatmul.mubr.bf16.gmra.mrb[0].mxu0 %v308
  %v482 = vpop.f32.mrb[0].mxu0
  %v483 = vadd.f32 0.0, %v482
  %v484 = vpop.f32.mrb[0].mxu0
  %v485 = vpop.f32.mrb[0].mxu0
  %v486 = vadd.f32 0.0, %v485
  %v487 = vpop.f32.mrb[0].mxu0
  %488 = vmatprep.mubr.bf16.mxu0 0
  %489 = vmatmul.mubr.bf16.gmra.mrb[0].mxu0 %v311
  %v490 = vpop.f32.mrb[0].mxu0
  %v491 = vadd.f32 0.0, %v490
  %v492 = vpop.f32.mrb[0].mxu0
  %v493 = vpop.f32.mrb[0].mxu0
  %v494 = vadd.f32 0.0, %v493
  %v495 = vpop.f32.mrb[0].mxu0
  %496 = vmatprep.mubr.bf16.mxu0 0
  %497 = vmatmul.mubr.bf16.gmra.mrb[0].mxu0 %v314
  %v498 = vpop.f32.mrb[0].mxu0
  %v499 = vadd.f32 0.0, %v498
  %v500 = vpop.f32.mrb[0].mxu0
  %v501 = vpop.f32.mrb[0].mxu0
  %v502 = vadd.f32 0.0, %v501
  %v503 = vpop.f32.mrb[0].mxu0
  %504 = vmatprep.mubr.bf16.mxu0 0
  %505 = vmatmul.mubr.bf16.gmra.mrb[0].mxu0 %v317
  %v506 = vpop.f32.mrb[0].mxu0
  %v507 = vadd.f32 0.0, %v506
  %v508 = vpop.f32.mrb[0].mxu0
  %v509 = vpop.f32.mrb[0].mxu0
  %v510 = vadd.f32 0.0, %v509
  %v511 = vpop.f32.mrb[0].mxu0
  %512 = vmatprep.mubr.bf16.mxu0 0
  %513 = vmatmul.mubr.bf16.gmra.mrb[0].mxu0 %v320
  %v514 = vpop.f32.mrb[0].mxu0
  %v515 = vadd.f32 0.0, %v514
  %v516 = vpop.f32.mrb[0].mxu0
  %v517 = vpop.f32.mrb[0].mxu0
  %v518 = vadd.f32 0.0, %v517
  %v519 = vpop.f32.mrb[0].mxu0
  %520 = vmatprep.mubr.bf16.mxu0 0
  %521 = vmatmul.mubr.bf16.gmra.mrb[0].mxu0 %v323
  %v522 = vpop.f32.mrb[0].mxu0
  %v523 = vadd.f32 0.0, %v522
  %v524 = vpop.f32.mrb[0].mxu0
  %v525 = vpop.f32.mrb[0].mxu0
  %v526 = vadd.f32 0.0, %v525
  %v527 = vpop.f32.mrb[0].mxu0
  %528 = vmatprep.mubr.bf16.mxu0 0
  %529 = vmatmul.mubr.bf16.gmra.mrb[0].mxu0 %v326
  %v530 = vpop.f32.mrb[0].mxu0
  %v531 = vadd.f32 0.0, %v530
  %v532 = vpop.f32.mrb[0].mxu0
  %v533 = vpop.f32.mrb[0].mxu0
  %v534 = vadd.f32 0.0, %v533
  %v535 = vpop.f32.mrb[0].mxu0
  %536 = vmatprep.mubr.bf16.mxu0 0
  %537 = vmatmul.mubr.bf16.gmra.mrb[0].mxu0 %v329
  %v538 = vpop.f32.mrb[0].mxu0
  %v539 = vadd.f32 0.0, %v538
  %v540 = vpop.f32.mrb[0].mxu0
  %v541 = vpop.f32.mrb[0].mxu0
  %v542 = vadd.f32 0.0, %v541
  %v543 = vpop.f32.mrb[0].mxu0
  %544 = vmatprep.mubr.bf16.mxu0 0
  %545 = vmatmul.mubr.bf16.gmra.mrb[0].mxu0 %v332
  %v546 = vpop.f32.mrb[0].mxu0
  %v547 = vadd.f32 0.0, %v546
  %v548 = vpop.f32.mrb[0].mxu0
  %v549 = vpop.f32.mrb[0].mxu0
  %v550 = vadd.f32 0.0, %v549
  %v551 = vpop.f32.mrb[0].mxu0
  %552 = vmatprep.mubr.bf16.mxu0 0
  %553 = vmatmul.mubr.bf16.gmra.mrb[0].mxu0 %v335
  %v554 = vpop.f32.mrb[0].mxu0
  %v555 = vadd.f32 0.0, %v554
  %v556 = vpop.f32.mrb[0].mxu0
  %v557 = vpop.f32.mrb[0].mxu0
  %v558 = vadd.f32 0.0, %v557
  %v559 = vpop.f32.mrb[0].mxu0
  %560 = vmatprep.mubr.bf16.mxu0 0
  %561 = vmatmul.mubr.bf16.gmra.mrb[0].mxu0 %v338
  %v562 = vpop.f32.mrb[0].mxu0
  %v563 = vadd.f32 0.0, %v562
  %v564 = vpop.f32.mrb[0].mxu0
  %v565 = vpop.f32.mrb[0].mxu0
  %v566 = vadd.f32 0.0, %v565
  %v567 = vpop.f32.mrb[0].mxu0
  %568 = vmatprep.mubr.bf16.mxu0 0
  %569 = vmatmul.mubr.bf16.gmra.mrb[0].mxu0 %v341
  %v570 = vpop.f32.mrb[0].mxu0
  %v571 = vadd.f32 0.0, %v570
  %v572 = vpop.f32.mrb[0].mxu0
  %v573 = vpop.f32.mrb[0].mxu0
  %v574 = vadd.f32 0.0, %v573
  %v575 = vpop.f32.mrb[0].mxu0
  %576 = vmatprep.mubr.bf16.mxu0 0
  %577 = vmatmul.mubr.bf16.gmra.mrb[0].mxu0 %v344
  %v578 = vpop.f32.mrb[0].mxu0
  %v579 = vadd.f32 0.0, %v578
  %v580 = vpop.f32.mrb[0].mxu0
  %v581 = vpop.f32.mrb[0].mxu0
  %v582 = vadd.f32 0.0, %v581
  %v583 = vpop.f32.mrb[0].mxu0
  %584 = vmatprep.mubr.bf16.mxu0 0
  %585 = vmatmul.mubr.bf16.gmra.mrb[0].mxu0 %v347
  %v586 = vpop.f32.mrb[0].mxu0
  %v587 = vadd.f32 0.0, %v586
  %v588 = vpop.f32.mrb[0].mxu0
  %v589 = vpop.f32.mrb[0].mxu0
  %v590 = vadd.f32 0.0, %v589
  %v591 = vpop.f32.mrb[0].mxu0
  %592 = vmatprep.mubr.bf16.mxu0 0
  %593 = vmatmul.mubr.bf16.gmra.mrb[0].mxu0 %v350
  %v594 = vpop.f32.mrb[0].mxu0
  %v595 = vadd.f32 0.0, %v594
  %v596 = vpop.f32.mrb[0].mxu0
  %v597 = vpop.f32.mrb[0].mxu0
  %v598 = vadd.f32 0.0, %v597
  %v599 = vpop.f32.mrb[0].mxu0
  %600 = vmatprep.mubr.bf16.mxu0 0
  %601 = vmatmul.mubr.bf16.gmra.mrb[0].mxu0 %v353
  %v602 = vpop.f32.mrb[0].mxu0
  %v603 = vadd.f32 0.0, %v602
  %v604 = vpop.f32.mrb[0].mxu0
  %v605 = vpop.f32.mrb[0].mxu0
  %v606 = vadd.f32 0.0, %v605
  %v607 = vpop.f32.mrb[0].mxu0
  %608 = vmatprep.mubr.bf16.mxu0 0
  %609 = vmatmul.mubr.bf16.gmra.mrb[0].mxu0 %v356
  %v610 = vpop.f32.mrb[0].mxu0
  %v611 = vadd.f32 0.0, %v610
  %v612 = vpop.f32.mrb[0].mxu0
  %v613 = vpop.f32.mrb[0].mxu0
  %v614 = vadd.f32 0.0, %v613
  %v615 = vpop.f32.mrb[0].mxu0
  %616 = vmatprep.mubr.bf16.mxu0 0
  %617 = vmatmul.mubr.bf16.gmra.mrb[0].mxu0 %v359
  %v618 = vpop.f32.mrb[0].mxu0
  %v619 = vadd.f32 0.0, %v618
  %v620 = vpop.f32.mrb[0].mxu0
  %v621 = vpop.f32.mrb[0].mxu0
  %v622 = vadd.f32 0.0, %v621
  %v623 = vpop.f32.mrb[0].mxu0
  %624 = vmatprep.mubr.bf16.mxu0 0
  %625 = vmatmul.mubr.bf16.gmra.mrb[0].mxu0 %v362
  %v626 = vpop.f32.mrb[0].mxu0
  %v627 = vadd.f32 0.0, %v626
  %v628 = vpop.f32.mrb[0].mxu0
  %v629 = vpop.f32.mrb[0].mxu0
  %v630 = vadd.f32 0.0, %v629
  %v631 = vpop.f32.mrb[0].mxu0
  %632 = vmatprep.mubr.bf16.mxu0 0
  %633 = vmatmul.mubr.bf16.gmra.mrb[0].mxu0 %v365
  %v634 = vpop.f32.mrb[0].mxu0
  %v635 = vadd.f32 0.0, %v634
  %v636 = vpop.f32.mrb[0].mxu0
  %v637 = vpop.f32.mrb[0].mxu0
  %v638 = vadd.f32 0.0, %v637
  %v639 = vpop.f32.mrb[0].mxu0
  %640 = vmatprep.mubr.bf16.mxu0 0
  %641 = vmatmul.mubr.bf16.gmra.mrb[0].mxu0 %v368
  %v642 = vpop.f32.mrb[0].mxu0
  %v643 = vadd.f32 0.0, %v642
  %v644 = vpop.f32.mrb[0].mxu0
  %v645 = vpop.f32.mrb[0].mxu0
  %v646 = vadd.f32 0.0, %v645
  %v647 = vpop.f32.mrb[0].mxu0
  %648 = vmatprep.mubr.bf16.mxu0 0
  %649 = vmatmul.mubr.bf16.gmra.mrb[0].mxu0 %v371
  %v650 = vpop.f32.mrb[0].mxu0
  %v651 = vadd.f32 0.0, %v650
  %v652 = vpop.f32.mrb[0].mxu0
  %v653 = vpop.f32.mrb[0].mxu0
  %v654 = vadd.f32 0.0, %v653
  %v655 = vpop.f32.mrb[0].mxu0
  %656 = vmatprep.mubr.bf16.mxu0 0
  %657 = vmatmul.mubr.bf16.gmra.mrb[0].mxu0 %v374
  %v658 = vpop.f32.mrb[0].mxu0
  %v659 = vadd.f32 0.0, %v658
  %v660 = vpop.f32.mrb[0].mxu0
  %v661 = vpop.f32.mrb[0].mxu0
  %v662 = vadd.f32 0.0, %v661
  %v663 = vpop.f32.mrb[0].mxu0
  %664 = vdwg.mxu0
  %v665 = vld [vmem:[%s1] sm:$0xf]
  %v666 = vld [vmem:[%s1 + $0x4] sm:$0xf]
  %v667 = vld [vmem:[%s1 + $0x8] sm:$0xf]
  %v668 = vld [vmem:[%s1 + $0xc] sm:$0xf]
  %v669 = vld [vmem:[%s1 + $0x10] sm:$0xf]
  %v670 = vld [vmem:[%s1 + $0x14] sm:$0xf]
  %v671 = vld [vmem:[%s1 + $0x18] sm:$0xf]
  %v672 = vld [vmem:[%s1 + $0x1c] sm:$0xf]
  %v673 = vld [vmem:[%s1 + $0x20] sm:$0xf]
  %v674 = vld [vmem:[%s1 + $0x24] sm:$0xf]
  %v675 = vld [vmem:[%s1 + $0x28] sm:$0xf]
  %v676 = vld [vmem:[%s1 + $0x2c] sm:$0xf]
  %v677 = vld [vmem:[%s1 + $0x30] sm:$0xf]
  %v678 = vld [vmem:[%s1 + $0x34] sm:$0xf]
  %v679 = vld [vmem:[%s1 + $0x38] sm:$0xf]
  %v680 = vld [vmem:[%s1 + $0x3c] sm:$0xf]
  %v681 = vld [vmem:[%s1 + $0x40] sm:$0xf]
  %v682 = vld [vmem:[%s1 + $0x44] sm:$0xf]
  %v683 = vld [vmem:[%s1 + $0x48] sm:$0xf]
  %v684 = vld [vmem:[%s1 + $0x4c] sm:$0xf]
  %v685 = vld [vmem:[%s1 + $0x50] sm:$0xf]
  %v686 = vld [vmem:[%s1 + $0x54] sm:$0xf]
  %v687 = vld [vmem:[%s1 + $0x58] sm:$0xf]
  %v688 = vld [vmem:[%s1 + $0x5c] sm:$0xf]
  %v689 = vld [vmem:[%s1 + $0x60] sm:$0xf]
  %v690 = vld [vmem:[%s1 + $0x64] sm:$0xf]
  %v691 = vld [vmem:[%s1 + $0x68] sm:$0xf]
  %v692 = vld [vmem:[%s1 + $0x6c] sm:$0xf]
  %v693 = vld [vmem:[%s1 + $0x70] sm:$0xf]
  %v694 = vld [vmem:[%s1 + $0x74] sm:$0xf]
  %v695 = vld [vmem:[%s1 + $0x78] sm:$0xf]
  %v696 = vld [vmem:[%s1 + $0x7c] sm:$0xf]
  %v697 = vld [vmem:[%s1 + $0x80] sm:$0xf]
  %v698 = vld [vmem:[%s1 + $0x84] sm:$0xf]
  %v699 = vld [vmem:[%s1 + $0x88] sm:$0xf]
  %v700 = vld [vmem:[%s1 + $0x8c] sm:$0xf]
  %v701 = vld [vmem:[%s1 + $0x90] sm:$0xf]
  %v702 = vld [vmem:[%s1 + $0x94] sm:$0xf]
  %v703 = vld [vmem:[%s1 + $0x98] sm:$0xf]
  %v704 = vld [vmem:[%s1 + $0x9c] sm:$0xf]
  %v705 = vld [vmem:[%s1 + $0xa0] sm:$0xf]
  %v706 = vld [vmem:[%s1 + $0xa4] sm:$0xf]
  %v707 = vld [vmem:[%s1 + $0xa8] sm:$0xf]
  %v708 = vld [vmem:[%s1 + $0xac] sm:$0xf]
  %v709 = vld [vmem:[%s1 + $0xb0] sm:$0xf]
  %v710 = vld [vmem:[%s1 + $0xb4] sm:$0xf]
  %v711 = vld [vmem:[%s1 + $0xb8] sm:$0xf]
  %v712 = vld [vmem:[%s1 + $0xbc] sm:$0xf]
  %v713 = vld [vmem:[%s1 + $0xc0] sm:$0xf]
  %v714 = vld [vmem:[%s1 + $0xc4] sm:$0xf]
  %v715 = vld [vmem:[%s1 + $0xc8] sm:$0xf]
  %v716 = vld [vmem:[%s1 + $0xcc] sm:$0xf]
  %v717 = vld [vmem:[%s1 + $0xd0] sm:$0xf]
  %v718 = vld [vmem:[%s1 + $0xd4] sm:$0xf]
  %v719 = vld [vmem:[%s1 + $0xd8] sm:$0xf]
  %v720 = vld [vmem:[%s1 + $0xdc] sm:$0xf]
  %v721 = vld [vmem:[%s1 + $0xe0] sm:$0xf]
  %v722 = vld [vmem:[%s1 + $0xe4] sm:$0xf]
  %v723 = vld [vmem:[%s1 + $0xe8] sm:$0xf]
  %v724 = vld [vmem:[%s1 + $0xec] sm:$0xf]
  %v725 = vld [vmem:[%s1 + $0xf0] sm:$0xf]
  %v726 = vld [vmem:[%s1 + $0xf4] sm:$0xf]
  %v727 = vld [vmem:[%s1 + $0xf8] sm:$0xf]
  %v728 = vld [vmem:[%s1 + $0xfc] sm:$0xf]
  %s729 = scalar_lea.vmem %s4, 32
  %v730 = vld [vmem:[%s729] sm:$0xf]
  %v731 = vld [vmem:[%s729 + $0x4] sm:$0xf]
  %v732 = vld [vmem:[%s729 + $0x8] sm:$0xf]
  %v733 = vld [vmem:[%s729 + $0xc] sm:$0xf]
  %v734 = vld [vmem:[%s729 + $0x10] sm:$0xf]
  %v735 = vld [vmem:[%s729 + $0x14] sm:$0xf]
  %v736 = vld [vmem:[%s729 + $0x18] sm:$0xf]
  %v737 = vld [vmem:[%s729 + $0x1c] sm:$0xf]
  %v802 = vunpack.c.l.b16 %v665
  %v803 = vunpack.c.l.b16 %v666
  %v804 = vunpack.c.l.b16 %v667
  %v805 = vunpack.c.l.b16 %v668
  %v806 = vunpack.c.l.b16 %v669
  %v807 = vunpack.c.l.b16 %v670
  %v808 = vunpack.c.l.b16 %v671
  %v809 = vunpack.c.l.b16 %v672
  %v810 = vunpack.c.l.b16 %v673
  %v811 = vunpack.c.l.b16 %v674
  %v812 = vunpack.c.l.b16 %v675
  %v813 = vunpack.c.l.b16 %v676
  %v814 = vunpack.c.l.b16 %v677
  %v815 = vunpack.c.l.b16 %v678
  %v816 = vunpack.c.l.b16 %v679
  %v817 = vunpack.c.l.b16 %v680
  %v818 = vunpack.c.l.b16 %v681
  %v819 = vunpack.c.l.b16 %v682
  %v820 = vunpack.c.l.b16 %v683
  %v821 = vunpack.c.l.b16 %v684
  %v822 = vunpack.c.l.b16 %v685
  %v823 = vunpack.c.l.b16 %v686
  %v824 = vunpack.c.l.b16 %v687
  %v825 = vunpack.c.l.b16 %v688
  %v826 = vunpack.c.l.b16 %v689
  %v827 = vunpack.c.l.b16 %v690
  %v828 = vunpack.c.l.b16 %v691
  %v829 = vunpack.c.l.b16 %v692
  %v830 = vunpack.c.l.b16 %v693
  %v831 = vunpack.c.l.b16 %v694
  %v832 = vunpack.c.l.b16 %v695
  %v833 = vunpack.c.l.b16 %v696
  %v834 = vunpack.c.l.b16 %v697
  %v835 = vunpack.c.l.b16 %v698
  %v836 = vunpack.c.l.b16 %v699
  %v837 = vunpack.c.l.b16 %v700
  %v838 = vunpack.c.l.b16 %v701
  %v839 = vunpack.c.l.b16 %v702
  %v840 = vunpack.c.l.b16 %v703
  %v841 = vunpack.c.l.b16 %v704
  %v842 = vunpack.c.l.b16 %v705
  %v843 = vunpack.c.l.b16 %v706
  %v844 = vunpack.c.l.b16 %v707
  %v845 = vunpack.c.l.b16 %v708
  %v846 = vunpack.c.l.b16 %v709
  %v847 = vunpack.c.l.b16 %v710
  %v848 = vunpack.c.l.b16 %v711
  %v849 = vunpack.c.l.b16 %v712
  %v850 = vunpack.c.l.b16 %v713
  %v851 = vunpack.c.l.b16 %v714
  %v852 = vunpack.c.l.b16 %v715
  %v853 = vunpack.c.l.b16 %v716
  %v854 = vunpack.c.l.b16 %v717
  %v855 = vunpack.c.l.b16 %v718
  %v856 = vunpack.c.l.b16 %v719
  %v857 = vunpack.c.l.b16 %v720
  %v858 = vunpack.c.l.b16 %v721
  %v859 = vunpack.c.l.b16 %v722
  %v860 = vunpack.c.l.b16 %v723
  %v861 = vunpack.c.l.b16 %v724
  %v862 = vunpack.c.l.b16 %v725
  %v863 = vunpack.c.l.b16 %v726
  %v864 = vunpack.c.l.b16 %v727
  %v865 = vunpack.c.l.b16 %v728
  %v866 = vpack.c.b16 %v803, %v802
  %v867 = vpack.c.b16 %v805, %v804
  %v868 = vpack.c.b16 %v807, %v806
  %v869 = vpack.c.b16 %v809, %v808
  %v870 = vpack.c.b16 %v811, %v810
  %v871 = vpack.c.b16 %v813, %v812
  %v872 = vpack.c.b16 %v815, %v814
  %v873 = vpack.c.b16 %v817, %v816
  %v874 = vpack.c.b16 %v819, %v818
  %v875 = vpack.c.b16 %v821, %v820
  %v876 = vpack.c.b16 %v823, %v822
  %v877 = vpack.c.b16 %v825, %v824
  %v878 = vpack.c.b16 %v827, %v826
  %v879 = vpack.c.b16 %v829, %v828
  %v880 = vpack.c.b16 %v831, %v830
  %v881 = vpack.c.b16 %v833, %v832
  %v882 = vpack.c.b16 %v835, %v834
  %v883 = vpack.c.b16 %v837, %v836
  %v884 = vpack.c.b16 %v839, %v838
  %v885 = vpack.c.b16 %v841, %v840
  %v886 = vpack.c.b16 %v843, %v842
  %v887 = vpack.c.b16 %v845, %v844
  %v888 = vpack.c.b16 %v847, %v846
  %v889 = vpack.c.b16 %v849, %v848
  %v890 = vpack.c.b16 %v851, %v850
  %v891 = vpack.c.b16 %v853, %v852
  %v892 = vpack.c.b16 %v855, %v854
  %v893 = vpack.c.b16 %v857, %v856
  %v894 = vpack.c.b16 %v859, %v858
  %v895 = vpack.c.b16 %v861, %v860
  %v896 = vpack.c.b16 %v863, %v862
  %v897 = vpack.c.b16 %v865, %v864
  %v906 = vunpack.c.l.b16 %v730
  %v907 = vunpack.c.l.b16 %v731
  %v908 = vunpack.c.l.b16 %v732
  %v909 = vunpack.c.l.b16 %v733
  %v910 = vunpack.c.l.b16 %v734
  %v911 = vunpack.c.l.b16 %v735
  %v912 = vunpack.c.l.b16 %v736
  %v913 = vunpack.c.l.b16 %v737
  %v914 = vpack.c.b16 %v907, %v906
  %v915 = vpack.c.b16 %v909, %v908
  %v916 = vpack.c.b16 %v911, %v910
  %v917 = vpack.c.b16 %v913, %v912
  %v923 = vsel %vm279, %v866, 0
  %v926 = vsel %vm279, %v867, 0
  %v929 = vsel %vm279, %v868, 0
  %v932 = vsel %vm279, %v869, 0
  %v935 = vsel %vm279, %v870, 0
  %v938 = vsel %vm279, %v871, 0
  %v941 = vsel %vm279, %v872, 0
  %v944 = vsel %vm279, %v873, 0
  %v947 = vsel %vm279, %v874, 0
  %v950 = vsel %vm279, %v875, 0
  %v953 = vsel %vm279, %v876, 0
  %v956 = vsel %vm279, %v877, 0
  %v959 = vsel %vm279, %v878, 0
  %v962 = vsel %vm279, %v879, 0
  %v965 = vsel %vm279, %v880, 0
  %v968 = vsel %vm279, %v881, 0
  %v971 = vsel %vm279, %v882, 0
  %v974 = vsel %vm279, %v883, 0
  %v977 = vsel %vm279, %v884, 0
  %v980 = vsel %vm279, %v885, 0
  %v983 = vsel %vm279, %v886, 0
  %v986 = vsel %vm279, %v887, 0
  %v989 = vsel %vm279, %v888, 0
  %v992 = vsel %vm279, %v889, 0
  %v995 = vsel %vm279, %v890, 0
  %v998 = vsel %vm279, %v891, 0
  %v1001 = vsel %vm279, %v892, 0
  %v1004 = vsel %vm279, %v893, 0
  %v1007 = vsel %vm279, %v894, 0
  %v1010 = vsel %vm279, %v895, 0
  %v1013 = vsel %vm279, %v896, 0
  %v1016 = vsel %vm279, %v897, 0
  %1018 = vmatprep.subr.bf16.mxu0 0
  %1019 = vmatpush1.bf16.msra.mxu0 %v914
  %1020 = vmatprep.subr.bf16.mxu0 0
  %1021 = vmatpush1.bf16.msra.mxu0 %v915
  %1022 = vmatprep.subr.bf16.mxu0 0
  %1023 = vmatpush1.bf16.msra.mxu0 %v916
  %1024 = vmatprep.subr.bf16.mxu0 0
  %1025 = vmatpush1.bf16.msra.mxu0 %v917
  %1026 = vmatprep.subr.bf16.mxu0 0
  %1027 = vmatpush1.bf16.msra.mxu0 0
  %1028 = vmatprep.subr.bf16.mxu0 0
  %1029 = vmatpush1.bf16.msra.mxu0 0
  %1030 = vmatprep.subr.bf16.mxu0 0
  %1031 = vmatpush1.bf16.msra.mxu0 0
  %1032 = vmatprep.subr.bf16.mxu0 0
  %1033 = vmatpush1.bf16.msra.mxu0 0
  %1034 = vmatprep.subr.bf16.mxu0 0
  %1035 = vmatpush1.bf16.msra.mxu0 0
  %1036 = vmatprep.subr.bf16.mxu0 0
  %1037 = vmatpush1.bf16.msra.mxu0 0
  %1038 = vmatprep.subr.bf16.mxu0 0
  %1039 = vmatpush1.bf16.msra.mxu0 0
  %1040 = vmatprep.subr.bf16.mxu0 0
  %1041 = vmatpush1.bf16.msra.mxu0 0
  %1042 = vmatprep.subr.bf16.mxu0 0
  %1043 = vmatpush1.bf16.msra.mxu0 0
  %1044 = vmatprep.subr.bf16.mxu0 0
  %1045 = vmatpush1.bf16.msra.mxu0 0
  %1046 = vmatprep.subr.bf16.mxu0 0
  %1047 = vmatpush1.bf16.msra.mxu0 0
  %1048 = vmatprep.subr.bf16.mxu0 0
  %1049 = vmatpush1.bf16.msra.mxu0 0
  %1050 = vmatprep.mubr.bf16.mxu0 0
  %1051 = vmatmul.mubr.bf16.gmra.mrb[0].mxu0 %v923
  %v1052 = vpop.f32.mrb[0].mxu0
  %v1053 = vadd.f32 0.0, %v1052
  %v1054 = vpop.f32.mrb[0].mxu0
  %v1055 = vpop.f32.mrb[0].mxu0
  %v1056 = vadd.f32 0.0, %v1055
  %v1057 = vpop.f32.mrb[0].mxu0
  %1058 = vmatprep.mubr.bf16.mxu0 0
  %1059 = vmatmul.mubr.bf16.gmra.mrb[0].mxu0 %v926
  %v1060 = vpop.f32.mrb[0].mxu0
  %v1061 = vadd.f32 0.0, %v1060
  %v1062 = vpop.f32.mrb[0].mxu0
  %v1063 = vpop.f32.mrb[0].mxu0
  %v1064 = vadd.f32 0.0, %v1063
  %v1065 = vpop.f32.mrb[0].mxu0
  %1066 = vmatprep.mubr.bf16.mxu0 0
  %1067 = vmatmul.mubr.bf16.gmra.mrb[0].mxu0 %v929
  %v1068 = vpop.f32.mrb[0].mxu0
  %v1069 = vadd.f32 0.0, %v1068
  %v1070 = vpop.f32.mrb[0].mxu0
  %v1071 = vpop.f32.mrb[0].mxu0
  %v1072 = vadd.f32 0.0, %v1071
  %v1073 = vpop.f32.mrb[0].mxu0
  %1074 = vmatprep.mubr.bf16.mxu0 0
  %1075 = vmatmul.mubr.bf16.gmra.mrb[0].mxu0 %v932
  %v1076 = vpop.f32.mrb[0].mxu0
  %v1077 = vadd.f32 0.0, %v1076
  %v1078 = vpop.f32.mrb[0].mxu0
  %v1079 = vpop.f32.mrb[0].mxu0
  %v1080 = vadd.f32 0.0, %v1079
  %v1081 = vpop.f32.mrb[0].mxu0
  %1082 = vmatprep.mubr.bf16.mxu0 0
  %1083 = vmatmul.mubr.bf16.gmra.mrb[0].mxu0 %v935
  %v1084 = vpop.f32.mrb[0].mxu0
  %v1085 = vadd.f32 0.0, %v1084
  %v1086 = vpop.f32.mrb[0].mxu0
  %v1087 = vpop.f32.mrb[0].mxu0
  %v1088 = vadd.f32 0.0, %v1087
  %v1089 = vpop.f32.mrb[0].mxu0
  %1090 = vmatprep.mubr.bf16.mxu0 0
  %1091 = vmatmul.mubr.bf16.gmra.mrb[0].mxu0 %v938
  %v1092 = vpop.f32.mrb[0].mxu0
  %v1093 = vadd.f32 0.0, %v1092
  %v1094 = vpop.f32.mrb[0].mxu0
  %v1095 = vpop.f32.mrb[0].mxu0
  %v1096 = vadd.f32 0.0, %v1095
  %v1097 = vpop.f32.mrb[0].mxu0
  %1098 = vmatprep.mubr.bf16.mxu0 0
  %1099 = vmatmul.mubr.bf16.gmra.mrb[0].mxu0 %v941
  %v1100 = vpop.f32.mrb[0].mxu0
  %v1101 = vadd.f32 0.0, %v1100
  %v1102 = vpop.f32.mrb[0].mxu0
  %v1103 = vpop.f32.mrb[0].mxu0
  %v1104 = vadd.f32 0.0, %v1103
  %v1105 = vpop.f32.mrb[0].mxu0
  %1106 = vmatprep.mubr.bf16.mxu0 0
  %1107 = vmatmul.mubr.bf16.gmra.mrb[0].mxu0 %v944
  %v1108 = vpop.f32.mrb[0].mxu0
  %v1109 = vadd.f32 0.0, %v1108
  %v1110 = vpop.f32.mrb[0].mxu0
  %v1111 = vpop.f32.mrb[0].mxu0
  %v1112 = vadd.f32 0.0, %v1111
  %v1113 = vpop.f32.mrb[0].mxu0
  %1114 = vmatprep.mubr.bf16.mxu0 0
  %1115 = vmatmul.mubr.bf16.gmra.mrb[0].mxu0 %v947
  %v1116 = vpop.f32.mrb[0].mxu0
  %v1117 = vadd.f32 0.0, %v1116
  %v1118 = vpop.f32.mrb[0].mxu0
  %v1119 = vpop.f32.mrb[0].mxu0
  %v1120 = vadd.f32 0.0, %v1119
  %v1121 = vpop.f32.mrb[0].mxu0
  %1122 = vmatprep.mubr.bf16.mxu0 0
  %1123 = vmatmul.mubr.bf16.gmra.mrb[0].mxu0 %v950
  %v1124 = vpop.f32.mrb[0].mxu0
  %v1125 = vadd.f32 0.0, %v1124
  %v1126 = vpop.f32.mrb[0].mxu0
  %v1127 = vpop.f32.mrb[0].mxu0
  %v1128 = vadd.f32 0.0, %v1127
  %v1129 = vpop.f32.mrb[0].mxu0
  %1130 = vmatprep.mubr.bf16.mxu0 0
  %1131 = vmatmul.mubr.bf16.gmra.mrb[0].mxu0 %v953
  %v1132 = vpop.f32.mrb[0].mxu0
  %v1133 = vadd.f32 0.0, %v1132
  %v1134 = vpop.f32.mrb[0].mxu0
  %v1135 = vpop.f32.mrb[0].mxu0
  %v1136 = vadd.f32 0.0, %v1135
  %v1137 = vpop.f32.mrb[0].mxu0
  %1138 = vmatprep.mubr.bf16.mxu0 0
  %1139 = vmatmul.mubr.bf16.gmra.mrb[0].mxu0 %v956
  %v1140 = vpop.f32.mrb[0].mxu0
  %v1141 = vadd.f32 0.0, %v1140
  %v1142 = vpop.f32.mrb[0].mxu0
  %v1143 = vpop.f32.mrb[0].mxu0
  %v1144 = vadd.f32 0.0, %v1143
  %v1145 = vpop.f32.mrb[0].mxu0
  %1146 = vmatprep.mubr.bf16.mxu0 0
  %1147 = vmatmul.mubr.bf16.gmra.mrb[0].mxu0 %v959
  %v1148 = vpop.f32.mrb[0].mxu0
  %v1149 = vadd.f32 0.0, %v1148
  %v1150 = vpop.f32.mrb[0].mxu0
  %v1151 = vpop.f32.mrb[0].mxu0
  %v1152 = vadd.f32 0.0, %v1151
  %v1153 = vpop.f32.mrb[0].mxu0
  %1154 = vmatprep.mubr.bf16.mxu0 0
  %1155 = vmatmul.mubr.bf16.gmra.mrb[0].mxu0 %v962
  %v1156 = vpop.f32.mrb[0].mxu0
  %v1157 = vadd.f32 0.0, %v1156
  %v1158 = vpop.f32.mrb[0].mxu0
  %v1159 = vpop.f32.mrb[0].mxu0
  %v1160 = vadd.f32 0.0, %v1159
  %v1161 = vpop.f32.mrb[0].mxu0
  %1162 = vmatprep.mubr.bf16.mxu0 0
  %1163 = vmatmul.mubr.bf16.gmra.mrb[0].mxu0 %v965
  %v1164 = vpop.f32.mrb[0].mxu0
  %v1165 = vadd.f32 0.0, %v1164
  %v1166 = vpop.f32.mrb[0].mxu0
  %v1167 = vpop.f32.mrb[0].mxu0
  %v1168 = vadd.f32 0.0, %v1167
  %v1169 = vpop.f32.mrb[0].mxu0
  %1170 = vmatprep.mubr.bf16.mxu0 0
  %1171 = vmatmul.mubr.bf16.gmra.mrb[0].mxu0 %v968
  %v1172 = vpop.f32.mrb[0].mxu0
  %v1173 = vadd.f32 0.0, %v1172
  %v1174 = vpop.f32.mrb[0].mxu0
  %v1175 = vpop.f32.mrb[0].mxu0
  %v1176 = vadd.f32 0.0, %v1175
  %v1177 = vpop.f32.mrb[0].mxu0
  %1178 = vmatprep.mubr.bf16.mxu0 0
  %1179 = vmatmul.mubr.bf16.gmra.mrb[0].mxu0 %v971
  %v1180 = vpop.f32.mrb[0].mxu0
  %v1181 = vadd.f32 0.0, %v1180
  %v1182 = vpop.f32.mrb[0].mxu0
  %v1183 = vpop.f32.mrb[0].mxu0
  %v1184 = vadd.f32 0.0, %v1183
  %v1185 = vpop.f32.mrb[0].mxu0
  %1186 = vmatprep.mubr.bf16.mxu0 0
  %1187 = vmatmul.mubr.bf16.gmra.mrb[0].mxu0 %v974
  %v1188 = vpop.f32.mrb[0].mxu0
  %v1189 = vadd.f32 0.0, %v1188
  %v1190 = vpop.f32.mrb[0].mxu0
  %v1191 = vpop.f32.mrb[0].mxu0
  %v1192 = vadd.f32 0.0, %v1191
  %v1193 = vpop.f32.mrb[0].mxu0
  %1194 = vmatprep.mubr.bf16.mxu0 0
  %1195 = vmatmul.mubr.bf16.gmra.mrb[0].mxu0 %v977
  %v1196 = vpop.f32.mrb[0].mxu0
  %v1197 = vadd.f32 0.0, %v1196
  %v1198 = vpop.f32.mrb[0].mxu0
  %v1199 = vpop.f32.mrb[0].mxu0
  %v1200 = vadd.f32 0.0, %v1199
  %v1201 = vpop.f32.mrb[0].mxu0
  %1202 = vmatprep.mubr.bf16.mxu0 0
  %1203 = vmatmul.mubr.bf16.gmra.mrb[0].mxu0 %v980
  %v1204 = vpop.f32.mrb[0].mxu0
  %v1205 = vadd.f32 0.0, %v1204
  %v1206 = vpop.f32.mrb[0].mxu0
  %v1207 = vpop.f32.mrb[0].mxu0
  %v1208 = vadd.f32 0.0, %v1207
  %v1209 = vpop.f32.mrb[0].mxu0
  %1210 = vmatprep.mubr.bf16.mxu0 0
  %1211 = vmatmul.mubr.bf16.gmra.mrb[0].mxu0 %v983
  %v1212 = vpop.f32.mrb[0].mxu0
  %v1213 = vadd.f32 0.0, %v1212
  %v1214 = vpop.f32.mrb[0].mxu0
  %v1215 = vpop.f32.mrb[0].mxu0
  %v1216 = vadd.f32 0.0, %v1215
  %v1217 = vpop.f32.mrb[0].mxu0
  %1218 = vmatprep.mubr.bf16.mxu0 0
  %1219 = vmatmul.mubr.bf16.gmra.mrb[0].mxu0 %v986
  %v1220 = vpop.f32.mrb[0].mxu0
  %v1221 = vadd.f32 0.0, %v1220
  %v1222 = vpop.f32.mrb[0].mxu0
  %v1223 = vpop.f32.mrb[0].mxu0
  %v1224 = vadd.f32 0.0, %v1223
  %v1225 = vpop.f32.mrb[0].mxu0
  %1226 = vmatprep.mubr.bf16.mxu0 0
  %1227 = vmatmul.mubr.bf16.gmra.mrb[0].mxu0 %v989
  %v1228 = vpop.f32.mrb[0].mxu0
  %v1229 = vadd.f32 0.0, %v1228
  %v1230 = vpop.f32.mrb[0].mxu0
  %v1231 = vpop.f32.mrb[0].mxu0
  %v1232 = vadd.f32 0.0, %v1231
  %v1233 = vpop.f32.mrb[0].mxu0
  %1234 = vmatprep.mubr.bf16.mxu0 0
  %1235 = vmatmul.mubr.bf16.gmra.mrb[0].mxu0 %v992
  %v1236 = vpop.f32.mrb[0].mxu0
  %v1237 = vadd.f32 0.0, %v1236
  %v1238 = vpop.f32.mrb[0].mxu0
  %v1239 = vpop.f32.mrb[0].mxu0
  %v1240 = vadd.f32 0.0, %v1239
  %v1241 = vpop.f32.mrb[0].mxu0
  %1242 = vmatprep.mubr.bf16.mxu0 0
  %1243 = vmatmul.mubr.bf16.gmra.mrb[0].mxu0 %v995
  %v1244 = vpop.f32.mrb[0].mxu0
  %v1245 = vadd.f32 0.0, %v1244
  %v1246 = vpop.f32.mrb[0].mxu0
  %v1247 = vpop.f32.mrb[0].mxu0
  %v1248 = vadd.f32 0.0, %v1247
  %v1249 = vpop.f32.mrb[0].mxu0
  %1250 = vmatprep.mubr.bf16.mxu0 0
  %1251 = vmatmul.mubr.bf16.gmra.mrb[0].mxu0 %v998
  %v1252 = vpop.f32.mrb[0].mxu0
  %v1253 = vadd.f32 0.0, %v1252
  %v1254 = vpop.f32.mrb[0].mxu0
  %v1255 = vpop.f32.mrb[0].mxu0
  %v1256 = vadd.f32 0.0, %v1255
  %v1257 = vpop.f32.mrb[0].mxu0
  %1258 = vmatprep.mubr.bf16.mxu0 0
  %1259 = vmatmul.mubr.bf16.gmra.mrb[0].mxu0 %v1001
  %v1260 = vpop.f32.mrb[0].mxu0
  %v1261 = vadd.f32 0.0, %v1260
  %v1262 = vpop.f32.mrb[0].mxu0
  %v1263 = vpop.f32.mrb[0].mxu0
  %v1264 = vadd.f32 0.0, %v1263
  %v1265 = vpop.f32.mrb[0].mxu0
  %1266 = vmatprep.mubr.bf16.mxu0 0
  %1267 = vmatmul.mubr.bf16.gmra.mrb[0].mxu0 %v1004
  %v1268 = vpop.f32.mrb[0].mxu0
  %v1269 = vadd.f32 0.0, %v1268
  %v1270 = vpop.f32.mrb[0].mxu0
  %v1271 = vpop.f32.mrb[0].mxu0
  %v1272 = vadd.f32 0.0, %v1271
  %v1273 = vpop.f32.mrb[0].mxu0
  %1274 = vmatprep.mubr.bf16.mxu0 0
  %1275 = vmatmul.mubr.bf16.gmra.mrb[0].mxu0 %v1007
  %v1276 = vpop.f32.mrb[0].mxu0
  %v1277 = vadd.f32 0.0, %v1276
  %v1278 = vpop.f32.mrb[0].mxu0
  %v1279 = vpop.f32.mrb[0].mxu0
  %v1280 = vadd.f32 0.0, %v1279
  %v1281 = vpop.f32.mrb[0].mxu0
  %1282 = vmatprep.mubr.bf16.mxu0 0
  %1283 = vmatmul.mubr.bf16.gmra.mrb[0].mxu0 %v1010
  %v1284 = vpop.f32.mrb[0].mxu0
  %v1285 = vadd.f32 0.0, %v1284
  %v1286 = vpop.f32.mrb[0].mxu0
  %v1287 = vpop.f32.mrb[0].mxu0
  %v1288 = vadd.f32 0.0, %v1287
  %v1289 = vpop.f32.mrb[0].mxu0
  %1290 = vmatprep.mubr.bf16.mxu0 0
  %1291 = vmatmul.mubr.bf16.gmra.mrb[0].mxu0 %v1013
  %v1292 = vpop.f32.mrb[0].mxu0
  %v1293 = vadd.f32 0.0, %v1292
  %v1294 = vpop.f32.mrb[0].mxu0
  %v1295 = vpop.f32.mrb[0].mxu0
  %v1296 = vadd.f32 0.0, %v1295
  %v1297 = vpop.f32.mrb[0].mxu0
  %1298 = vmatprep.mubr.bf16.mxu0 0
  %1299 = vmatmul.mubr.bf16.gmra.mrb[0].mxu0 %v1016
  %v1300 = vpop.f32.mrb[0].mxu0
  %v1301 = vadd.f32 0.0, %v1300
  %v1302 = vpop.f32.mrb[0].mxu0
  %v1303 = vpop.f32.mrb[0].mxu0
  %v1304 = vadd.f32 0.0, %v1303
  %v1305 = vpop.f32.mrb[0].mxu0
  %1306 = vdwg.mxu0
  %v1307 = vld [vmem:[%s2] sm:$0xf]
  %v1308 = vld [vmem:[%s2 + $0x4] sm:$0xf]
  %v1309 = vld [vmem:[%s2 + $0x8] sm:$0xf]
  %v1310 = vld [vmem:[%s2 + $0xc] sm:$0xf]
  %v1311 = vld [vmem:[%s2 + $0x10] sm:$0xf]
  %v1312 = vld [vmem:[%s2 + $0x14] sm:$0xf]
  %v1313 = vld [vmem:[%s2 + $0x18] sm:$0xf]
  %v1314 = vld [vmem:[%s2 + $0x1c] sm:$0xf]
  %v1315 = vld [vmem:[%s2 + $0x20] sm:$0xf]
  %v1316 = vld [vmem:[%s2 + $0x24] sm:$0xf]
  %v1317 = vld [vmem:[%s2 + $0x28] sm:$0xf]
  %v1318 = vld [vmem:[%s2 + $0x2c] sm:$0xf]
  %v1319 = vld [vmem:[%s2 + $0x30] sm:$0xf]
  %v1320 = vld [vmem:[%s2 + $0x34] sm:$0xf]
  %v1321 = vld [vmem:[%s2 + $0x38] sm:$0xf]
  %v1322 = vld [vmem:[%s2 + $0x3c] sm:$0xf]
  %v1323 = vld [vmem:[%s2 + $0x40] sm:$0xf]
  %v1324 = vld [vmem:[%s2 + $0x44] sm:$0xf]
  %v1325 = vld [vmem:[%s2 + $0x48] sm:$0xf]
  %v1326 = vld [vmem:[%s2 + $0x4c] sm:$0xf]
  %v1327 = vld [vmem:[%s2 + $0x50] sm:$0xf]
  %v1328 = vld [vmem:[%s2 + $0x54] sm:$0xf]
  %v1329 = vld [vmem:[%s2 + $0x58] sm:$0xf]
  %v1330 = vld [vmem:[%s2 + $0x5c] sm:$0xf]
  %v1331 = vld [vmem:[%s2 + $0x60] sm:$0xf]
  %v1332 = vld [vmem:[%s2 + $0x64] sm:$0xf]
  %v1333 = vld [vmem:[%s2 + $0x68] sm:$0xf]
  %v1334 = vld [vmem:[%s2 + $0x6c] sm:$0xf]
  %v1335 = vld [vmem:[%s2 + $0x70] sm:$0xf]
  %v1336 = vld [vmem:[%s2 + $0x74] sm:$0xf]
  %v1337 = vld [vmem:[%s2 + $0x78] sm:$0xf]
  %v1338 = vld [vmem:[%s2 + $0x7c] sm:$0xf]
  %v1339 = vld [vmem:[%s2 + $0x80] sm:$0xf]
  %v1340 = vld [vmem:[%s2 + $0x84] sm:$0xf]
  %v1341 = vld [vmem:[%s2 + $0x88] sm:$0xf]
  %v1342 = vld [vmem:[%s2 + $0x8c] sm:$0xf]
  %v1343 = vld [vmem:[%s2 + $0x90] sm:$0xf]
  %v1344 = vld [vmem:[%s2 + $0x94] sm:$0xf]
  %v1345 = vld [vmem:[%s2 + $0x98] sm:$0xf]
  %v1346 = vld [vmem:[%s2 + $0x9c] sm:$0xf]
  %v1347 = vld [vmem:[%s2 + $0xa0] sm:$0xf]
  %v1348 = vld [vmem:[%s2 + $0xa4] sm:$0xf]
  %v1349 = vld [vmem:[%s2 + $0xa8] sm:$0xf]
  %v1350 = vld [vmem:[%s2 + $0xac] sm:$0xf]
  %v1351 = vld [vmem:[%s2 + $0xb0] sm:$0xf]
  %v1352 = vld [vmem:[%s2 + $0xb4] sm:$0xf]
  %v1353 = vld [vmem:[%s2 + $0xb8] sm:$0xf]
  %v1354 = vld [vmem:[%s2 + $0xbc] sm:$0xf]
  %v1355 = vld [vmem:[%s2 + $0xc0] sm:$0xf]
  %v1356 = vld [vmem:[%s2 + $0xc4] sm:$0xf]
  %v1357 = vld [vmem:[%s2 + $0xc8] sm:$0xf]
  %v1358 = vld [vmem:[%s2 + $0xcc] sm:$0xf]
  %v1359 = vld [vmem:[%s2 + $0xd0] sm:$0xf]
  %v1360 = vld [vmem:[%s2 + $0xd4] sm:$0xf]
  %v1361 = vld [vmem:[%s2 + $0xd8] sm:$0xf]
  %v1362 = vld [vmem:[%s2 + $0xdc] sm:$0xf]
  %v1363 = vld [vmem:[%s2 + $0xe0] sm:$0xf]
  %v1364 = vld [vmem:[%s2 + $0xe4] sm:$0xf]
  %v1365 = vld [vmem:[%s2 + $0xe8] sm:$0xf]
  %v1366 = vld [vmem:[%s2 + $0xec] sm:$0xf]
  %v1367 = vld [vmem:[%s2 + $0xf0] sm:$0xf]
  %v1368 = vld [vmem:[%s2 + $0xf4] sm:$0xf]
  %v1369 = vld [vmem:[%s2 + $0xf8] sm:$0xf]
  %v1370 = vld [vmem:[%s2 + $0xfc] sm:$0xf]
  %s1371 = scalar_lea.vmem %s4, 64
  %v1372 = vld [vmem:[%s1371] sm:$0xf]
  %v1373 = vld [vmem:[%s1371 + $0x4] sm:$0xf]
  %v1374 = vld [vmem:[%s1371 + $0x8] sm:$0xf]
  %v1375 = vld [vmem:[%s1371 + $0xc] sm:$0xf]
  %v1376 = vld [vmem:[%s1371 + $0x10] sm:$0xf]
  %v1377 = vld [vmem:[%s1371 + $0x14] sm:$0xf]
  %v1378 = vld [vmem:[%s1371 + $0x18] sm:$0xf]
  %v1379 = vld [vmem:[%s1371 + $0x1c] sm:$0xf]
  %v1444 = vunpack.c.l.b16 %v1307
  %v1445 = vunpack.c.l.b16 %v1308
  %v1446 = vunpack.c.l.b16 %v1309
  %v1447 = vunpack.c.l.b16 %v1310
  %v1448 = vunpack.c.l.b16 %v1311
  %v1449 = vunpack.c.l.b16 %v1312
  %v1450 = vunpack.c.l.b16 %v1313
  %v1451 = vunpack.c.l.b16 %v1314
  %v1452 = vunpack.c.l.b16 %v1315
  %v1453 = vunpack.c.l.b16 %v1316
  %v1454 = vunpack.c.l.b16 %v1317
  %v1455 = vunpack.c.l.b16 %v1318
  %v1456 = vunpack.c.l.b16 %v1319
  %v1457 = vunpack.c.l.b16 %v1320
  %v1458 = vunpack.c.l.b16 %v1321
  %v1459 = vunpack.c.l.b16 %v1322
  %v1460 = vunpack.c.l.b16 %v1323
  %v1461 = vunpack.c.l.b16 %v1324
  %v1462 = vunpack.c.l.b16 %v1325
  %v1463 = vunpack.c.l.b16 %v1326
  %v1464 = vunpack.c.l.b16 %v1327
  %v1465 = vunpack.c.l.b16 %v1328
  %v1466 = vunpack.c.l.b16 %v1329
  %v1467 = vunpack.c.l.b16 %v1330
  %v1468 = vunpack.c.l.b16 %v1331
  %v1469 = vunpack.c.l.b16 %v1332
  %v1470 = vunpack.c.l.b16 %v1333
  %v1471 = vunpack.c.l.b16 %v1334
  %v1472 = vunpack.c.l.b16 %v1335
  %v1473 = vunpack.c.l.b16 %v1336
  %v1474 = vunpack.c.l.b16 %v1337
  %v1475 = vunpack.c.l.b16 %v1338
  %v1476 = vunpack.c.l.b16 %v1339
  %v1477 = vunpack.c.l.b16 %v1340
  %v1478 = vunpack.c.l.b16 %v1341
  %v1479 = vunpack.c.l.b16 %v1342
  %v1480 = vunpack.c.l.b16 %v1343
  %v1481 = vunpack.c.l.b16 %v1344
  %v1482 = vunpack.c.l.b16 %v1345
  %v1483 = vunpack.c.l.b16 %v1346
  %v1484 = vunpack.c.l.b16 %v1347
  %v1485 = vunpack.c.l.b16 %v1348
  %v1486 = vunpack.c.l.b16 %v1349
  %v1487 = vunpack.c.l.b16 %v1350
  %v1488 = vunpack.c.l.b16 %v1351
  %v1489 = vunpack.c.l.b16 %v1352
  %v1490 = vunpack.c.l.b16 %v1353
  %v1491 = vunpack.c.l.b16 %v1354
  %v1492 = vunpack.c.l.b16 %v1355
  %v1493 = vunpack.c.l.b16 %v1356
  %v1494 = vunpack.c.l.b16 %v1357
  %v1495 = vunpack.c.l.b16 %v1358
  %v1496 = vunpack.c.l.b16 %v1359
  %v1497 = vunpack.c.l.b16 %v1360
  %v1498 = vunpack.c.l.b16 %v1361
  %v1499 = vunpack.c.l.b16 %v1362
  %v1500 = vunpack.c.l.b16 %v1363
  %v1501 = vunpack.c.l.b16 %v1364
  %v1502 = vunpack.c.l.b16 %v1365
  %v1503 = vunpack.c.l.b16 %v1366
  %v1504 = vunpack.c.l.b16 %v1367
  %v1505 = vunpack.c.l.b16 %v1368
  %v1506 = vunpack.c.l.b16 %v1369
  %v1507 = vunpack.c.l.b16 %v1370
  %v1508 = vpack.c.b16 %v1445, %v1444
  %v1509 = vpack.c.b16 %v1447, %v1446
  %v1510 = vpack.c.b16 %v1449, %v1448
  %v1511 = vpack.c.b16 %v1451, %v1450
  %v1512 = vpack.c.b16 %v1453, %v1452
  %v1513 = vpack.c.b16 %v1455, %v1454
  %v1514 = vpack.c.b16 %v1457, %v1456
  %v1515 = vpack.c.b16 %v1459, %v1458
  %v1516 = vpack.c.b16 %v1461, %v1460
  %v1517 = vpack.c.b16 %v1463, %v1462
  %v1518 = vpack.c.b16 %v1465, %v1464
  %v1519 = vpack.c.b16 %v1467, %v1466
  %v1520 = vpack.c.b16 %v1469, %v1468
  %v1521 = vpack.c.b16 %v1471, %v1470
  %v1522 = vpack.c.b16 %v1473, %v1472
  %v1523 = vpack.c.b16 %v1475, %v1474
  %v1524 = vpack.c.b16 %v1477, %v1476
  %v1525 = vpack.c.b16 %v1479, %v1478
  %v1526 = vpack.c.b16 %v1481, %v1480
  %v1527 = vpack.c.b16 %v1483, %v1482
  %v1528 = vpack.c.b16 %v1485, %v1484
  %v1529 = vpack.c.b16 %v1487, %v1486
  %v1530 = vpack.c.b16 %v1489, %v1488
  %v1531 = vpack.c.b16 %v1491, %v1490
  %v1532 = vpack.c.b16 %v1493, %v1492
  %v1533 = vpack.c.b16 %v1495, %v1494
  %v1534 = vpack.c.b16 %v1497, %v1496
  %v1535 = vpack.c.b16 %v1499, %v1498
  %v1536 = vpack.c.b16 %v1501, %v1500
  %v1537 = vpack.c.b16 %v1503, %v1502
  %v1538 = vpack.c.b16 %v1505, %v1504
  %v1539 = vpack.c.b16 %v1507, %v1506
  %v1548 = vunpack.c.l.b16 %v1372
  %v1549 = vunpack.c.l.b16 %v1373
  %v1550 = vunpack.c.l.b16 %v1374
  %v1551 = vunpack.c.l.b16 %v1375
  %v1552 = vunpack.c.l.b16 %v1376
  %v1553 = vunpack.c.l.b16 %v1377
  %v1554 = vunpack.c.l.b16 %v1378
  %v1555 = vunpack.c.l.b16 %v1379
  %v1556 = vpack.c.b16 %v1549, %v1548
  %v1557 = vpack.c.b16 %v1551, %v1550
  %v1558 = vpack.c.b16 %v1553, %v1552
  %v1559 = vpack.c.b16 %v1555, %v1554
  %v1565 = vsel %vm279, %v1508, 0
  %v1568 = vsel %vm279, %v1509, 0
  %v1571 = vsel %vm279, %v1510, 0
  %v1574 = vsel %vm279, %v1511, 0
  %v1577 = vsel %vm279, %v1512, 0
  %v1580 = vsel %vm279, %v1513, 0
  %v1583 = vsel %vm279, %v1514, 0
  %v1586 = vsel %vm279, %v1515, 0
  %v1589 = vsel %vm279, %v1516, 0
  %v1592 = vsel %vm279, %v1517, 0
  %v1595 = vsel %vm279, %v1518, 0
  %v1598 = vsel %vm279, %v1519, 0
  %v1601 = vsel %vm279, %v1520, 0
  %v1604 = vsel %vm279, %v1521, 0
  %v1607 = vsel %vm279, %v1522, 0
  %v1610 = vsel %vm279, %v1523, 0
  %v1613 = vsel %vm279, %v1524, 0
  %v1616 = vsel %vm279, %v1525, 0
  %v1619 = vsel %vm279, %v1526, 0
  %v1622 = vsel %vm279, %v1527, 0
  %v1625 = vsel %vm279, %v1528, 0
  %v1628 = vsel %vm279, %v1529, 0
  %v1631 = vsel %vm279, %v1530, 0
  %v1634 = vsel %vm279, %v1531, 0
  %v1637 = vsel %vm279, %v1532, 0
  %v1640 = vsel %vm279, %v1533, 0
  %v1643 = vsel %vm279, %v1534, 0
  %v1646 = vsel %vm279, %v1535, 0
  %v1649 = vsel %vm279, %v1536, 0
  %v1652 = vsel %vm279, %v1537, 0
  %v1655 = vsel %vm279, %v1538, 0
  %v1658 = vsel %vm279, %v1539, 0
  %1660 = vmatprep.subr.bf16.mxu0 0
  %1661 = vmatpush1.bf16.msra.mxu0 %v1556
  %1662 = vmatprep.subr.bf16.mxu0 0
  %1663 = vmatpush1.bf16.msra.mxu0 %v1557
  %1664 = vmatprep.subr.bf16.mxu0 0
  %1665 = vmatpush1.bf16.msra.mxu0 %v1558
  %1666 = vmatprep.subr.bf16.mxu0 0
  %1667 = vmatpush1.bf16.msra.mxu0 %v1559
  %1668 = vmatprep.subr.bf16.mxu0 0
  %1669 = vmatpush1.bf16.msra.mxu0 0
  %1670 = vmatprep.subr.bf16.mxu0 0
  %1671 = vmatpush1.bf16.msra.mxu0 0
  %1672 = vmatprep.subr.bf16.mxu0 0
  %1673 = vmatpush1.bf16.msra.mxu0 0
  %1674 = vmatprep.subr.bf16.mxu0 0
  %1675 = vmatpush1.bf16.msra.mxu0 0
  %1676 = vmatprep.subr.bf16.mxu0 0
  %1677 = vmatpush1.bf16.msra.mxu0 0
  %1678 = vmatprep.subr.bf16.mxu0 0
  %1679 = vmatpush1.bf16.msra.mxu0 0
  %1680 = vmatprep.subr.bf16.mxu0 0
  %1681 = vmatpush1.bf16.msra.mxu0 0
  %1682 = vmatprep.subr.bf16.mxu0 0
  %1683 = vmatpush1.bf16.msra.mxu0 0
  %1684 = vmatprep.subr.bf16.mxu0 0
  %1685 = vmatpush1.bf16.msra.mxu0 0
  %1686 = vmatprep.subr.bf16.mxu0 0
  %1687 = vmatpush1.bf16.msra.mxu0 0
  %1688 = vmatprep.subr.bf16.mxu0 0
  %1689 = vmatpush1.bf16.msra.mxu0 0
  %1690 = vmatprep.subr.bf16.mxu0 0
  %1691 = vmatpush1.bf16.msra.mxu0 0
  %1692 = vmatprep.mubr.bf16.mxu0 0
  %1693 = vmatmul.mubr.bf16.gmra.mrb[0].mxu0 %v1565
  %v1694 = vpop.f32.mrb[0].mxu0
  %v1695 = vadd.f32 0.0, %v1694
  %v1696 = vpop.f32.mrb[0].mxu0
  %v1697 = vpop.f32.mrb[0].mxu0
  %v1698 = vadd.f32 0.0, %v1697
  %v1699 = vpop.f32.mrb[0].mxu0
  %1700 = vmatprep.mubr.bf16.mxu0 0
  %1701 = vmatmul.mubr.bf16.gmra.mrb[0].mxu0 %v1568
  %v1702 = vpop.f32.mrb[0].mxu0
  %v1703 = vadd.f32 0.0, %v1702
  %v1704 = vpop.f32.mrb[0].mxu0
  %v1705 = vpop.f32.mrb[0].mxu0
  %v1706 = vadd.f32 0.0, %v1705
  %v1707 = vpop.f32.mrb[0].mxu0
  %1708 = vmatprep.mubr.bf16.mxu0 0
  %1709 = vmatmul.mubr.bf16.gmra.mrb[0].mxu0 %v1571
  %v1710 = vpop.f32.mrb[0].mxu0
  %v1711 = vadd.f32 0.0, %v1710
  %v1712 = vpop.f32.mrb[0].mxu0
  %v1713 = vpop.f32.mrb[0].mxu0
  %v1714 = vadd.f32 0.0, %v1713
  %v1715 = vpop.f32.mrb[0].mxu0
  %1716 = vmatprep.mubr.bf16.mxu0 0
  %1717 = vmatmul.mubr.bf16.gmra.mrb[0].mxu0 %v1574
  %v1718 = vpop.f32.mrb[0].mxu0
  %v1719 = vadd.f32 0.0, %v1718
  %v1720 = vpop.f32.mrb[0].mxu0
  %v1721 = vpop.f32.mrb[0].mxu0
  %v1722 = vadd.f32 0.0, %v1721
  %v1723 = vpop.f32.mrb[0].mxu0
  %1724 = vmatprep.mubr.bf16.mxu0 0
  %1725 = vmatmul.mubr.bf16.gmra.mrb[0].mxu0 %v1577
  %v1726 = vpop.f32.mrb[0].mxu0
  %v1727 = vadd.f32 0.0, %v1726
  %v1728 = vpop.f32.mrb[0].mxu0
  %v1729 = vpop.f32.mrb[0].mxu0
  %v1730 = vadd.f32 0.0, %v1729
  %v1731 = vpop.f32.mrb[0].mxu0
  %1732 = vmatprep.mubr.bf16.mxu0 0
  %1733 = vmatmul.mubr.bf16.gmra.mrb[0].mxu0 %v1580
  %v1734 = vpop.f32.mrb[0].mxu0
  %v1735 = vadd.f32 0.0, %v1734
  %v1736 = vpop.f32.mrb[0].mxu0
  %v1737 = vpop.f32.mrb[0].mxu0
  %v1738 = vadd.f32 0.0, %v1737
  %v1739 = vpop.f32.mrb[0].mxu0
  %1740 = vmatprep.mubr.bf16.mxu0 0
  %1741 = vmatmul.mubr.bf16.gmra.mrb[0].mxu0 %v1583
  %v1742 = vpop.f32.mrb[0].mxu0
  %v1743 = vadd.f32 0.0, %v1742
  %v1744 = vpop.f32.mrb[0].mxu0
  %v1745 = vpop.f32.mrb[0].mxu0
  %v1746 = vadd.f32 0.0, %v1745
  %v1747 = vpop.f32.mrb[0].mxu0
  %1748 = vmatprep.mubr.bf16.mxu0 0
  %1749 = vmatmul.mubr.bf16.gmra.mrb[0].mxu0 %v1586
  %v1750 = vpop.f32.mrb[0].mxu0
  %v1751 = vadd.f32 0.0, %v1750
  %v1752 = vpop.f32.mrb[0].mxu0
  %v1753 = vpop.f32.mrb[0].mxu0
  %v1754 = vadd.f32 0.0, %v1753
  %v1755 = vpop.f32.mrb[0].mxu0
  %1756 = vmatprep.mubr.bf16.mxu0 0
  %1757 = vmatmul.mubr.bf16.gmra.mrb[0].mxu0 %v1589
  %v1758 = vpop.f32.mrb[0].mxu0
  %v1759 = vadd.f32 0.0, %v1758
  %v1760 = vpop.f32.mrb[0].mxu0
  %v1761 = vpop.f32.mrb[0].mxu0
  %v1762 = vadd.f32 0.0, %v1761
  %v1763 = vpop.f32.mrb[0].mxu0
  %1764 = vmatprep.mubr.bf16.mxu0 0
  %1765 = vmatmul.mubr.bf16.gmra.mrb[0].mxu0 %v1592
  %v1766 = vpop.f32.mrb[0].mxu0
  %v1767 = vadd.f32 0.0, %v1766
  %v1768 = vpop.f32.mrb[0].mxu0
  %v1769 = vpop.f32.mrb[0].mxu0
  %v1770 = vadd.f32 0.0, %v1769
  %v1771 = vpop.f32.mrb[0].mxu0
  %1772 = vmatprep.mubr.bf16.mxu0 0
  %1773 = vmatmul.mubr.bf16.gmra.mrb[0].mxu0 %v1595
  %v1774 = vpop.f32.mrb[0].mxu0
  %v1775 = vadd.f32 0.0, %v1774
  %v1776 = vpop.f32.mrb[0].mxu0
  %v1777 = vpop.f32.mrb[0].mxu0
  %v1778 = vadd.f32 0.0, %v1777
  %v1779 = vpop.f32.mrb[0].mxu0
  %1780 = vmatprep.mubr.bf16.mxu0 0
  %1781 = vmatmul.mubr.bf16.gmra.mrb[0].mxu0 %v1598
  %v1782 = vpop.f32.mrb[0].mxu0
  %v1783 = vadd.f32 0.0, %v1782
  %v1784 = vpop.f32.mrb[0].mxu0
  %v1785 = vpop.f32.mrb[0].mxu0
  %v1786 = vadd.f32 0.0, %v1785
  %v1787 = vpop.f32.mrb[0].mxu0
  %1788 = vmatprep.mubr.bf16.mxu0 0
  %1789 = vmatmul.mubr.bf16.gmra.mrb[0].mxu0 %v1601
  %v1790 = vpop.f32.mrb[0].mxu0
  %v1791 = vadd.f32 0.0, %v1790
  %v1792 = vpop.f32.mrb[0].mxu0
  %v1793 = vpop.f32.mrb[0].mxu0
  %v1794 = vadd.f32 0.0, %v1793
  %v1795 = vpop.f32.mrb[0].mxu0
  %1796 = vmatprep.mubr.bf16.mxu0 0
  %1797 = vmatmul.mubr.bf16.gmra.mrb[0].mxu0 %v1604
  %v1798 = vpop.f32.mrb[0].mxu0
  %v1799 = vadd.f32 0.0, %v1798
  %v1800 = vpop.f32.mrb[0].mxu0
  %v1801 = vpop.f32.mrb[0].mxu0
  %v1802 = vadd.f32 0.0, %v1801
  %v1803 = vpop.f32.mrb[0].mxu0
  %1804 = vmatprep.mubr.bf16.mxu0 0
  %1805 = vmatmul.mubr.bf16.gmra.mrb[0].mxu0 %v1607
  %v1806 = vpop.f32.mrb[0].mxu0
  %v1807 = vadd.f32 0.0, %v1806
  %v1808 = vpop.f32.mrb[0].mxu0
  %v1809 = vpop.f32.mrb[0].mxu0
  %v1810 = vadd.f32 0.0, %v1809
  %v1811 = vpop.f32.mrb[0].mxu0
  %1812 = vmatprep.mubr.bf16.mxu0 0
  %1813 = vmatmul.mubr.bf16.gmra.mrb[0].mxu0 %v1610
  %v1814 = vpop.f32.mrb[0].mxu0
  %v1815 = vadd.f32 0.0, %v1814
  %v1816 = vpop.f32.mrb[0].mxu0
  %v1817 = vpop.f32.mrb[0].mxu0
  %v1818 = vadd.f32 0.0, %v1817
  %v1819 = vpop.f32.mrb[0].mxu0
  %1820 = vmatprep.mubr.bf16.mxu0 0
  %1821 = vmatmul.mubr.bf16.gmra.mrb[0].mxu0 %v1613
  %v1822 = vpop.f32.mrb[0].mxu0
  %v1823 = vadd.f32 0.0, %v1822
  %v1824 = vpop.f32.mrb[0].mxu0
  %v1825 = vpop.f32.mrb[0].mxu0
  %v1826 = vadd.f32 0.0, %v1825
  %v1827 = vpop.f32.mrb[0].mxu0
  %1828 = vmatprep.mubr.bf16.mxu0 0
  %1829 = vmatmul.mubr.bf16.gmra.mrb[0].mxu0 %v1616
  %v1830 = vpop.f32.mrb[0].mxu0
  %v1831 = vadd.f32 0.0, %v1830
  %v1832 = vpop.f32.mrb[0].mxu0
  %v1833 = vpop.f32.mrb[0].mxu0
  %v1834 = vadd.f32 0.0, %v1833
  %v1835 = vpop.f32.mrb[0].mxu0
  %1836 = vmatprep.mubr.bf16.mxu0 0
  %1837 = vmatmul.mubr.bf16.gmra.mrb[0].mxu0 %v1619
  %v1838 = vpop.f32.mrb[0].mxu0
  %v1839 = vadd.f32 0.0, %v1838
  %v1840 = vpop.f32.mrb[0].mxu0
  %v1841 = vpop.f32.mrb[0].mxu0
  %v1842 = vadd.f32 0.0, %v1841
  %v1843 = vpop.f32.mrb[0].mxu0
  %1844 = vmatprep.mubr.bf16.mxu0 0
  %1845 = vmatmul.mubr.bf16.gmra.mrb[0].mxu0 %v1622
  %v1846 = vpop.f32.mrb[0].mxu0
  %v1847 = vadd.f32 0.0, %v1846
  %v1848 = vpop.f32.mrb[0].mxu0
  %v1849 = vpop.f32.mrb[0].mxu0
  %v1850 = vadd.f32 0.0, %v1849
  %v1851 = vpop.f32.mrb[0].mxu0
  %1852 = vmatprep.mubr.bf16.mxu0 0
  %1853 = vmatmul.mubr.bf16.gmra.mrb[0].mxu0 %v1625
  %v1854 = vpop.f32.mrb[0].mxu0
  %v1855 = vadd.f32 0.0, %v1854
  %v1856 = vpop.f32.mrb[0].mxu0
  %v1857 = vpop.f32.mrb[0].mxu0
  %v1858 = vadd.f32 0.0, %v1857
  %v1859 = vpop.f32.mrb[0].mxu0
  %1860 = vmatprep.mubr.bf16.mxu0 0
  %1861 = vmatmul.mubr.bf16.gmra.mrb[0].mxu0 %v1628
  %v1862 = vpop.f32.mrb[0].mxu0
  %v1863 = vadd.f32 0.0, %v1862
  %v1864 = vpop.f32.mrb[0].mxu0
  %v1865 = vpop.f32.mrb[0].mxu0
  %v1866 = vadd.f32 0.0, %v1865
  %v1867 = vpop.f32.mrb[0].mxu0
  %1868 = vmatprep.mubr.bf16.mxu0 0
  %1869 = vmatmul.mubr.bf16.gmra.mrb[0].mxu0 %v1631
  %v1870 = vpop.f32.mrb[0].mxu0
  %v1871 = vadd.f32 0.0, %v1870
  %v1872 = vpop.f32.mrb[0].mxu0
  %v1873 = vpop.f32.mrb[0].mxu0
  %v1874 = vadd.f32 0.0, %v1873
  %v1875 = vpop.f32.mrb[0].mxu0
  %1876 = vmatprep.mubr.bf16.mxu0 0
  %1877 = vmatmul.mubr.bf16.gmra.mrb[0].mxu0 %v1634
  %v1878 = vpop.f32.mrb[0].mxu0
  %v1879 = vadd.f32 0.0, %v1878
  %v1880 = vpop.f32.mrb[0].mxu0
  %v1881 = vpop.f32.mrb[0].mxu0
  %v1882 = vadd.f32 0.0, %v1881
  %v1883 = vpop.f32.mrb[0].mxu0
  %1884 = vmatprep.mubr.bf16.mxu0 0
  %1885 = vmatmul.mubr.bf16.gmra.mrb[0].mxu0 %v1637
  %v1886 = vpop.f32.mrb[0].mxu0
  %v1887 = vadd.f32 0.0, %v1886
  %v1888 = vpop.f32.mrb[0].mxu0
  %v1889 = vpop.f32.mrb[0].mxu0
  %v1890 = vadd.f32 0.0, %v1889
  %v1891 = vpop.f32.mrb[0].mxu0
  %1892 = vmatprep.mubr.bf16.mxu0 0
  %1893 = vmatmul.mubr.bf16.gmra.mrb[0].mxu0 %v1640
  %v1894 = vpop.f32.mrb[0].mxu0
  %v1895 = vadd.f32 0.0, %v1894
  %v1896 = vpop.f32.mrb[0].mxu0
  %v1897 = vpop.f32.mrb[0].mxu0
  %v1898 = vadd.f32 0.0, %v1897
  %v1899 = vpop.f32.mrb[0].mxu0
  %1900 = vmatprep.mubr.bf16.mxu0 0
  %1901 = vmatmul.mubr.bf16.gmra.mrb[0].mxu0 %v1643
  %v1902 = vpop.f32.mrb[0].mxu0
  %v1903 = vadd.f32 0.0, %v1902
  %v1904 = vpop.f32.mrb[0].mxu0
  %v1905 = vpop.f32.mrb[0].mxu0
  %v1906 = vadd.f32 0.0, %v1905
  %v1907 = vpop.f32.mrb[0].mxu0
  %1908 = vmatprep.mubr.bf16.mxu0 0
  %1909 = vmatmul.mubr.bf16.gmra.mrb[0].mxu0 %v1646
  %v1910 = vpop.f32.mrb[0].mxu0
  %v1911 = vadd.f32 0.0, %v1910
  %v1912 = vpop.f32.mrb[0].mxu0
  %v1913 = vpop.f32.mrb[0].mxu0
  %v1914 = vadd.f32 0.0, %v1913
  %v1915 = vpop.f32.mrb[0].mxu0
  %1916 = vmatprep.mubr.bf16.mxu0 0
  %1917 = vmatmul.mubr.bf16.gmra.mrb[0].mxu0 %v1649
  %v1918 = vpop.f32.mrb[0].mxu0
  %v1919 = vadd.f32 0.0, %v1918
  %v1920 = vpop.f32.mrb[0].mxu0
  %v1921 = vpop.f32.mrb[0].mxu0
  %v1922 = vadd.f32 0.0, %v1921
  %v1923 = vpop.f32.mrb[0].mxu0
  %1924 = vmatprep.mubr.bf16.mxu0 0
  %1925 = vmatmul.mubr.bf16.gmra.mrb[0].mxu0 %v1652
  %v1926 = vpop.f32.mrb[0].mxu0
  %v1927 = vadd.f32 0.0, %v1926
  %v1928 = vpop.f32.mrb[0].mxu0
  %v1929 = vpop.f32.mrb[0].mxu0
  %v1930 = vadd.f32 0.0, %v1929
  %v1931 = vpop.f32.mrb[0].mxu0
  %1932 = vmatprep.mubr.bf16.mxu0 0
  %1933 = vmatmul.mubr.bf16.gmra.mrb[0].mxu0 %v1655
  %v1934 = vpop.f32.mrb[0].mxu0
  %v1935 = vadd.f32 0.0, %v1934
  %v1936 = vpop.f32.mrb[0].mxu0
  %v1937 = vpop.f32.mrb[0].mxu0
  %v1938 = vadd.f32 0.0, %v1937
  %v1939 = vpop.f32.mrb[0].mxu0
  %1940 = vmatprep.mubr.bf16.mxu0 0
  %1941 = vmatmul.mubr.bf16.gmra.mrb[0].mxu0 %v1658
  %v1942 = vpop.f32.mrb[0].mxu0
  %v1943 = vadd.f32 0.0, %v1942
  %v1944 = vpop.f32.mrb[0].mxu0
  %v1945 = vpop.f32.mrb[0].mxu0
  %v1946 = vadd.f32 0.0, %v1945
  %v1947 = vpop.f32.mrb[0].mxu0
  %1948 = vdwg.mxu0
  %v1949 = vld [vmem:[%s3] sm:$0xf]
  %v1950 = vld [vmem:[%s3 + $0x4] sm:$0xf]
  %v1951 = vld [vmem:[%s3 + $0x8] sm:$0xf]
  %v1952 = vld [vmem:[%s3 + $0xc] sm:$0xf]
  %v1953 = vld [vmem:[%s3 + $0x10] sm:$0xf]
  %v1954 = vld [vmem:[%s3 + $0x14] sm:$0xf]
  %v1955 = vld [vmem:[%s3 + $0x18] sm:$0xf]
  %v1956 = vld [vmem:[%s3 + $0x1c] sm:$0xf]
  %v1957 = vld [vmem:[%s3 + $0x20] sm:$0xf]
  %v1958 = vld [vmem:[%s3 + $0x24] sm:$0xf]
  %v1959 = vld [vmem:[%s3 + $0x28] sm:$0xf]
  %v1960 = vld [vmem:[%s3 + $0x2c] sm:$0xf]
  %v1961 = vld [vmem:[%s3 + $0x30] sm:$0xf]
  %v1962 = vld [vmem:[%s3 + $0x34] sm:$0xf]
  %v1963 = vld [vmem:[%s3 + $0x38] sm:$0xf]
  %v1964 = vld [vmem:[%s3 + $0x3c] sm:$0xf]
  %v1965 = vld [vmem:[%s3 + $0x40] sm:$0xf]
  %v1966 = vld [vmem:[%s3 + $0x44] sm:$0xf]
  %v1967 = vld [vmem:[%s3 + $0x48] sm:$0xf]
  %v1968 = vld [vmem:[%s3 + $0x4c] sm:$0xf]
  %v1969 = vld [vmem:[%s3 + $0x50] sm:$0xf]
  %v1970 = vld [vmem:[%s3 + $0x54] sm:$0xf]
  %v1971 = vld [vmem:[%s3 + $0x58] sm:$0xf]
  %v1972 = vld [vmem:[%s3 + $0x5c] sm:$0xf]
  %v1973 = vld [vmem:[%s3 + $0x60] sm:$0xf]
  %v1974 = vld [vmem:[%s3 + $0x64] sm:$0xf]
  %v1975 = vld [vmem:[%s3 + $0x68] sm:$0xf]
  %v1976 = vld [vmem:[%s3 + $0x6c] sm:$0xf]
  %v1977 = vld [vmem:[%s3 + $0x70] sm:$0xf]
  %v1978 = vld [vmem:[%s3 + $0x74] sm:$0xf]
  %v1979 = vld [vmem:[%s3 + $0x78] sm:$0xf]
  %v1980 = vld [vmem:[%s3 + $0x7c] sm:$0xf]
  %v1981 = vld [vmem:[%s3 + $0x80] sm:$0xf]
  %v1982 = vld [vmem:[%s3 + $0x84] sm:$0xf]
  %v1983 = vld [vmem:[%s3 + $0x88] sm:$0xf]
  %v1984 = vld [vmem:[%s3 + $0x8c] sm:$0xf]
  %v1985 = vld [vmem:[%s3 + $0x90] sm:$0xf]
  %v1986 = vld [vmem:[%s3 + $0x94] sm:$0xf]
  %v1987 = vld [vmem:[%s3 + $0x98] sm:$0xf]
  %v1988 = vld [vmem:[%s3 + $0x9c] sm:$0xf]
  %v1989 = vld [vmem:[%s3 + $0xa0] sm:$0xf]
  %v1990 = vld [vmem:[%s3 + $0xa4] sm:$0xf]
  %v1991 = vld [vmem:[%s3 + $0xa8] sm:$0xf]
  %v1992 = vld [vmem:[%s3 + $0xac] sm:$0xf]
  %v1993 = vld [vmem:[%s3 + $0xb0] sm:$0xf]
  %v1994 = vld [vmem:[%s3 + $0xb4] sm:$0xf]
  %v1995 = vld [vmem:[%s3 + $0xb8] sm:$0xf]
  %v1996 = vld [vmem:[%s3 + $0xbc] sm:$0xf]
  %v1997 = vld [vmem:[%s3 + $0xc0] sm:$0xf]
  %v1998 = vld [vmem:[%s3 + $0xc4] sm:$0xf]
  %v1999 = vld [vmem:[%s3 + $0xc8] sm:$0xf]
  %v2000 = vld [vmem:[%s3 + $0xcc] sm:$0xf]
  %v2001 = vld [vmem:[%s3 + $0xd0] sm:$0xf]
  %v2002 = vld [vmem:[%s3 + $0xd4] sm:$0xf]
  %v2003 = vld [vmem:[%s3 + $0xd8] sm:$0xf]
  %v2004 = vld [vmem:[%s3 + $0xdc] sm:$0xf]
  %v2005 = vld [vmem:[%s3 + $0xe0] sm:$0xf]
  %v2006 = vld [vmem:[%s3 + $0xe4] sm:$0xf]
  %v2007 = vld [vmem:[%s3 + $0xe8] sm:$0xf]
  %v2008 = vld [vmem:[%s3 + $0xec] sm:$0xf]
  %v2009 = vld [vmem:[%s3 + $0xf0] sm:$0xf]
  %v2010 = vld [vmem:[%s3 + $0xf4] sm:$0xf]
  %v2011 = vld [vmem:[%s3 + $0xf8] sm:$0xf]
  %v2012 = vld [vmem:[%s3 + $0xfc] sm:$0xf]
  %s2013 = scalar_lea.vmem %s4, 96
  %v2014 = vld [vmem:[%s2013] sm:$0xf]
  %v2015 = vld [vmem:[%s2013 + $0x4] sm:$0xf]
  %v2016 = vld [vmem:[%s2013 + $0x8] sm:$0xf]
  %v2017 = vld [vmem:[%s2013 + $0xc] sm:$0xf]
  %v2018 = vld [vmem:[%s2013 + $0x10] sm:$0xf]
  %v2019 = vld [vmem:[%s2013 + $0x14] sm:$0xf]
  %v2020 = vld [vmem:[%s2013 + $0x18] sm:$0xf]
  %v2021 = vld [vmem:[%s2013 + $0x1c] sm:$0xf]
  %v2086 = vunpack.c.l.b16 %v1949
  %v2087 = vunpack.c.l.b16 %v1950
  %v2088 = vunpack.c.l.b16 %v1951
  %v2089 = vunpack.c.l.b16 %v1952
  %v2090 = vunpack.c.l.b16 %v1953
  %v2091 = vunpack.c.l.b16 %v1954
  %v2092 = vunpack.c.l.b16 %v1955
  %v2093 = vunpack.c.l.b16 %v1956
  %v2094 = vunpack.c.l.b16 %v1957
  %v2095 = vunpack.c.l.b16 %v1958
  %v2096 = vunpack.c.l.b16 %v1959
  %v2097 = vunpack.c.l.b16 %v1960
  %v2098 = vunpack.c.l.b16 %v1961
  %v2099 = vunpack.c.l.b16 %v1962
  %v2100 = vunpack.c.l.b16 %v1963
  %v2101 = vunpack.c.l.b16 %v1964
  %v2102 = vunpack.c.l.b16 %v1965
  %v2103 = vunpack.c.l.b16 %v1966
  %v2104 = vunpack.c.l.b16 %v1967
  %v2105 = vunpack.c.l.b16 %v1968
  %v2106 = vunpack.c.l.b16 %v1969
  %v2107 = vunpack.c.l.b16 %v1970
  %v2108 = vunpack.c.l.b16 %v1971
  %v2109 = vunpack.c.l.b16 %v1972
  %v2110 = vunpack.c.l.b16 %v1973
  %v2111 = vunpack.c.l.b16 %v1974
  %v2112 = vunpack.c.l.b16 %v1975
  %v2113 = vunpack.c.l.b16 %v1976
  %v2114 = vunpack.c.l.b16 %v1977
  %v2115 = vunpack.c.l.b16 %v1978
  %v2116 = vunpack.c.l.b16 %v1979
  %v2117 = vunpack.c.l.b16 %v1980
  %v2118 = vunpack.c.l.b16 %v1981
  %v2119 = vunpack.c.l.b16 %v1982
  %v2120 = vunpack.c.l.b16 %v1983
  %v2121 = vunpack.c.l.b16 %v1984
  %v2122 = vunpack.c.l.b16 %v1985
  %v2123 = vunpack.c.l.b16 %v1986
  %v2124 = vunpack.c.l.b16 %v1987
  %v2125 = vunpack.c.l.b16 %v1988
  %v2126 = vunpack.c.l.b16 %v1989
  %v2127 = vunpack.c.l.b16 %v1990
  %v2128 = vunpack.c.l.b16 %v1991
  %v2129 = vunpack.c.l.b16 %v1992
  %v2130 = vunpack.c.l.b16 %v1993
  %v2131 = vunpack.c.l.b16 %v1994
  %v2132 = vunpack.c.l.b16 %v1995
  %v2133 = vunpack.c.l.b16 %v1996
  %v2134 = vunpack.c.l.b16 %v1997
  %v2135 = vunpack.c.l.b16 %v1998
  %v2136 = vunpack.c.l.b16 %v1999
  %v2137 = vunpack.c.l.b16 %v2000
  %v2138 = vunpack.c.l.b16 %v2001
  %v2139 = vunpack.c.l.b16 %v2002
  %v2140 = vunpack.c.l.b16 %v2003
  %v2141 = vunpack.c.l.b16 %v2004
  %v2142 = vunpack.c.l.b16 %v2005
  %v2143 = vunpack.c.l.b16 %v2006
  %v2144 = vunpack.c.l.b16 %v2007
  %v2145 = vunpack.c.l.b16 %v2008
  %v2146 = vunpack.c.l.b16 %v2009
  %v2147 = vunpack.c.l.b16 %v2010
  %v2148 = vunpack.c.l.b16 %v2011
  %v2149 = vunpack.c.l.b16 %v2012
  %v2150 = vpack.c.b16 %v2087, %v2086
  %v2151 = vpack.c.b16 %v2089, %v2088
  %v2152 = vpack.c.b16 %v2091, %v2090
  %v2153 = vpack.c.b16 %v2093, %v2092
  %v2154 = vpack.c.b16 %v2095, %v2094
  %v2155 = vpack.c.b16 %v2097, %v2096
  %v2156 = vpack.c.b16 %v2099, %v2098
  %v2157 = vpack.c.b16 %v2101, %v2100
  %v2158 = vpack.c.b16 %v2103, %v2102
  %v2159 = vpack.c.b16 %v2105, %v2104
  %v2160 = vpack.c.b16 %v2107, %v2106
  %v2161 = vpack.c.b16 %v2109, %v2108
  %v2162 = vpack.c.b16 %v2111, %v2110
  %v2163 = vpack.c.b16 %v2113, %v2112
  %v2164 = vpack.c.b16 %v2115, %v2114
  %v2165 = vpack.c.b16 %v2117, %v2116
  %v2166 = vpack.c.b16 %v2119, %v2118
  %v2167 = vpack.c.b16 %v2121, %v2120
  %v2168 = vpack.c.b16 %v2123, %v2122
  %v2169 = vpack.c.b16 %v2125, %v2124
  %v2170 = vpack.c.b16 %v2127, %v2126
  %v2171 = vpack.c.b16 %v2129, %v2128
  %v2172 = vpack.c.b16 %v2131, %v2130
  %v2173 = vpack.c.b16 %v2133, %v2132
  %v2174 = vpack.c.b16 %v2135, %v2134
  %v2175 = vpack.c.b16 %v2137, %v2136
  %v2176 = vpack.c.b16 %v2139, %v2138
  %v2177 = vpack.c.b16 %v2141, %v2140
  %v2178 = vpack.c.b16 %v2143, %v2142
  %v2179 = vpack.c.b16 %v2145, %v2144
  %v2180 = vpack.c.b16 %v2147, %v2146
  %v2181 = vpack.c.b16 %v2149, %v2148
  %v2190 = vunpack.c.l.b16 %v2014
  %v2191 = vunpack.c.l.b16 %v2015
  %v2192 = vunpack.c.l.b16 %v2016
  %v2193 = vunpack.c.l.b16 %v2017
  %v2194 = vunpack.c.l.b16 %v2018
  %v2195 = vunpack.c.l.b16 %v2019
  %v2196 = vunpack.c.l.b16 %v2020
  %v2197 = vunpack.c.l.b16 %v2021
  %v2198 = vpack.c.b16 %v2191, %v2190
  %v2199 = vpack.c.b16 %v2193, %v2192
  %v2200 = vpack.c.b16 %v2195, %v2194
  %v2201 = vpack.c.b16 %v2197, %v2196
  %v2207 = vsel %vm279, %v2150, 0
  %v2210 = vsel %vm279, %v2151, 0
  %v2213 = vsel %vm279, %v2152, 0
  %v2216 = vsel %vm279, %v2153, 0
  %v2219 = vsel %vm279, %v2154, 0
  %v2222 = vsel %vm279, %v2155, 0
  %v2225 = vsel %vm279, %v2156, 0
  %v2228 = vsel %vm279, %v2157, 0
  %v2231 = vsel %vm279, %v2158, 0
  %v2234 = vsel %vm279, %v2159, 0
  %v2237 = vsel %vm279, %v2160, 0
  %v2240 = vsel %vm279, %v2161, 0
  %v2243 = vsel %vm279, %v2162, 0
  %v2246 = vsel %vm279, %v2163, 0
  %v2249 = vsel %vm279, %v2164, 0
  %v2252 = vsel %vm279, %v2165, 0
  %v2255 = vsel %vm279, %v2166, 0
  %v2258 = vsel %vm279, %v2167, 0
  %v2261 = vsel %vm279, %v2168, 0
  %v2264 = vsel %vm279, %v2169, 0
  %v2267 = vsel %vm279, %v2170, 0
  %v2270 = vsel %vm279, %v2171, 0
  %v2273 = vsel %vm279, %v2172, 0
  %v2276 = vsel %vm279, %v2173, 0
  %v2279 = vsel %vm279, %v2174, 0
  %v2282 = vsel %vm279, %v2175, 0
  %v2285 = vsel %vm279, %v2176, 0
  %v2288 = vsel %vm279, %v2177, 0
  %v2291 = vsel %vm279, %v2178, 0
  %v2294 = vsel %vm279, %v2179, 0
  %v2297 = vsel %vm279, %v2180, 0
  %v2300 = vsel %vm279, %v2181, 0
  %2302 = vmatprep.subr.bf16.mxu0 0
  %2303 = vmatpush1.bf16.msra.mxu0 %v2198
  %2304 = vmatprep.subr.bf16.mxu0 0
  %2305 = vmatpush1.bf16.msra.mxu0 %v2199
  %2306 = vmatprep.subr.bf16.mxu0 0
  %2307 = vmatpush1.bf16.msra.mxu0 %v2200
  %2308 = vmatprep.subr.bf16.mxu0 0
  %2309 = vmatpush1.bf16.msra.mxu0 %v2201
  %2310 = vmatprep.subr.bf16.mxu0 0
  %2311 = vmatpush1.bf16.msra.mxu0 0
  %2312 = vmatprep.subr.bf16.mxu0 0
  %2313 = vmatpush1.bf16.msra.mxu0 0
  %2314 = vmatprep.subr.bf16.mxu0 0
  %2315 = vmatpush1.bf16.msra.mxu0 0
  %2316 = vmatprep.subr.bf16.mxu0 0
  %2317 = vmatpush1.bf16.msra.mxu0 0
  %2318 = vmatprep.subr.bf16.mxu0 0
  %2319 = vmatpush1.bf16.msra.mxu0 0
  %2320 = vmatprep.subr.bf16.mxu0 0
  %2321 = vmatpush1.bf16.msra.mxu0 0
  %2322 = vmatprep.subr.bf16.mxu0 0
  %2323 = vmatpush1.bf16.msra.mxu0 0
  %2324 = vmatprep.subr.bf16.mxu0 0
  %2325 = vmatpush1.bf16.msra.mxu0 0
  %2326 = vmatprep.subr.bf16.mxu0 0
  %2327 = vmatpush1.bf16.msra.mxu0 0
  %2328 = vmatprep.subr.bf16.mxu0 0
  %2329 = vmatpush1.bf16.msra.mxu0 0
  %2330 = vmatprep.subr.bf16.mxu0 0
  %2331 = vmatpush1.bf16.msra.mxu0 0
  %2332 = vmatprep.subr.bf16.mxu0 0
  %2333 = vmatpush1.bf16.msra.mxu0 0
  %2334 = vmatprep.mubr.bf16.mxu0 0
  %2335 = vmatmul.mubr.bf16.gmra.mrb[0].mxu0 %v2207
  %v2336 = vpop.f32.mrb[0].mxu0
  %v2337 = vadd.f32 0.0, %v2336
  %v2338 = vpop.f32.mrb[0].mxu0
  %v2339 = vpop.f32.mrb[0].mxu0
  %v2340 = vadd.f32 0.0, %v2339
  %v2341 = vpop.f32.mrb[0].mxu0
  %2342 = vmatprep.mubr.bf16.mxu0 0
  %2343 = vmatmul.mubr.bf16.gmra.mrb[0].mxu0 %v2210
  %v2344 = vpop.f32.mrb[0].mxu0
  %v2345 = vadd.f32 0.0, %v2344
  %v2346 = vpop.f32.mrb[0].mxu0
  %v2347 = vpop.f32.mrb[0].mxu0
  %v2348 = vadd.f32 0.0, %v2347
  %v2349 = vpop.f32.mrb[0].mxu0
  %2350 = vmatprep.mubr.bf16.mxu0 0
  %2351 = vmatmul.mubr.bf16.gmra.mrb[0].mxu0 %v2213
  %v2352 = vpop.f32.mrb[0].mxu0
  %v2353 = vadd.f32 0.0, %v2352
  %v2354 = vpop.f32.mrb[0].mxu0
  %v2355 = vpop.f32.mrb[0].mxu0
  %v2356 = vadd.f32 0.0, %v2355
  %v2357 = vpop.f32.mrb[0].mxu0
  %2358 = vmatprep.mubr.bf16.mxu0 0
  %2359 = vmatmul.mubr.bf16.gmra.mrb[0].mxu0 %v2216
  %v2360 = vpop.f32.mrb[0].mxu0
  %v2361 = vadd.f32 0.0, %v2360
  %v2362 = vpop.f32.mrb[0].mxu0
  %v2363 = vpop.f32.mrb[0].mxu0
  %v2364 = vadd.f32 0.0, %v2363
  %v2365 = vpop.f32.mrb[0].mxu0
  %2366 = vmatprep.mubr.bf16.mxu0 0
  %2367 = vmatmul.mubr.bf16.gmra.mrb[0].mxu0 %v2219
  %v2368 = vpop.f32.mrb[0].mxu0
  %v2369 = vadd.f32 0.0, %v2368
  %v2370 = vpop.f32.mrb[0].mxu0
  %v2371 = vpop.f32.mrb[0].mxu0
  %v2372 = vadd.f32 0.0, %v2371
  %v2373 = vpop.f32.mrb[0].mxu0
  %2374 = vmatprep.mubr.bf16.mxu0 0
  %2375 = vmatmul.mubr.bf16.gmra.mrb[0].mxu0 %v2222
  %v2376 = vpop.f32.mrb[0].mxu0
  %v2377 = vadd.f32 0.0, %v2376
  %v2378 = vpop.f32.mrb[0].mxu0
  %v2379 = vpop.f32.mrb[0].mxu0
  %v2380 = vadd.f32 0.0, %v2379
  %v2381 = vpop.f32.mrb[0].mxu0
  %2382 = vmatprep.mubr.bf16.mxu0 0
  %2383 = vmatmul.mubr.bf16.gmra.mrb[0].mxu0 %v2225
  %v2384 = vpop.f32.mrb[0].mxu0
  %v2385 = vadd.f32 0.0, %v2384
  %v2386 = vpop.f32.mrb[0].mxu0
  %v2387 = vpop.f32.mrb[0].mxu0
  %v2388 = vadd.f32 0.0, %v2387
  %v2389 = vpop.f32.mrb[0].mxu0
  %2390 = vmatprep.mubr.bf16.mxu0 0
  %2391 = vmatmul.mubr.bf16.gmra.mrb[0].mxu0 %v2228
  %v2392 = vpop.f32.mrb[0].mxu0
  %v2393 = vadd.f32 0.0, %v2392
  %v2394 = vpop.f32.mrb[0].mxu0
  %v2395 = vpop.f32.mrb[0].mxu0
  %v2396 = vadd.f32 0.0, %v2395
  %v2397 = vpop.f32.mrb[0].mxu0
  %2398 = vmatprep.mubr.bf16.mxu0 0
  %2399 = vmatmul.mubr.bf16.gmra.mrb[0].mxu0 %v2231
  %v2400 = vpop.f32.mrb[0].mxu0
  %v2401 = vadd.f32 0.0, %v2400
  %v2402 = vpop.f32.mrb[0].mxu0
  %v2403 = vpop.f32.mrb[0].mxu0
  %v2404 = vadd.f32 0.0, %v2403
  %v2405 = vpop.f32.mrb[0].mxu0
  %2406 = vmatprep.mubr.bf16.mxu0 0
  %2407 = vmatmul.mubr.bf16.gmra.mrb[0].mxu0 %v2234
  %v2408 = vpop.f32.mrb[0].mxu0
  %v2409 = vadd.f32 0.0, %v2408
  %v2410 = vpop.f32.mrb[0].mxu0
  %v2411 = vpop.f32.mrb[0].mxu0
  %v2412 = vadd.f32 0.0, %v2411
  %v2413 = vpop.f32.mrb[0].mxu0
  %2414 = vmatprep.mubr.bf16.mxu0 0
  %2415 = vmatmul.mubr.bf16.gmra.mrb[0].mxu0 %v2237
  %v2416 = vpop.f32.mrb[0].mxu0
  %v2417 = vadd.f32 0.0, %v2416
  %v2418 = vpop.f32.mrb[0].mxu0
  %v2419 = vpop.f32.mrb[0].mxu0
  %v2420 = vadd.f32 0.0, %v2419
  %v2421 = vpop.f32.mrb[0].mxu0
  %2422 = vmatprep.mubr.bf16.mxu0 0
  %2423 = vmatmul.mubr.bf16.gmra.mrb[0].mxu0 %v2240
  %v2424 = vpop.f32.mrb[0].mxu0
  %v2425 = vadd.f32 0.0, %v2424
  %v2426 = vpop.f32.mrb[0].mxu0
  %v2427 = vpop.f32.mrb[0].mxu0
  %v2428 = vadd.f32 0.0, %v2427
  %v2429 = vpop.f32.mrb[0].mxu0
  %2430 = vmatprep.mubr.bf16.mxu0 0
  %2431 = vmatmul.mubr.bf16.gmra.mrb[0].mxu0 %v2243
  %v2432 = vpop.f32.mrb[0].mxu0
  %v2433 = vadd.f32 0.0, %v2432
  %v2434 = vpop.f32.mrb[0].mxu0
  %v2435 = vpop.f32.mrb[0].mxu0
  %v2436 = vadd.f32 0.0, %v2435
  %v2437 = vpop.f32.mrb[0].mxu0
  %2438 = vmatprep.mubr.bf16.mxu0 0
  %2439 = vmatmul.mubr.bf16.gmra.mrb[0].mxu0 %v2246
  %v2440 = vpop.f32.mrb[0].mxu0
  %v2441 = vadd.f32 0.0, %v2440
  %v2442 = vpop.f32.mrb[0].mxu0
  %v2443 = vpop.f32.mrb[0].mxu0
  %v2444 = vadd.f32 0.0, %v2443
  %v2445 = vpop.f32.mrb[0].mxu0
  %2446 = vmatprep.mubr.bf16.mxu0 0
  %2447 = vmatmul.mubr.bf16.gmra.mrb[0].mxu0 %v2249
  %v2448 = vpop.f32.mrb[0].mxu0
  %v2449 = vadd.f32 0.0, %v2448
  %v2450 = vpop.f32.mrb[0].mxu0
  %v2451 = vpop.f32.mrb[0].mxu0
  %v2452 = vadd.f32 0.0, %v2451
  %v2453 = vpop.f32.mrb[0].mxu0
  %2454 = vmatprep.mubr.bf16.mxu0 0
  %2455 = vmatmul.mubr.bf16.gmra.mrb[0].mxu0 %v2252
  %v2456 = vpop.f32.mrb[0].mxu0
  %v2457 = vadd.f32 0.0, %v2456
  %v2458 = vpop.f32.mrb[0].mxu0
  %v2459 = vpop.f32.mrb[0].mxu0
  %v2460 = vadd.f32 0.0, %v2459
  %v2461 = vpop.f32.mrb[0].mxu0
  %2462 = vmatprep.mubr.bf16.mxu0 0
  %2463 = vmatmul.mubr.bf16.gmra.mrb[0].mxu0 %v2255
  %v2464 = vpop.f32.mrb[0].mxu0
  %v2465 = vadd.f32 0.0, %v2464
  %v2466 = vpop.f32.mrb[0].mxu0
  %v2467 = vpop.f32.mrb[0].mxu0
  %v2468 = vadd.f32 0.0, %v2467
  %v2469 = vpop.f32.mrb[0].mxu0
  %2470 = vmatprep.mubr.bf16.mxu0 0
  %2471 = vmatmul.mubr.bf16.gmra.mrb[0].mxu0 %v2258
  %v2472 = vpop.f32.mrb[0].mxu0
  %v2473 = vadd.f32 0.0, %v2472
  %v2474 = vpop.f32.mrb[0].mxu0
  %v2475 = vpop.f32.mrb[0].mxu0
  %v2476 = vadd.f32 0.0, %v2475
  %v2477 = vpop.f32.mrb[0].mxu0
  %2478 = vmatprep.mubr.bf16.mxu0 0
  %2479 = vmatmul.mubr.bf16.gmra.mrb[0].mxu0 %v2261
  %v2480 = vpop.f32.mrb[0].mxu0
  %v2481 = vadd.f32 0.0, %v2480
  %v2482 = vpop.f32.mrb[0].mxu0
  %v2483 = vpop.f32.mrb[0].mxu0
  %v2484 = vadd.f32 0.0, %v2483
  %v2485 = vpop.f32.mrb[0].mxu0
  %2486 = vmatprep.mubr.bf16.mxu0 0
  %2487 = vmatmul.mubr.bf16.gmra.mrb[0].mxu0 %v2264
  %v2488 = vpop.f32.mrb[0].mxu0
  %v2489 = vadd.f32 0.0, %v2488
  %v2490 = vpop.f32.mrb[0].mxu0
  %v2491 = vpop.f32.mrb[0].mxu0
  %v2492 = vadd.f32 0.0, %v2491
  %v2493 = vpop.f32.mrb[0].mxu0
  %2494 = vmatprep.mubr.bf16.mxu0 0
  %2495 = vmatmul.mubr.bf16.gmra.mrb[0].mxu0 %v2267
  %v2496 = vpop.f32.mrb[0].mxu0
  %v2497 = vadd.f32 0.0, %v2496
  %v2498 = vpop.f32.mrb[0].mxu0
  %v2499 = vpop.f32.mrb[0].mxu0
  %v2500 = vadd.f32 0.0, %v2499
  %v2501 = vpop.f32.mrb[0].mxu0
  %2502 = vmatprep.mubr.bf16.mxu0 0
  %2503 = vmatmul.mubr.bf16.gmra.mrb[0].mxu0 %v2270
  %v2504 = vpop.f32.mrb[0].mxu0
  %v2505 = vadd.f32 0.0, %v2504
  %v2506 = vpop.f32.mrb[0].mxu0
  %v2507 = vpop.f32.mrb[0].mxu0
  %v2508 = vadd.f32 0.0, %v2507
  %v2509 = vpop.f32.mrb[0].mxu0
  %2510 = vmatprep.mubr.bf16.mxu0 0
  %2511 = vmatmul.mubr.bf16.gmra.mrb[0].mxu0 %v2273
  %v2512 = vpop.f32.mrb[0].mxu0
  %v2513 = vadd.f32 0.0, %v2512
  %v2514 = vpop.f32.mrb[0].mxu0
  %v2515 = vpop.f32.mrb[0].mxu0
  %v2516 = vadd.f32 0.0, %v2515
  %v2517 = vpop.f32.mrb[0].mxu0
  %2518 = vmatprep.mubr.bf16.mxu0 0
  %2519 = vmatmul.mubr.bf16.gmra.mrb[0].mxu0 %v2276
  %v2520 = vpop.f32.mrb[0].mxu0
  %v2521 = vadd.f32 0.0, %v2520
  %v2522 = vpop.f32.mrb[0].mxu0
  %v2523 = vpop.f32.mrb[0].mxu0
  %v2524 = vadd.f32 0.0, %v2523
  %v2525 = vpop.f32.mrb[0].mxu0
  %2526 = vmatprep.mubr.bf16.mxu0 0
  %2527 = vmatmul.mubr.bf16.gmra.mrb[0].mxu0 %v2279
  %v2528 = vpop.f32.mrb[0].mxu0
  %v2529 = vadd.f32 0.0, %v2528
  %v2530 = vpop.f32.mrb[0].mxu0
  %v2531 = vpop.f32.mrb[0].mxu0
  %v2532 = vadd.f32 0.0, %v2531
  %v2533 = vpop.f32.mrb[0].mxu0
  %2534 = vmatprep.mubr.bf16.mxu0 0
  %2535 = vmatmul.mubr.bf16.gmra.mrb[0].mxu0 %v2282
  %v2536 = vpop.f32.mrb[0].mxu0
  %v2537 = vadd.f32 0.0, %v2536
  %v2538 = vpop.f32.mrb[0].mxu0
  %v2539 = vpop.f32.mrb[0].mxu0
  %v2540 = vadd.f32 0.0, %v2539
  %v2541 = vpop.f32.mrb[0].mxu0
  %2542 = vmatprep.mubr.bf16.mxu0 0
  %2543 = vmatmul.mubr.bf16.gmra.mrb[0].mxu0 %v2285
  %v2544 = vpop.f32.mrb[0].mxu0
  %v2545 = vadd.f32 0.0, %v2544
  %v2546 = vpop.f32.mrb[0].mxu0
  %v2547 = vpop.f32.mrb[0].mxu0
  %v2548 = vadd.f32 0.0, %v2547
  %v2549 = vpop.f32.mrb[0].mxu0
  %2550 = vmatprep.mubr.bf16.mxu0 0
  %2551 = vmatmul.mubr.bf16.gmra.mrb[0].mxu0 %v2288
  %v2552 = vpop.f32.mrb[0].mxu0
  %v2553 = vadd.f32 0.0, %v2552
  %v2554 = vpop.f32.mrb[0].mxu0
  %v2555 = vpop.f32.mrb[0].mxu0
  %v2556 = vadd.f32 0.0, %v2555
  %v2557 = vpop.f32.mrb[0].mxu0
  %2558 = vmatprep.mubr.bf16.mxu0 0
  %2559 = vmatmul.mubr.bf16.gmra.mrb[0].mxu0 %v2291
  %v2560 = vpop.f32.mrb[0].mxu0
  %v2561 = vadd.f32 0.0, %v2560
  %v2562 = vpop.f32.mrb[0].mxu0
  %v2563 = vpop.f32.mrb[0].mxu0
  %v2564 = vadd.f32 0.0, %v2563
  %v2565 = vpop.f32.mrb[0].mxu0
  %2566 = vmatprep.mubr.bf16.mxu0 0
  %2567 = vmatmul.mubr.bf16.gmra.mrb[0].mxu0 %v2294
  %v2568 = vpop.f32.mrb[0].mxu0
  %v2569 = vadd.f32 0.0, %v2568
  %v2570 = vpop.f32.mrb[0].mxu0
  %v2571 = vpop.f32.mrb[0].mxu0
  %v2572 = vadd.f32 0.0, %v2571
  %v2573 = vpop.f32.mrb[0].mxu0
  %2574 = vmatprep.mubr.bf16.mxu0 0
  %2575 = vmatmul.mubr.bf16.gmra.mrb[0].mxu0 %v2297
  %v2576 = vpop.f32.mrb[0].mxu0
  %v2577 = vadd.f32 0.0, %v2576
  %v2578 = vpop.f32.mrb[0].mxu0
  %v2579 = vpop.f32.mrb[0].mxu0
  %v2580 = vadd.f32 0.0, %v2579
  %v2581 = vpop.f32.mrb[0].mxu0
  %2582 = vmatprep.mubr.bf16.mxu0 0
  %2583 = vmatmul.mubr.bf16.gmra.mrb[0].mxu0 %v2300
  %v2584 = vpop.f32.mrb[0].mxu0
  %v2585 = vadd.f32 0.0, %v2584
  %v2586 = vpop.f32.mrb[0].mxu0
  %v2587 = vpop.f32.mrb[0].mxu0
  %v2588 = vadd.f32 0.0, %v2587
  %v2589 = vpop.f32.mrb[0].mxu0
  %2590 = vdwg.mxu0
  %2655 = vrot.lane.b32.xlu0 %v1053, 8
  %v2656 = vpop.permute.xlu0 %2655
  %2657 = vrot.lane.b32.xlu0 %v1056, 8
  %v2658 = vpop.permute.xlu0 %2657
  %2659 = vrot.lane.b32.xlu0 %v1061, 8
  %v2660 = vpop.permute.xlu0 %2659
  %2661 = vrot.lane.b32.xlu0 %v1064, 8
  %v2662 = vpop.permute.xlu0 %2661
  %2663 = vrot.lane.b32.xlu0 %v1069, 8
  %v2664 = vpop.permute.xlu0 %2663
  %2665 = vrot.lane.b32.xlu0 %v1072, 8
  %v2666 = vpop.permute.xlu0 %2665
  %2667 = vrot.lane.b32.xlu0 %v1077, 8
  %v2668 = vpop.permute.xlu0 %2667
  %2669 = vrot.lane.b32.xlu0 %v1080, 8
  %v2670 = vpop.permute.xlu0 %2669
  %2671 = vrot.lane.b32.xlu0 %v1085, 8
  %v2672 = vpop.permute.xlu0 %2671
  %2673 = vrot.lane.b32.xlu0 %v1088, 8
  %v2674 = vpop.permute.xlu0 %2673
  %2675 = vrot.lane.b32.xlu0 %v1093, 8
  %v2676 = vpop.permute.xlu0 %2675
  %2677 = vrot.lane.b32.xlu0 %v1096, 8
  %v2678 = vpop.permute.xlu0 %2677
  %2679 = vrot.lane.b32.xlu0 %v1101, 8
  %v2680 = vpop.permute.xlu0 %2679
  %2681 = vrot.lane.b32.xlu0 %v1104, 8
  %v2682 = vpop.permute.xlu0 %2681
  %2683 = vrot.lane.b32.xlu0 %v1109, 8
  %v2684 = vpop.permute.xlu0 %2683
  %2685 = vrot.lane.b32.xlu0 %v1112, 8
  %v2686 = vpop.permute.xlu0 %2685
  %2687 = vrot.lane.b32.xlu0 %v1117, 8
  %v2688 = vpop.permute.xlu0 %2687
  %2689 = vrot.lane.b32.xlu0 %v1120, 8
  %v2690 = vpop.permute.xlu0 %2689
  %2691 = vrot.lane.b32.xlu0 %v1125, 8
  %v2692 = vpop.permute.xlu0 %2691
  %2693 = vrot.lane.b32.xlu0 %v1128, 8
  %v2694 = vpop.permute.xlu0 %2693
  %2695 = vrot.lane.b32.xlu0 %v1133, 8
  %v2696 = vpop.permute.xlu0 %2695
  %2697 = vrot.lane.b32.xlu0 %v1136, 8
  %v2698 = vpop.permute.xlu0 %2697
  %2699 = vrot.lane.b32.xlu0 %v1141, 8
  %v2700 = vpop.permute.xlu0 %2699
  %2701 = vrot.lane.b32.xlu0 %v1144, 8
  %v2702 = vpop.permute.xlu0 %2701
  %2703 = vrot.lane.b32.xlu0 %v1149, 8
  %v2704 = vpop.permute.xlu0 %2703
  %2705 = vrot.lane.b32.xlu0 %v1152, 8
  %v2706 = vpop.permute.xlu0 %2705
  %2707 = vrot.lane.b32.xlu0 %v1157, 8
  %v2708 = vpop.permute.xlu0 %2707
  %2709 = vrot.lane.b32.xlu0 %v1160, 8
  %v2710 = vpop.permute.xlu0 %2709
  %2711 = vrot.lane.b32.xlu0 %v1165, 8
  %v2712 = vpop.permute.xlu0 %2711
  %2713 = vrot.lane.b32.xlu0 %v1168, 8
  %v2714 = vpop.permute.xlu0 %2713
  %2715 = vrot.lane.b32.xlu0 %v1173, 8
  %v2716 = vpop.permute.xlu0 %2715
  %2717 = vrot.lane.b32.xlu0 %v1176, 8
  %v2718 = vpop.permute.xlu0 %2717
  %2719 = vrot.lane.b32.xlu0 %v1181, 8
  %v2720 = vpop.permute.xlu0 %2719
  %2721 = vrot.lane.b32.xlu0 %v1184, 8
  %v2722 = vpop.permute.xlu0 %2721
  %2723 = vrot.lane.b32.xlu0 %v1189, 8
  %v2724 = vpop.permute.xlu0 %2723
  %2725 = vrot.lane.b32.xlu0 %v1192, 8
  %v2726 = vpop.permute.xlu0 %2725
  %2727 = vrot.lane.b32.xlu0 %v1197, 8
  %v2728 = vpop.permute.xlu0 %2727
  %2729 = vrot.lane.b32.xlu0 %v1200, 8
  %v2730 = vpop.permute.xlu0 %2729
  %2731 = vrot.lane.b32.xlu0 %v1205, 8
  %v2732 = vpop.permute.xlu0 %2731
  %2733 = vrot.lane.b32.xlu0 %v1208, 8
  %v2734 = vpop.permute.xlu0 %2733
  %2735 = vrot.lane.b32.xlu0 %v1213, 8
  %v2736 = vpop.permute.xlu0 %2735
  %2737 = vrot.lane.b32.xlu0 %v1216, 8
  %v2738 = vpop.permute.xlu0 %2737
  %2739 = vrot.lane.b32.xlu0 %v1221, 8
  %v2740 = vpop.permute.xlu0 %2739
  %2741 = vrot.lane.b32.xlu0 %v1224, 8
  %v2742 = vpop.permute.xlu0 %2741
  %2743 = vrot.lane.b32.xlu0 %v1229, 8
  %v2744 = vpop.permute.xlu0 %2743
  %2745 = vrot.lane.b32.xlu0 %v1232, 8
  %v2746 = vpop.permute.xlu0 %2745
  %2747 = vrot.lane.b32.xlu0 %v1237, 8
  %v2748 = vpop.permute.xlu0 %2747
  %2749 = vrot.lane.b32.xlu0 %v1240, 8
  %v2750 = vpop.permute.xlu0 %2749
  %2751 = vrot.lane.b32.xlu0 %v1245, 8
  %v2752 = vpop.permute.xlu0 %2751
  %2753 = vrot.lane.b32.xlu0 %v1248, 8
  %v2754 = vpop.permute.xlu0 %2753
  %2755 = vrot.lane.b32.xlu0 %v1253, 8
  %v2756 = vpop.permute.xlu0 %2755
  %2757 = vrot.lane.b32.xlu0 %v1256, 8
  %v2758 = vpop.permute.xlu0 %2757
  %2759 = vrot.lane.b32.xlu0 %v1261, 8
  %v2760 = vpop.permute.xlu0 %2759
  %2761 = vrot.lane.b32.xlu0 %v1264, 8
  %v2762 = vpop.permute.xlu0 %2761
  %2763 = vrot.lane.b32.xlu0 %v1269, 8
  %v2764 = vpop.permute.xlu0 %2763
  %2765 = vrot.lane.b32.xlu0 %v1272, 8
  %v2766 = vpop.permute.xlu0 %2765
  %2767 = vrot.lane.b32.xlu0 %v1277, 8
  %v2768 = vpop.permute.xlu0 %2767
  %2769 = vrot.lane.b32.xlu0 %v1280, 8
  %v2770 = vpop.permute.xlu0 %2769
  %2771 = vrot.lane.b32.xlu0 %v1285, 8
  %v2772 = vpop.permute.xlu0 %2771
  %2773 = vrot.lane.b32.xlu0 %v1288, 8
  %v2774 = vpop.permute.xlu0 %2773
  %2775 = vrot.lane.b32.xlu0 %v1293, 8
  %v2776 = vpop.permute.xlu0 %2775
  %2777 = vrot.lane.b32.xlu0 %v1296, 8
  %v2778 = vpop.permute.xlu0 %2777
  %2779 = vrot.lane.b32.xlu0 %v1301, 8
  %v2780 = vpop.permute.xlu0 %2779
  %2781 = vrot.lane.b32.xlu0 %v1304, 8
  %v2782 = vpop.permute.xlu0 %2781
  %2911 = vrot.lane.b32.xlu0 %v1695, 16
  %v2912 = vpop.permute.xlu0 %2911
  %2913 = vrot.lane.b32.xlu0 %v1698, 16
  %v2914 = vpop.permute.xlu0 %2913
  %2915 = vrot.lane.b32.xlu0 %v1703, 16
  %v2916 = vpop.permute.xlu0 %2915
  %2917 = vrot.lane.b32.xlu0 %v1706, 16
  %v2918 = vpop.permute.xlu0 %2917
  %2919 = vrot.lane.b32.xlu0 %v1711, 16
  %v2920 = vpop.permute.xlu0 %2919
  %2921 = vrot.lane.b32.xlu0 %v1714, 16
  %v2922 = vpop.permute.xlu0 %2921
  %2923 = vrot.lane.b32.xlu0 %v1719, 16
  %v2924 = vpop.permute.xlu0 %2923
  %2925 = vrot.lane.b32.xlu0 %v1722, 16
  %v2926 = vpop.permute.xlu0 %2925
  %2927 = vrot.lane.b32.xlu0 %v1727, 16
  %v2928 = vpop.permute.xlu0 %2927
  %2929 = vrot.lane.b32.xlu0 %v1730, 16
  %v2930 = vpop.permute.xlu0 %2929
  %2931 = vrot.lane.b32.xlu0 %v1735, 16
  %v2932 = vpop.permute.xlu0 %2931
  %2933 = vrot.lane.b32.xlu0 %v1738, 16
  %v2934 = vpop.permute.xlu0 %2933
  %2935 = vrot.lane.b32.xlu0 %v1743, 16
  %v2936 = vpop.permute.xlu0 %2935
  %2937 = vrot.lane.b32.xlu0 %v1746, 16
  %v2938 = vpop.permute.xlu0 %2937
  %2939 = vrot.lane.b32.xlu0 %v1751, 16
  %v2940 = vpop.permute.xlu0 %2939
  %2941 = vrot.lane.b32.xlu0 %v1754, 16
  %v2942 = vpop.permute.xlu0 %2941
  %2943 = vrot.lane.b32.xlu0 %v1759, 16
  %v2944 = vpop.permute.xlu0 %2943
  %2945 = vrot.lane.b32.xlu0 %v1762, 16
  %v2946 = vpop.permute.xlu0 %2945
  %2947 = vrot.lane.b32.xlu0 %v1767, 16
  %v2948 = vpop.permute.xlu0 %2947
  %2949 = vrot.lane.b32.xlu0 %v1770, 16
  %v2950 = vpop.permute.xlu0 %2949
  %2951 = vrot.lane.b32.xlu0 %v1775, 16
  %v2952 = vpop.permute.xlu0 %2951
  %2953 = vrot.lane.b32.xlu0 %v1778, 16
  %v2954 = vpop.permute.xlu0 %2953
  %2955 = vrot.lane.b32.xlu0 %v1783, 16
  %v2956 = vpop.permute.xlu0 %2955
  %2957 = vrot.lane.b32.xlu0 %v1786, 16
  %v2958 = vpop.permute.xlu0 %2957
  %2959 = vrot.lane.b32.xlu0 %v1791, 16
  %v2960 = vpop.permute.xlu0 %2959
  %2961 = vrot.lane.b32.xlu0 %v1794, 16
  %v2962 = vpop.permute.xlu0 %2961
  %2963 = vrot.lane.b32.xlu0 %v1799, 16
  %v2964 = vpop.permute.xlu0 %2963
  %2965 = vrot.lane.b32.xlu0 %v1802, 16
  %v2966 = vpop.permute.xlu0 %2965
  %2967 = vrot.lane.b32.xlu0 %v1807, 16
  %v2968 = vpop.permute.xlu0 %2967
  %2969 = vrot.lane.b32.xlu0 %v1810, 16
  %v2970 = vpop.permute.xlu0 %2969
  %2971 = vrot.lane.b32.xlu0 %v1815, 16
  %v2972 = vpop.permute.xlu0 %2971
  %2973 = vrot.lane.b32.xlu0 %v1818, 16
  %v2974 = vpop.permute.xlu0 %2973
  %2975 = vrot.lane.b32.xlu0 %v1823, 16
  %v2976 = vpop.permute.xlu0 %2975
  %2977 = vrot.lane.b32.xlu0 %v1826, 16
  %v2978 = vpop.permute.xlu0 %2977
  %2979 = vrot.lane.b32.xlu0 %v1831, 16
  %v2980 = vpop.permute.xlu0 %2979
  %2981 = vrot.lane.b32.xlu0 %v1834, 16
  %v2982 = vpop.permute.xlu0 %2981
  %2983 = vrot.lane.b32.xlu0 %v1839, 16
  %v2984 = vpop.permute.xlu0 %2983
  %2985 = vrot.lane.b32.xlu0 %v1842, 16
  %v2986 = vpop.permute.xlu0 %2985
  %2987 = vrot.lane.b32.xlu0 %v1847, 16
  %v2988 = vpop.permute.xlu0 %2987
  %2989 = vrot.lane.b32.xlu0 %v1850, 16
  %v2990 = vpop.permute.xlu0 %2989
  %2991 = vrot.lane.b32.xlu0 %v1855, 16
  %v2992 = vpop.permute.xlu0 %2991
  %2993 = vrot.lane.b32.xlu0 %v1858, 16
  %v2994 = vpop.permute.xlu0 %2993
  %2995 = vrot.lane.b32.xlu0 %v1863, 16
  %v2996 = vpop.permute.xlu0 %2995
  %2997 = vrot.lane.b32.xlu0 %v1866, 16
  %v2998 = vpop.permute.xlu0 %2997
  %2999 = vrot.lane.b32.xlu0 %v1871, 16
  %v3000 = vpop.permute.xlu0 %2999
  %3001 = vrot.lane.b32.xlu0 %v1874, 16
  %v3002 = vpop.permute.xlu0 %3001
  %3003 = vrot.lane.b32.xlu0 %v1879, 16
  %v3004 = vpop.permute.xlu0 %3003
  %3005 = vrot.lane.b32.xlu0 %v1882, 16
  %v3006 = vpop.permute.xlu0 %3005
  %3007 = vrot.lane.b32.xlu0 %v1887, 16
  %v3008 = vpop.permute.xlu0 %3007
  %3009 = vrot.lane.b32.xlu0 %v1890, 16
  %v3010 = vpop.permute.xlu0 %3009
  %3011 = vrot.lane.b32.xlu0 %v1895, 16
  %v3012 = vpop.permute.xlu0 %3011
  %3013 = vrot.lane.b32.xlu0 %v1898, 16
  %v3014 = vpop.permute.xlu0 %3013
  %3015 = vrot.lane.b32.xlu0 %v1903, 16
  %v3016 = vpop.permute.xlu0 %3015
  %3017 = vrot.lane.b32.xlu0 %v1906, 16
  %v3018 = vpop.permute.xlu0 %3017
  %3019 = vrot.lane.b32.xlu0 %v1911, 16
  %v3020 = vpop.permute.xlu0 %3019
  %3021 = vrot.lane.b32.xlu0 %v1914, 16
  %v3022 = vpop.permute.xlu0 %3021
  %3023 = vrot.lane.b32.xlu0 %v1919, 16
  %v3024 = vpop.permute.xlu0 %3023
  %3025 = vrot.lane.b32.xlu0 %v1922, 16
  %v3026 = vpop.permute.xlu0 %3025
  %3027 = vrot.lane.b32.xlu0 %v1927, 16
  %v3028 = vpop.permute.xlu0 %3027
  %3029 = vrot.lane.b32.xlu0 %v1930, 16
  %v3030 = vpop.permute.xlu0 %3029
  %3031 = vrot.lane.b32.xlu0 %v1935, 16
  %v3032 = vpop.permute.xlu0 %3031
  %3033 = vrot.lane.b32.xlu0 %v1938, 16
  %v3034 = vpop.permute.xlu0 %3033
  %3035 = vrot.lane.b32.xlu0 %v1943, 16
  %v3036 = vpop.permute.xlu0 %3035
  %3037 = vrot.lane.b32.xlu0 %v1946, 16
  %v3038 = vpop.permute.xlu0 %3037
  %3167 = vrot.lane.b32.xlu0 %v2337, 24
  %v3168 = vpop.permute.xlu0 %3167
  %3169 = vrot.lane.b32.xlu0 %v2340, 24
  %v3170 = vpop.permute.xlu0 %3169
  %3171 = vrot.lane.b32.xlu0 %v2345, 24
  %v3172 = vpop.permute.xlu0 %3171
  %3173 = vrot.lane.b32.xlu0 %v2348, 24
  %v3174 = vpop.permute.xlu0 %3173
  %3175 = vrot.lane.b32.xlu0 %v2353, 24
  %v3176 = vpop.permute.xlu0 %3175
  %3177 = vrot.lane.b32.xlu0 %v2356, 24
  %v3178 = vpop.permute.xlu0 %3177
  %3179 = vrot.lane.b32.xlu0 %v2361, 24
  %v3180 = vpop.permute.xlu0 %3179
  %3181 = vrot.lane.b32.xlu0 %v2364, 24
  %v3182 = vpop.permute.xlu0 %3181
  %3183 = vrot.lane.b32.xlu0 %v2369, 24
  %v3184 = vpop.permute.xlu0 %3183
  %3185 = vrot.lane.b32.xlu0 %v2372, 24
  %v3186 = vpop.permute.xlu0 %3185
  %3187 = vrot.lane.b32.xlu0 %v2377, 24
  %v3188 = vpop.permute.xlu0 %3187
  %3189 = vrot.lane.b32.xlu0 %v2380, 24
  %v3190 = vpop.permute.xlu0 %3189
  %3191 = vrot.lane.b32.xlu0 %v2385, 24
  %v3192 = vpop.permute.xlu0 %3191
  %3193 = vrot.lane.b32.xlu0 %v2388, 24
  %v3194 = vpop.permute.xlu0 %3193
  %3195 = vrot.lane.b32.xlu0 %v2393, 24
  %v3196 = vpop.permute.xlu0 %3195
  %3197 = vrot.lane.b32.xlu0 %v2396, 24
  %v3198 = vpop.permute.xlu0 %3197
  %3199 = vrot.lane.b32.xlu0 %v2401, 24
  %v3200 = vpop.permute.xlu0 %3199
  %3201 = vrot.lane.b32.xlu0 %v2404, 24
  %v3202 = vpop.permute.xlu0 %3201
  %3203 = vrot.lane.b32.xlu0 %v2409, 24
  %v3204 = vpop.permute.xlu0 %3203
  %3205 = vrot.lane.b32.xlu0 %v2412, 24
  %v3206 = vpop.permute.xlu0 %3205
  %3207 = vrot.lane.b32.xlu0 %v2417, 24
  %v3208 = vpop.permute.xlu0 %3207
  %3209 = vrot.lane.b32.xlu0 %v2420, 24
  %v3210 = vpop.permute.xlu0 %3209
  %3211 = vrot.lane.b32.xlu0 %v2425, 24
  %v3212 = vpop.permute.xlu0 %3211
  %3213 = vrot.lane.b32.xlu0 %v2428, 24
  %v3214 = vpop.permute.xlu0 %3213
  %3215 = vrot.lane.b32.xlu0 %v2433, 24
  %v3216 = vpop.permute.xlu0 %3215
  %3217 = vrot.lane.b32.xlu0 %v2436, 24
  %v3218 = vpop.permute.xlu0 %3217
  %3219 = vrot.lane.b32.xlu0 %v2441, 24
  %v3220 = vpop.permute.xlu0 %3219
  %3221 = vrot.lane.b32.xlu0 %v2444, 24
  %v3222 = vpop.permute.xlu0 %3221
  %3223 = vrot.lane.b32.xlu0 %v2449, 24
  %v3224 = vpop.permute.xlu0 %3223
  %3225 = vrot.lane.b32.xlu0 %v2452, 24
  %v3226 = vpop.permute.xlu0 %3225
  %3227 = vrot.lane.b32.xlu0 %v2457, 24
  %v3228 = vpop.permute.xlu0 %3227
  %3229 = vrot.lane.b32.xlu0 %v2460, 24
  %v3230 = vpop.permute.xlu0 %3229
  %3231 = vrot.lane.b32.xlu0 %v2465, 24
  %v3232 = vpop.permute.xlu0 %3231
  %3233 = vrot.lane.b32.xlu0 %v2468, 24
  %v3234 = vpop.permute.xlu0 %3233
  %3235 = vrot.lane.b32.xlu0 %v2473, 24
  %v3236 = vpop.permute.xlu0 %3235
  %3237 = vrot.lane.b32.xlu0 %v2476, 24
  %v3238 = vpop.permute.xlu0 %3237
  %3239 = vrot.lane.b32.xlu0 %v2481, 24
  %v3240 = vpop.permute.xlu0 %3239
  %3241 = vrot.lane.b32.xlu0 %v2484, 24
  %v3242 = vpop.permute.xlu0 %3241
  %3243 = vrot.lane.b32.xlu0 %v2489, 24
  %v3244 = vpop.permute.xlu0 %3243
  %3245 = vrot.lane.b32.xlu0 %v2492, 24
  %v3246 = vpop.permute.xlu0 %3245
  %3247 = vrot.lane.b32.xlu0 %v2497, 24
  %v3248 = vpop.permute.xlu0 %3247
  %3249 = vrot.lane.b32.xlu0 %v2500, 24
  %v3250 = vpop.permute.xlu0 %3249
  %3251 = vrot.lane.b32.xlu0 %v2505, 24
  %v3252 = vpop.permute.xlu0 %3251
  %3253 = vrot.lane.b32.xlu0 %v2508, 24
  %v3254 = vpop.permute.xlu0 %3253
  %3255 = vrot.lane.b32.xlu0 %v2513, 24
  %v3256 = vpop.permute.xlu0 %3255
  %3257 = vrot.lane.b32.xlu0 %v2516, 24
  %v3258 = vpop.permute.xlu0 %3257
  %3259 = vrot.lane.b32.xlu0 %v2521, 24
  %v3260 = vpop.permute.xlu0 %3259
  %3261 = vrot.lane.b32.xlu0 %v2524, 24
  %v3262 = vpop.permute.xlu0 %3261
  %3263 = vrot.lane.b32.xlu0 %v2529, 24
  %v3264 = vpop.permute.xlu0 %3263
  %3265 = vrot.lane.b32.xlu0 %v2532, 24
  %v3266 = vpop.permute.xlu0 %3265
  %3267 = vrot.lane.b32.xlu0 %v2537, 24
  %v3268 = vpop.permute.xlu0 %3267
  %3269 = vrot.lane.b32.xlu0 %v2540, 24
  %v3270 = vpop.permute.xlu0 %3269
  %3271 = vrot.lane.b32.xlu0 %v2545, 24
  %v3272 = vpop.permute.xlu0 %3271
  %3273 = vrot.lane.b32.xlu0 %v2548, 24
  %v3274 = vpop.permute.xlu0 %3273
  %3275 = vrot.lane.b32.xlu0 %v2553, 24
  %v3276 = vpop.permute.xlu0 %3275
  %3277 = vrot.lane.b32.xlu0 %v2556, 24
  %v3278 = vpop.permute.xlu0 %3277
  %3279 = vrot.lane.b32.xlu0 %v2561, 24
  %v3280 = vpop.permute.xlu0 %3279
  %3281 = vrot.lane.b32.xlu0 %v2564, 24
  %v3282 = vpop.permute.xlu0 %3281
  %3283 = vrot.lane.b32.xlu0 %v2569, 24
  %v3284 = vpop.permute.xlu0 %3283
  %3285 = vrot.lane.b32.xlu0 %v2572, 24
  %v3286 = vpop.permute.xlu0 %3285
  %3287 = vrot.lane.b32.xlu0 %v2577, 24
  %v3288 = vpop.permute.xlu0 %3287
  %3289 = vrot.lane.b32.xlu0 %v2580, 24
  %v3290 = vpop.permute.xlu0 %3289
  %3291 = vrot.lane.b32.xlu0 %v2585, 24
  %v3292 = vpop.permute.xlu0 %3291
  %3293 = vrot.lane.b32.xlu0 %v2588, 24
  %v3294 = vpop.permute.xlu0 %3293
  %vm3359 = vcmask 64512
  %v3360 = vsel %vm3359, %v411, %v2656
  %v3361 = vsel %vm3359, %v414, %v2658
  %v3362 = vsel %vm3359, %v419, %v2660
  %v3363 = vsel %vm3359, %v422, %v2662
  %v3364 = vsel %vm3359, %v427, %v2664
  %v3365 = vsel %vm3359, %v430, %v2666
  %v3366 = vsel %vm3359, %v435, %v2668
  %v3367 = vsel %vm3359, %v438, %v2670
  %v3368 = vsel %vm3359, %v443, %v2672
  %v3369 = vsel %vm3359, %v446, %v2674
  %v3370 = vsel %vm3359, %v451, %v2676
  %v3371 = vsel %vm3359, %v454, %v2678
  %v3372 = vsel %vm3359, %v459, %v2680
  %v3373 = vsel %vm3359, %v462, %v2682
  %v3374 = vsel %vm3359, %v467, %v2684
  %v3375 = vsel %vm3359, %v470, %v2686
  %v3376 = vsel %vm3359, %v475, %v2688
  %v3377 = vsel %vm3359, %v478, %v2690
  %v3378 = vsel %vm3359, %v483, %v2692
  %v3379 = vsel %vm3359, %v486, %v2694
  %v3380 = vsel %vm3359, %v491, %v2696
  %v3381 = vsel %vm3359, %v494, %v2698
  %v3382 = vsel %vm3359, %v499, %v2700
  %v3383 = vsel %vm3359, %v502, %v2702
  %v3384 = vsel %vm3359, %v507, %v2704
  %v3385 = vsel %vm3359, %v510, %v2706
  %v3386 = vsel %vm3359, %v515, %v2708
  %v3387 = vsel %vm3359, %v518, %v2710
  %v3388 = vsel %vm3359, %v523, %v2712
  %v3389 = vsel %vm3359, %v526, %v2714
  %v3390 = vsel %vm3359, %v531, %v2716
  %v3391 = vsel %vm3359, %v534, %v2718
  %v3392 = vsel %vm3359, %v539, %v2720
  %v3393 = vsel %vm3359, %v542, %v2722
  %v3394 = vsel %vm3359, %v547, %v2724
  %v3395 = vsel %vm3359, %v550, %v2726
  %v3396 = vsel %vm3359, %v555, %v2728
  %v3397 = vsel %vm3359, %v558, %v2730
  %v3398 = vsel %vm3359, %v563, %v2732
  %v3399 = vsel %vm3359, %v566, %v2734
  %v3400 = vsel %vm3359, %v571, %v2736
  %v3401 = vsel %vm3359, %v574, %v2738
  %v3402 = vsel %vm3359, %v579, %v2740
  %v3403 = vsel %vm3359, %v582, %v2742
  %v3404 = vsel %vm3359, %v587, %v2744
  %v3405 = vsel %vm3359, %v590, %v2746
  %v3406 = vsel %vm3359, %v595, %v2748
  %v3407 = vsel %vm3359, %v598, %v2750
  %v3408 = vsel %vm3359, %v603, %v2752
  %v3409 = vsel %vm3359, %v606, %v2754
  %v3410 = vsel %vm3359, %v611, %v2756
  %v3411 = vsel %vm3359, %v614, %v2758
  %v3412 = vsel %vm3359, %v619, %v2760
  %v3413 = vsel %vm3359, %v622, %v2762
  %v3414 = vsel %vm3359, %v627, %v2764
  %v3415 = vsel %vm3359, %v630, %v2766
  %v3416 = vsel %vm3359, %v635, %v2768
  %v3417 = vsel %vm3359, %v638, %v2770
  %v3418 = vsel %vm3359, %v643, %v2772
  %v3419 = vsel %vm3359, %v646, %v2774
  %v3420 = vsel %vm3359, %v651, %v2776
  %v3421 = vsel %vm3359, %v654, %v2778
  %v3422 = vsel %vm3359, %v659, %v2780
  %v3423 = vsel %vm3359, %v662, %v2782
  %vm3424 = vcmask 130048
  %v3425 = vsel %vm3424, %v3360, %v2912
  %v3426 = vsel %vm3424, %v3361, %v2914
  %v3427 = vsel %vm3424, %v3362, %v2916
  %v3428 = vsel %vm3424, %v3363, %v2918
  %v3429 = vsel %vm3424, %v3364, %v2920
  %v3430 = vsel %vm3424, %v3365, %v2922
  %v3431 = vsel %vm3424, %v3366, %v2924
  %v3432 = vsel %vm3424, %v3367, %v2926
  %v3433 = vsel %vm3424, %v3368, %v2928
  %v3434 = vsel %vm3424, %v3369, %v2930
  %v3435 = vsel %vm3424, %v3370, %v2932
  %v3436 = vsel %vm3424, %v3371, %v2934
  %v3437 = vsel %vm3424, %v3372, %v2936
  %v3438 = vsel %vm3424, %v3373, %v2938
  %v3439 = vsel %vm3424, %v3374, %v2940
  %v3440 = vsel %vm3424, %v3375, %v2942
  %v3441 = vsel %vm3424, %v3376, %v2944
  %v3442 = vsel %vm3424, %v3377, %v2946
  %v3443 = vsel %vm3424, %v3378, %v2948
  %v3444 = vsel %vm3424, %v3379, %v2950
  %v3445 = vsel %vm3424, %v3380, %v2952
  %v3446 = vsel %vm3424, %v3381, %v2954
  %v3447 = vsel %vm3424, %v3382, %v2956
  %v3448 = vsel %vm3424, %v3383, %v2958
  %v3449 = vsel %vm3424, %v3384, %v2960
  %v3450 = vsel %vm3424, %v3385, %v2962
  %v3451 = vsel %vm3424, %v3386, %v2964
  %v3452 = vsel %vm3424, %v3387, %v2966
  %v3453 = vsel %vm3424, %v3388, %v2968
  %v3454 = vsel %vm3424, %v3389, %v2970
  %v3455 = vsel %vm3424, %v3390, %v2972
  %v3456 = vsel %vm3424, %v3391, %v2974
  %v3457 = vsel %vm3424, %v3392, %v2976
  %v3458 = vsel %vm3424, %v3393, %v2978
  %v3459 = vsel %vm3424, %v3394, %v2980
  %v3460 = vsel %vm3424, %v3395, %v2982
  %v3461 = vsel %vm3424, %v3396, %v2984
  %v3462 = vsel %vm3424, %v3397, %v2986
  %v3463 = vsel %vm3424, %v3398, %v2988
  %v3464 = vsel %vm3424, %v3399, %v2990
  %v3465 = vsel %vm3424, %v3400, %v2992
  %v3466 = vsel %vm3424, %v3401, %v2994
  %v3467 = vsel %vm3424, %v3402, %v2996
  %v3468 = vsel %vm3424, %v3403, %v2998
  %v3469 = vsel %vm3424, %v3404, %v3000
  %v3470 = vsel %vm3424, %v3405, %v3002
  %v3471 = vsel %vm3424, %v3406, %v3004
  %v3472 = vsel %vm3424, %v3407, %v3006
  %v3473 = vsel %vm3424, %v3408, %v3008
  %v3474 = vsel %vm3424, %v3409, %v3010
  %v3475 = vsel %vm3424, %v3410, %v3012
  %v3476 = vsel %vm3424, %v3411, %v3014
  %v3477 = vsel %vm3424, %v3412, %v3016
  %v3478 = vsel %vm3424, %v3413, %v3018
  %v3479 = vsel %vm3424, %v3414, %v3020
  %v3480 = vsel %vm3424, %v3415, %v3022
  %v3481 = vsel %vm3424, %v3416, %v3024
  %v3482 = vsel %vm3424, %v3417, %v3026
  %v3483 = vsel %vm3424, %v3418, %v3028
  %v3484 = vsel %vm3424, %v3419, %v3030
  %v3485 = vsel %vm3424, %v3420, %v3032
  %v3486 = vsel %vm3424, %v3421, %v3034
  %v3487 = vsel %vm3424, %v3422, %v3036
  %v3488 = vsel %vm3424, %v3423, %v3038
  %vm3489 = vcmask 195584
  %v3490 = vsel %vm3489, %v3425, %v3168
  %v3491 = vsel %vm3489, %v3426, %v3170
  %v3492 = vsel %vm3489, %v3427, %v3172
  %v3493 = vsel %vm3489, %v3428, %v3174
  %v3494 = vsel %vm3489, %v3429, %v3176
  %v3495 = vsel %vm3489, %v3430, %v3178
  %v3496 = vsel %vm3489, %v3431, %v3180
  %v3497 = vsel %vm3489, %v3432, %v3182
  %v3498 = vsel %vm3489, %v3433, %v3184
  %v3499 = vsel %vm3489, %v3434, %v3186
  %v3500 = vsel %vm3489, %v3435, %v3188
  %v3501 = vsel %vm3489, %v3436, %v3190
  %v3502 = vsel %vm3489, %v3437, %v3192
  %v3503 = vsel %vm3489, %v3438, %v3194
  %v3504 = vsel %vm3489, %v3439, %v3196
  %v3505 = vsel %vm3489, %v3440, %v3198
  %v3506 = vsel %vm3489, %v3441, %v3200
  %v3507 = vsel %vm3489, %v3442, %v3202
  %v3508 = vsel %vm3489, %v3443, %v3204
  %v3509 = vsel %vm3489, %v3444, %v3206
  %v3510 = vsel %vm3489, %v3445, %v3208
  %v3511 = vsel %vm3489, %v3446, %v3210
  %v3512 = vsel %vm3489, %v3447, %v3212
  %v3513 = vsel %vm3489, %v3448, %v3214
  %v3514 = vsel %vm3489, %v3449, %v3216
  %v3515 = vsel %vm3489, %v3450, %v3218
  %v3516 = vsel %vm3489, %v3451, %v3220
  %v3517 = vsel %vm3489, %v3452, %v3222
  %v3518 = vsel %vm3489, %v3453, %v3224
  %v3519 = vsel %vm3489, %v3454, %v3226
  %v3520 = vsel %vm3489, %v3455, %v3228
  %v3521 = vsel %vm3489, %v3456, %v3230
  %v3522 = vsel %vm3489, %v3457, %v3232
  %v3523 = vsel %vm3489, %v3458, %v3234
  %v3524 = vsel %vm3489, %v3459, %v3236
  %v3525 = vsel %vm3489, %v3460, %v3238
  %v3526 = vsel %vm3489, %v3461, %v3240
  %v3527 = vsel %vm3489, %v3462, %v3242
  %v3528 = vsel %vm3489, %v3463, %v3244
  %v3529 = vsel %vm3489, %v3464, %v3246
  %v3530 = vsel %vm3489, %v3465, %v3248
  %v3531 = vsel %vm3489, %v3466, %v3250
  %v3532 = vsel %vm3489, %v3467, %v3252
  %v3533 = vsel %vm3489, %v3468, %v3254
  %v3534 = vsel %vm3489, %v3469, %v3256
  %v3535 = vsel %vm3489, %v3470, %v3258
  %v3536 = vsel %vm3489, %v3471, %v3260
  %v3537 = vsel %vm3489, %v3472, %v3262
  %v3538 = vsel %vm3489, %v3473, %v3264
  %v3539 = vsel %vm3489, %v3474, %v3266
  %v3540 = vsel %vm3489, %v3475, %v3268
  %v3541 = vsel %vm3489, %v3476, %v3270
  %v3542 = vsel %vm3489, %v3477, %v3272
  %v3543 = vsel %vm3489, %v3478, %v3274
  %v3544 = vsel %vm3489, %v3479, %v3276
  %v3545 = vsel %vm3489, %v3480, %v3278
  %v3546 = vsel %vm3489, %v3481, %v3280
  %v3547 = vsel %vm3489, %v3482, %v3282
  %v3548 = vsel %vm3489, %v3483, %v3284
  %v3549 = vsel %vm3489, %v3484, %v3286
  %v3550 = vsel %vm3489, %v3485, %v3288
  %v3551 = vsel %vm3489, %v3486, %v3290
  %v3552 = vsel %vm3489, %v3487, %v3292
  %v3553 = vsel %vm3489, %v3488, %v3294
  %v3554 = vpack.c.bf16 %v3491, %v3490
  %v3555 = vpack.c.bf16 %v3493, %v3492
  %v3556 = vpack.c.bf16 %v3495, %v3494
  %v3557 = vpack.c.bf16 %v3497, %v3496
  %v3558 = vpack.c.bf16 %v3499, %v3498
  %v3559 = vpack.c.bf16 %v3501, %v3500
  %v3560 = vpack.c.bf16 %v3503, %v3502
  %v3561 = vpack.c.bf16 %v3505, %v3504
  %v3562 = vpack.c.bf16 %v3507, %v3506
  %v3563 = vpack.c.bf16 %v3509, %v3508
  %v3564 = vpack.c.bf16 %v3511, %v3510
  %v3565 = vpack.c.bf16 %v3513, %v3512
  %v3566 = vpack.c.bf16 %v3515, %v3514
  %v3567 = vpack.c.bf16 %v3517, %v3516
  %v3568 = vpack.c.bf16 %v3519, %v3518
  %v3569 = vpack.c.bf16 %v3521, %v3520
  %v3570 = vpack.c.bf16 %v3523, %v3522
  %v3571 = vpack.c.bf16 %v3525, %v3524
  %v3572 = vpack.c.bf16 %v3527, %v3526
  %v3573 = vpack.c.bf16 %v3529, %v3528
  %v3574 = vpack.c.bf16 %v3531, %v3530
  %v3575 = vpack.c.bf16 %v3533, %v3532
  %v3576 = vpack.c.bf16 %v3535, %v3534
  %v3577 = vpack.c.bf16 %v3537, %v3536
  %v3578 = vpack.c.bf16 %v3539, %v3538
  %v3579 = vpack.c.bf16 %v3541, %v3540
  %v3580 = vpack.c.bf16 %v3543, %v3542
  %v3581 = vpack.c.bf16 %v3545, %v3544
  %v3582 = vpack.c.bf16 %v3547, %v3546
  %v3583 = vpack.c.bf16 %v3549, %v3548
  %v3584 = vpack.c.bf16 %v3551, %v3550
  %v3585 = vpack.c.bf16 %v3553, %v3552
  %v3618 = vunpack.c.l.b16 %v3554
  %v3619 = vunpack.c.h.b16 %v3554
  %v3620 = vunpack.c.l.b16 %v3555
  %v3621 = vunpack.c.h.b16 %v3555
  %v3622 = vunpack.c.l.b16 %v3556
  %v3623 = vunpack.c.h.b16 %v3556
  %v3624 = vunpack.c.l.b16 %v3557
  %v3625 = vunpack.c.h.b16 %v3557
  %v3626 = vunpack.c.l.b16 %v3558
  %v3627 = vunpack.c.h.b16 %v3558
  %v3628 = vunpack.c.l.b16 %v3559
  %v3629 = vunpack.c.h.b16 %v3559
  %v3630 = vunpack.c.l.b16 %v3560
  %v3631 = vunpack.c.h.b16 %v3560
  %v3632 = vunpack.c.l.b16 %v3561
  %v3633 = vunpack.c.h.b16 %v3561
  %v3634 = vunpack.c.l.b16 %v3562
  %v3635 = vunpack.c.h.b16 %v3562
  %v3636 = vunpack.c.l.b16 %v3563
  %v3637 = vunpack.c.h.b16 %v3563
  %v3638 = vunpack.c.l.b16 %v3564
  %v3639 = vunpack.c.h.b16 %v3564
  %v3640 = vunpack.c.l.b16 %v3565
  %v3641 = vunpack.c.h.b16 %v3565
  %v3642 = vunpack.c.l.b16 %v3566
  %v3643 = vunpack.c.h.b16 %v3566
  %v3644 = vunpack.c.l.b16 %v3567
  %v3645 = vunpack.c.h.b16 %v3567
  %v3646 = vunpack.c.l.b16 %v3568
  %v3647 = vunpack.c.h.b16 %v3568
  %v3648 = vunpack.c.l.b16 %v3569
  %v3649 = vunpack.c.h.b16 %v3569
  %v3650 = vunpack.c.l.b16 %v3570
  %v3651 = vunpack.c.h.b16 %v3570
  %v3652 = vunpack.c.l.b16 %v3571
  %v3653 = vunpack.c.h.b16 %v3571
  %v3654 = vunpack.c.l.b16 %v3572
  %v3655 = vunpack.c.h.b16 %v3572
  %v3656 = vunpack.c.l.b16 %v3573
  %v3657 = vunpack.c.h.b16 %v3573
  %v3658 = vunpack.c.l.b16 %v3574
  %v3659 = vunpack.c.h.b16 %v3574
  %v3660 = vunpack.c.l.b16 %v3575
  %v3661 = vunpack.c.h.b16 %v3575
  %v3662 = vunpack.c.l.b16 %v3576
  %v3663 = vunpack.c.h.b16 %v3576
  %v3664 = vunpack.c.l.b16 %v3577
  %v3665 = vunpack.c.h.b16 %v3577
  %v3666 = vunpack.c.l.b16 %v3578
  %v3667 = vunpack.c.h.b16 %v3578
  %v3668 = vunpack.c.l.b16 %v3579
  %v3669 = vunpack.c.h.b16 %v3579
  %v3670 = vunpack.c.l.b16 %v3580
  %v3671 = vunpack.c.h.b16 %v3580
  %v3672 = vunpack.c.l.b16 %v3581
  %v3673 = vunpack.c.h.b16 %v3581
  %v3674 = vunpack.c.l.b16 %v3582
  %v3675 = vunpack.c.h.b16 %v3582
  %v3676 = vunpack.c.l.b16 %v3583
  %v3677 = vunpack.c.h.b16 %v3583
  %v3678 = vunpack.c.l.b16 %v3584
  %v3679 = vunpack.c.h.b16 %v3584
  %v3680 = vunpack.c.l.b16 %v3585
  %v3681 = vunpack.c.h.b16 %v3585
  %v3682 = vpack.c.b16 %v3618, %v3618
  %v3683 = vpack.c.b16 %v3619, %v3619
  %v3684 = vpack.c.b16 %v3620, %v3620
  %v3685 = vpack.c.b16 %v3621, %v3621
  %v3686 = vpack.c.b16 %v3622, %v3622
  %v3687 = vpack.c.b16 %v3623, %v3623
  %v3688 = vpack.c.b16 %v3624, %v3624
  %v3689 = vpack.c.b16 %v3625, %v3625
  %v3690 = vpack.c.b16 %v3626, %v3626
  %v3691 = vpack.c.b16 %v3627, %v3627
  %v3692 = vpack.c.b16 %v3628, %v3628
  %v3693 = vpack.c.b16 %v3629, %v3629
  %v3694 = vpack.c.b16 %v3630, %v3630
  %v3695 = vpack.c.b16 %v3631, %v3631
  %v3696 = vpack.c.b16 %v3632, %v3632
  %v3697 = vpack.c.b16 %v3633, %v3633
  %v3698 = vpack.c.b16 %v3634, %v3634
  %v3699 = vpack.c.b16 %v3635, %v3635
  %v3700 = vpack.c.b16 %v3636, %v3636
  %v3701 = vpack.c.b16 %v3637, %v3637
  %v3702 = vpack.c.b16 %v3638, %v3638
  %v3703 = vpack.c.b16 %v3639, %v3639
  %v3704 = vpack.c.b16 %v3640, %v3640
  %v3705 = vpack.c.b16 %v3641, %v3641
  %v3706 = vpack.c.b16 %v3642, %v3642
  %v3707 = vpack.c.b16 %v3643, %v3643
  %v3708 = vpack.c.b16 %v3644, %v3644
  %v3709 = vpack.c.b16 %v3645, %v3645
  %v3710 = vpack.c.b16 %v3646, %v3646
  %v3711 = vpack.c.b16 %v3647, %v3647
  %v3712 = vpack.c.b16 %v3648, %v3648
  %v3713 = vpack.c.b16 %v3649, %v3649
  %v3714 = vpack.c.b16 %v3650, %v3650
  %v3715 = vpack.c.b16 %v3651, %v3651
  %v3716 = vpack.c.b16 %v3652, %v3652
  %v3717 = vpack.c.b16 %v3653, %v3653
  %v3718 = vpack.c.b16 %v3654, %v3654
  %v3719 = vpack.c.b16 %v3655, %v3655
  %v3720 = vpack.c.b16 %v3656, %v3656
  %v3721 = vpack.c.b16 %v3657, %v3657
  %v3722 = vpack.c.b16 %v3658, %v3658
  %v3723 = vpack.c.b16 %v3659, %v3659
  %v3724 = vpack.c.b16 %v3660, %v3660
  %v3725 = vpack.c.b16 %v3661, %v3661
  %v3726 = vpack.c.b16 %v3662, %v3662
  %v3727 = vpack.c.b16 %v3663, %v3663
  %v3728 = vpack.c.b16 %v3664, %v3664
  %v3729 = vpack.c.b16 %v3665, %v3665
  %v3730 = vpack.c.b16 %v3666, %v3666
  %v3731 = vpack.c.b16 %v3667, %v3667
  %v3732 = vpack.c.b16 %v3668, %v3668
  %v3733 = vpack.c.b16 %v3669, %v3669
  %v3734 = vpack.c.b16 %v3670, %v3670
  %v3735 = vpack.c.b16 %v3671, %v3671
  %v3736 = vpack.c.b16 %v3672, %v3672
  %v3737 = vpack.c.b16 %v3673, %v3673
  %v3738 = vpack.c.b16 %v3674, %v3674
  %v3739 = vpack.c.b16 %v3675, %v3675
  %v3740 = vpack.c.b16 %v3676, %v3676
  %v3741 = vpack.c.b16 %v3677, %v3677
  %v3742 = vpack.c.b16 %v3678, %v3678
  %v3743 = vpack.c.b16 %v3679, %v3679
  %v3744 = vpack.c.b16 %v3680, %v3680
  %v3745 = vpack.c.b16 %v3681, %v3681
  %vm3810 = vcmask 257024
  %3811 = vst.msk [vmem:[%s5] sm:$0xf] %vm3810, %v3682
  %3812 = vst.msk [vmem:[%s5 + $0x4] sm:$0xf] %vm3810, %v3683
  %3813 = vst.msk [vmem:[%s5 + $0x8] sm:$0xf] %vm3810, %v3684
  %3814 = vst.msk [vmem:[%s5 + $0xc] sm:$0xf] %vm3810, %v3685
  %3815 = vst.msk [vmem:[%s5 + $0x10] sm:$0xf] %vm3810, %v3686
  %3816 = vst.msk [vmem:[%s5 + $0x14] sm:$0xf] %vm3810, %v3687
  %3817 = vst.msk [vmem:[%s5 + $0x18] sm:$0xf] %vm3810, %v3688
  %3818 = vst.msk [vmem:[%s5 + $0x1c] sm:$0xf] %vm3810, %v3689
  %3819 = vst.msk [vmem:[%s5 + $0x20] sm:$0xf] %vm3810, %v3690
  %3820 = vst.msk [vmem:[%s5 + $0x24] sm:$0xf] %vm3810, %v3691
  %3821 = vst.msk [vmem:[%s5 + $0x28] sm:$0xf] %vm3810, %v3692
  %3822 = vst.msk [vmem:[%s5 + $0x2c] sm:$0xf] %vm3810, %v3693
  %3823 = vst.msk [vmem:[%s5 + $0x30] sm:$0xf] %vm3810, %v3694
  %3824 = vst.msk [vmem:[%s5 + $0x34] sm:$0xf] %vm3810, %v3695
  %3825 = vst.msk [vmem:[%s5 + $0x38] sm:$0xf] %vm3810, %v3696
  %3826 = vst.msk [vmem:[%s5 + $0x3c] sm:$0xf] %vm3810, %v3697
  %3827 = vst.msk [vmem:[%s5 + $0x40] sm:$0xf] %vm3810, %v3698
  %3828 = vst.msk [vmem:[%s5 + $0x44] sm:$0xf] %vm3810, %v3699
  %3829 = vst.msk [vmem:[%s5 + $0x48] sm:$0xf] %vm3810, %v3700
  %3830 = vst.msk [vmem:[%s5 + $0x4c] sm:$0xf] %vm3810, %v3701
  %3831 = vst.msk [vmem:[%s5 + $0x50] sm:$0xf] %vm3810, %v3702
  %3832 = vst.msk [vmem:[%s5 + $0x54] sm:$0xf] %vm3810, %v3703
  %3833 = vst.msk [vmem:[%s5 + $0x58] sm:$0xf] %vm3810, %v3704
  %3834 = vst.msk [vmem:[%s5 + $0x5c] sm:$0xf] %vm3810, %v3705
  %3835 = vst.msk [vmem:[%s5 + $0x60] sm:$0xf] %vm3810, %v3706
  %3836 = vst.msk [vmem:[%s5 + $0x64] sm:$0xf] %vm3810, %v3707
  %3837 = vst.msk [vmem:[%s5 + $0x68] sm:$0xf] %vm3810, %v3708
  %3838 = vst.msk [vmem:[%s5 + $0x6c] sm:$0xf] %vm3810, %v3709
  %3839 = vst.msk [vmem:[%s5 + $0x70] sm:$0xf] %vm3810, %v3710
  %3840 = vst.msk [vmem:[%s5 + $0x74] sm:$0xf] %vm3810, %v3711
  %3841 = vst.msk [vmem:[%s5 + $0x78] sm:$0xf] %vm3810, %v3712
  %3842 = vst.msk [vmem:[%s5 + $0x7c] sm:$0xf] %vm3810, %v3713
  %3843 = vst.msk [vmem:[%s5 + $0x80] sm:$0xf] %vm3810, %v3714
  %3844 = vst.msk [vmem:[%s5 + $0x84] sm:$0xf] %vm3810, %v3715
  %3845 = vst.msk [vmem:[%s5 + $0x88] sm:$0xf] %vm3810, %v3716
  %3846 = vst.msk [vmem:[%s5 + $0x8c] sm:$0xf] %vm3810, %v3717
  %3847 = vst.msk [vmem:[%s5 + $0x90] sm:$0xf] %vm3810, %v3718
  %3848 = vst.msk [vmem:[%s5 + $0x94] sm:$0xf] %vm3810, %v3719
  %3849 = vst.msk [vmem:[%s5 + $0x98] sm:$0xf] %vm3810, %v3720
  %3850 = vst.msk [vmem:[%s5 + $0x9c] sm:$0xf] %vm3810, %v3721
  %3851 = vst.msk [vmem:[%s5 + $0xa0] sm:$0xf] %vm3810, %v3722
  %3852 = vst.msk [vmem:[%s5 + $0xa4] sm:$0xf] %vm3810, %v3723
  %3853 = vst.msk [vmem:[%s5 + $0xa8] sm:$0xf] %vm3810, %v3724
  %3854 = vst.msk [vmem:[%s5 + $0xac] sm:$0xf] %vm3810, %v3725
  %3855 = vst.msk [vmem:[%s5 + $0xb0] sm:$0xf] %vm3810, %v3726
  %3856 = vst.msk [vmem:[%s5 + $0xb4] sm:$0xf] %vm3810, %v3727
  %3857 = vst.msk [vmem:[%s5 + $0xb8] sm:$0xf] %vm3810, %v3728
  %3858 = vst.msk [vmem:[%s5 + $0xbc] sm:$0xf] %vm3810, %v3729
  %3859 = vst.msk [vmem:[%s5 + $0xc0] sm:$0xf] %vm3810, %v3730
  %3860 = vst.msk [vmem:[%s5 + $0xc4] sm:$0xf] %vm3810, %v3731
  %3861 = vst.msk [vmem:[%s5 + $0xc8] sm:$0xf] %vm3810, %v3732
  %3862 = vst.msk [vmem:[%s5 + $0xcc] sm:$0xf] %vm3810, %v3733
  %3863 = vst.msk [vmem:[%s5 + $0xd0] sm:$0xf] %vm3810, %v3734
  %3864 = vst.msk [vmem:[%s5 + $0xd4] sm:$0xf] %vm3810, %v3735
  %3865 = vst.msk [vmem:[%s5 + $0xd8] sm:$0xf] %vm3810, %v3736
  %3866 = vst.msk [vmem:[%s5 + $0xdc] sm:$0xf] %vm3810, %v3737
  %3867 = vst.msk [vmem:[%s5 + $0xe0] sm:$0xf] %vm3810, %v3738
  %3868 = vst.msk [vmem:[%s5 + $0xe4] sm:$0xf] %vm3810, %v3739
  %3869 = vst.msk [vmem:[%s5 + $0xe8] sm:$0xf] %vm3810, %v3740
  %3870 = vst.msk [vmem:[%s5 + $0xec] sm:$0xf] %vm3810, %v3741
  %3871 = vst.msk [vmem:[%s5 + $0xf0] sm:$0xf] %vm3810, %v3742
  %3872 = vst.msk [vmem:[%s5 + $0xf4] sm:$0xf] %vm3810, %v3743
  %3873 = vst.msk [vmem:[%s5 + $0xf8] sm:$0xf] %vm3810, %v3744
  %3874 = vst.msk [vmem:[%s5 + $0xfc] sm:$0xf] %vm3810, %v3745
  %vm3875 = vcmask 261120
  %v3876 = vsel %vm3875, %v3490, 0.0
  %v3877 = vsel %vm3875, %v3491, 0.0
  %v3878 = vadd.f32 %v3876, %v3877
  %v3879 = vsel %vm3875, %v3492, 0.0
  %v3880 = vadd.f32 %v3878, %v3879
  %v3881 = vsel %vm3875, %v3493, 0.0
  %v3882 = vadd.f32 %v3880, %v3881
  %v3883 = vsel %vm3875, %v3494, 0.0
  %v3884 = vadd.f32 %v3882, %v3883
  %v3885 = vsel %vm3875, %v3495, 0.0
  %v3886 = vadd.f32 %v3884, %v3885
  %v3887 = vsel %vm3875, %v3496, 0.0
  %v3888 = vadd.f32 %v3886, %v3887
  %v3889 = vsel %vm3875, %v3497, 0.0
  %v3890 = vadd.f32 %v3888, %v3889
  %v3891 = vsel %vm3875, %v3498, 0.0
  %v3892 = vadd.f32 %v3890, %v3891
  %v3893 = vsel %vm3875, %v3499, 0.0
  %v3894 = vadd.f32 %v3892, %v3893
  %v3895 = vsel %vm3875, %v3500, 0.0
  %v3896 = vadd.f32 %v3894, %v3895
  %v3897 = vsel %vm3875, %v3501, 0.0
  %v3898 = vadd.f32 %v3896, %v3897
  %v3899 = vsel %vm3875, %v3502, 0.0
  %v3900 = vadd.f32 %v3898, %v3899
  %v3901 = vsel %vm3875, %v3503, 0.0
  %v3902 = vadd.f32 %v3900, %v3901
  %v3903 = vsel %vm3875, %v3504, 0.0
  %v3904 = vadd.f32 %v3902, %v3903
  %v3905 = vsel %vm3875, %v3505, 0.0
  %v3906 = vadd.f32 %v3904, %v3905
  %v3907 = vsel %vm3875, %v3506, 0.0
  %v3908 = vadd.f32 %v3906, %v3907
  %v3909 = vsel %vm3875, %v3507, 0.0
  %v3910 = vadd.f32 %v3908, %v3909
  %v3911 = vsel %vm3875, %v3508, 0.0
  %v3912 = vadd.f32 %v3910, %v3911
  %v3913 = vsel %vm3875, %v3509, 0.0
  %v3914 = vadd.f32 %v3912, %v3913
  %v3915 = vsel %vm3875, %v3510, 0.0
  %v3916 = vadd.f32 %v3914, %v3915
  %v3917 = vsel %vm3875, %v3511, 0.0
  %v3918 = vadd.f32 %v3916, %v3917
  %v3919 = vsel %vm3875, %v3512, 0.0
  %v3920 = vadd.f32 %v3918, %v3919
  %v3921 = vsel %vm3875, %v3513, 0.0
  %v3922 = vadd.f32 %v3920, %v3921
  %v3923 = vsel %vm3875, %v3514, 0.0
  %v3924 = vadd.f32 %v3922, %v3923
  %v3925 = vsel %vm3875, %v3515, 0.0
  %v3926 = vadd.f32 %v3924, %v3925
  %v3927 = vsel %vm3875, %v3516, 0.0
  %v3928 = vadd.f32 %v3926, %v3927
  %v3929 = vsel %vm3875, %v3517, 0.0
  %v3930 = vadd.f32 %v3928, %v3929
  %v3931 = vsel %vm3875, %v3518, 0.0
  %v3932 = vadd.f32 %v3930, %v3931
  %v3933 = vsel %vm3875, %v3519, 0.0
  %v3934 = vadd.f32 %v3932, %v3933
  %v3935 = vsel %vm3875, %v3520, 0.0
  %v3936 = vadd.f32 %v3934, %v3935
  %v3937 = vsel %vm3875, %v3521, 0.0
  %v3938 = vadd.f32 %v3936, %v3937
  %v3939 = vsel %vm3875, %v3522, 0.0
  %v3940 = vadd.f32 %v3938, %v3939
  %v3941 = vsel %vm3875, %v3523, 0.0
  %v3942 = vadd.f32 %v3940, %v3941
  %v3943 = vsel %vm3875, %v3524, 0.0
  %v3944 = vadd.f32 %v3942, %v3943
  %v3945 = vsel %vm3875, %v3525, 0.0
  %v3946 = vadd.f32 %v3944, %v3945
  %v3947 = vsel %vm3875, %v3526, 0.0
  %v3948 = vadd.f32 %v3946, %v3947
  %v3949 = vsel %vm3875, %v3527, 0.0
  %v3950 = vadd.f32 %v3948, %v3949
  %v3951 = vsel %vm3875, %v3528, 0.0
  %v3952 = vadd.f32 %v3950, %v3951
  %v3953 = vsel %vm3875, %v3529, 0.0
  %v3954 = vadd.f32 %v3952, %v3953
  %v3955 = vsel %vm3875, %v3530, 0.0
  %v3956 = vadd.f32 %v3954, %v3955
  %v3957 = vsel %vm3875, %v3531, 0.0
  %v3958 = vadd.f32 %v3956, %v3957
  %v3959 = vsel %vm3875, %v3532, 0.0
  %v3960 = vadd.f32 %v3958, %v3959
  %v3961 = vsel %vm3875, %v3533, 0.0
  %v3962 = vadd.f32 %v3960, %v3961
  %v3963 = vsel %vm3875, %v3534, 0.0
  %v3964 = vadd.f32 %v3962, %v3963
  %v3965 = vsel %vm3875, %v3535, 0.0
  %v3966 = vadd.f32 %v3964, %v3965
  %v3967 = vsel %vm3875, %v3536, 0.0
  %v3968 = vadd.f32 %v3966, %v3967
  %v3969 = vsel %vm3875, %v3537, 0.0
  %v3970 = vadd.f32 %v3968, %v3969
  %v3971 = vsel %vm3875, %v3538, 0.0
  %v3972 = vadd.f32 %v3970, %v3971
  %v3973 = vsel %vm3875, %v3539, 0.0
  %v3974 = vadd.f32 %v3972, %v3973
  %v3975 = vsel %vm3875, %v3540, 0.0
  %v3976 = vadd.f32 %v3974, %v3975
  %v3977 = vsel %vm3875, %v3541, 0.0
  %v3978 = vadd.f32 %v3976, %v3977
  %v3979 = vsel %vm3875, %v3542, 0.0
  %v3980 = vadd.f32 %v3978, %v3979
  %v3981 = vsel %vm3875, %v3543, 0.0
  %v3982 = vadd.f32 %v3980, %v3981
  %v3983 = vsel %vm3875, %v3544, 0.0
  %v3984 = vadd.f32 %v3982, %v3983
  %v3985 = vsel %vm3875, %v3545, 0.0
  %v3986 = vadd.f32 %v3984, %v3985
  %v3987 = vsel %vm3875, %v3546, 0.0
  %v3988 = vadd.f32 %v3986, %v3987
  %v3989 = vsel %vm3875, %v3547, 0.0
  %v3990 = vadd.f32 %v3988, %v3989
  %v3991 = vsel %vm3875, %v3548, 0.0
  %v3992 = vadd.f32 %v3990, %v3991
  %v3993 = vsel %vm3875, %v3549, 0.0
  %v3994 = vadd.f32 %v3992, %v3993
  %v3995 = vsel %vm3875, %v3550, 0.0
  %v3996 = vadd.f32 %v3994, %v3995
  %v3997 = vsel %vm3875, %v3551, 0.0
  %v3998 = vadd.f32 %v3996, %v3997
  %v3999 = vsel %vm3875, %v3552, 0.0
  %v4000 = vadd.f32 %v3998, %v3999
  %v4001 = vsel %vm3875, %v3553, 0.0
  %v4002 = vadd.f32 %v4000, %v4001
  %v4003 = vrot.slane %v4002, 4
  %v4004 = vadd.f32 %v4002, %v4003
  %v4005 = vrot.slane %v4004, 2
  %v4006 = vadd.f32 %v4004, %v4005
  %v4007 = vrot.slane %v4006, 1
  %v4008 = vadd.f32 %v4006, %v4007
  %v4009 = vmul.f32 %v3490, %v3490
  %v4010 = vmul.f32 %v3491, %v3491
  %v4011 = vmul.f32 %v3492, %v3492
  %v4012 = vmul.f32 %v3493, %v3493
  %v4013 = vmul.f32 %v3494, %v3494
  %v4014 = vmul.f32 %v3495, %v3495
  %v4015 = vmul.f32 %v3496, %v3496
  %v4016 = vmul.f32 %v3497, %v3497
  %v4017 = vmul.f32 %v3498, %v3498
  %v4018 = vmul.f32 %v3499, %v3499
  %v4019 = vmul.f32 %v3500, %v3500
  %v4020 = vmul.f32 %v3501, %v3501
  %v4021 = vmul.f32 %v3502, %v3502
  %v4022 = vmul.f32 %v3503, %v3503
  %v4023 = vmul.f32 %v3504, %v3504
  %v4024 = vmul.f32 %v3505, %v3505
  %v4025 = vmul.f32 %v3506, %v3506
  %v4026 = vmul.f32 %v3507, %v3507
  %v4027 = vmul.f32 %v3508, %v3508
  %v4028 = vmul.f32 %v3509, %v3509
  %v4029 = vmul.f32 %v3510, %v3510
  %v4030 = vmul.f32 %v3511, %v3511
  %v4031 = vmul.f32 %v3512, %v3512
  %v4032 = vmul.f32 %v3513, %v3513
  %v4033 = vmul.f32 %v3514, %v3514
  %v4034 = vmul.f32 %v3515, %v3515
  %v4035 = vmul.f32 %v3516, %v3516
  %v4036 = vmul.f32 %v3517, %v3517
  %v4037 = vmul.f32 %v3518, %v3518
  %v4038 = vmul.f32 %v3519, %v3519
  %v4039 = vmul.f32 %v3520, %v3520
  %v4040 = vmul.f32 %v3521, %v3521
  %v4041 = vmul.f32 %v3522, %v3522
  %v4042 = vmul.f32 %v3523, %v3523
  %v4043 = vmul.f32 %v3524, %v3524
  %v4044 = vmul.f32 %v3525, %v3525
  %v4045 = vmul.f32 %v3526, %v3526
  %v4046 = vmul.f32 %v3527, %v3527
  %v4047 = vmul.f32 %v3528, %v3528
  %v4048 = vmul.f32 %v3529, %v3529
  %v4049 = vmul.f32 %v3530, %v3530
  %v4050 = vmul.f32 %v3531, %v3531
  %v4051 = vmul.f32 %v3532, %v3532
  %v4052 = vmul.f32 %v3533, %v3533
  %v4053 = vmul.f32 %v3534, %v3534
  %v4054 = vmul.f32 %v3535, %v3535
  %v4055 = vmul.f32 %v3536, %v3536
  %v4056 = vmul.f32 %v3537, %v3537
  %v4057 = vmul.f32 %v3538, %v3538
  %v4058 = vmul.f32 %v3539, %v3539
  %v4059 = vmul.f32 %v3540, %v3540
  %v4060 = vmul.f32 %v3541, %v3541
  %v4061 = vmul.f32 %v3542, %v3542
  %v4062 = vmul.f32 %v3543, %v3543
  %v4063 = vmul.f32 %v3544, %v3544
  %v4064 = vmul.f32 %v3545, %v3545
  %v4065 = vmul.f32 %v3546, %v3546
  %v4066 = vmul.f32 %v3547, %v3547
  %v4067 = vmul.f32 %v3548, %v3548
  %v4068 = vmul.f32 %v3549, %v3549
  %v4069 = vmul.f32 %v3550, %v3550
  %v4070 = vmul.f32 %v3551, %v3551
  %v4071 = vmul.f32 %v3552, %v3552
  %v4072 = vmul.f32 %v3553, %v3553
  %v4073 = vsel %vm3875, %v4009, 0.0
  %v4074 = vsel %vm3875, %v4010, 0.0
  %v4075 = vadd.f32 %v4073, %v4074
  %v4076 = vsel %vm3875, %v4011, 0.0
  %v4077 = vadd.f32 %v4075, %v4076
  %v4078 = vsel %vm3875, %v4012, 0.0
  %v4079 = vadd.f32 %v4077, %v4078
  %v4080 = vsel %vm3875, %v4013, 0.0
  %v4081 = vadd.f32 %v4079, %v4080
  %v4082 = vsel %vm3875, %v4014, 0.0
  %v4083 = vadd.f32 %v4081, %v4082
  %v4084 = vsel %vm3875, %v4015, 0.0
  %v4085 = vadd.f32 %v4083, %v4084
  %v4086 = vsel %vm3875, %v4016, 0.0
  %v4087 = vadd.f32 %v4085, %v4086
  %v4088 = vsel %vm3875, %v4017, 0.0
  %v4089 = vadd.f32 %v4087, %v4088
  %v4090 = vsel %vm3875, %v4018, 0.0
  %v4091 = vadd.f32 %v4089, %v4090
  %v4092 = vsel %vm3875, %v4019, 0.0
  %v4093 = vadd.f32 %v4091, %v4092
  %v4094 = vsel %vm3875, %v4020, 0.0
  %v4095 = vadd.f32 %v4093, %v4094
  %v4096 = vsel %vm3875, %v4021, 0.0
  %v4097 = vadd.f32 %v4095, %v4096
  %v4098 = vsel %vm3875, %v4022, 0.0
  %v4099 = vadd.f32 %v4097, %v4098
  %v4100 = vsel %vm3875, %v4023, 0.0
  %v4101 = vadd.f32 %v4099, %v4100
  %v4102 = vsel %vm3875, %v4024, 0.0
  %v4103 = vadd.f32 %v4101, %v4102
  %v4104 = vsel %vm3875, %v4025, 0.0
  %v4105 = vadd.f32 %v4103, %v4104
  %v4106 = vsel %vm3875, %v4026, 0.0
  %v4107 = vadd.f32 %v4105, %v4106
  %v4108 = vsel %vm3875, %v4027, 0.0
  %v4109 = vadd.f32 %v4107, %v4108
  %v4110 = vsel %vm3875, %v4028, 0.0
  %v4111 = vadd.f32 %v4109, %v4110
  %v4112 = vsel %vm3875, %v4029, 0.0
  %v4113 = vadd.f32 %v4111, %v4112
  %v4114 = vsel %vm3875, %v4030, 0.0
  %v4115 = vadd.f32 %v4113, %v4114
  %v4116 = vsel %vm3875, %v4031, 0.0
  %v4117 = vadd.f32 %v4115, %v4116
  %v4118 = vsel %vm3875, %v4032, 0.0
  %v4119 = vadd.f32 %v4117, %v4118
  %v4120 = vsel %vm3875, %v4033, 0.0
  %v4121 = vadd.f32 %v4119, %v4120
  %v4122 = vsel %vm3875, %v4034, 0.0
  %v4123 = vadd.f32 %v4121, %v4122
  %v4124 = vsel %vm3875, %v4035, 0.0
  %v4125 = vadd.f32 %v4123, %v4124
  %v4126 = vsel %vm3875, %v4036, 0.0
  %v4127 = vadd.f32 %v4125, %v4126
  %v4128 = vsel %vm3875, %v4037, 0.0
  %v4129 = vadd.f32 %v4127, %v4128
  %v4130 = vsel %vm3875, %v4038, 0.0
  %v4131 = vadd.f32 %v4129, %v4130
  %v4132 = vsel %vm3875, %v4039, 0.0
  %v4133 = vadd.f32 %v4131, %v4132
  %v4134 = vsel %vm3875, %v4040, 0.0
  %v4135 = vadd.f32 %v4133, %v4134
  %v4136 = vsel %vm3875, %v4041, 0.0
  %v4137 = vadd.f32 %v4135, %v4136
  %v4138 = vsel %vm3875, %v4042, 0.0
  %v4139 = vadd.f32 %v4137, %v4138
  %v4140 = vsel %vm3875, %v4043, 0.0
  %v4141 = vadd.f32 %v4139, %v4140
  %v4142 = vsel %vm3875, %v4044, 0.0
  %v4143 = vadd.f32 %v4141, %v4142
  %v4144 = vsel %vm3875, %v4045, 0.0
  %v4145 = vadd.f32 %v4143, %v4144
  %v4146 = vsel %vm3875, %v4046, 0.0
  %v4147 = vadd.f32 %v4145, %v4146
  %v4148 = vsel %vm3875, %v4047, 0.0
  %v4149 = vadd.f32 %v4147, %v4148
  %v4150 = vsel %vm3875, %v4048, 0.0
  %v4151 = vadd.f32 %v4149, %v4150
  %v4152 = vsel %vm3875, %v4049, 0.0
  %v4153 = vadd.f32 %v4151, %v4152
  %v4154 = vsel %vm3875, %v4050, 0.0
  %v4155 = vadd.f32 %v4153, %v4154
  %v4156 = vsel %vm3875, %v4051, 0.0
  %v4157 = vadd.f32 %v4155, %v4156
  %v4158 = vsel %vm3875, %v4052, 0.0
  %v4159 = vadd.f32 %v4157, %v4158
  %v4160 = vsel %vm3875, %v4053, 0.0
  %v4161 = vadd.f32 %v4159, %v4160
  %v4162 = vsel %vm3875, %v4054, 0.0
  %v4163 = vadd.f32 %v4161, %v4162
  %v4164 = vsel %vm3875, %v4055, 0.0
  %v4165 = vadd.f32 %v4163, %v4164
  %v4166 = vsel %vm3875, %v4056, 0.0
  %v4167 = vadd.f32 %v4165, %v4166
  %v4168 = vsel %vm3875, %v4057, 0.0
  %v4169 = vadd.f32 %v4167, %v4168
  %v4170 = vsel %vm3875, %v4058, 0.0
  %v4171 = vadd.f32 %v4169, %v4170
  %v4172 = vsel %vm3875, %v4059, 0.0
  %v4173 = vadd.f32 %v4171, %v4172
  %v4174 = vsel %vm3875, %v4060, 0.0
  %v4175 = vadd.f32 %v4173, %v4174
  %v4176 = vsel %vm3875, %v4061, 0.0
  %v4177 = vadd.f32 %v4175, %v4176
  %v4178 = vsel %vm3875, %v4062, 0.0
  %v4179 = vadd.f32 %v4177, %v4178
  %v4180 = vsel %vm3875, %v4063, 0.0
  %v4181 = vadd.f32 %v4179, %v4180
  %v4182 = vsel %vm3875, %v4064, 0.0
  %v4183 = vadd.f32 %v4181, %v4182
  %v4184 = vsel %vm3875, %v4065, 0.0
  %v4185 = vadd.f32 %v4183, %v4184
  %v4186 = vsel %vm3875, %v4066, 0.0
  %v4187 = vadd.f32 %v4185, %v4186
  %v4188 = vsel %vm3875, %v4067, 0.0
  %v4189 = vadd.f32 %v4187, %v4188
  %v4190 = vsel %vm3875, %v4068, 0.0
  %v4191 = vadd.f32 %v4189, %v4190
  %v4192 = vsel %vm3875, %v4069, 0.0
  %v4193 = vadd.f32 %v4191, %v4192
  %v4194 = vsel %vm3875, %v4070, 0.0
  %v4195 = vadd.f32 %v4193, %v4194
  %v4196 = vsel %vm3875, %v4071, 0.0
  %v4197 = vadd.f32 %v4195, %v4196
  %v4198 = vsel %vm3875, %v4072, 0.0
  %v4199 = vadd.f32 %v4197, %v4198
  %v4200 = vrot.slane %v4199, 4
  %v4201 = vadd.f32 %v4199, %v4200
  %v4202 = vrot.slane %v4201, 2
  %v4203 = vadd.f32 %v4201, %v4202
  %v4204 = vrot.slane %v4203, 1
  %v4205 = vadd.f32 %v4203, %v4204
  %vm4206 = vcmask 1040384
  %v4207 = vsel %vm4206, %v4008, %v4205
  %vm4208 = vcmask 254976
  %4209 = vst.msk [vmem:[%s6] sm:$0x3] %vm4208, %v4207
  // Predicated region
  $region22: #{generator_forward.15} parent=0 // pred_check
    _
  $region23: #{generator_forward.15} parent=0 // pred_check_branch
    %4211 = sbr.rel (0) target = $region25
  $region24: #{generator_forward.15} parent=0 // pred_region
    _
  $region25: #{generator_forward.15} parent=0 // pred_fallthru
    _
  // Predicated region
  $region26: #{generator_forward.15} parent=0 // pred_check
    _
  $region27: #{generator_forward.15} parent=0 // pred_check_branch
    %4213 = sbr.rel (0) target = $region29
  $region28: #{generator_forward.15} parent=0 // pred_region
    _
  $region29: #{generator_forward.15} parent=0 // pred_fallthru
    _
  // Predicated region
  $region30: #{generator_forward.15} parent=0 // pred_check
    _
  $region31: #{generator_forward.15} parent=0 // pred_check_branch
    %4215 = sbr.rel (0) target = $region33
  $region32: #{generator_forward.15} parent=0 // pred_region
    _
  $region33: #{generator_forward.15} parent=0 // pred_fallthru
    _
  // Predicated region
  $region34: #{generator_forward.15} parent=0 // pred_check
    _
  $region35: #{generator_forward.15} parent=0 // pred_check_branch
    %4217 = sbr.rel (0) target = $region37
  $region36: #{generator_forward.15} parent=0 // pred_region
    _
  $region37: #{generator_forward.15} parent=0 // pred_fallthru
    _

// kernel: generator_forward.17
$region0: #{generator_forward.17}
  #allocation0 [shape = 'u32[]', space=smem, size = 0x4, offset = 0x4, fixed_abs, tag = 'smem constant byte address 0x4 - core index']
  #allocation1 [shape = 'u32[144,128]{1,0:T(1,128)}', space=vmem, size = 0x12000, scoped, tag = 'internal scratch']
  %s0 = inlined_call_operand.vmem [shape: bf16[2048,32], index: 0, kind: input, shape index: {}]
  %s1 = inlined_call_operand.vmem [shape: bf16[2048,32], index: 1, kind: input, shape index: {}]
  %s2 = inlined_call_operand.vmem [shape: bf16[2048,32], index: 2, kind: input, shape index: {}]
  %s3 = inlined_call_operand.vmem [shape: bf16[2048,32], index: 3, kind: input, shape index: {}]
  %s4 = inlined_call_operand.vmem [shape: bf16[4,32,3], index: 4, kind: input, shape index: {}]
  %s5 = inlined_call_operand.vmem [shape: f32[2048,12], index: 5, kind: output, shape index: {}]
  %s6 = sld [smem:[#allocation0]]
  $region53: #{generator_forward.17} parent=0
    _
  %s8 = ssub.s32 1, %s6
  %s9 = scalar_select 0, %s8, %s6
  loop: start=0, step=1, limit=6
  $region2: #{generator_forward.17} parent=0 // loop_pre_header
    _
  $region3: #{generator_forward.17} parent=0 // loop_header
    %s11 = sphi 0, %s15
    %p12 = scmp.ge.s32.totalorder %s11, 6
    %s21 = sphi 0, %s23
    %s24 = sphi 0, %s21
    %s25 = sphi 0, %s24
    %s41 = sphi 0, %s25
    %s47 = sphi 0, %s49
    %s50 = sphi 0, %s47
    %s51 = sphi 0, %s50
    %s67 = sphi 0, %s51
    %s73 = sphi 0, %s75
    %s76 = sphi 0, %s73
    %s77 = sphi 0, %s76
    %s93 = sphi 0, %s77
    %s99 = sphi 0, %s101
    %s102 = sphi 0, %s99
    %s103 = sphi 0, %s102
    %s119 = sphi 0, %s103
    %s123 = sphi 0, %s123
    %s125 = sphi 0, %s123
    %s126 = sphi 0, %s125
    %s140 = sphi 0, %s126
    %s146 = sphi 0, %s148
    %s149 = sphi 0, %s146
    %s150 = sphi 0, %s149
    %s166 = sphi 0, %s150
  $region4: #{generator_forward.17} parent=0 // loop_header_branch
    %14 = sbr.rel (%p12) target = $region8
  $region5: #{generator_forward.17} parent=0 // loop_body
    %s16 = ssub.s32 %s11, 1
    %s17 = ssub.s32 %s11, 2
    %s18 = sadd.s32 %s11, 1
    %s19 = ssub.s32 %s11, %s18
    %p20 = scmp.eq.s32.totalorder %s19, 0
    %s22 = sadd.s32 %s21, 1
    %s23 = scalar_select %p20, %s21, %s22
    %p26 = pneg %p20
    %p27 = scmp.eq.s32.totalorder %s11, 3
    %p28 = por %p26, %p27
    %p29 = scmp.ne.s32.totalorder %s21, %s24
    %p30 = scmp.eq.s32.totalorder %s11, 0
    %p31 = por %p29, %p30
    %p32 = scmp.ne.s32.totalorder %s21, %s24
    %p33 = scmp.eq.s32.totalorder %s16, 3
    %p34 = por %p32, %p33
    %p35 = scmp.ne.s32.totalorder %s24, %s25
    %p36 = scmp.eq.s32.totalorder %s16, 0
    %p37 = por %p35, %p36
    %p38 = scmp.ne.s32.totalorder %s24, %s25
    %p39 = scmp.eq.s32.totalorder %s17, 3
    %p40 = por %p38, %p39
    %p42 = scmp.ne.s32.totalorder %s25, %s41
    %p43 = scmp.eq.s32.totalorder %s17, 0
    %p44 = por %p42, %p43
    %s45 = ssub.s32 %s11, %s18
    %p46 = scmp.eq.s32.totalorder %s45, 0
    %s48 = sadd.s32 %s47, 1
    %s49 = scalar_select %p46, %s47, %s48
    %p52 = pneg %p46
    %p53 = scmp.eq.s32.totalorder %s11, 3
    %p54 = por %p52, %p53
    %p55 = scmp.ne.s32.totalorder %s47, %s50
    %p56 = scmp.eq.s32.totalorder %s11, 0
    %p57 = por %p55, %p56
    %p58 = scmp.ne.s32.totalorder %s47, %s50
    %p59 = scmp.eq.s32.totalorder %s16, 3
    %p60 = por %p58, %p59
    %p61 = scmp.ne.s32.totalorder %s50, %s51
    %p62 = scmp.eq.s32.totalorder %s16, 0
    %p63 = por %p61, %p62
    %p64 = scmp.ne.s32.totalorder %s50, %s51
    %p65 = scmp.eq.s32.totalorder %s17, 3
    %p66 = por %p64, %p65
    %p68 = scmp.ne.s32.totalorder %s51, %s67
    %p69 = scmp.eq.s32.totalorder %s17, 0
    %p70 = por %p68, %p69
    %s71 = ssub.s32 %s11, %s18
    %p72 = scmp.eq.s32.totalorder %s71, 0
    %s74 = sadd.s32 %s73, 1
    %s75 = scalar_select %p72, %s73, %s74
    %p78 = pneg %p72
    %p79 = scmp.eq.s32.totalorder %s11, 3
    %p80 = por %p78, %p79
    %p81 = scmp.ne.s32.totalorder %s73, %s76
    %p82 = scmp.eq.s32.totalorder %s11, 0
    %p83 = por %p81, %p82
    %p84 = scmp.ne.s32.totalorder %s73, %s76
    %p85 = scmp.eq.s32.totalorder %s16, 3
    %p86 = por %p84, %p85
    %p87 = scmp.ne.s32.totalorder %s76, %s77
    %p88 = scmp.eq.s32.totalorder %s16, 0
    %p89 = por %p87, %p88
    %p90 = scmp.ne.s32.totalorder %s76, %s77
    %p91 = scmp.eq.s32.totalorder %s17, 3
    %p92 = por %p90, %p91
    %p94 = scmp.ne.s32.totalorder %s77, %s93
    %p95 = scmp.eq.s32.totalorder %s17, 0
    %p96 = por %p94, %p95
    %s97 = ssub.s32 %s11, %s18
    %p98 = scmp.eq.s32.totalorder %s97, 0
    %s100 = sadd.s32 %s99, 1
    %s101 = scalar_select %p98, %s99, %s100
    %p104 = pneg %p98
    %p105 = scmp.eq.s32.totalorder %s11, 3
    %p106 = por %p104, %p105
    %p107 = scmp.ne.s32.totalorder %s99, %s102
    %p108 = scmp.eq.s32.totalorder %s11, 0
    %p109 = por %p107, %p108
    %p110 = scmp.ne.s32.totalorder %s99, %s102
    %p111 = scmp.eq.s32.totalorder %s16, 3
    %p112 = por %p110, %p111
    %p113 = scmp.ne.s32.totalorder %s102, %s103
    %p114 = scmp.eq.s32.totalorder %s16, 0
    %p115 = por %p113, %p114
    %p116 = scmp.ne.s32.totalorder %s102, %s103
    %p117 = scmp.eq.s32.totalorder %s17, 3
    %p118 = por %p116, %p117
    %p120 = scmp.ne.s32.totalorder %s103, %s119
    %p121 = scmp.eq.s32.totalorder %s17, 0
    %p122 = por %p120, %p121
    %s124 = sadd.s32 %s123, 1
    %p127 = scmp.eq.s32.totalorder %s11, 3
    %p128 = scmp.ne.s32.totalorder %s123, %s125
    %p129 = scmp.eq.s32.totalorder %s11, 0
    %p130 = por %p128, %p129
    %p131 = scmp.ne.s32.totalorder %s123, %s125
    %p132 = scmp.eq.s32.totalorder %s16, 3
    %p133 = por %p131, %p132
    %p134 = scmp.ne.s32.totalorder %s125, %s126
    %p135 = scmp.eq.s32.totalorder %s16, 0
    %p136 = por %p134, %p135
    %p137 = scmp.ne.s32.totalorder %s125, %s126
    %p138 = scmp.eq.s32.totalorder %s17, 3
    %p139 = por %p137, %p138
    %p141 = scmp.ne.s32.totalorder %s126, %s140
    %p142 = scmp.eq.s32.totalorder %s17, 0
    %p143 = por %p141, %p142
    %s144 = ssub.s32 %s11, %s18
    %p145 = scmp.eq.s32.totalorder %s144, 0
    %s147 = sadd.s32 %s146, 1
    %s148 = scalar_select %p145, %s146, %s147
    %p151 = pneg %p145
    %p152 = scmp.eq.s32.totalorder %s11, 3
    %p153 = por %p151, %p152
    %p154 = scmp.ne.s32.totalorder %s146, %s149
    %p155 = scmp.eq.s32.totalorder %s11, 0
    %p156 = por %p154, %p155
    %p157 = scmp.ne.s32.totalorder %s146, %s149
    %p158 = scmp.eq.s32.totalorder %s16, 3
    %p159 = por %p157, %p158
    %p160 = scmp.ne.s32.totalorder %s149, %s150
    %p161 = scmp.eq.s32.totalorder %s16, 0
    %p162 = por %p160, %p161
    %p163 = scmp.ne.s32.totalorder %s149, %s150
    %p164 = scmp.eq.s32.totalorder %s17, 3
    %p165 = por %p163, %p164
    %p167 = scmp.ne.s32.totalorder %s150, %s166
    %p168 = scmp.eq.s32.totalorder %s17, 0
    %p169 = por %p167, %p168
    %p170 = scmp.le.s32.totalorder 1, %s11
    %p171 = scmp.lt.s32.totalorder %s11, 5
    %p172 = pnand %p170, %p171
    %p173 = pneg %p172
    // Predicated region
    $region9: #{generator_forward.17} parent=5 // pred_check
      _
    $region10: #{generator_forward.17} parent=5 // pred_check_branch
      %175 = sbr.rel (%p172) target = $region12
    $region11: #{generator_forward.17} parent=5 // pred_region
      %s176 = ssub.s32 %s11, 1
      // Predicated region
      $region13: #{generator_forward.17} parent=11 // pred_check
        %p177 = pneg %p136
      $region14: #{generator_forward.17} parent=11 // pred_check_branch
        %179 = sbr.rel (%p177) target = $region16
      $region15: #{generator_forward.17} parent=11 // pred_region
        _
      $region16: #{generator_forward.17} parent=11 // pred_fallthru
        _
    $region12: #{generator_forward.17} parent=5 // pred_fallthru
      _
    %p180 = scmp.lt.s32.totalorder %s11, 4
    // Predicated region
    $region17: #{generator_forward.17} parent=5 // pred_check
      %p181 = pneg %p180
    $region18: #{generator_forward.17} parent=5 // pred_check_branch
      %183 = sbr.rel (%p181) target = $region20
    $region19: #{generator_forward.17} parent=5 // pred_region
      // Predicated region
      $region21: #{generator_forward.17} parent=19 // pred_check
        %p184 = pneg %p31
      $region22: #{generator_forward.17} parent=19 // pred_check_branch
        %186 = sbr.rel (%p184) target = $region24
      $region23: #{generator_forward.17} parent=19 // pred_region
        %s187 = smul.u32 64, %s11
        %p188 = scmp.lt.s32.totalorder %s187, 255
        %s189 = scalar_select %p188, %s187, 255
        %s190 = smul.addr %s189, 4
        %s191 = scalar_lea.vmem %s0, %s190
        %s192 = smul.u32 64, %s11
      $region24: #{generator_forward.17} parent=19 // pred_fallthru
        _
      // Predicated region
      $region25: #{generator_forward.17} parent=19 // pred_check
        %p193 = pneg %p57
      $region26: #{generator_forward.17} parent=19 // pred_check_branch
        %195 = sbr.rel (%p193) target = $region28
      $region27: #{generator_forward.17} parent=19 // pred_region
        %s196 = smul.u32 64, %s11
        %p197 = scmp.lt.s32.totalorder %s196, 255
        %s198 = scalar_select %p197, %s196, 255
        %s199 = smul.addr %s198, 4
        %s200 = scalar_lea.vmem %s1, %s199
        %s201 = smul.u32 64, %s11
      $region28: #{generator_forward.17} parent=19 // pred_fallthru
        _
      // Predicated region
      $region29: #{generator_forward.17} parent=19 // pred_check
        %p202 = pneg %p83
      $region30: #{generator_forward.17} parent=19 // pred_check_branch
        %204 = sbr.rel (%p202) target = $region32
      $region31: #{generator_forward.17} parent=19 // pred_region
        %s205 = smul.u32 64, %s11
        %p206 = scmp.lt.s32.totalorder %s205, 255
        %s207 = scalar_select %p206, %s205, 255
        %s208 = smul.addr %s207, 4
        %s209 = scalar_lea.vmem %s2, %s208
        %s210 = smul.u32 64, %s11
      $region32: #{generator_forward.17} parent=19 // pred_fallthru
        _
      // Predicated region
      $region33: #{generator_forward.17} parent=19 // pred_check
        %p211 = pneg %p109
      $region34: #{generator_forward.17} parent=19 // pred_check_branch
        %213 = sbr.rel (%p211) target = $region36
      $region35: #{generator_forward.17} parent=19 // pred_region
        %s214 = smul.u32 64, %s11
        %p215 = scmp.lt.s32.totalorder %s214, 255
        %s216 = scalar_select %p215, %s214, 255
        %s217 = smul.addr %s216, 4
        %s218 = scalar_lea.vmem %s3, %s217
        %s219 = smul.u32 64, %s11
      $region36: #{generator_forward.17} parent=19 // pred_fallthru
        _
    $region20: #{generator_forward.17} parent=5 // pred_fallthru
      _
    %p220 = scmp.le.s32.totalorder 1, %s11
    %p221 = scmp.lt.s32.totalorder %s11, 5
    %p222 = pnand %p220, %p221
    %p223 = pneg %p222
    // Predicated region
    $region37: #{generator_forward.17} parent=5 // pred_check
      _
    $region38: #{generator_forward.17} parent=5 // pred_check_branch
      %225 = sbr.rel (%p222) target = $region40
    $region39: #{generator_forward.17} parent=5 // pred_region
      %s226 = ssub.s32 %s11, 1
      %s227 = smul.u32 64, %s16
      %p228 = scmp.lt.s32.totalorder %s227, 255
      %s229 = scalar_select %p228, %s227, 255
      %s230 = smul.addr %s229, 4
      %s231 = scalar_lea.vmem %s0, %s230
      %p232 = pneg %p37
      %p233 = pneg %p34
      %s234 = smul.u32 64, %s16
      %p235 = scmp.lt.s32.totalorder %s234, 255
      %s236 = scalar_select %p235, %s234, 255
      %s237 = smul.addr %s236, 4
      %s238 = scalar_lea.vmem %s1, %s237
      %p239 = pneg %p63
      %p240 = pneg %p60
      %s241 = smul.u32 64, %s16
      %p242 = scmp.lt.s32.totalorder %s241, 255
      %s243 = scalar_select %p242, %s241, 255
      %s244 = smul.addr %s243, 4
      %s245 = scalar_lea.vmem %s2, %s244
      %p246 = pneg %p89
      %p247 = pneg %p86
      %s248 = smul.u32 64, %s16
      %p249 = scmp.lt.s32.totalorder %s248, 255
      %s250 = scalar_select %p249, %s248, 255
      %s251 = smul.addr %s250, 4
      %s252 = scalar_lea.vmem %s3, %s251
      %p253 = pneg %p115
      %p254 = pneg %p112
      %p255 = pneg %p136
      %p256 = pneg %p133
      %p257 = pneg %p162
      %p258 = pneg %p159
      %s259 = smul.u32 64, %s16
      %p260 = scmp.lt.s32.totalorder %s259, 255
      %s261 = scalar_select %p260, %s259, 255
      %s262 = smul.addr %s261, 8
      %s263 = scalar_lea.vmem %s5, %s262
      %s264 = smul.u32 64, %s16
      %p265 = scmp.lt.s32.totalorder %s264, 255
      %s266 = scalar_select %p265, %s264, 255
      %s267 = smul.addr %s266, 4
      %s268 = scalar_lea.vmem %s0, %s267
      %s269 = smul.u32 64, %s16
      %s270 = smul.u32 64, %s16
      %p271 = scmp.lt.s32.totalorder %s270, 255
      %s272 = scalar_select %p271, %s270, 255
      %s273 = smul.addr %s272, 4
      %s274 = scalar_lea.vmem %s1, %s273
      %s275 = smul.u32 64, %s16
      %s276 = smul.u32 64, %s16
      %p277 = scmp.lt.s32.totalorder %s276, 255
      %s278 = scalar_select %p277, %s276, 255
      %s279 = smul.addr %s278, 4
      %s280 = scalar_lea.vmem %s2, %s279
      %s281 = smul.u32 64, %s16
      %s282 = smul.u32 64, %s16
      %p283 = scmp.lt.s32.totalorder %s282, 255
      %s284 = scalar_select %p283, %s282, 255
      %s285 = smul.addr %s284, 4
      %s286 = scalar_lea.vmem %s3, %s285
      %s287 = smul.u32 64, %s16
      %s288 = smul.u32 64, %s16
      %p289 = scmp.lt.s32.totalorder %s288, 255
      %s290 = scalar_select %p289, %s288, 255
      %s291 = smul.addr %s290, 8
      %s292 = scalar_lea.vmem %s5, %s291
      %s293 = smul.u32 64, %s16
      %v295 = vld [vmem:[%s268] sm:$0xf]
      %v296 = vld [vmem:[%s268 + $0x4] sm:$0xf]
      %v297 = vld [vmem:[%s268 + $0x8] sm:$0xf]
      %v298 = vld [vmem:[%s268 + $0xc] sm:$0xf]
      %v299 = vld [vmem:[%s268 + $0x10] sm:$0xf]
      %v300 = vld [vmem:[%s268 + $0x14] sm:$0xf]
      %v301 = vld [vmem:[%s268 + $0x18] sm:$0xf]
      %v302 = vld [vmem:[%s268 + $0x1c] sm:$0xf]
      %v303 = vld [vmem:[%s268 + $0x20] sm:$0xf]
      %v304 = vld [vmem:[%s268 + $0x24] sm:$0xf]
      %v305 = vld [vmem:[%s268 + $0x28] sm:$0xf]
      %v306 = vld [vmem:[%s268 + $0x2c] sm:$0xf]
      %v307 = vld [vmem:[%s268 + $0x30] sm:$0xf]
      %v308 = vld [vmem:[%s268 + $0x34] sm:$0xf]
      %v309 = vld [vmem:[%s268 + $0x38] sm:$0xf]
      %v310 = vld [vmem:[%s268 + $0x3c] sm:$0xf]
      %v311 = vld [vmem:[%s268 + $0x40] sm:$0xf]
      %v312 = vld [vmem:[%s268 + $0x44] sm:$0xf]
      %v313 = vld [vmem:[%s268 + $0x48] sm:$0xf]
      %v314 = vld [vmem:[%s268 + $0x4c] sm:$0xf]
      %v315 = vld [vmem:[%s268 + $0x50] sm:$0xf]
      %v316 = vld [vmem:[%s268 + $0x54] sm:$0xf]
      %v317 = vld [vmem:[%s268 + $0x58] sm:$0xf]
      %v318 = vld [vmem:[%s268 + $0x5c] sm:$0xf]
      %v319 = vld [vmem:[%s268 + $0x60] sm:$0xf]
      %v320 = vld [vmem:[%s268 + $0x64] sm:$0xf]
      %v321 = vld [vmem:[%s268 + $0x68] sm:$0xf]
      %v322 = vld [vmem:[%s268 + $0x6c] sm:$0xf]
      %v323 = vld [vmem:[%s268 + $0x70] sm:$0xf]
      %v324 = vld [vmem:[%s268 + $0x74] sm:$0xf]
      %v325 = vld [vmem:[%s268 + $0x78] sm:$0xf]
      %v326 = vld [vmem:[%s268 + $0x7c] sm:$0xf]
      %v327 = vld [vmem:[%s268 + $0x80] sm:$0xf]
      %v328 = vld [vmem:[%s268 + $0x84] sm:$0xf]
      %v329 = vld [vmem:[%s268 + $0x88] sm:$0xf]
      %v330 = vld [vmem:[%s268 + $0x8c] sm:$0xf]
      %v331 = vld [vmem:[%s268 + $0x90] sm:$0xf]
      %v332 = vld [vmem:[%s268 + $0x94] sm:$0xf]
      %v333 = vld [vmem:[%s268 + $0x98] sm:$0xf]
      %v334 = vld [vmem:[%s268 + $0x9c] sm:$0xf]
      %v335 = vld [vmem:[%s268 + $0xa0] sm:$0xf]
      %v336 = vld [vmem:[%s268 + $0xa4] sm:$0xf]
      %v337 = vld [vmem:[%s268 + $0xa8] sm:$0xf]
      %v338 = vld [vmem:[%s268 + $0xac] sm:$0xf]
      %v339 = vld [vmem:[%s268 + $0xb0] sm:$0xf]
      %v340 = vld [vmem:[%s268 + $0xb4] sm:$0xf]
      %v341 = vld [vmem:[%s268 + $0xb8] sm:$0xf]
      %v342 = vld [vmem:[%s268 + $0xbc] sm:$0xf]
      %v343 = vld [vmem:[%s268 + $0xc0] sm:$0xf]
      %v344 = vld [vmem:[%s268 + $0xc4] sm:$0xf]
      %v345 = vld [vmem:[%s268 + $0xc8] sm:$0xf]
      %v346 = vld [vmem:[%s268 + $0xcc] sm:$0xf]
      %v347 = vld [vmem:[%s268 + $0xd0] sm:$0xf]
      %v348 = vld [vmem:[%s268 + $0xd4] sm:$0xf]
      %v349 = vld [vmem:[%s268 + $0xd8] sm:$0xf]
      %v350 = vld [vmem:[%s268 + $0xdc] sm:$0xf]
      %v351 = vld [vmem:[%s268 + $0xe0] sm:$0xf]
      %v352 = vld [vmem:[%s268 + $0xe4] sm:$0xf]
      %v353 = vld [vmem:[%s268 + $0xe8] sm:$0xf]
      %v354 = vld [vmem:[%s268 + $0xec] sm:$0xf]
      %v355 = vld [vmem:[%s268 + $0xf0] sm:$0xf]
      %v356 = vld [vmem:[%s268 + $0xf4] sm:$0xf]
      %v357 = vld [vmem:[%s268 + $0xf8] sm:$0xf]
      %v358 = vld [vmem:[%s268 + $0xfc] sm:$0xf]
      %v359 = vld [vmem:[%s4] sm:$0xf]
      %v360 = vld [vmem:[%s4 + $0x4] sm:$0xf]
      %v361 = vld [vmem:[%s4 + $0x8] sm:$0xf]
      %v362 = vld [vmem:[%s4 + $0xc] sm:$0xf]
      %v427 = vunpack.c.l.b16 %v295
      %v428 = vunpack.c.l.b16 %v296
      %v429 = vunpack.c.l.b16 %v297
      %v430 = vunpack.c.l.b16 %v298
      %v431 = vunpack.c.l.b16 %v299
      %v432 = vunpack.c.l.b16 %v300
      %v433 = vunpack.c.l.b16 %v301
      %v434 = vunpack.c.l.b16 %v302
      %v435 = vunpack.c.l.b16 %v303
      %v436 = vunpack.c.l.b16 %v304
      %v437 = vunpack.c.l.b16 %v305
      %v438 = vunpack.c.l.b16 %v306
      %v439 = vunpack.c.l.b16 %v307
      %v440 = vunpack.c.l.b16 %v308
      %v441 = vunpack.c.l.b16 %v309
      %v442 = vunpack.c.l.b16 %v310
      %v443 = vunpack.c.l.b16 %v311
      %v444 = vunpack.c.l.b16 %v312
      %v445 = vunpack.c.l.b16 %v313
      %v446 = vunpack.c.l.b16 %v314
      %v447 = vunpack.c.l.b16 %v315
      %v448 = vunpack.c.l.b16 %v316
      %v449 = vunpack.c.l.b16 %v317
      %v450 = vunpack.c.l.b16 %v318
      %v451 = vunpack.c.l.b16 %v319
      %v452 = vunpack.c.l.b16 %v320
      %v453 = vunpack.c.l.b16 %v321
      %v454 = vunpack.c.l.b16 %v322
      %v455 = vunpack.c.l.b16 %v323
      %v456 = vunpack.c.l.b16 %v324
      %v457 = vunpack.c.l.b16 %v325
      %v458 = vunpack.c.l.b16 %v326
      %v459 = vunpack.c.l.b16 %v327
      %v460 = vunpack.c.l.b16 %v328
      %v461 = vunpack.c.l.b16 %v329
      %v462 = vunpack.c.l.b16 %v330
      %v463 = vunpack.c.l.b16 %v331
      %v464 = vunpack.c.l.b16 %v332
      %v465 = vunpack.c.l.b16 %v333
      %v466 = vunpack.c.l.b16 %v334
      %v467 = vunpack.c.l.b16 %v335
      %v468 = vunpack.c.l.b16 %v336
      %v469 = vunpack.c.l.b16 %v337
      %v470 = vunpack.c.l.b16 %v338
      %v471 = vunpack.c.l.b16 %v339
      %v472 = vunpack.c.l.b16 %v340
      %v473 = vunpack.c.l.b16 %v341
      %v474 = vunpack.c.l.b16 %v342
      %v475 = vunpack.c.l.b16 %v343
      %v476 = vunpack.c.l.b16 %v344
      %v477 = vunpack.c.l.b16 %v345
      %v478 = vunpack.c.l.b16 %v346
      %v479 = vunpack.c.l.b16 %v347
      %v480 = vunpack.c.l.b16 %v348
      %v481 = vunpack.c.l.b16 %v349
      %v482 = vunpack.c.l.b16 %v350
      %v483 = vunpack.c.l.b16 %v351
      %v484 = vunpack.c.l.b16 %v352
      %v485 = vunpack.c.l.b16 %v353
      %v486 = vunpack.c.l.b16 %v354
      %v487 = vunpack.c.l.b16 %v355
      %v488 = vunpack.c.l.b16 %v356
      %v489 = vunpack.c.l.b16 %v357
      %v490 = vunpack.c.l.b16 %v358
      %v491 = vpack.c.b16 %v428, %v427
      %v492 = vpack.c.b16 %v430, %v429
      %v493 = vpack.c.b16 %v432, %v431
      %v494 = vpack.c.b16 %v434, %v433
      %v495 = vpack.c.b16 %v436, %v435
      %v496 = vpack.c.b16 %v438, %v437
      %v497 = vpack.c.b16 %v440, %v439
      %v498 = vpack.c.b16 %v442, %v441
      %v499 = vpack.c.b16 %v444, %v443
      %v500 = vpack.c.b16 %v446, %v445
      %v501 = vpack.c.b16 %v448, %v447
      %v502 = vpack.c.b16 %v450, %v449
      %v503 = vpack.c.b16 %v452, %v451
      %v504 = vpack.c.b16 %v454, %v453
      %v505 = vpack.c.b16 %v456, %v455
      %v506 = vpack.c.b16 %v458, %v457
      %v507 = vpack.c.b16 %v460, %v459
      %v508 = vpack.c.b16 %v462, %v461
      %v509 = vpack.c.b16 %v464, %v463
      %v510 = vpack.c.b16 %v466, %v465
      %v511 = vpack.c.b16 %v468, %v467
      %v512 = vpack.c.b16 %v470, %v469
      %v513 = vpack.c.b16 %v472, %v471
      %v514 = vpack.c.b16 %v474, %v473
      %v515 = vpack.c.b16 %v476, %v475
      %v516 = vpack.c.b16 %v478, %v477
      %v517 = vpack.c.b16 %v480, %v479
      %v518 = vpack.c.b16 %v482, %v481
      %v519 = vpack.c.b16 %v484, %v483
      %v520 = vpack.c.b16 %v486, %v485
      %v521 = vpack.c.b16 %v488, %v487
      %v522 = vpack.c.b16 %v490, %v489
      %v527 = vunpack.c.l.b16 %v359
      %v528 = vunpack.c.l.b16 %v360
      %v529 = vunpack.c.l.b16 %v361
      %v530 = vunpack.c.l.b16 %v362
      %v531 = vpack.c.b16 %v528, %v527
      %v532 = vpack.c.b16 %v530, %v529
      %vm535 = vcmask 261120
      %v537 = vsel %vm535, %v491, 0
      %v540 = vsel %vm535, %v492, 0
      %v543 = vsel %vm535, %v493, 0
      %v546 = vsel %vm535, %v494, 0
      %v549 = vsel %vm535, %v495, 0
      %v552 = vsel %vm535, %v496, 0
      %v555 = vsel %vm535, %v497, 0
      %v558 = vsel %vm535, %v498, 0
      %v561 = vsel %vm535, %v499, 0
      %v564 = vsel %vm535, %v500, 0
      %v567 = vsel %vm535, %v501, 0
      %v570 = vsel %vm535, %v502, 0
      %v573 = vsel %vm535, %v503, 0
      %v576 = vsel %vm535, %v504, 0
      %v579 = vsel %vm535, %v505, 0
      %v582 = vsel %vm535, %v506, 0
      %v585 = vsel %vm535, %v507, 0
      %v588 = vsel %vm535, %v508, 0
      %v591 = vsel %vm535, %v509, 0
      %v594 = vsel %vm535, %v510, 0
      %v597 = vsel %vm535, %v511, 0
      %v600 = vsel %vm535, %v512, 0
      %v603 = vsel %vm535, %v513, 0
      %v606 = vsel %vm535, %v514, 0
      %v609 = vsel %vm535, %v515, 0
      %v612 = vsel %vm535, %v516, 0
      %v615 = vsel %vm535, %v517, 0
      %v618 = vsel %vm535, %v518, 0
      %v621 = vsel %vm535, %v519, 0
      %v624 = vsel %vm535, %v520, 0
      %v627 = vsel %vm535, %v521, 0
      %v630 = vsel %vm535, %v522, 0
      %632 = vmatprep.subr.bf16.mxu0 0
      %633 = vmatpush1.bf16.msra.mxu0 %v531
      %634 = vmatprep.subr.bf16.mxu0 0
      %635 = vmatpush1.bf16.msra.mxu0 %v532
      %636 = vmatprep.subr.bf16.mxu0 0
      %637 = vmatpush1.bf16.msra.mxu0 0
      %638 = vmatprep.subr.bf16.mxu0 0
      %639 = vmatpush1.bf16.msra.mxu0 0
      %640 = vmatprep.subr.bf16.mxu0 0
      %641 = vmatpush1.bf16.msra.mxu0 0
      %642 = vmatprep.subr.bf16.mxu0 0
      %643 = vmatpush1.bf16.msra.mxu0 0
      %644 = vmatprep.subr.bf16.mxu0 0
      %645 = vmatpush1.bf16.msra.mxu0 0
      %646 = vmatprep.subr.bf16.mxu0 0
      %647 = vmatpush1.bf16.msra.mxu0 0
      %648 = vmatprep.subr.bf16.mxu0 0
      %649 = vmatpush1.bf16.msra.mxu0 0
      %650 = vmatprep.subr.bf16.mxu0 0
      %651 = vmatpush1.bf16.msra.mxu0 0
      %652 = vmatprep.subr.bf16.mxu0 0
      %653 = vmatpush1.bf16.msra.mxu0 0
      %654 = vmatprep.subr.bf16.mxu0 0
      %655 = vmatpush1.bf16.msra.mxu0 0
      %656 = vmatprep.subr.bf16.mxu0 0
      %657 = vmatpush1.bf16.msra.mxu0 0
      %658 = vmatprep.subr.bf16.mxu0 0
      %659 = vmatpush1.bf16.msra.mxu0 0
      %660 = vmatprep.subr.bf16.mxu0 0
      %661 = vmatpush1.bf16.msra.mxu0 0
      %662 = vmatprep.subr.bf16.mxu0 0
      %663 = vmatpush1.bf16.msra.mxu0 0
      %664 = vmatprep.mubr.bf16.mxu0 0
      %665 = vmatmul.mubr.bf16.gmra.mrb[0].mxu0 %v537
      %v666 = vpop.f32.mrb[0].mxu0
      %v667 = vadd.f32 0.0, %v666
      %v668 = vpop.f32.mrb[0].mxu0
      %v669 = vpop.f32.mrb[0].mxu0
      %v670 = vadd.f32 0.0, %v669
      %v671 = vpop.f32.mrb[0].mxu0
      %672 = vmatprep.mubr.bf16.mxu0 0
      %673 = vmatmul.mubr.bf16.gmra.mrb[0].mxu0 %v540
      %v674 = vpop.f32.mrb[0].mxu0
      %v675 = vadd.f32 0.0, %v674
      %v676 = vpop.f32.mrb[0].mxu0
      %v677 = vpop.f32.mrb[0].mxu0
      %v678 = vadd.f32 0.0, %v677
      %v679 = vpop.f32.mrb[0].mxu0
      %680 = vmatprep.mubr.bf16.mxu0 0
      %681 = vmatmul.mubr.bf16.gmra.mrb[0].mxu0 %v543
      %v682 = vpop.f32.mrb[0].mxu0
      %v683 = vadd.f32 0.0, %v682
      %v684 = vpop.f32.mrb[0].mxu0
      %v685 = vpop.f32.mrb[0].mxu0
      %v686 = vadd.f32 0.0, %v685
      %v687 = vpop.f32.mrb[0].mxu0
      %688 = vmatprep.mubr.bf16.mxu0 0
      %689 = vmatmul.mubr.bf16.gmra.mrb[0].mxu0 %v546
      %v690 = vpop.f32.mrb[0].mxu0
      %v691 = vadd.f32 0.0, %v690
      %v692 = vpop.f32.mrb[0].mxu0
      %v693 = vpop.f32.mrb[0].mxu0
      %v694 = vadd.f32 0.0, %v693
      %v695 = vpop.f32.mrb[0].mxu0
      %696 = vmatprep.mubr.bf16.mxu0 0
      %697 = vmatmul.mubr.bf16.gmra.mrb[0].mxu0 %v549
      %v698 = vpop.f32.mrb[0].mxu0
      %v699 = vadd.f32 0.0, %v698
      %v700 = vpop.f32.mrb[0].mxu0
      %v701 = vpop.f32.mrb[0].mxu0
      %v702 = vadd.f32 0.0, %v701
      %v703 = vpop.f32.mrb[0].mxu0
      %704 = vmatprep.mubr.bf16.mxu0 0
      %705 = vmatmul.mubr.bf16.gmra.mrb[0].mxu0 %v552
      %v706 = vpop.f32.mrb[0].mxu0
      %v707 = vadd.f32 0.0, %v706
      %v708 = vpop.f32.mrb[0].mxu0
      %v709 = vpop.f32.mrb[0].mxu0
      %v710 = vadd.f32 0.0, %v709
      %v711 = vpop.f32.mrb[0].mxu0
      %712 = vmatprep.mubr.bf16.mxu0 0
      %713 = vmatmul.mubr.bf16.gmra.mrb[0].mxu0 %v555
      %v714 = vpop.f32.mrb[0].mxu0
      %v715 = vadd.f32 0.0, %v714
      %v716 = vpop.f32.mrb[0].mxu0
      %v717 = vpop.f32.mrb[0].mxu0
      %v718 = vadd.f32 0.0, %v717
      %v719 = vpop.f32.mrb[0].mxu0
      %720 = vmatprep.mubr.bf16.mxu0 0
      %721 = vmatmul.mubr.bf16.gmra.mrb[0].mxu0 %v558
      %v722 = vpop.f32.mrb[0].mxu0
      %v723 = vadd.f32 0.0, %v722
      %v724 = vpop.f32.mrb[0].mxu0
      %v725 = vpop.f32.mrb[0].mxu0
      %v726 = vadd.f32 0.0, %v725
      %v727 = vpop.f32.mrb[0].mxu0
      %728 = vmatprep.mubr.bf16.mxu0 0
      %729 = vmatmul.mubr.bf16.gmra.mrb[0].mxu0 %v561
      %v730 = vpop.f32.mrb[0].mxu0
      %v731 = vadd.f32 0.0, %v730
      %v732 = vpop.f32.mrb[0].mxu0
      %v733 = vpop.f32.mrb[0].mxu0
      %v734 = vadd.f32 0.0, %v733
      %v735 = vpop.f32.mrb[0].mxu0
      %736 = vmatprep.mubr.bf16.mxu0 0
      %737 = vmatmul.mubr.bf16.gmra.mrb[0].mxu0 %v564
      %v738 = vpop.f32.mrb[0].mxu0
      %v739 = vadd.f32 0.0, %v738
      %v740 = vpop.f32.mrb[0].mxu0
      %v741 = vpop.f32.mrb[0].mxu0
      %v742 = vadd.f32 0.0, %v741
      %v743 = vpop.f32.mrb[0].mxu0
      %744 = vmatprep.mubr.bf16.mxu0 0
      %745 = vmatmul.mubr.bf16.gmra.mrb[0].mxu0 %v567
      %v746 = vpop.f32.mrb[0].mxu0
      %v747 = vadd.f32 0.0, %v746
      %v748 = vpop.f32.mrb[0].mxu0
      %v749 = vpop.f32.mrb[0].mxu0
      %v750 = vadd.f32 0.0, %v749
      %v751 = vpop.f32.mrb[0].mxu0
      %752 = vmatprep.mubr.bf16.mxu0 0
      %753 = vmatmul.mubr.bf16.gmra.mrb[0].mxu0 %v570
      %v754 = vpop.f32.mrb[0].mxu0
      %v755 = vadd.f32 0.0, %v754
      %v756 = vpop.f32.mrb[0].mxu0
      %v757 = vpop.f32.mrb[0].mxu0
      %v758 = vadd.f32 0.0, %v757
      %v759 = vpop.f32.mrb[0].mxu0
      %760 = vmatprep.mubr.bf16.mxu0 0
      %761 = vmatmul.mubr.bf16.gmra.mrb[0].mxu0 %v573
      %v762 = vpop.f32.mrb[0].mxu0
      %v763 = vadd.f32 0.0, %v762
      %v764 = vpop.f32.mrb[0].mxu0
      %v765 = vpop.f32.mrb[0].mxu0
      %v766 = vadd.f32 0.0, %v765
      %v767 = vpop.f32.mrb[0].mxu0
      %768 = vmatprep.mubr.bf16.mxu0 0
      %769 = vmatmul.mubr.bf16.gmra.mrb[0].mxu0 %v576
      %v770 = vpop.f32.mrb[0].mxu0
      %v771 = vadd.f32 0.0, %v770
      %v772 = vpop.f32.mrb[0].mxu0
      %v773 = vpop.f32.mrb[0].mxu0
      %v774 = vadd.f32 0.0, %v773
      %v775 = vpop.f32.mrb[0].mxu0
      %776 = vmatprep.mubr.bf16.mxu0 0
      %777 = vmatmul.mubr.bf16.gmra.mrb[0].mxu0 %v579
      %v778 = vpop.f32.mrb[0].mxu0
      %v779 = vadd.f32 0.0, %v778
      %v780 = vpop.f32.mrb[0].mxu0
      %v781 = vpop.f32.mrb[0].mxu0
      %v782 = vadd.f32 0.0, %v781
      %v783 = vpop.f32.mrb[0].mxu0
      %784 = vmatprep.mubr.bf16.mxu0 0
      %785 = vmatmul.mubr.bf16.gmra.mrb[0].mxu0 %v582
      %v786 = vpop.f32.mrb[0].mxu0
      %v787 = vadd.f32 0.0, %v786
      %v788 = vpop.f32.mrb[0].mxu0
      %v789 = vpop.f32.mrb[0].mxu0
      %v790 = vadd.f32 0.0, %v789
      %v791 = vpop.f32.mrb[0].mxu0
      %792 = vmatprep.mubr.bf16.mxu0 0
      %793 = vmatmul.mubr.bf16.gmra.mrb[0].mxu0 %v585
      %v794 = vpop.f32.mrb[0].mxu0
      %v795 = vadd.f32 0.0, %v794
      %v796 = vpop.f32.mrb[0].mxu0
      %v797 = vpop.f32.mrb[0].mxu0
      %v798 = vadd.f32 0.0, %v797
      %v799 = vpop.f32.mrb[0].mxu0
      %800 = vmatprep.mubr.bf16.mxu0 0
      %801 = vmatmul.mubr.bf16.gmra.mrb[0].mxu0 %v588
      %v802 = vpop.f32.mrb[0].mxu0
      %v803 = vadd.f32 0.0, %v802
      %v804 = vpop.f32.mrb[0].mxu0
      %v805 = vpop.f32.mrb[0].mxu0
      %v806 = vadd.f32 0.0, %v805
      %v807 = vpop.f32.mrb[0].mxu0
      %808 = vmatprep.mubr.bf16.mxu0 0
      %809 = vmatmul.mubr.bf16.gmra.mrb[0].mxu0 %v591
      %v810 = vpop.f32.mrb[0].mxu0
      %v811 = vadd.f32 0.0, %v810
      %v812 = vpop.f32.mrb[0].mxu0
      %v813 = vpop.f32.mrb[0].mxu0
      %v814 = vadd.f32 0.0, %v813
      %v815 = vpop.f32.mrb[0].mxu0
      %816 = vmatprep.mubr.bf16.mxu0 0
      %817 = vmatmul.mubr.bf16.gmra.mrb[0].mxu0 %v594
      %v818 = vpop.f32.mrb[0].mxu0
      %v819 = vadd.f32 0.0, %v818
      %v820 = vpop.f32.mrb[0].mxu0
      %v821 = vpop.f32.mrb[0].mxu0
      %v822 = vadd.f32 0.0, %v821
      %v823 = vpop.f32.mrb[0].mxu0
      %824 = vmatprep.mubr.bf16.mxu0 0
      %825 = vmatmul.mubr.bf16.gmra.mrb[0].mxu0 %v597
      %v826 = vpop.f32.mrb[0].mxu0
      %v827 = vadd.f32 0.0, %v826
      %v828 = vpop.f32.mrb[0].mxu0
      %v829 = vpop.f32.mrb[0].mxu0
      %v830 = vadd.f32 0.0, %v829
      %v831 = vpop.f32.mrb[0].mxu0
      %832 = vmatprep.mubr.bf16.mxu0 0
      %833 = vmatmul.mubr.bf16.gmra.mrb[0].mxu0 %v600
      %v834 = vpop.f32.mrb[0].mxu0
      %v835 = vadd.f32 0.0, %v834
      %v836 = vpop.f32.mrb[0].mxu0
      %v837 = vpop.f32.mrb[0].mxu0
      %v838 = vadd.f32 0.0, %v837
      %v839 = vpop.f32.mrb[0].mxu0
      %840 = vmatprep.mubr.bf16.mxu0 0
      %841 = vmatmul.mubr.bf16.gmra.mrb[0].mxu0 %v603
      %v842 = vpop.f32.mrb[0].mxu0
      %v843 = vadd.f32 0.0, %v842
      %v844 = vpop.f32.mrb[0].mxu0
      %v845 = vpop.f32.mrb[0].mxu0
      %v846 = vadd.f32 0.0, %v845
      %v847 = vpop.f32.mrb[0].mxu0
      %848 = vmatprep.mubr.bf16.mxu0 0
      %849 = vmatmul.mubr.bf16.gmra.mrb[0].mxu0 %v606
      %v850 = vpop.f32.mrb[0].mxu0
      %v851 = vadd.f32 0.0, %v850
      %v852 = vpop.f32.mrb[0].mxu0
      %v853 = vpop.f32.mrb[0].mxu0
      %v854 = vadd.f32 0.0, %v853
      %v855 = vpop.f32.mrb[0].mxu0
      %856 = vmatprep.mubr.bf16.mxu0 0
      %857 = vmatmul.mubr.bf16.gmra.mrb[0].mxu0 %v609
      %v858 = vpop.f32.mrb[0].mxu0
      %v859 = vadd.f32 0.0, %v858
      %v860 = vpop.f32.mrb[0].mxu0
      %v861 = vpop.f32.mrb[0].mxu0
      %v862 = vadd.f32 0.0, %v861
      %v863 = vpop.f32.mrb[0].mxu0
      %864 = vmatprep.mubr.bf16.mxu0 0
      %865 = vmatmul.mubr.bf16.gmra.mrb[0].mxu0 %v612
      %v866 = vpop.f32.mrb[0].mxu0
      %v867 = vadd.f32 0.0, %v866
      %v868 = vpop.f32.mrb[0].mxu0
      %v869 = vpop.f32.mrb[0].mxu0
      %v870 = vadd.f32 0.0, %v869
      %v871 = vpop.f32.mrb[0].mxu0
      %872 = vmatprep.mubr.bf16.mxu0 0
      %873 = vmatmul.mubr.bf16.gmra.mrb[0].mxu0 %v615
      %v874 = vpop.f32.mrb[0].mxu0
      %v875 = vadd.f32 0.0, %v874
      %v876 = vpop.f32.mrb[0].mxu0
      %v877 = vpop.f32.mrb[0].mxu0
      %v878 = vadd.f32 0.0, %v877
      %v879 = vpop.f32.mrb[0].mxu0
      %880 = vmatprep.mubr.bf16.mxu0 0
      %881 = vmatmul.mubr.bf16.gmra.mrb[0].mxu0 %v618
      %v882 = vpop.f32.mrb[0].mxu0
      %v883 = vadd.f32 0.0, %v882
      %v884 = vpop.f32.mrb[0].mxu0
      %v885 = vpop.f32.mrb[0].mxu0
      %v886 = vadd.f32 0.0, %v885
      %v887 = vpop.f32.mrb[0].mxu0
      %888 = vmatprep.mubr.bf16.mxu0 0
      %889 = vmatmul.mubr.bf16.gmra.mrb[0].mxu0 %v621
      %v890 = vpop.f32.mrb[0].mxu0
      %v891 = vadd.f32 0.0, %v890
      %v892 = vpop.f32.mrb[0].mxu0
      %v893 = vpop.f32.mrb[0].mxu0
      %v894 = vadd.f32 0.0, %v893
      %v895 = vpop.f32.mrb[0].mxu0
      %896 = vmatprep.mubr.bf16.mxu0 0
      %897 = vmatmul.mubr.bf16.gmra.mrb[0].mxu0 %v624
      %v898 = vpop.f32.mrb[0].mxu0
      %v899 = vadd.f32 0.0, %v898
      %v900 = vpop.f32.mrb[0].mxu0
      %v901 = vpop.f32.mrb[0].mxu0
      %v902 = vadd.f32 0.0, %v901
      %v903 = vpop.f32.mrb[0].mxu0
      %904 = vmatprep.mubr.bf16.mxu0 0
      %905 = vmatmul.mubr.bf16.gmra.mrb[0].mxu0 %v627
      %v906 = vpop.f32.mrb[0].mxu0
      %v907 = vadd.f32 0.0, %v906
      %v908 = vpop.f32.mrb[0].mxu0
      %v909 = vpop.f32.mrb[0].mxu0
      %v910 = vadd.f32 0.0, %v909
      %v911 = vpop.f32.mrb[0].mxu0
      %912 = vmatprep.mubr.bf16.mxu0 0
      %913 = vmatmul.mubr.bf16.gmra.mrb[0].mxu0 %v630
      %v914 = vpop.f32.mrb[0].mxu0
      %v915 = vadd.f32 0.0, %v914
      %v916 = vpop.f32.mrb[0].mxu0
      %v917 = vpop.f32.mrb[0].mxu0
      %v918 = vadd.f32 0.0, %v917
      %v919 = vpop.f32.mrb[0].mxu0
      %920 = vdwg.mxu0
      %v921 = vld [vmem:[%s274] sm:$0xf]
      %v922 = vld [vmem:[%s274 + $0x4] sm:$0xf]
      %v923 = vld [vmem:[%s274 + $0x8] sm:$0xf]
      %v924 = vld [vmem:[%s274 + $0xc] sm:$0xf]
      %v925 = vld [vmem:[%s274 + $0x10] sm:$0xf]
      %v926 = vld [vmem:[%s274 + $0x14] sm:$0xf]
      %v927 = vld [vmem:[%s274 + $0x18] sm:$0xf]
      %v928 = vld [vmem:[%s274 + $0x1c] sm:$0xf]
      %v929 = vld [vmem:[%s274 + $0x20] sm:$0xf]
      %v930 = vld [vmem:[%s274 + $0x24] sm:$0xf]
      %v931 = vld [vmem:[%s274 + $0x28] sm:$0xf]
      %v932 = vld [vmem:[%s274 + $0x2c] sm:$0xf]
      %v933 = vld [vmem:[%s274 + $0x30] sm:$0xf]
      %v934 = vld [vmem:[%s274 + $0x34] sm:$0xf]
      %v935 = vld [vmem:[%s274 + $0x38] sm:$0xf]
      %v936 = vld [vmem:[%s274 + $0x3c] sm:$0xf]
      %v937 = vld [vmem:[%s274 + $0x40] sm:$0xf]
      %v938 = vld [vmem:[%s274 + $0x44] sm:$0xf]
      %v939 = vld [vmem:[%s274 + $0x48] sm:$0xf]
      %v940 = vld [vmem:[%s274 + $0x4c] sm:$0xf]
      %v941 = vld [vmem:[%s274 + $0x50] sm:$0xf]
      %v942 = vld [vmem:[%s274 + $0x54] sm:$0xf]
      %v943 = vld [vmem:[%s274 + $0x58] sm:$0xf]
      %v944 = vld [vmem:[%s274 + $0x5c] sm:$0xf]
      %v945 = vld [vmem:[%s274 + $0x60] sm:$0xf]
      %v946 = vld [vmem:[%s274 + $0x64] sm:$0xf]
      %v947 = vld [vmem:[%s274 + $0x68] sm:$0xf]
      %v948 = vld [vmem:[%s274 + $0x6c] sm:$0xf]
      %v949 = vld [vmem:[%s274 + $0x70] sm:$0xf]
      %v950 = vld [vmem:[%s274 + $0x74] sm:$0xf]
      %v951 = vld [vmem:[%s274 + $0x78] sm:$0xf]
      %v952 = vld [vmem:[%s274 + $0x7c] sm:$0xf]
      %v953 = vld [vmem:[%s274 + $0x80] sm:$0xf]
      %v954 = vld [vmem:[%s274 + $0x84] sm:$0xf]
      %v955 = vld [vmem:[%s274 + $0x88] sm:$0xf]
      %v956 = vld [vmem:[%s274 + $0x8c] sm:$0xf]
      %v957 = vld [vmem:[%s274 + $0x90] sm:$0xf]
      %v958 = vld [vmem:[%s274 + $0x94] sm:$0xf]
      %v959 = vld [vmem:[%s274 + $0x98] sm:$0xf]
      %v960 = vld [vmem:[%s274 + $0x9c] sm:$0xf]
      %v961 = vld [vmem:[%s274 + $0xa0] sm:$0xf]
      %v962 = vld [vmem:[%s274 + $0xa4] sm:$0xf]
      %v963 = vld [vmem:[%s274 + $0xa8] sm:$0xf]
      %v964 = vld [vmem:[%s274 + $0xac] sm:$0xf]
      %v965 = vld [vmem:[%s274 + $0xb0] sm:$0xf]
      %v966 = vld [vmem:[%s274 + $0xb4] sm:$0xf]
      %v967 = vld [vmem:[%s274 + $0xb8] sm:$0xf]
      %v968 = vld [vmem:[%s274 + $0xbc] sm:$0xf]
      %v969 = vld [vmem:[%s274 + $0xc0] sm:$0xf]
      %v970 = vld [vmem:[%s274 + $0xc4] sm:$0xf]
      %v971 = vld [vmem:[%s274 + $0xc8] sm:$0xf]
      %v972 = vld [vmem:[%s274 + $0xcc] sm:$0xf]
      %v973 = vld [vmem:[%s274 + $0xd0] sm:$0xf]
      %v974 = vld [vmem:[%s274 + $0xd4] sm:$0xf]
      %v975 = vld [vmem:[%s274 + $0xd8] sm:$0xf]
      %v976 = vld [vmem:[%s274 + $0xdc] sm:$0xf]
      %v977 = vld [vmem:[%s274 + $0xe0] sm:$0xf]
      %v978 = vld [vmem:[%s274 + $0xe4] sm:$0xf]
      %v979 = vld [vmem:[%s274 + $0xe8] sm:$0xf]
      %v980 = vld [vmem:[%s274 + $0xec] sm:$0xf]
      %v981 = vld [vmem:[%s274 + $0xf0] sm:$0xf]
      %v982 = vld [vmem:[%s274 + $0xf4] sm:$0xf]
      %v983 = vld [vmem:[%s274 + $0xf8] sm:$0xf]
      %v984 = vld [vmem:[%s274 + $0xfc] sm:$0xf]
      %s985 = scalar_lea.vmem %s4, 16
      %v986 = vld [vmem:[%s985] sm:$0xf]
      %v987 = vld [vmem:[%s985 + $0x4] sm:$0xf]
      %v988 = vld [vmem:[%s985 + $0x8] sm:$0xf]
      %v989 = vld [vmem:[%s985 + $0xc] sm:$0xf]
      %v1054 = vunpack.c.l.b16 %v921
      %v1055 = vunpack.c.l.b16 %v922
      %v1056 = vunpack.c.l.b16 %v923
      %v1057 = vunpack.c.l.b16 %v924
      %v1058 = vunpack.c.l.b16 %v925
      %v1059 = vunpack.c.l.b16 %v926
      %v1060 = vunpack.c.l.b16 %v927
      %v1061 = vunpack.c.l.b16 %v928
      %v1062 = vunpack.c.l.b16 %v929
      %v1063 = vunpack.c.l.b16 %v930
      %v1064 = vunpack.c.l.b16 %v931
      %v1065 = vunpack.c.l.b16 %v932
      %v1066 = vunpack.c.l.b16 %v933
      %v1067 = vunpack.c.l.b16 %v934
      %v1068 = vunpack.c.l.b16 %v935
      %v1069 = vunpack.c.l.b16 %v936
      %v1070 = vunpack.c.l.b16 %v937
      %v1071 = vunpack.c.l.b16 %v938
      %v1072 = vunpack.c.l.b16 %v939
      %v1073 = vunpack.c.l.b16 %v940
      %v1074 = vunpack.c.l.b16 %v941
      %v1075 = vunpack.c.l.b16 %v942
      %v1076 = vunpack.c.l.b16 %v943
      %v1077 = vunpack.c.l.b16 %v944
      %v1078 = vunpack.c.l.b16 %v945
      %v1079 = vunpack.c.l.b16 %v946
      %v1080 = vunpack.c.l.b16 %v947
      %v1081 = vunpack.c.l.b16 %v948
      %v1082 = vunpack.c.l.b16 %v949
      %v1083 = vunpack.c.l.b16 %v950
      %v1084 = vunpack.c.l.b16 %v951
      %v1085 = vunpack.c.l.b16 %v952
      %v1086 = vunpack.c.l.b16 %v953
      %v1087 = vunpack.c.l.b16 %v954
      %v1088 = vunpack.c.l.b16 %v955
      %v1089 = vunpack.c.l.b16 %v956
      %v1090 = vunpack.c.l.b16 %v957
      %v1091 = vunpack.c.l.b16 %v958
      %v1092 = vunpack.c.l.b16 %v959
      %v1093 = vunpack.c.l.b16 %v960
      %v1094 = vunpack.c.l.b16 %v961
      %v1095 = vunpack.c.l.b16 %v962
      %v1096 = vunpack.c.l.b16 %v963
      %v1097 = vunpack.c.l.b16 %v964
      %v1098 = vunpack.c.l.b16 %v965
      %v1099 = vunpack.c.l.b16 %v966
      %v1100 = vunpack.c.l.b16 %v967
      %v1101 = vunpack.c.l.b16 %v968
      %v1102 = vunpack.c.l.b16 %v969
      %v1103 = vunpack.c.l.b16 %v970
      %v1104 = vunpack.c.l.b16 %v971
      %v1105 = vunpack.c.l.b16 %v972
      %v1106 = vunpack.c.l.b16 %v973
      %v1107 = vunpack.c.l.b16 %v974
      %v1108 = vunpack.c.l.b16 %v975
      %v1109 = vunpack.c.l.b16 %v976
      %v1110 = vunpack.c.l.b16 %v977
      %v1111 = vunpack.c.l.b16 %v978
      %v1112 = vunpack.c.l.b16 %v979
      %v1113 = vunpack.c.l.b16 %v980
      %v1114 = vunpack.c.l.b16 %v981
      %v1115 = vunpack.c.l.b16 %v982
      %v1116 = vunpack.c.l.b16 %v983
      %v1117 = vunpack.c.l.b16 %v984
      %v1118 = vpack.c.b16 %v1055, %v1054
      %v1119 = vpack.c.b16 %v1057, %v1056
      %v1120 = vpack.c.b16 %v1059, %v1058
      %v1121 = vpack.c.b16 %v1061, %v1060
      %v1122 = vpack.c.b16 %v1063, %v1062
      %v1123 = vpack.c.b16 %v1065, %v1064
      %v1124 = vpack.c.b16 %v1067, %v1066
      %v1125 = vpack.c.b16 %v1069, %v1068
      %v1126 = vpack.c.b16 %v1071, %v1070
      %v1127 = vpack.c.b16 %v1073, %v1072
      %v1128 = vpack.c.b16 %v1075, %v1074
      %v1129 = vpack.c.b16 %v1077, %v1076
      %v1130 = vpack.c.b16 %v1079, %v1078
      %v1131 = vpack.c.b16 %v1081, %v1080
      %v1132 = vpack.c.b16 %v1083, %v1082
      %v1133 = vpack.c.b16 %v1085, %v1084
      %v1134 = vpack.c.b16 %v1087, %v1086
      %v1135 = vpack.c.b16 %v1089, %v1088
      %v1136 = vpack.c.b16 %v1091, %v1090
      %v1137 = vpack.c.b16 %v1093, %v1092
      %v1138 = vpack.c.b16 %v1095, %v1094
      %v1139 = vpack.c.b16 %v1097, %v1096
      %v1140 = vpack.c.b16 %v1099, %v1098
      %v1141 = vpack.c.b16 %v1101, %v1100
      %v1142 = vpack.c.b16 %v1103, %v1102
      %v1143 = vpack.c.b16 %v1105, %v1104
      %v1144 = vpack.c.b16 %v1107, %v1106
      %v1145 = vpack.c.b16 %v1109, %v1108
      %v1146 = vpack.c.b16 %v1111, %v1110
      %v1147 = vpack.c.b16 %v1113, %v1112
      %v1148 = vpack.c.b16 %v1115, %v1114
      %v1149 = vpack.c.b16 %v1117, %v1116
      %v1154 = vunpack.c.l.b16 %v986
      %v1155 = vunpack.c.l.b16 %v987
      %v1156 = vunpack.c.l.b16 %v988
      %v1157 = vunpack.c.l.b16 %v989
      %v1158 = vpack.c.b16 %v1155, %v1154
      %v1159 = vpack.c.b16 %v1157, %v1156
      %v1163 = vsel %vm535, %v1118, 0
      %v1166 = vsel %vm535, %v1119, 0
      %v1169 = vsel %vm535, %v1120, 0
      %v1172 = vsel %vm535, %v1121, 0
      %v1175 = vsel %vm535, %v1122, 0
      %v1178 = vsel %vm535, %v1123, 0
      %v1181 = vsel %vm535, %v1124, 0
      %v1184 = vsel %vm535, %v1125, 0
      %v1187 = vsel %vm535, %v1126, 0
      %v1190 = vsel %vm535, %v1127, 0
      %v1193 = vsel %vm535, %v1128, 0
      %v1196 = vsel %vm535, %v1129, 0
      %v1199 = vsel %vm535, %v1130, 0
      %v1202 = vsel %vm535, %v1131, 0
      %v1205 = vsel %vm535, %v1132, 0
      %v1208 = vsel %vm535, %v1133, 0
      %v1211 = vsel %vm535, %v1134, 0
      %v1214 = vsel %vm535, %v1135, 0
      %v1217 = vsel %vm535, %v1136, 0
      %v1220 = vsel %vm535, %v1137, 0
      %v1223 = vsel %vm535, %v1138, 0
      %v1226 = vsel %vm535, %v1139, 0
      %v1229 = vsel %vm535, %v1140, 0
      %v1232 = vsel %vm535, %v1141, 0
      %v1235 = vsel %vm535, %v1142, 0
      %v1238 = vsel %vm535, %v1143, 0
      %v1241 = vsel %vm535, %v1144, 0
      %v1244 = vsel %vm535, %v1145, 0
      %v1247 = vsel %vm535, %v1146, 0
      %v1250 = vsel %vm535, %v1147, 0
      %v1253 = vsel %vm535, %v1148, 0
      %v1256 = vsel %vm535, %v1149, 0
      %1258 = vmatprep.subr.bf16.mxu0 0
      %1259 = vmatpush1.bf16.msra.mxu0 %v1158
      %1260 = vmatprep.subr.bf16.mxu0 0
      %1261 = vmatpush1.bf16.msra.mxu0 %v1159
      %1262 = vmatprep.subr.bf16.mxu0 0
      %1263 = vmatpush1.bf16.msra.mxu0 0
      %1264 = vmatprep.subr.bf16.mxu0 0
      %1265 = vmatpush1.bf16.msra.mxu0 0
      %1266 = vmatprep.subr.bf16.mxu0 0
      %1267 = vmatpush1.bf16.msra.mxu0 0
      %1268 = vmatprep.subr.bf16.mxu0 0
      %1269 = vmatpush1.bf16.msra.mxu0 0
      %1270 = vmatprep.subr.bf16.mxu0 0
      %1271 = vmatpush1.bf16.msra.mxu0 0
      %1272 = vmatprep.subr.bf16.mxu0 0
      %1273 = vmatpush1.bf16.msra.mxu0 0
      %1274 = vmatprep.subr.bf16.mxu0 0
      %1275 = vmatpush1.bf16.msra.mxu0 0
      %1276 = vmatprep.subr.bf16.mxu0 0
      %1277 = vmatpush1.bf16.msra.mxu0 0
      %1278 = vmatprep.subr.bf16.mxu0 0
      %1279 = vmatpush1.bf16.msra.mxu0 0
      %1280 = vmatprep.subr.bf16.mxu0 0
      %1281 = vmatpush1.bf16.msra.mxu0 0
      %1282 = vmatprep.subr.bf16.mxu0 0
      %1283 = vmatpush1.bf16.msra.mxu0 0
      %1284 = vmatprep.subr.bf16.mxu0 0
      %1285 = vmatpush1.bf16.msra.mxu0 0
      %1286 = vmatprep.subr.bf16.mxu0 0
      %1287 = vmatpush1.bf16.msra.mxu0 0
      %1288 = vmatprep.subr.bf16.mxu0 0
      %1289 = vmatpush1.bf16.msra.mxu0 0
      %1290 = vmatprep.mubr.bf16.mxu0 0
      %1291 = vmatmul.mubr.bf16.gmra.mrb[0].mxu0 %v1163
      %v1292 = vpop.f32.mrb[0].mxu0
      %v1293 = vadd.f32 0.0, %v1292
      %v1294 = vpop.f32.mrb[0].mxu0
      %v1295 = vpop.f32.mrb[0].mxu0
      %v1296 = vadd.f32 0.0, %v1295
      %v1297 = vpop.f32.mrb[0].mxu0
      %1298 = vmatprep.mubr.bf16.mxu0 0
      %1299 = vmatmul.mubr.bf16.gmra.mrb[0].mxu0 %v1166
      %v1300 = vpop.f32.mrb[0].mxu0
      %v1301 = vadd.f32 0.0, %v1300
      %v1302 = vpop.f32.mrb[0].mxu0
      %v1303 = vpop.f32.mrb[0].mxu0
      %v1304 = vadd.f32 0.0, %v1303
      %v1305 = vpop.f32.mrb[0].mxu0
      %1306 = vmatprep.mubr.bf16.mxu0 0
      %1307 = vmatmul.mubr.bf16.gmra.mrb[0].mxu0 %v1169
      %v1308 = vpop.f32.mrb[0].mxu0
      %v1309 = vadd.f32 0.0, %v1308
      %v1310 = vpop.f32.mrb[0].mxu0
      %v1311 = vpop.f32.mrb[0].mxu0
      %v1312 = vadd.f32 0.0, %v1311
      %v1313 = vpop.f32.mrb[0].mxu0
      %1314 = vmatprep.mubr.bf16.mxu0 0
      %1315 = vmatmul.mubr.bf16.gmra.mrb[0].mxu0 %v1172
      %v1316 = vpop.f32.mrb[0].mxu0
      %v1317 = vadd.f32 0.0, %v1316
      %v1318 = vpop.f32.mrb[0].mxu0
      %v1319 = vpop.f32.mrb[0].mxu0
      %v1320 = vadd.f32 0.0, %v1319
      %v1321 = vpop.f32.mrb[0].mxu0
      %1322 = vmatprep.mubr.bf16.mxu0 0
      %1323 = vmatmul.mubr.bf16.gmra.mrb[0].mxu0 %v1175
      %v1324 = vpop.f32.mrb[0].mxu0
      %v1325 = vadd.f32 0.0, %v1324
      %v1326 = vpop.f32.mrb[0].mxu0
      %v1327 = vpop.f32.mrb[0].mxu0
      %v1328 = vadd.f32 0.0, %v1327
      %v1329 = vpop.f32.mrb[0].mxu0
      %1330 = vmatprep.mubr.bf16.mxu0 0
      %1331 = vmatmul.mubr.bf16.gmra.mrb[0].mxu0 %v1178
      %v1332 = vpop.f32.mrb[0].mxu0
      %v1333 = vadd.f32 0.0, %v1332
      %v1334 = vpop.f32.mrb[0].mxu0
      %v1335 = vpop.f32.mrb[0].mxu0
      %v1336 = vadd.f32 0.0, %v1335
      %v1337 = vpop.f32.mrb[0].mxu0
      %1338 = vmatprep.mubr.bf16.mxu0 0
      %1339 = vmatmul.mubr.bf16.gmra.mrb[0].mxu0 %v1181
      %v1340 = vpop.f32.mrb[0].mxu0
      %v1341 = vadd.f32 0.0, %v1340
      %v1342 = vpop.f32.mrb[0].mxu0
      %v1343 = vpop.f32.mrb[0].mxu0
      %v1344 = vadd.f32 0.0, %v1343
      %v1345 = vpop.f32.mrb[0].mxu0
      %1346 = vmatprep.mubr.bf16.mxu0 0
      %1347 = vmatmul.mubr.bf16.gmra.mrb[0].mxu0 %v1184
      %v1348 = vpop.f32.mrb[0].mxu0
      %v1349 = vadd.f32 0.0, %v1348
      %v1350 = vpop.f32.mrb[0].mxu0
      %v1351 = vpop.f32.mrb[0].mxu0
      %v1352 = vadd.f32 0.0, %v1351
      %v1353 = vpop.f32.mrb[0].mxu0
      %1354 = vmatprep.mubr.bf16.mxu0 0
      %1355 = vmatmul.mubr.bf16.gmra.mrb[0].mxu0 %v1187
      %v1356 = vpop.f32.mrb[0].mxu0
      %v1357 = vadd.f32 0.0, %v1356
      %v1358 = vpop.f32.mrb[0].mxu0
      %v1359 = vpop.f32.mrb[0].mxu0
      %v1360 = vadd.f32 0.0, %v1359
      %v1361 = vpop.f32.mrb[0].mxu0
      %1362 = vmatprep.mubr.bf16.mxu0 0
      %1363 = vmatmul.mubr.bf16.gmra.mrb[0].mxu0 %v1190
      %v1364 = vpop.f32.mrb[0].mxu0
      %v1365 = vadd.f32 0.0, %v1364
      %v1366 = vpop.f32.mrb[0].mxu0
      %v1367 = vpop.f32.mrb[0].mxu0
      %v1368 = vadd.f32 0.0, %v1367
      %v1369 = vpop.f32.mrb[0].mxu0
      %1370 = vmatprep.mubr.bf16.mxu0 0
      %1371 = vmatmul.mubr.bf16.gmra.mrb[0].mxu0 %v1193
      %v1372 = vpop.f32.mrb[0].mxu0
      %v1373 = vadd.f32 0.0, %v1372
      %v1374 = vpop.f32.mrb[0].mxu0
      %v1375 = vpop.f32.mrb[0].mxu0
      %v1376 = vadd.f32 0.0, %v1375
      %v1377 = vpop.f32.mrb[0].mxu0
      %1378 = vmatprep.mubr.bf16.mxu0 0
      %1379 = vmatmul.mubr.bf16.gmra.mrb[0].mxu0 %v1196
      %v1380 = vpop.f32.mrb[0].mxu0
      %v1381 = vadd.f32 0.0, %v1380
      %v1382 = vpop.f32.mrb[0].mxu0
      %v1383 = vpop.f32.mrb[0].mxu0
      %v1384 = vadd.f32 0.0, %v1383
      %v1385 = vpop.f32.mrb[0].mxu0
      %1386 = vmatprep.mubr.bf16.mxu0 0
      %1387 = vmatmul.mubr.bf16.gmra.mrb[0].mxu0 %v1199
      %v1388 = vpop.f32.mrb[0].mxu0
      %v1389 = vadd.f32 0.0, %v1388
      %v1390 = vpop.f32.mrb[0].mxu0
      %v1391 = vpop.f32.mrb[0].mxu0
      %v1392 = vadd.f32 0.0, %v1391
      %v1393 = vpop.f32.mrb[0].mxu0
      %1394 = vmatprep.mubr.bf16.mxu0 0
      %1395 = vmatmul.mubr.bf16.gmra.mrb[0].mxu0 %v1202
      %v1396 = vpop.f32.mrb[0].mxu0
      %v1397 = vadd.f32 0.0, %v1396
      %v1398 = vpop.f32.mrb[0].mxu0
      %v1399 = vpop.f32.mrb[0].mxu0
      %v1400 = vadd.f32 0.0, %v1399
      %v1401 = vpop.f32.mrb[0].mxu0
      %1402 = vmatprep.mubr.bf16.mxu0 0
      %1403 = vmatmul.mubr.bf16.gmra.mrb[0].mxu0 %v1205
      %v1404 = vpop.f32.mrb[0].mxu0
      %v1405 = vadd.f32 0.0, %v1404
      %v1406 = vpop.f32.mrb[0].mxu0
      %v1407 = vpop.f32.mrb[0].mxu0
      %v1408 = vadd.f32 0.0, %v1407
      %v1409 = vpop.f32.mrb[0].mxu0
      %1410 = vmatprep.mubr.bf16.mxu0 0
      %1411 = vmatmul.mubr.bf16.gmra.mrb[0].mxu0 %v1208
      %v1412 = vpop.f32.mrb[0].mxu0
      %v1413 = vadd.f32 0.0, %v1412
      %v1414 = vpop.f32.mrb[0].mxu0
      %v1415 = vpop.f32.mrb[0].mxu0
      %v1416 = vadd.f32 0.0, %v1415
      %v1417 = vpop.f32.mrb[0].mxu0
      %1418 = vmatprep.mubr.bf16.mxu0 0
      %1419 = vmatmul.mubr.bf16.gmra.mrb[0].mxu0 %v1211
      %v1420 = vpop.f32.mrb[0].mxu0
      %v1421 = vadd.f32 0.0, %v1420
      %v1422 = vpop.f32.mrb[0].mxu0
      %v1423 = vpop.f32.mrb[0].mxu0
      %v1424 = vadd.f32 0.0, %v1423
      %v1425 = vpop.f32.mrb[0].mxu0
      %1426 = vmatprep.mubr.bf16.mxu0 0
      %1427 = vmatmul.mubr.bf16.gmra.mrb[0].mxu0 %v1214
      %v1428 = vpop.f32.mrb[0].mxu0
      %v1429 = vadd.f32 0.0, %v1428
      %v1430 = vpop.f32.mrb[0].mxu0
      %v1431 = vpop.f32.mrb[0].mxu0
      %v1432 = vadd.f32 0.0, %v1431
      %v1433 = vpop.f32.mrb[0].mxu0
      %1434 = vmatprep.mubr.bf16.mxu0 0
      %1435 = vmatmul.mubr.bf16.gmra.mrb[0].mxu0 %v1217
      %v1436 = vpop.f32.mrb[0].mxu0
      %v1437 = vadd.f32 0.0, %v1436
      %v1438 = vpop.f32.mrb[0].mxu0
      %v1439 = vpop.f32.mrb[0].mxu0
      %v1440 = vadd.f32 0.0, %v1439
      %v1441 = vpop.f32.mrb[0].mxu0
      %1442 = vmatprep.mubr.bf16.mxu0 0
      %1443 = vmatmul.mubr.bf16.gmra.mrb[0].mxu0 %v1220
      %v1444 = vpop.f32.mrb[0].mxu0
      %v1445 = vadd.f32 0.0, %v1444
      %v1446 = vpop.f32.mrb[0].mxu0
      %v1447 = vpop.f32.mrb[0].mxu0
      %v1448 = vadd.f32 0.0, %v1447
      %v1449 = vpop.f32.mrb[0].mxu0
      %1450 = vmatprep.mubr.bf16.mxu0 0
      %1451 = vmatmul.mubr.bf16.gmra.mrb[0].mxu0 %v1223
      %v1452 = vpop.f32.mrb[0].mxu0
      %v1453 = vadd.f32 0.0, %v1452
      %v1454 = vpop.f32.mrb[0].mxu0
      %v1455 = vpop.f32.mrb[0].mxu0
      %v1456 = vadd.f32 0.0, %v1455
      %v1457 = vpop.f32.mrb[0].mxu0
      %1458 = vmatprep.mubr.bf16.mxu0 0
      %1459 = vmatmul.mubr.bf16.gmra.mrb[0].mxu0 %v1226
      %v1460 = vpop.f32.mrb[0].mxu0
      %v1461 = vadd.f32 0.0, %v1460
      %v1462 = vpop.f32.mrb[0].mxu0
      %v1463 = vpop.f32.mrb[0].mxu0
      %v1464 = vadd.f32 0.0, %v1463
      %v1465 = vpop.f32.mrb[0].mxu0
      %1466 = vmatprep.mubr.bf16.mxu0 0
      %1467 = vmatmul.mubr.bf16.gmra.mrb[0].mxu0 %v1229
      %v1468 = vpop.f32.mrb[0].mxu0
      %v1469 = vadd.f32 0.0, %v1468
      %v1470 = vpop.f32.mrb[0].mxu0
      %v1471 = vpop.f32.mrb[0].mxu0
      %v1472 = vadd.f32 0.0, %v1471
      %v1473 = vpop.f32.mrb[0].mxu0
      %1474 = vmatprep.mubr.bf16.mxu0 0
      %1475 = vmatmul.mubr.bf16.gmra.mrb[0].mxu0 %v1232
      %v1476 = vpop.f32.mrb[0].mxu0
      %v1477 = vadd.f32 0.0, %v1476
      %v1478 = vpop.f32.mrb[0].mxu0
      %v1479 = vpop.f32.mrb[0].mxu0
      %v1480 = vadd.f32 0.0, %v1479
      %v1481 = vpop.f32.mrb[0].mxu0
      %1482 = vmatprep.mubr.bf16.mxu0 0
      %1483 = vmatmul.mubr.bf16.gmra.mrb[0].mxu0 %v1235
      %v1484 = vpop.f32.mrb[0].mxu0
      %v1485 = vadd.f32 0.0, %v1484
      %v1486 = vpop.f32.mrb[0].mxu0
      %v1487 = vpop.f32.mrb[0].mxu0
      %v1488 = vadd.f32 0.0, %v1487
      %v1489 = vpop.f32.mrb[0].mxu0
      %1490 = vmatprep.mubr.bf16.mxu0 0
      %1491 = vmatmul.mubr.bf16.gmra.mrb[0].mxu0 %v1238
      %v1492 = vpop.f32.mrb[0].mxu0
      %v1493 = vadd.f32 0.0, %v1492
      %v1494 = vpop.f32.mrb[0].mxu0
      %v1495 = vpop.f32.mrb[0].mxu0
      %v1496 = vadd.f32 0.0, %v1495
      %v1497 = vpop.f32.mrb[0].mxu0
      %1498 = vmatprep.mubr.bf16.mxu0 0
      %1499 = vmatmul.mubr.bf16.gmra.mrb[0].mxu0 %v1241
      %v1500 = vpop.f32.mrb[0].mxu0
      %v1501 = vadd.f32 0.0, %v1500
      %v1502 = vpop.f32.mrb[0].mxu0
      %v1503 = vpop.f32.mrb[0].mxu0
      %v1504 = vadd.f32 0.0, %v1503
      %v1505 = vpop.f32.mrb[0].mxu0
      %1506 = vmatprep.mubr.bf16.mxu0 0
      %1507 = vmatmul.mubr.bf16.gmra.mrb[0].mxu0 %v1244
      %v1508 = vpop.f32.mrb[0].mxu0
      %v1509 = vadd.f32 0.0, %v1508
      %v1510 = vpop.f32.mrb[0].mxu0
      %v1511 = vpop.f32.mrb[0].mxu0
      %v1512 = vadd.f32 0.0, %v1511
      %v1513 = vpop.f32.mrb[0].mxu0
      %1514 = vmatprep.mubr.bf16.mxu0 0
      %1515 = vmatmul.mubr.bf16.gmra.mrb[0].mxu0 %v1247
      %v1516 = vpop.f32.mrb[0].mxu0
      %v1517 = vadd.f32 0.0, %v1516
      %v1518 = vpop.f32.mrb[0].mxu0
      %v1519 = vpop.f32.mrb[0].mxu0
      %v1520 = vadd.f32 0.0, %v1519
      %v1521 = vpop.f32.mrb[0].mxu0
      %1522 = vmatprep.mubr.bf16.mxu0 0
      %1523 = vmatmul.mubr.bf16.gmra.mrb[0].mxu0 %v1250
      %v1524 = vpop.f32.mrb[0].mxu0
      %v1525 = vadd.f32 0.0, %v1524
      %v1526 = vpop.f32.mrb[0].mxu0
      %v1527 = vpop.f32.mrb[0].mxu0
      %v1528 = vadd.f32 0.0, %v1527
      %v1529 = vpop.f32.mrb[0].mxu0
      %1530 = vmatprep.mubr.bf16.mxu0 0
      %1531 = vmatmul.mubr.bf16.gmra.mrb[0].mxu0 %v1253
      %v1532 = vpop.f32.mrb[0].mxu0
      %v1533 = vadd.f32 0.0, %v1532
      %v1534 = vpop.f32.mrb[0].mxu0
      %v1535 = vpop.f32.mrb[0].mxu0
      %v1536 = vadd.f32 0.0, %v1535
      %v1537 = vpop.f32.mrb[0].mxu0
      %1538 = vmatprep.mubr.bf16.mxu0 0
      %1539 = vmatmul.mubr.bf16.gmra.mrb[0].mxu0 %v1256
      %v1540 = vpop.f32.mrb[0].mxu0
      %v1541 = vadd.f32 0.0, %v1540
      %v1542 = vpop.f32.mrb[0].mxu0
      %v1543 = vpop.f32.mrb[0].mxu0
      %v1544 = vadd.f32 0.0, %v1543
      %v1545 = vpop.f32.mrb[0].mxu0
      %1546 = vdwg.mxu0
      %v1547 = vld [vmem:[%s280] sm:$0xf]
      %v1548 = vld [vmem:[%s280 + $0x4] sm:$0xf]
      %v1549 = vld [vmem:[%s280 + $0x8] sm:$0xf]
      %v1550 = vld [vmem:[%s280 + $0xc] sm:$0xf]
      %v1551 = vld [vmem:[%s280 + $0x10] sm:$0xf]
      %v1552 = vld [vmem:[%s280 + $0x14] sm:$0xf]
      %v1553 = vld [vmem:[%s280 + $0x18] sm:$0xf]
      %v1554 = vld [vmem:[%s280 + $0x1c] sm:$0xf]
      %v1555 = vld [vmem:[%s280 + $0x20] sm:$0xf]
      %v1556 = vld [vmem:[%s280 + $0x24] sm:$0xf]
      %v1557 = vld [vmem:[%s280 + $0x28] sm:$0xf]
      %v1558 = vld [vmem:[%s280 + $0x2c] sm:$0xf]
      %v1559 = vld [vmem:[%s280 + $0x30] sm:$0xf]
      %v1560 = vld [vmem:[%s280 + $0x34] sm:$0xf]
      %v1561 = vld [vmem:[%s280 + $0x38] sm:$0xf]
      %v1562 = vld [vmem:[%s280 + $0x3c] sm:$0xf]
      %v1563 = vld [vmem:[%s280 + $0x40] sm:$0xf]
      %v1564 = vld [vmem:[%s280 + $0x44] sm:$0xf]
      %v1565 = vld [vmem:[%s280 + $0x48] sm:$0xf]
      %v1566 = vld [vmem:[%s280 + $0x4c] sm:$0xf]
      %v1567 = vld [vmem:[%s280 + $0x50] sm:$0xf]
      %v1568 = vld [vmem:[%s280 + $0x54] sm:$0xf]
      %v1569 = vld [vmem:[%s280 + $0x58] sm:$0xf]
      %v1570 = vld [vmem:[%s280 + $0x5c] sm:$0xf]
      %v1571 = vld [vmem:[%s280 + $0x60] sm:$0xf]
      %v1572 = vld [vmem:[%s280 + $0x64] sm:$0xf]
      %v1573 = vld [vmem:[%s280 + $0x68] sm:$0xf]
      %v1574 = vld [vmem:[%s280 + $0x6c] sm:$0xf]
      %v1575 = vld [vmem:[%s280 + $0x70] sm:$0xf]
      %v1576 = vld [vmem:[%s280 + $0x74] sm:$0xf]
      %v1577 = vld [vmem:[%s280 + $0x78] sm:$0xf]
      %v1578 = vld [vmem:[%s280 + $0x7c] sm:$0xf]
      %v1579 = vld [vmem:[%s280 + $0x80] sm:$0xf]
      %v1580 = vld [vmem:[%s280 + $0x84] sm:$0xf]
      %v1581 = vld [vmem:[%s280 + $0x88] sm:$0xf]
      %v1582 = vld [vmem:[%s280 + $0x8c] sm:$0xf]
      %v1583 = vld [vmem:[%s280 + $0x90] sm:$0xf]
      %v1584 = vld [vmem:[%s280 + $0x94] sm:$0xf]
      %v1585 = vld [vmem:[%s280 + $0x98] sm:$0xf]
      %v1586 = vld [vmem:[%s280 + $0x9c] sm:$0xf]
      %v1587 = vld [vmem:[%s280 + $0xa0] sm:$0xf]
      %v1588 = vld [vmem:[%s280 + $0xa4] sm:$0xf]
      %v1589 = vld [vmem:[%s280 + $0xa8] sm:$0xf]
      %v1590 = vld [vmem:[%s280 + $0xac] sm:$0xf]
      %v1591 = vld [vmem:[%s280 + $0xb0] sm:$0xf]
      %v1592 = vld [vmem:[%s280 + $0xb4] sm:$0xf]
      %v1593 = vld [vmem:[%s280 + $0xb8] sm:$0xf]
      %v1594 = vld [vmem:[%s280 + $0xbc] sm:$0xf]
      %v1595 = vld [vmem:[%s280 + $0xc0] sm:$0xf]
      %v1596 = vld [vmem:[%s280 + $0xc4] sm:$0xf]
      %v1597 = vld [vmem:[%s280 + $0xc8] sm:$0xf]
      %v1598 = vld [vmem:[%s280 + $0xcc] sm:$0xf]
      %v1599 = vld [vmem:[%s280 + $0xd0] sm:$0xf]
      %v1600 = vld [vmem:[%s280 + $0xd4] sm:$0xf]
      %v1601 = vld [vmem:[%s280 + $0xd8] sm:$0xf]
      %v1602 = vld [vmem:[%s280 + $0xdc] sm:$0xf]
      %v1603 = vld [vmem:[%s280 + $0xe0] sm:$0xf]
      %v1604 = vld [vmem:[%s280 + $0xe4] sm:$0xf]
      %v1605 = vld [vmem:[%s280 + $0xe8] sm:$0xf]
      %v1606 = vld [vmem:[%s280 + $0xec] sm:$0xf]
      %v1607 = vld [vmem:[%s280 + $0xf0] sm:$0xf]
      %v1608 = vld [vmem:[%s280 + $0xf4] sm:$0xf]
      %v1609 = vld [vmem:[%s280 + $0xf8] sm:$0xf]
      %v1610 = vld [vmem:[%s280 + $0xfc] sm:$0xf]
      %s1611 = scalar_lea.vmem %s4, 32
      %v1612 = vld [vmem:[%s1611] sm:$0xf]
      %v1613 = vld [vmem:[%s1611 + $0x4] sm:$0xf]
      %v1614 = vld [vmem:[%s1611 + $0x8] sm:$0xf]
      %v1615 = vld [vmem:[%s1611 + $0xc] sm:$0xf]
      %v1680 = vunpack.c.l.b16 %v1547
      %v1681 = vunpack.c.l.b16 %v1548
      %v1682 = vunpack.c.l.b16 %v1549
      %v1683 = vunpack.c.l.b16 %v1550
      %v1684 = vunpack.c.l.b16 %v1551
      %v1685 = vunpack.c.l.b16 %v1552
      %v1686 = vunpack.c.l.b16 %v1553
      %v1687 = vunpack.c.l.b16 %v1554
      %v1688 = vunpack.c.l.b16 %v1555
      %v1689 = vunpack.c.l.b16 %v1556
      %v1690 = vunpack.c.l.b16 %v1557
      %v1691 = vunpack.c.l.b16 %v1558
      %v1692 = vunpack.c.l.b16 %v1559
      %v1693 = vunpack.c.l.b16 %v1560
      %v1694 = vunpack.c.l.b16 %v1561
      %v1695 = vunpack.c.l.b16 %v1562
      %v1696 = vunpack.c.l.b16 %v1563
      %v1697 = vunpack.c.l.b16 %v1564
      %v1698 = vunpack.c.l.b16 %v1565
      %v1699 = vunpack.c.l.b16 %v1566
      %v1700 = vunpack.c.l.b16 %v1567
      %v1701 = vunpack.c.l.b16 %v1568
      %v1702 = vunpack.c.l.b16 %v1569
      %v1703 = vunpack.c.l.b16 %v1570
      %v1704 = vunpack.c.l.b16 %v1571
      %v1705 = vunpack.c.l.b16 %v1572
      %v1706 = vunpack.c.l.b16 %v1573
      %v1707 = vunpack.c.l.b16 %v1574
      %v1708 = vunpack.c.l.b16 %v1575
      %v1709 = vunpack.c.l.b16 %v1576
      %v1710 = vunpack.c.l.b16 %v1577
      %v1711 = vunpack.c.l.b16 %v1578
      %v1712 = vunpack.c.l.b16 %v1579
      %v1713 = vunpack.c.l.b16 %v1580
      %v1714 = vunpack.c.l.b16 %v1581
      %v1715 = vunpack.c.l.b16 %v1582
      %v1716 = vunpack.c.l.b16 %v1583
      %v1717 = vunpack.c.l.b16 %v1584
      %v1718 = vunpack.c.l.b16 %v1585
      %v1719 = vunpack.c.l.b16 %v1586
      %v1720 = vunpack.c.l.b16 %v1587
      %v1721 = vunpack.c.l.b16 %v1588
      %v1722 = vunpack.c.l.b16 %v1589
      %v1723 = vunpack.c.l.b16 %v1590
      %v1724 = vunpack.c.l.b16 %v1591
      %v1725 = vunpack.c.l.b16 %v1592
      %v1726 = vunpack.c.l.b16 %v1593
      %v1727 = vunpack.c.l.b16 %v1594
      %v1728 = vunpack.c.l.b16 %v1595
      %v1729 = vunpack.c.l.b16 %v1596
      %v1730 = vunpack.c.l.b16 %v1597
      %v1731 = vunpack.c.l.b16 %v1598
      %v1732 = vunpack.c.l.b16 %v1599
      %v1733 = vunpack.c.l.b16 %v1600
      %v1734 = vunpack.c.l.b16 %v1601
      %v1735 = vunpack.c.l.b16 %v1602
      %v1736 = vunpack.c.l.b16 %v1603
      %v1737 = vunpack.c.l.b16 %v1604
      %v1738 = vunpack.c.l.b16 %v1605
      %v1739 = vunpack.c.l.b16 %v1606
      %v1740 = vunpack.c.l.b16 %v1607
      %v1741 = vunpack.c.l.b16 %v1608
      %v1742 = vunpack.c.l.b16 %v1609
      %v1743 = vunpack.c.l.b16 %v1610
      %v1744 = vpack.c.b16 %v1681, %v1680
      %v1745 = vpack.c.b16 %v1683, %v1682
      %v1746 = vpack.c.b16 %v1685, %v1684
      %v1747 = vpack.c.b16 %v1687, %v1686
      %v1748 = vpack.c.b16 %v1689, %v1688
      %v1749 = vpack.c.b16 %v1691, %v1690
      %v1750 = vpack.c.b16 %v1693, %v1692
      %v1751 = vpack.c.b16 %v1695, %v1694
      %v1752 = vpack.c.b16 %v1697, %v1696
      %v1753 = vpack.c.b16 %v1699, %v1698
      %v1754 = vpack.c.b16 %v1701, %v1700
      %v1755 = vpack.c.b16 %v1703, %v1702
      %v1756 = vpack.c.b16 %v1705, %v1704
      %v1757 = vpack.c.b16 %v1707, %v1706
      %v1758 = vpack.c.b16 %v1709, %v1708
      %v1759 = vpack.c.b16 %v1711, %v1710
      %v1760 = vpack.c.b16 %v1713, %v1712
      %v1761 = vpack.c.b16 %v1715, %v1714
      %v1762 = vpack.c.b16 %v1717, %v1716
      %v1763 = vpack.c.b16 %v1719, %v1718
      %v1764 = vpack.c.b16 %v1721, %v1720
      %v1765 = vpack.c.b16 %v1723, %v1722
      %v1766 = vpack.c.b16 %v1725, %v1724
      %v1767 = vpack.c.b16 %v1727, %v1726
      %v1768 = vpack.c.b16 %v1729, %v1728
      %v1769 = vpack.c.b16 %v1731, %v1730
      %v1770 = vpack.c.b16 %v1733, %v1732
      %v1771 = vpack.c.b16 %v1735, %v1734
      %v1772 = vpack.c.b16 %v1737, %v1736
      %v1773 = vpack.c.b16 %v1739, %v1738
      %v1774 = vpack.c.b16 %v1741, %v1740
      %v1775 = vpack.c.b16 %v1743, %v1742
      %v1780 = vunpack.c.l.b16 %v1612
      %v1781 = vunpack.c.l.b16 %v1613
      %v1782 = vunpack.c.l.b16 %v1614
      %v1783 = vunpack.c.l.b16 %v1615
      %v1784 = vpack.c.b16 %v1781, %v1780
      %v1785 = vpack.c.b16 %v1783, %v1782
      %v1789 = vsel %vm535, %v1744, 0
      %v1792 = vsel %vm535, %v1745, 0
      %v1795 = vsel %vm535, %v1746, 0
      %v1798 = vsel %vm535, %v1747, 0
      %v1801 = vsel %vm535, %v1748, 0
      %v1804 = vsel %vm535, %v1749, 0
      %v1807 = vsel %vm535, %v1750, 0
      %v1810 = vsel %vm535, %v1751, 0
      %v1813 = vsel %vm535, %v1752, 0
      %v1816 = vsel %vm535, %v1753, 0
      %v1819 = vsel %vm535, %v1754, 0
      %v1822 = vsel %vm535, %v1755, 0
      %v1825 = vsel %vm535, %v1756, 0
      %v1828 = vsel %vm535, %v1757, 0
      %v1831 = vsel %vm535, %v1758, 0
      %v1834 = vsel %vm535, %v1759, 0
      %v1837 = vsel %vm535, %v1760, 0
      %v1840 = vsel %vm535, %v1761, 0
      %v1843 = vsel %vm535, %v1762, 0
      %v1846 = vsel %vm535, %v1763, 0
      %v1849 = vsel %vm535, %v1764, 0
      %v1852 = vsel %vm535, %v1765, 0
      %v1855 = vsel %vm535, %v1766, 0
      %v1858 = vsel %vm535, %v1767, 0
      %v1861 = vsel %vm535, %v1768, 0
      %v1864 = vsel %vm535, %v1769, 0
      %v1867 = vsel %vm535, %v1770, 0
      %v1870 = vsel %vm535, %v1771, 0
      %v1873 = vsel %vm535, %v1772, 0
      %v1876 = vsel %vm535, %v1773, 0
      %v1879 = vsel %vm535, %v1774, 0
      %v1882 = vsel %vm535, %v1775, 0
      %1884 = vmatprep.subr.bf16.mxu0 0
      %1885 = vmatpush1.bf16.msra.mxu0 %v1784
      %1886 = vmatprep.subr.bf16.mxu0 0
      %1887 = vmatpush1.bf16.msra.mxu0 %v1785
      %1888 = vmatprep.subr.bf16.mxu0 0
      %1889 = vmatpush1.bf16.msra.mxu0 0
      %1890 = vmatprep.subr.bf16.mxu0 0
      %1891 = vmatpush1.bf16.msra.mxu0 0
      %1892 = vmatprep.subr.bf16.mxu0 0
      %1893 = vmatpush1.bf16.msra.mxu0 0
      %1894 = vmatprep.subr.bf16.mxu0 0
      %1895 = vmatpush1.bf16.msra.mxu0 0
      %1896 = vmatprep.subr.bf16.mxu0 0
      %1897 = vmatpush1.bf16.msra.mxu0 0
      %1898 = vmatprep.subr.bf16.mxu0 0
      %1899 = vmatpush1.bf16.msra.mxu0 0
      %1900 = vmatprep.subr.bf16.mxu0 0
      %1901 = vmatpush1.bf16.msra.mxu0 0
      %1902 = vmatprep.subr.bf16.mxu0 0
      %1903 = vmatpush1.bf16.msra.mxu0 0
      %1904 = vmatprep.subr.bf16.mxu0 0
      %1905 = vmatpush1.bf16.msra.mxu0 0
      %1906 = vmatprep.subr.bf16.mxu0 0
      %1907 = vmatpush1.bf16.msra.mxu0 0
      %1908 = vmatprep.subr.bf16.mxu0 0
      %1909 = vmatpush1.bf16.msra.mxu0 0
      %1910 = vmatprep.subr.bf16.mxu0 0
      %1911 = vmatpush1.bf16.msra.mxu0 0
      %1912 = vmatprep.subr.bf16.mxu0 0
      %1913 = vmatpush1.bf16.msra.mxu0 0
      %1914 = vmatprep.subr.bf16.mxu0 0
      %1915 = vmatpush1.bf16.msra.mxu0 0
      %1916 = vmatprep.mubr.bf16.mxu0 0
      %1917 = vmatmul.mubr.bf16.gmra.mrb[0].mxu0 %v1789
      %v1918 = vpop.f32.mrb[0].mxu0
      %v1919 = vadd.f32 0.0, %v1918
      %v1920 = vpop.f32.mrb[0].mxu0
      %v1921 = vpop.f32.mrb[0].mxu0
      %v1922 = vadd.f32 0.0, %v1921
      %v1923 = vpop.f32.mrb[0].mxu0
      %1924 = vmatprep.mubr.bf16.mxu0 0
      %1925 = vmatmul.mubr.bf16.gmra.mrb[0].mxu0 %v1792
      %v1926 = vpop.f32.mrb[0].mxu0
      %v1927 = vadd.f32 0.0, %v1926
      %v1928 = vpop.f32.mrb[0].mxu0
      %v1929 = vpop.f32.mrb[0].mxu0
      %v1930 = vadd.f32 0.0, %v1929
      %v1931 = vpop.f32.mrb[0].mxu0
      %1932 = vmatprep.mubr.bf16.mxu0 0
      %1933 = vmatmul.mubr.bf16.gmra.mrb[0].mxu0 %v1795
      %v1934 = vpop.f32.mrb[0].mxu0
      %v1935 = vadd.f32 0.0, %v1934
      %v1936 = vpop.f32.mrb[0].mxu0
      %v1937 = vpop.f32.mrb[0].mxu0
      %v1938 = vadd.f32 0.0, %v1937
      %v1939 = vpop.f32.mrb[0].mxu0
      %1940 = vmatprep.mubr.bf16.mxu0 0
      %1941 = vmatmul.mubr.bf16.gmra.mrb[0].mxu0 %v1798
      %v1942 = vpop.f32.mrb[0].mxu0
      %v1943 = vadd.f32 0.0, %v1942
      %v1944 = vpop.f32.mrb[0].mxu0
      %v1945 = vpop.f32.mrb[0].mxu0
      %v1946 = vadd.f32 0.0, %v1945
      %v1947 = vpop.f32.mrb[0].mxu0
      %1948 = vmatprep.mubr.bf16.mxu0 0
      %1949 = vmatmul.mubr.bf16.gmra.mrb[0].mxu0 %v1801
      %v1950 = vpop.f32.mrb[0].mxu0
      %v1951 = vadd.f32 0.0, %v1950
      %v1952 = vpop.f32.mrb[0].mxu0
      %v1953 = vpop.f32.mrb[0].mxu0
      %v1954 = vadd.f32 0.0, %v1953
      %v1955 = vpop.f32.mrb[0].mxu0
      %1956 = vmatprep.mubr.bf16.mxu0 0
      %1957 = vmatmul.mubr.bf16.gmra.mrb[0].mxu0 %v1804
      %v1958 = vpop.f32.mrb[0].mxu0
      %v1959 = vadd.f32 0.0, %v1958
      %v1960 = vpop.f32.mrb[0].mxu0
      %v1961 = vpop.f32.mrb[0].mxu0
      %v1962 = vadd.f32 0.0, %v1961
      %v1963 = vpop.f32.mrb[0].mxu0
      %1964 = vmatprep.mubr.bf16.mxu0 0
      %1965 = vmatmul.mubr.bf16.gmra.mrb[0].mxu0 %v1807
      %v1966 = vpop.f32.mrb[0].mxu0
      %v1967 = vadd.f32 0.0, %v1966
      %v1968 = vpop.f32.mrb[0].mxu0
      %v1969 = vpop.f32.mrb[0].mxu0
      %v1970 = vadd.f32 0.0, %v1969
      %v1971 = vpop.f32.mrb[0].mxu0
      %1972 = vmatprep.mubr.bf16.mxu0 0
      %1973 = vmatmul.mubr.bf16.gmra.mrb[0].mxu0 %v1810
      %v1974 = vpop.f32.mrb[0].mxu0
      %v1975 = vadd.f32 0.0, %v1974
      %v1976 = vpop.f32.mrb[0].mxu0
      %v1977 = vpop.f32.mrb[0].mxu0
      %v1978 = vadd.f32 0.0, %v1977
      %v1979 = vpop.f32.mrb[0].mxu0
      %1980 = vmatprep.mubr.bf16.mxu0 0
      %1981 = vmatmul.mubr.bf16.gmra.mrb[0].mxu0 %v1813
      %v1982 = vpop.f32.mrb[0].mxu0
      %v1983 = vadd.f32 0.0, %v1982
      %v1984 = vpop.f32.mrb[0].mxu0
      %v1985 = vpop.f32.mrb[0].mxu0
      %v1986 = vadd.f32 0.0, %v1985
      %v1987 = vpop.f32.mrb[0].mxu0
      %1988 = vmatprep.mubr.bf16.mxu0 0
      %1989 = vmatmul.mubr.bf16.gmra.mrb[0].mxu0 %v1816
      %v1990 = vpop.f32.mrb[0].mxu0
      %v1991 = vadd.f32 0.0, %v1990
      %v1992 = vpop.f32.mrb[0].mxu0
      %v1993 = vpop.f32.mrb[0].mxu0
      %v1994 = vadd.f32 0.0, %v1993
      %v1995 = vpop.f32.mrb[0].mxu0
      %1996 = vmatprep.mubr.bf16.mxu0 0
      %1997 = vmatmul.mubr.bf16.gmra.mrb[0].mxu0 %v1819
      %v1998 = vpop.f32.mrb[0].mxu0
      %v1999 = vadd.f32 0.0, %v1998
      %v2000 = vpop.f32.mrb[0].mxu0
      %v2001 = vpop.f32.mrb[0].mxu0
      %v2002 = vadd.f32 0.0, %v2001
      %v2003 = vpop.f32.mrb[0].mxu0
      %2004 = vmatprep.mubr.bf16.mxu0 0
      %2005 = vmatmul.mubr.bf16.gmra.mrb[0].mxu0 %v1822
      %v2006 = vpop.f32.mrb[0].mxu0
      %v2007 = vadd.f32 0.0, %v2006
      %v2008 = vpop.f32.mrb[0].mxu0
      %v2009 = vpop.f32.mrb[0].mxu0
      %v2010 = vadd.f32 0.0, %v2009
      %v2011 = vpop.f32.mrb[0].mxu0
      %2012 = vmatprep.mubr.bf16.mxu0 0
      %2013 = vmatmul.mubr.bf16.gmra.mrb[0].mxu0 %v1825
      %v2014 = vpop.f32.mrb[0].mxu0
      %v2015 = vadd.f32 0.0, %v2014
      %v2016 = vpop.f32.mrb[0].mxu0
      %v2017 = vpop.f32.mrb[0].mxu0
      %v2018 = vadd.f32 0.0, %v2017
      %v2019 = vpop.f32.mrb[0].mxu0
      %2020 = vmatprep.mubr.bf16.mxu0 0
      %2021 = vmatmul.mubr.bf16.gmra.mrb[0].mxu0 %v1828
      %v2022 = vpop.f32.mrb[0].mxu0
      %v2023 = vadd.f32 0.0, %v2022
      %v2024 = vpop.f32.mrb[0].mxu0
      %v2025 = vpop.f32.mrb[0].mxu0
      %v2026 = vadd.f32 0.0, %v2025
      %v2027 = vpop.f32.mrb[0].mxu0
      %2028 = vmatprep.mubr.bf16.mxu0 0
      %2029 = vmatmul.mubr.bf16.gmra.mrb[0].mxu0 %v1831
      %v2030 = vpop.f32.mrb[0].mxu0
      %v2031 = vadd.f32 0.0, %v2030
      %v2032 = vpop.f32.mrb[0].mxu0
      %v2033 = vpop.f32.mrb[0].mxu0
      %v2034 = vadd.f32 0.0, %v2033
      %v2035 = vpop.f32.mrb[0].mxu0
      %2036 = vmatprep.mubr.bf16.mxu0 0
      %2037 = vmatmul.mubr.bf16.gmra.mrb[0].mxu0 %v1834
      %v2038 = vpop.f32.mrb[0].mxu0
      %v2039 = vadd.f32 0.0, %v2038
      %v2040 = vpop.f32.mrb[0].mxu0
      %v2041 = vpop.f32.mrb[0].mxu0
      %v2042 = vadd.f32 0.0, %v2041
      %v2043 = vpop.f32.mrb[0].mxu0
      %2044 = vmatprep.mubr.bf16.mxu0 0
      %2045 = vmatmul.mubr.bf16.gmra.mrb[0].mxu0 %v1837
      %v2046 = vpop.f32.mrb[0].mxu0
      %v2047 = vadd.f32 0.0, %v2046
      %v2048 = vpop.f32.mrb[0].mxu0
      %v2049 = vpop.f32.mrb[0].mxu0
      %v2050 = vadd.f32 0.0, %v2049
      %v2051 = vpop.f32.mrb[0].mxu0
      %2052 = vmatprep.mubr.bf16.mxu0 0
      %2053 = vmatmul.mubr.bf16.gmra.mrb[0].mxu0 %v1840
      %v2054 = vpop.f32.mrb[0].mxu0
      %v2055 = vadd.f32 0.0, %v2054
      %v2056 = vpop.f32.mrb[0].mxu0
      %v2057 = vpop.f32.mrb[0].mxu0
      %v2058 = vadd.f32 0.0, %v2057
      %v2059 = vpop.f32.mrb[0].mxu0
      %2060 = vmatprep.mubr.bf16.mxu0 0
      %2061 = vmatmul.mubr.bf16.gmra.mrb[0].mxu0 %v1843
      %v2062 = vpop.f32.mrb[0].mxu0
      %v2063 = vadd.f32 0.0, %v2062
      %v2064 = vpop.f32.mrb[0].mxu0
      %v2065 = vpop.f32.mrb[0].mxu0
      %v2066 = vadd.f32 0.0, %v2065
      %v2067 = vpop.f32.mrb[0].mxu0
      %2068 = vmatprep.mubr.bf16.mxu0 0
      %2069 = vmatmul.mubr.bf16.gmra.mrb[0].mxu0 %v1846
      %v2070 = vpop.f32.mrb[0].mxu0
      %v2071 = vadd.f32 0.0, %v2070
      %v2072 = vpop.f32.mrb[0].mxu0
      %v2073 = vpop.f32.mrb[0].mxu0
      %v2074 = vadd.f32 0.0, %v2073
      %v2075 = vpop.f32.mrb[0].mxu0
      %2076 = vmatprep.mubr.bf16.mxu0 0
      %2077 = vmatmul.mubr.bf16.gmra.mrb[0].mxu0 %v1849
      %v2078 = vpop.f32.mrb[0].mxu0
      %v2079 = vadd.f32 0.0, %v2078
      %v2080 = vpop.f32.mrb[0].mxu0
      %v2081 = vpop.f32.mrb[0].mxu0
      %v2082 = vadd.f32 0.0, %v2081
      %v2083 = vpop.f32.mrb[0].mxu0
      %2084 = vmatprep.mubr.bf16.mxu0 0
      %2085 = vmatmul.mubr.bf16.gmra.mrb[0].mxu0 %v1852
      %v2086 = vpop.f32.mrb[0].mxu0
      %v2087 = vadd.f32 0.0, %v2086
      %v2088 = vpop.f32.mrb[0].mxu0
      %v2089 = vpop.f32.mrb[0].mxu0
      %v2090 = vadd.f32 0.0, %v2089
      %v2091 = vpop.f32.mrb[0].mxu0
      %2092 = vmatprep.mubr.bf16.mxu0 0
      %2093 = vmatmul.mubr.bf16.gmra.mrb[0].mxu0 %v1855
      %v2094 = vpop.f32.mrb[0].mxu0
      %v2095 = vadd.f32 0.0, %v2094
      %v2096 = vpop.f32.mrb[0].mxu0
      %v2097 = vpop.f32.mrb[0].mxu0
      %v2098 = vadd.f32 0.0, %v2097
      %v2099 = vpop.f32.mrb[0].mxu0
      %2100 = vmatprep.mubr.bf16.mxu0 0
      %2101 = vmatmul.mubr.bf16.gmra.mrb[0].mxu0 %v1858
      %v2102 = vpop.f32.mrb[0].mxu0
      %v2103 = vadd.f32 0.0, %v2102
      %v2104 = vpop.f32.mrb[0].mxu0
      %v2105 = vpop.f32.mrb[0].mxu0
      %v2106 = vadd.f32 0.0, %v2105
      %v2107 = vpop.f32.mrb[0].mxu0
      %2108 = vmatprep.mubr.bf16.mxu0 0
      %2109 = vmatmul.mubr.bf16.gmra.mrb[0].mxu0 %v1861
      %v2110 = vpop.f32.mrb[0].mxu0
      %v2111 = vadd.f32 0.0, %v2110
      %v2112 = vpop.f32.mrb[0].mxu0
      %v2113 = vpop.f32.mrb[0].mxu0
      %v2114 = vadd.f32 0.0, %v2113
      %v2115 = vpop.f32.mrb[0].mxu0
      %2116 = vmatprep.mubr.bf16.mxu0 0
      %2117 = vmatmul.mubr.bf16.gmra.mrb[0].mxu0 %v1864
      %v2118 = vpop.f32.mrb[0].mxu0
      %v2119 = vadd.f32 0.0, %v2118
      %v2120 = vpop.f32.mrb[0].mxu0
      %v2121 = vpop.f32.mrb[0].mxu0
      %v2122 = vadd.f32 0.0, %v2121
      %v2123 = vpop.f32.mrb[0].mxu0
      %2124 = vmatprep.mubr.bf16.mxu0 0
      %2125 = vmatmul.mubr.bf16.gmra.mrb[0].mxu0 %v1867
      %v2126 = vpop.f32.mrb[0].mxu0
      %v2127 = vadd.f32 0.0, %v2126
      %v2128 = vpop.f32.mrb[0].mxu0
      %v2129 = vpop.f32.mrb[0].mxu0
      %v2130 = vadd.f32 0.0, %v2129
      %v2131 = vpop.f32.mrb[0].mxu0
      %2132 = vmatprep.mubr.bf16.mxu0 0
      %2133 = vmatmul.mubr.bf16.gmra.mrb[0].mxu0 %v1870
      %v2134 = vpop.f32.mrb[0].mxu0
      %v2135 = vadd.f32 0.0, %v2134
      %v2136 = vpop.f32.mrb[0].mxu0
      %v2137 = vpop.f32.mrb[0].mxu0
      %v2138 = vadd.f32 0.0, %v2137
      %v2139 = vpop.f32.mrb[0].mxu0
      %2140 = vmatprep.mubr.bf16.mxu0 0
      %2141 = vmatmul.mubr.bf16.gmra.mrb[0].mxu0 %v1873
      %v2142 = vpop.f32.mrb[0].mxu0
      %v2143 = vadd.f32 0.0, %v2142
      %v2144 = vpop.f32.mrb[0].mxu0
      %v2145 = vpop.f32.mrb[0].mxu0
      %v2146 = vadd.f32 0.0, %v2145
      %v2147 = vpop.f32.mrb[0].mxu0
      %2148 = vmatprep.mubr.bf16.mxu0 0
      %2149 = vmatmul.mubr.bf16.gmra.mrb[0].mxu0 %v1876
      %v2150 = vpop.f32.mrb[0].mxu0
      %v2151 = vadd.f32 0.0, %v2150
      %v2152 = vpop.f32.mrb[0].mxu0
      %v2153 = vpop.f32.mrb[0].mxu0
      %v2154 = vadd.f32 0.0, %v2153
      %v2155 = vpop.f32.mrb[0].mxu0
      %2156 = vmatprep.mubr.bf16.mxu0 0
      %2157 = vmatmul.mubr.bf16.gmra.mrb[0].mxu0 %v1879
      %v2158 = vpop.f32.mrb[0].mxu0
      %v2159 = vadd.f32 0.0, %v2158
      %v2160 = vpop.f32.mrb[0].mxu0
      %v2161 = vpop.f32.mrb[0].mxu0
      %v2162 = vadd.f32 0.0, %v2161
      %v2163 = vpop.f32.mrb[0].mxu0
      %2164 = vmatprep.mubr.bf16.mxu0 0
      %2165 = vmatmul.mubr.bf16.gmra.mrb[0].mxu0 %v1882
      %v2166 = vpop.f32.mrb[0].mxu0
      %v2167 = vadd.f32 0.0, %v2166
      %v2168 = vpop.f32.mrb[0].mxu0
      %v2169 = vpop.f32.mrb[0].mxu0
      %v2170 = vadd.f32 0.0, %v2169
      %v2171 = vpop.f32.mrb[0].mxu0
      %2172 = vdwg.mxu0
      %v2173 = vld [vmem:[%s286] sm:$0xf]
      %v2174 = vld [vmem:[%s286 + $0x4] sm:$0xf]
      %v2175 = vld [vmem:[%s286 + $0x8] sm:$0xf]
      %v2176 = vld [vmem:[%s286 + $0xc] sm:$0xf]
      %v2177 = vld [vmem:[%s286 + $0x10] sm:$0xf]
      %v2178 = vld [vmem:[%s286 + $0x14] sm:$0xf]
      %v2179 = vld [vmem:[%s286 + $0x18] sm:$0xf]
      %v2180 = vld [vmem:[%s286 + $0x1c] sm:$0xf]
      %v2181 = vld [vmem:[%s286 + $0x20] sm:$0xf]
      %v2182 = vld [vmem:[%s286 + $0x24] sm:$0xf]
      %v2183 = vld [vmem:[%s286 + $0x28] sm:$0xf]
      %v2184 = vld [vmem:[%s286 + $0x2c] sm:$0xf]
      %v2185 = vld [vmem:[%s286 + $0x30] sm:$0xf]
      %v2186 = vld [vmem:[%s286 + $0x34] sm:$0xf]
      %v2187 = vld [vmem:[%s286 + $0x38] sm:$0xf]
      %v2188 = vld [vmem:[%s286 + $0x3c] sm:$0xf]
      %v2189 = vld [vmem:[%s286 + $0x40] sm:$0xf]
      %v2190 = vld [vmem:[%s286 + $0x44] sm:$0xf]
      %v2191 = vld [vmem:[%s286 + $0x48] sm:$0xf]
      %v2192 = vld [vmem:[%s286 + $0x4c] sm:$0xf]
      %v2193 = vld [vmem:[%s286 + $0x50] sm:$0xf]
      %v2194 = vld [vmem:[%s286 + $0x54] sm:$0xf]
      %v2195 = vld [vmem:[%s286 + $0x58] sm:$0xf]
      %v2196 = vld [vmem:[%s286 + $0x5c] sm:$0xf]
      %v2197 = vld [vmem:[%s286 + $0x60] sm:$0xf]
      %v2198 = vld [vmem:[%s286 + $0x64] sm:$0xf]
      %v2199 = vld [vmem:[%s286 + $0x68] sm:$0xf]
      %v2200 = vld [vmem:[%s286 + $0x6c] sm:$0xf]
      %v2201 = vld [vmem:[%s286 + $0x70] sm:$0xf]
      %v2202 = vld [vmem:[%s286 + $0x74] sm:$0xf]
      %v2203 = vld [vmem:[%s286 + $0x78] sm:$0xf]
      %v2204 = vld [vmem:[%s286 + $0x7c] sm:$0xf]
      %v2205 = vld [vmem:[%s286 + $0x80] sm:$0xf]
      %v2206 = vld [vmem:[%s286 + $0x84] sm:$0xf]
      %v2207 = vld [vmem:[%s286 + $0x88] sm:$0xf]
      %v2208 = vld [vmem:[%s286 + $0x8c] sm:$0xf]
      %v2209 = vld [vmem:[%s286 + $0x90] sm:$0xf]
      %v2210 = vld [vmem:[%s286 + $0x94] sm:$0xf]
      %v2211 = vld [vmem:[%s286 + $0x98] sm:$0xf]
      %v2212 = vld [vmem:[%s286 + $0x9c] sm:$0xf]
      %v2213 = vld [vmem:[%s286 + $0xa0] sm:$0xf]
      %v2214 = vld [vmem:[%s286 + $0xa4] sm:$0xf]
      %v2215 = vld [vmem:[%s286 + $0xa8] sm:$0xf]
      %v2216 = vld [vmem:[%s286 + $0xac] sm:$0xf]
      %v2217 = vld [vmem:[%s286 + $0xb0] sm:$0xf]
      %v2218 = vld [vmem:[%s286 + $0xb4] sm:$0xf]
      %v2219 = vld [vmem:[%s286 + $0xb8] sm:$0xf]
      %v2220 = vld [vmem:[%s286 + $0xbc] sm:$0xf]
      %v2221 = vld [vmem:[%s286 + $0xc0] sm:$0xf]
      %v2222 = vld [vmem:[%s286 + $0xc4] sm:$0xf]
      %v2223 = vld [vmem:[%s286 + $0xc8] sm:$0xf]
      %v2224 = vld [vmem:[%s286 + $0xcc] sm:$0xf]
      %v2225 = vld [vmem:[%s286 + $0xd0] sm:$0xf]
      %v2226 = vld [vmem:[%s286 + $0xd4] sm:$0xf]
      %v2227 = vld [vmem:[%s286 + $0xd8] sm:$0xf]
      %v2228 = vld [vmem:[%s286 + $0xdc] sm:$0xf]
      %v2229 = vld [vmem:[%s286 + $0xe0] sm:$0xf]
      %v2230 = vld [vmem:[%s286 + $0xe4] sm:$0xf]
      %v2231 = vld [vmem:[%s286 + $0xe8] sm:$0xf]
      %v2232 = vld [vmem:[%s286 + $0xec] sm:$0xf]
      %v2233 = vld [vmem:[%s286 + $0xf0] sm:$0xf]
      %v2234 = vld [vmem:[%s286 + $0xf4] sm:$0xf]
      %v2235 = vld [vmem:[%s286 + $0xf8] sm:$0xf]
      %v2236 = vld [vmem:[%s286 + $0xfc] sm:$0xf]
      %s2237 = scalar_lea.vmem %s4, 48
      %v2238 = vld [vmem:[%s2237] sm:$0xf]
      %v2239 = vld [vmem:[%s2237 + $0x4] sm:$0xf]
      %v2240 = vld [vmem:[%s2237 + $0x8] sm:$0xf]
      %v2241 = vld [vmem:[%s2237 + $0xc] sm:$0xf]
      %v2306 = vunpack.c.l.b16 %v2173
      %v2307 = vunpack.c.l.b16 %v2174
      %v2308 = vunpack.c.l.b16 %v2175
      %v2309 = vunpack.c.l.b16 %v2176
      %v2310 = vunpack.c.l.b16 %v2177
      %v2311 = vunpack.c.l.b16 %v2178
      %v2312 = vunpack.c.l.b16 %v2179
      %v2313 = vunpack.c.l.b16 %v2180
      %v2314 = vunpack.c.l.b16 %v2181
      %v2315 = vunpack.c.l.b16 %v2182
      %v2316 = vunpack.c.l.b16 %v2183
      %v2317 = vunpack.c.l.b16 %v2184
      %v2318 = vunpack.c.l.b16 %v2185
      %v2319 = vunpack.c.l.b16 %v2186
      %v2320 = vunpack.c.l.b16 %v2187
      %v2321 = vunpack.c.l.b16 %v2188
      %v2322 = vunpack.c.l.b16 %v2189
      %v2323 = vunpack.c.l.b16 %v2190
      %v2324 = vunpack.c.l.b16 %v2191
      %v2325 = vunpack.c.l.b16 %v2192
      %v2326 = vunpack.c.l.b16 %v2193
      %v2327 = vunpack.c.l.b16 %v2194
      %v2328 = vunpack.c.l.b16 %v2195
      %v2329 = vunpack.c.l.b16 %v2196
      %v2330 = vunpack.c.l.b16 %v2197
      %v2331 = vunpack.c.l.b16 %v2198
      %v2332 = vunpack.c.l.b16 %v2199
      %v2333 = vunpack.c.l.b16 %v2200
      %v2334 = vunpack.c.l.b16 %v2201
      %v2335 = vunpack.c.l.b16 %v2202
      %v2336 = vunpack.c.l.b16 %v2203
      %v2337 = vunpack.c.l.b16 %v2204
      %v2338 = vunpack.c.l.b16 %v2205
      %v2339 = vunpack.c.l.b16 %v2206
      %v2340 = vunpack.c.l.b16 %v2207
      %v2341 = vunpack.c.l.b16 %v2208
      %v2342 = vunpack.c.l.b16 %v2209
      %v2343 = vunpack.c.l.b16 %v2210
      %v2344 = vunpack.c.l.b16 %v2211
      %v2345 = vunpack.c.l.b16 %v2212
      %v2346 = vunpack.c.l.b16 %v2213
      %v2347 = vunpack.c.l.b16 %v2214
      %v2348 = vunpack.c.l.b16 %v2215
      %v2349 = vunpack.c.l.b16 %v2216
      %v2350 = vunpack.c.l.b16 %v2217
      %v2351 = vunpack.c.l.b16 %v2218
      %v2352 = vunpack.c.l.b16 %v2219
      %v2353 = vunpack.c.l.b16 %v2220
      %v2354 = vunpack.c.l.b16 %v2221
      %v2355 = vunpack.c.l.b16 %v2222
      %v2356 = vunpack.c.l.b16 %v2223
      %v2357 = vunpack.c.l.b16 %v2224
      %v2358 = vunpack.c.l.b16 %v2225
      %v2359 = vunpack.c.l.b16 %v2226
      %v2360 = vunpack.c.l.b16 %v2227
      %v2361 = vunpack.c.l.b16 %v2228
      %v2362 = vunpack.c.l.b16 %v2229
      %v2363 = vunpack.c.l.b16 %v2230
      %v2364 = vunpack.c.l.b16 %v2231
      %v2365 = vunpack.c.l.b16 %v2232
      %v2366 = vunpack.c.l.b16 %v2233
      %v2367 = vunpack.c.l.b16 %v2234
      %v2368 = vunpack.c.l.b16 %v2235
      %v2369 = vunpack.c.l.b16 %v2236
      %v2370 = vpack.c.b16 %v2307, %v2306
      %v2371 = vpack.c.b16 %v2309, %v2308
      %v2372 = vpack.c.b16 %v2311, %v2310
      %v2373 = vpack.c.b16 %v2313, %v2312
      %v2374 = vpack.c.b16 %v2315, %v2314
      %v2375 = vpack.c.b16 %v2317, %v2316
      %v2376 = vpack.c.b16 %v2319, %v2318
      %v2377 = vpack.c.b16 %v2321, %v2320
      %v2378 = vpack.c.b16 %v2323, %v2322
      %v2379 = vpack.c.b16 %v2325, %v2324
      %v2380 = vpack.c.b16 %v2327, %v2326
      %v2381 = vpack.c.b16 %v2329, %v2328
      %v2382 = vpack.c.b16 %v2331, %v2330
      %v2383 = vpack.c.b16 %v2333, %v2332
      %v2384 = vpack.c.b16 %v2335, %v2334
      %v2385 = vpack.c.b16 %v2337, %v2336
      %v2386 = vpack.c.b16 %v2339, %v2338
      %v2387 = vpack.c.b16 %v2341, %v2340
      %v2388 = vpack.c.b16 %v2343, %v2342
      %v2389 = vpack.c.b16 %v2345, %v2344
      %v2390 = vpack.c.b16 %v2347, %v2346
      %v2391 = vpack.c.b16 %v2349, %v2348
      %v2392 = vpack.c.b16 %v2351, %v2350
      %v2393 = vpack.c.b16 %v2353, %v2352
      %v2394 = vpack.c.b16 %v2355, %v2354
      %v2395 = vpack.c.b16 %v2357, %v2356
      %v2396 = vpack.c.b16 %v2359, %v2358
      %v2397 = vpack.c.b16 %v2361, %v2360
      %v2398 = vpack.c.b16 %v2363, %v2362
      %v2399 = vpack.c.b16 %v2365, %v2364
      %v2400 = vpack.c.b16 %v2367, %v2366
      %v2401 = vpack.c.b16 %v2369, %v2368
      %v2406 = vunpack.c.l.b16 %v2238
      %v2407 = vunpack.c.l.b16 %v2239
      %v2408 = vunpack.c.l.b16 %v2240
      %v2409 = vunpack.c.l.b16 %v2241
      %v2410 = vpack.c.b16 %v2407, %v2406
      %v2411 = vpack.c.b16 %v2409, %v2408
      %v2415 = vsel %vm535, %v2370, 0
      %v2418 = vsel %vm535, %v2371, 0
      %v2421 = vsel %vm535, %v2372, 0
      %v2424 = vsel %vm535, %v2373, 0
      %v2427 = vsel %vm535, %v2374, 0
      %v2430 = vsel %vm535, %v2375, 0
      %v2433 = vsel %vm535, %v2376, 0
      %v2436 = vsel %vm535, %v2377, 0
      %v2439 = vsel %vm535, %v2378, 0
      %v2442 = vsel %vm535, %v2379, 0
      %v2445 = vsel %vm535, %v2380, 0
      %v2448 = vsel %vm535, %v2381, 0
      %v2451 = vsel %vm535, %v2382, 0
      %v2454 = vsel %vm535, %v2383, 0
      %v2457 = vsel %vm535, %v2384, 0
      %v2460 = vsel %vm535, %v2385, 0
      %v2463 = vsel %vm535, %v2386, 0
      %v2466 = vsel %vm535, %v2387, 0
      %v2469 = vsel %vm535, %v2388, 0
      %v2472 = vsel %vm535, %v2389, 0
      %v2475 = vsel %vm535, %v2390, 0
      %v2478 = vsel %vm535, %v2391, 0
      %v2481 = vsel %vm535, %v2392, 0
      %v2484 = vsel %vm535, %v2393, 0
      %v2487 = vsel %vm535, %v2394, 0
      %v2490 = vsel %vm535, %v2395, 0
      %v2493 = vsel %vm535, %v2396, 0
      %v2496 = vsel %vm535, %v2397, 0
      %v2499 = vsel %vm535, %v2398, 0
      %v2502 = vsel %vm535, %v2399, 0
      %v2505 = vsel %vm535, %v2400, 0
      %v2508 = vsel %vm535, %v2401, 0
      %2510 = vmatprep.subr.bf16.mxu0 0
      %2511 = vmatpush1.bf16.msra.mxu0 %v2410
      %2512 = vmatprep.subr.bf16.mxu0 0
      %2513 = vmatpush1.bf16.msra.mxu0 %v2411
      %2514 = vmatprep.subr.bf16.mxu0 0
      %2515 = vmatpush1.bf16.msra.mxu0 0
      %2516 = vmatprep.subr.bf16.mxu0 0
      %2517 = vmatpush1.bf16.msra.mxu0 0
      %2518 = vmatprep.subr.bf16.mxu0 0
      %2519 = vmatpush1.bf16.msra.mxu0 0
      %2520 = vmatprep.subr.bf16.mxu0 0
      %2521 = vmatpush1.bf16.msra.mxu0 0
      %2522 = vmatprep.subr.bf16.mxu0 0
      %2523 = vmatpush1.bf16.msra.mxu0 0
      %2524 = vmatprep.subr.bf16.mxu0 0
      %2525 = vmatpush1.bf16.msra.mxu0 0
      %2526 = vmatprep.subr.bf16.mxu0 0
      %2527 = vmatpush1.bf16.msra.mxu0 0
      %2528 = vmatprep.subr.bf16.mxu0 0
      %2529 = vmatpush1.bf16.msra.mxu0 0
      %2530 = vmatprep.subr.bf16.mxu0 0
      %2531 = vmatpush1.bf16.msra.mxu0 0
      %2532 = vmatprep.subr.bf16.mxu0 0
      %2533 = vmatpush1.bf16.msra.mxu0 0
      %2534 = vmatprep.subr.bf16.mxu0 0
      %2535 = vmatpush1.bf16.msra.mxu0 0
      %2536 = vmatprep.subr.bf16.mxu0 0
      %2537 = vmatpush1.bf16.msra.mxu0 0
      %2538 = vmatprep.subr.bf16.mxu0 0
      %2539 = vmatpush1.bf16.msra.mxu0 0
      %2540 = vmatprep.subr.bf16.mxu0 0
      %2541 = vmatpush1.bf16.msra.mxu0 0
      %2542 = vmatprep.mubr.bf16.mxu0 0
      %2543 = vmatmul.mubr.bf16.gmra.mrb[0].mxu0 %v2415
      %v2544 = vpop.f32.mrb[0].mxu0
      %v2545 = vadd.f32 0.0, %v2544
      %v2546 = vpop.f32.mrb[0].mxu0
      %v2547 = vpop.f32.mrb[0].mxu0
      %v2548 = vadd.f32 0.0, %v2547
      %v2549 = vpop.f32.mrb[0].mxu0
      %2550 = vmatprep.mubr.bf16.mxu0 0
      %2551 = vmatmul.mubr.bf16.gmra.mrb[0].mxu0 %v2418
      %v2552 = vpop.f32.mrb[0].mxu0
      %v2553 = vadd.f32 0.0, %v2552
      %v2554 = vpop.f32.mrb[0].mxu0
      %v2555 = vpop.f32.mrb[0].mxu0
      %v2556 = vadd.f32 0.0, %v2555
      %v2557 = vpop.f32.mrb[0].mxu0
      %2558 = vmatprep.mubr.bf16.mxu0 0
      %2559 = vmatmul.mubr.bf16.gmra.mrb[0].mxu0 %v2421
      %v2560 = vpop.f32.mrb[0].mxu0
      %v2561 = vadd.f32 0.0, %v2560
      %v2562 = vpop.f32.mrb[0].mxu0
      %v2563 = vpop.f32.mrb[0].mxu0
      %v2564 = vadd.f32 0.0, %v2563
      %v2565 = vpop.f32.mrb[0].mxu0
      %2566 = vmatprep.mubr.bf16.mxu0 0
      %2567 = vmatmul.mubr.bf16.gmra.mrb[0].mxu0 %v2424
      %v2568 = vpop.f32.mrb[0].mxu0
      %v2569 = vadd.f32 0.0, %v2568
      %v2570 = vpop.f32.mrb[0].mxu0
      %v2571 = vpop.f32.mrb[0].mxu0
      %v2572 = vadd.f32 0.0, %v2571
      %v2573 = vpop.f32.mrb[0].mxu0
      %2574 = vmatprep.mubr.bf16.mxu0 0
      %2575 = vmatmul.mubr.bf16.gmra.mrb[0].mxu0 %v2427
      %v2576 = vpop.f32.mrb[0].mxu0
      %v2577 = vadd.f32 0.0, %v2576
      %v2578 = vpop.f32.mrb[0].mxu0
      %v2579 = vpop.f32.mrb[0].mxu0
      %v2580 = vadd.f32 0.0, %v2579
      %v2581 = vpop.f32.mrb[0].mxu0
      %2582 = vmatprep.mubr.bf16.mxu0 0
      %2583 = vmatmul.mubr.bf16.gmra.mrb[0].mxu0 %v2430
      %v2584 = vpop.f32.mrb[0].mxu0
      %v2585 = vadd.f32 0.0, %v2584
      %v2586 = vpop.f32.mrb[0].mxu0
      %v2587 = vpop.f32.mrb[0].mxu0
      %v2588 = vadd.f32 0.0, %v2587
      %v2589 = vpop.f32.mrb[0].mxu0
      %2590 = vmatprep.mubr.bf16.mxu0 0
      %2591 = vmatmul.mubr.bf16.gmra.mrb[0].mxu0 %v2433
      %v2592 = vpop.f32.mrb[0].mxu0
      %v2593 = vadd.f32 0.0, %v2592
      %v2594 = vpop.f32.mrb[0].mxu0
      %v2595 = vpop.f32.mrb[0].mxu0
      %v2596 = vadd.f32 0.0, %v2595
      %v2597 = vpop.f32.mrb[0].mxu0
      %2598 = vmatprep.mubr.bf16.mxu0 0
      %2599 = vmatmul.mubr.bf16.gmra.mrb[0].mxu0 %v2436
      %v2600 = vpop.f32.mrb[0].mxu0
      %v2601 = vadd.f32 0.0, %v2600
      %v2602 = vpop.f32.mrb[0].mxu0
      %v2603 = vpop.f32.mrb[0].mxu0
      %v2604 = vadd.f32 0.0, %v2603
      %v2605 = vpop.f32.mrb[0].mxu0
      %2606 = vmatprep.mubr.bf16.mxu0 0
      %2607 = vmatmul.mubr.bf16.gmra.mrb[0].mxu0 %v2439
      %v2608 = vpop.f32.mrb[0].mxu0
      %v2609 = vadd.f32 0.0, %v2608
      %v2610 = vpop.f32.mrb[0].mxu0
      %v2611 = vpop.f32.mrb[0].mxu0
      %v2612 = vadd.f32 0.0, %v2611
      %v2613 = vpop.f32.mrb[0].mxu0
      %2614 = vmatprep.mubr.bf16.mxu0 0
      %2615 = vmatmul.mubr.bf16.gmra.mrb[0].mxu0 %v2442
      %v2616 = vpop.f32.mrb[0].mxu0
      %v2617 = vadd.f32 0.0, %v2616
      %v2618 = vpop.f32.mrb[0].mxu0
      %v2619 = vpop.f32.mrb[0].mxu0
      %v2620 = vadd.f32 0.0, %v2619
      %v2621 = vpop.f32.mrb[0].mxu0
      %2622 = vmatprep.mubr.bf16.mxu0 0
      %2623 = vmatmul.mubr.bf16.gmra.mrb[0].mxu0 %v2445
      %v2624 = vpop.f32.mrb[0].mxu0
      %v2625 = vadd.f32 0.0, %v2624
      %v2626 = vpop.f32.mrb[0].mxu0
      %v2627 = vpop.f32.mrb[0].mxu0
      %v2628 = vadd.f32 0.0, %v2627
      %v2629 = vpop.f32.mrb[0].mxu0
      %2630 = vmatprep.mubr.bf16.mxu0 0
      %2631 = vmatmul.mubr.bf16.gmra.mrb[0].mxu0 %v2448
      %v2632 = vpop.f32.mrb[0].mxu0
      %v2633 = vadd.f32 0.0, %v2632
      %v2634 = vpop.f32.mrb[0].mxu0
      %v2635 = vpop.f32.mrb[0].mxu0
      %v2636 = vadd.f32 0.0, %v2635
      %v2637 = vpop.f32.mrb[0].mxu0
      %2638 = vmatprep.mubr.bf16.mxu0 0
      %2639 = vmatmul.mubr.bf16.gmra.mrb[0].mxu0 %v2451
      %v2640 = vpop.f32.mrb[0].mxu0
      %v2641 = vadd.f32 0.0, %v2640
      %v2642 = vpop.f32.mrb[0].mxu0
      %v2643 = vpop.f32.mrb[0].mxu0
      %v2644 = vadd.f32 0.0, %v2643
      %v2645 = vpop.f32.mrb[0].mxu0
      %2646 = vmatprep.mubr.bf16.mxu0 0
      %2647 = vmatmul.mubr.bf16.gmra.mrb[0].mxu0 %v2454
      %v2648 = vpop.f32.mrb[0].mxu0
      %v2649 = vadd.f32 0.0, %v2648
      %v2650 = vpop.f32.mrb[0].mxu0
      %v2651 = vpop.f32.mrb[0].mxu0
      %v2652 = vadd.f32 0.0, %v2651
      %v2653 = vpop.f32.mrb[0].mxu0
      %2654 = vmatprep.mubr.bf16.mxu0 0
      %2655 = vmatmul.mubr.bf16.gmra.mrb[0].mxu0 %v2457
      %v2656 = vpop.f32.mrb[0].mxu0
      %v2657 = vadd.f32 0.0, %v2656
      %v2658 = vpop.f32.mrb[0].mxu0
      %v2659 = vpop.f32.mrb[0].mxu0
      %v2660 = vadd.f32 0.0, %v2659
      %v2661 = vpop.f32.mrb[0].mxu0
      %2662 = vmatprep.mubr.bf16.mxu0 0
      %2663 = vmatmul.mubr.bf16.gmra.mrb[0].mxu0 %v2460
      %v2664 = vpop.f32.mrb[0].mxu0
      %v2665 = vadd.f32 0.0, %v2664
      %v2666 = vpop.f32.mrb[0].mxu0
      %v2667 = vpop.f32.mrb[0].mxu0
      %v2668 = vadd.f32 0.0, %v2667
      %v2669 = vpop.f32.mrb[0].mxu0
      %2670 = vmatprep.mubr.bf16.mxu0 0
      %2671 = vmatmul.mubr.bf16.gmra.mrb[0].mxu0 %v2463
      %v2672 = vpop.f32.mrb[0].mxu0
      %v2673 = vadd.f32 0.0, %v2672
      %v2674 = vpop.f32.mrb[0].mxu0
      %v2675 = vpop.f32.mrb[0].mxu0
      %v2676 = vadd.f32 0.0, %v2675
      %v2677 = vpop.f32.mrb[0].mxu0
      %2678 = vmatprep.mubr.bf16.mxu0 0
      %2679 = vmatmul.mubr.bf16.gmra.mrb[0].mxu0 %v2466
      %v2680 = vpop.f32.mrb[0].mxu0
      %v2681 = vadd.f32 0.0, %v2680
      %v2682 = vpop.f32.mrb[0].mxu0
      %v2683 = vpop.f32.mrb[0].mxu0
      %v2684 = vadd.f32 0.0, %v2683
      %v2685 = vpop.f32.mrb[0].mxu0
      %2686 = vmatprep.mubr.bf16.mxu0 0
      %2687 = vmatmul.mubr.bf16.gmra.mrb[0].mxu0 %v2469
      %v2688 = vpop.f32.mrb[0].mxu0
      %v2689 = vadd.f32 0.0, %v2688
      %v2690 = vpop.f32.mrb[0].mxu0
      %v2691 = vpop.f32.mrb[0].mxu0
      %v2692 = vadd.f32 0.0, %v2691
      %v2693 = vpop.f32.mrb[0].mxu0
      %2694 = vmatprep.mubr.bf16.mxu0 0
      %2695 = vmatmul.mubr.bf16.gmra.mrb[0].mxu0 %v2472
      %v2696 = vpop.f32.mrb[0].mxu0
      %v2697 = vadd.f32 0.0, %v2696
      %v2698 = vpop.f32.mrb[0].mxu0
      %v2699 = vpop.f32.mrb[0].mxu0
      %v2700 = vadd.f32 0.0, %v2699
      %v2701 = vpop.f32.mrb[0].mxu0
      %2702 = vmatprep.mubr.bf16.mxu0 0
      %2703 = vmatmul.mubr.bf16.gmra.mrb[0].mxu0 %v2475
      %v2704 = vpop.f32.mrb[0].mxu0
      %v2705 = vadd.f32 0.0, %v2704
      %v2706 = vpop.f32.mrb[0].mxu0
      %v2707 = vpop.f32.mrb[0].mxu0
      %v2708 = vadd.f32 0.0, %v2707
      %v2709 = vpop.f32.mrb[0].mxu0
      %2710 = vmatprep.mubr.bf16.mxu0 0
      %2711 = vmatmul.mubr.bf16.gmra.mrb[0].mxu0 %v2478
      %v2712 = vpop.f32.mrb[0].mxu0
      %v2713 = vadd.f32 0.0, %v2712
      %v2714 = vpop.f32.mrb[0].mxu0
      %v2715 = vpop.f32.mrb[0].mxu0
      %v2716 = vadd.f32 0.0, %v2715
      %v2717 = vpop.f32.mrb[0].mxu0
      %2718 = vmatprep.mubr.bf16.mxu0 0
      %2719 = vmatmul.mubr.bf16.gmra.mrb[0].mxu0 %v2481
      %v2720 = vpop.f32.mrb[0].mxu0
      %v2721 = vadd.f32 0.0, %v2720
      %v2722 = vpop.f32.mrb[0].mxu0
      %v2723 = vpop.f32.mrb[0].mxu0
      %v2724 = vadd.f32 0.0, %v2723
      %v2725 = vpop.f32.mrb[0].mxu0
      %2726 = vmatprep.mubr.bf16.mxu0 0
      %2727 = vmatmul.mubr.bf16.gmra.mrb[0].mxu0 %v2484
      %v2728 = vpop.f32.mrb[0].mxu0
      %v2729 = vadd.f32 0.0, %v2728
      %v2730 = vpop.f32.mrb[0].mxu0
      %v2731 = vpop.f32.mrb[0].mxu0
      %v2732 = vadd.f32 0.0, %v2731
      %v2733 = vpop.f32.mrb[0].mxu0
      %2734 = vmatprep.mubr.bf16.mxu0 0
      %2735 = vmatmul.mubr.bf16.gmra.mrb[0].mxu0 %v2487
      %v2736 = vpop.f32.mrb[0].mxu0
      %v2737 = vadd.f32 0.0, %v2736
      %v2738 = vpop.f32.mrb[0].mxu0
      %v2739 = vpop.f32.mrb[0].mxu0
      %v2740 = vadd.f32 0.0, %v2739
      %v2741 = vpop.f32.mrb[0].mxu0
      %2742 = vmatprep.mubr.bf16.mxu0 0
      %2743 = vmatmul.mubr.bf16.gmra.mrb[0].mxu0 %v2490
      %v2744 = vpop.f32.mrb[0].mxu0
      %v2745 = vadd.f32 0.0, %v2744
      %v2746 = vpop.f32.mrb[0].mxu0
      %v2747 = vpop.f32.mrb[0].mxu0
      %v2748 = vadd.f32 0.0, %v2747
      %v2749 = vpop.f32.mrb[0].mxu0
      %2750 = vmatprep.mubr.bf16.mxu0 0
      %2751 = vmatmul.mubr.bf16.gmra.mrb[0].mxu0 %v2493
      %v2752 = vpop.f32.mrb[0].mxu0
      %v2753 = vadd.f32 0.0, %v2752
      %v2754 = vpop.f32.mrb[0].mxu0
      %v2755 = vpop.f32.mrb[0].mxu0
      %v2756 = vadd.f32 0.0, %v2755
      %v2757 = vpop.f32.mrb[0].mxu0
      %2758 = vmatprep.mubr.bf16.mxu0 0
      %2759 = vmatmul.mubr.bf16.gmra.mrb[0].mxu0 %v2496
      %v2760 = vpop.f32.mrb[0].mxu0
      %v2761 = vadd.f32 0.0, %v2760
      %v2762 = vpop.f32.mrb[0].mxu0
      %v2763 = vpop.f32.mrb[0].mxu0
      %v2764 = vadd.f32 0.0, %v2763
      %v2765 = vpop.f32.mrb[0].mxu0
      %2766 = vmatprep.mubr.bf16.mxu0 0
      %2767 = vmatmul.mubr.bf16.gmra.mrb[0].mxu0 %v2499
      %v2768 = vpop.f32.mrb[0].mxu0
      %v2769 = vadd.f32 0.0, %v2768
      %v2770 = vpop.f32.mrb[0].mxu0
      %v2771 = vpop.f32.mrb[0].mxu0
      %v2772 = vadd.f32 0.0, %v2771
      %v2773 = vpop.f32.mrb[0].mxu0
      %2774 = vmatprep.mubr.bf16.mxu0 0
      %2775 = vmatmul.mubr.bf16.gmra.mrb[0].mxu0 %v2502
      %v2776 = vpop.f32.mrb[0].mxu0
      %v2777 = vadd.f32 0.0, %v2776
      %v2778 = vpop.f32.mrb[0].mxu0
      %v2779 = vpop.f32.mrb[0].mxu0
      %v2780 = vadd.f32 0.0, %v2779
      %v2781 = vpop.f32.mrb[0].mxu0
      %2782 = vmatprep.mubr.bf16.mxu0 0
      %2783 = vmatmul.mubr.bf16.gmra.mrb[0].mxu0 %v2505
      %v2784 = vpop.f32.mrb[0].mxu0
      %v2785 = vadd.f32 0.0, %v2784
      %v2786 = vpop.f32.mrb[0].mxu0
      %v2787 = vpop.f32.mrb[0].mxu0
      %v2788 = vadd.f32 0.0, %v2787
      %v2789 = vpop.f32.mrb[0].mxu0
      %2790 = vmatprep.mubr.bf16.mxu0 0
      %2791 = vmatmul.mubr.bf16.gmra.mrb[0].mxu0 %v2508
      %v2792 = vpop.f32.mrb[0].mxu0
      %v2793 = vadd.f32 0.0, %v2792
      %v2794 = vpop.f32.mrb[0].mxu0
      %v2795 = vpop.f32.mrb[0].mxu0
      %v2796 = vadd.f32 0.0, %v2795
      %v2797 = vpop.f32.mrb[0].mxu0
      %2798 = vdwg.mxu0
      %2863 = vrot.lane.b32.xlu0 %v1293, 3
      %v2864 = vpop.permute.xlu0 %2863
      %2865 = vrot.lane.b32.xlu0 %v1296, 3
      %v2866 = vpop.permute.xlu0 %2865
      %2867 = vrot.lane.b32.xlu0 %v1301, 3
      %v2868 = vpop.permute.xlu0 %2867
      %2869 = vrot.lane.b32.xlu0 %v1304, 3
      %v2870 = vpop.permute.xlu0 %2869
      %2871 = vrot.lane.b32.xlu0 %v1309, 3
      %v2872 = vpop.permute.xlu0 %2871
      %2873 = vrot.lane.b32.xlu0 %v1312, 3
      %v2874 = vpop.permute.xlu0 %2873
      %2875 = vrot.lane.b32.xlu0 %v1317, 3
      %v2876 = vpop.permute.xlu0 %2875
      %2877 = vrot.lane.b32.xlu0 %v1320, 3
      %v2878 = vpop.permute.xlu0 %2877
      %2879 = vrot.lane.b32.xlu0 %v1325, 3
      %v2880 = vpop.permute.xlu0 %2879
      %2881 = vrot.lane.b32.xlu0 %v1328, 3
      %v2882 = vpop.permute.xlu0 %2881
      %2883 = vrot.lane.b32.xlu0 %v1333, 3
      %v2884 = vpop.permute.xlu0 %2883
      %2885 = vrot.lane.b32.xlu0 %v1336, 3
      %v2886 = vpop.permute.xlu0 %2885
      %2887 = vrot.lane.b32.xlu0 %v1341, 3
      %v2888 = vpop.permute.xlu0 %2887
      %2889 = vrot.lane.b32.xlu0 %v1344, 3
      %v2890 = vpop.permute.xlu0 %2889
      %2891 = vrot.lane.b32.xlu0 %v1349, 3
      %v2892 = vpop.permute.xlu0 %2891
      %2893 = vrot.lane.b32.xlu0 %v1352, 3
      %v2894 = vpop.permute.xlu0 %2893
      %2895 = vrot.lane.b32.xlu0 %v1357, 3
      %v2896 = vpop.permute.xlu0 %2895
      %2897 = vrot.lane.b32.xlu0 %v1360, 3
      %v2898 = vpop.permute.xlu0 %2897
      %2899 = vrot.lane.b32.xlu0 %v1365, 3
      %v2900 = vpop.permute.xlu0 %2899
      %2901 = vrot.lane.b32.xlu0 %v1368, 3
      %v2902 = vpop.permute.xlu0 %2901
      %2903 = vrot.lane.b32.xlu0 %v1373, 3
      %v2904 = vpop.permute.xlu0 %2903
      %2905 = vrot.lane.b32.xlu0 %v1376, 3
      %v2906 = vpop.permute.xlu0 %2905
      %2907 = vrot.lane.b32.xlu0 %v1381, 3
      %v2908 = vpop.permute.xlu0 %2907
      %2909 = vrot.lane.b32.xlu0 %v1384, 3
      %v2910 = vpop.permute.xlu0 %2909
      %2911 = vrot.lane.b32.xlu0 %v1389, 3
      %v2912 = vpop.permute.xlu0 %2911
      %2913 = vrot.lane.b32.xlu0 %v1392, 3
      %v2914 = vpop.permute.xlu0 %2913
      %2915 = vrot.lane.b32.xlu0 %v1397, 3
      %v2916 = vpop.permute.xlu0 %2915
      %2917 = vrot.lane.b32.xlu0 %v1400, 3
      %v2918 = vpop.permute.xlu0 %2917
      %2919 = vrot.lane.b32.xlu0 %v1405, 3
      %v2920 = vpop.permute.xlu0 %2919
      %2921 = vrot.lane.b32.xlu0 %v1408, 3
      %v2922 = vpop.permute.xlu0 %2921
      %2923 = vrot.lane.b32.xlu0 %v1413, 3
      %v2924 = vpop.permute.xlu0 %2923
      %2925 = vrot.lane.b32.xlu0 %v1416, 3
      %v2926 = vpop.permute.xlu0 %2925
      %2927 = vrot.lane.b32.xlu0 %v1421, 3
      %v2928 = vpop.permute.xlu0 %2927
      %2929 = vrot.lane.b32.xlu0 %v1424, 3
      %v2930 = vpop.permute.xlu0 %2929
      %2931 = vrot.lane.b32.xlu0 %v1429, 3
      %v2932 = vpop.permute.xlu0 %2931
      %2933 = vrot.lane.b32.xlu0 %v1432, 3
      %v2934 = vpop.permute.xlu0 %2933
      %2935 = vrot.lane.b32.xlu0 %v1437, 3
      %v2936 = vpop.permute.xlu0 %2935
      %2937 = vrot.lane.b32.xlu0 %v1440, 3
      %v2938 = vpop.permute.xlu0 %2937
      %2939 = vrot.lane.b32.xlu0 %v1445, 3
      %v2940 = vpop.permute.xlu0 %2939
      %2941 = vrot.lane.b32.xlu0 %v1448, 3
      %v2942 = vpop.permute.xlu0 %2941
      %2943 = vrot.lane.b32.xlu0 %v1453, 3
      %v2944 = vpop.permute.xlu0 %2943
      %2945 = vrot.lane.b32.xlu0 %v1456, 3
      %v2946 = vpop.permute.xlu0 %2945
      %2947 = vrot.lane.b32.xlu0 %v1461, 3
      %v2948 = vpop.permute.xlu0 %2947
      %2949 = vrot.lane.b32.xlu0 %v1464, 3
      %v2950 = vpop.permute.xlu0 %2949
      %2951 = vrot.lane.b32.xlu0 %v1469, 3
      %v2952 = vpop.permute.xlu0 %2951
      %2953 = vrot.lane.b32.xlu0 %v1472, 3
      %v2954 = vpop.permute.xlu0 %2953
      %2955 = vrot.lane.b32.xlu0 %v1477, 3
      %v2956 = vpop.permute.xlu0 %2955
      %2957 = vrot.lane.b32.xlu0 %v1480, 3
      %v2958 = vpop.permute.xlu0 %2957
      %2959 = vrot.lane.b32.xlu0 %v1485, 3
      %v2960 = vpop.permute.xlu0 %2959
      %2961 = vrot.lane.b32.xlu0 %v1488, 3
      %v2962 = vpop.permute.xlu0 %2961
      %2963 = vrot.lane.b32.xlu0 %v1493, 3
      %v2964 = vpop.permute.xlu0 %2963
      %2965 = vrot.lane.b32.xlu0 %v1496, 3
      %v2966 = vpop.permute.xlu0 %2965
      %2967 = vrot.lane.b32.xlu0 %v1501, 3
      %v2968 = vpop.permute.xlu0 %2967
      %2969 = vrot.lane.b32.xlu0 %v1504, 3
      %v2970 = vpop.permute.xlu0 %2969
      %2971 = vrot.lane.b32.xlu0 %v1509, 3
      %v2972 = vpop.permute.xlu0 %2971
      %2973 = vrot.lane.b32.xlu0 %v1512, 3
      %v2974 = vpop.permute.xlu0 %2973
      %2975 = vrot.lane.b32.xlu0 %v1517, 3
      %v2976 = vpop.permute.xlu0 %2975
      %2977 = vrot.lane.b32.xlu0 %v1520, 3
      %v2978 = vpop.permute.xlu0 %2977
      %2979 = vrot.lane.b32.xlu0 %v1525, 3
      %v2980 = vpop.permute.xlu0 %2979
      %2981 = vrot.lane.b32.xlu0 %v1528, 3
      %v2982 = vpop.permute.xlu0 %2981
      %2983 = vrot.lane.b32.xlu0 %v1533, 3
      %v2984 = vpop.permute.xlu0 %2983
      %2985 = vrot.lane.b32.xlu0 %v1536, 3
      %v2986 = vpop.permute.xlu0 %2985
      %2987 = vrot.lane.b32.xlu0 %v1541, 3
      %v2988 = vpop.permute.xlu0 %2987
      %2989 = vrot.lane.b32.xlu0 %v1544, 3
      %v2990 = vpop.permute.xlu0 %2989
      %3119 = vrot.lane.b32.xlu0 %v1919, 6
      %v3120 = vpop.permute.xlu0 %3119
      %3121 = vrot.lane.b32.xlu0 %v1922, 6
      %v3122 = vpop.permute.xlu0 %3121
      %3123 = vrot.lane.b32.xlu0 %v1927, 6
      %v3124 = vpop.permute.xlu0 %3123
      %3125 = vrot.lane.b32.xlu0 %v1930, 6
      %v3126 = vpop.permute.xlu0 %3125
      %3127 = vrot.lane.b32.xlu0 %v1935, 6
      %v3128 = vpop.permute.xlu0 %3127
      %3129 = vrot.lane.b32.xlu0 %v1938, 6
      %v3130 = vpop.permute.xlu0 %3129
      %3131 = vrot.lane.b32.xlu0 %v1943, 6
      %v3132 = vpop.permute.xlu0 %3131
      %3133 = vrot.lane.b32.xlu0 %v1946, 6
      %v3134 = vpop.permute.xlu0 %3133
      %3135 = vrot.lane.b32.xlu0 %v1951, 6
      %v3136 = vpop.permute.xlu0 %3135
      %3137 = vrot.lane.b32.xlu0 %v1954, 6
      %v3138 = vpop.permute.xlu0 %3137
      %3139 = vrot.lane.b32.xlu0 %v1959, 6
      %v3140 = vpop.permute.xlu0 %3139
      %3141 = vrot.lane.b32.xlu0 %v1962, 6
      %v3142 = vpop.permute.xlu0 %3141
      %3143 = vrot.lane.b32.xlu0 %v1967, 6
      %v3144 = vpop.permute.xlu0 %3143
      %3145 = vrot.lane.b32.xlu0 %v1970, 6
      %v3146 = vpop.permute.xlu0 %3145
      %3147 = vrot.lane.b32.xlu0 %v1975, 6
      %v3148 = vpop.permute.xlu0 %3147
      %3149 = vrot.lane.b32.xlu0 %v1978, 6
      %v3150 = vpop.permute.xlu0 %3149
      %3151 = vrot.lane.b32.xlu0 %v1983, 6
      %v3152 = vpop.permute.xlu0 %3151
      %3153 = vrot.lane.b32.xlu0 %v1986, 6
      %v3154 = vpop.permute.xlu0 %3153
      %3155 = vrot.lane.b32.xlu0 %v1991, 6
      %v3156 = vpop.permute.xlu0 %3155
      %3157 = vrot.lane.b32.xlu0 %v1994, 6
      %v3158 = vpop.permute.xlu0 %3157
      %3159 = vrot.lane.b32.xlu0 %v1999, 6
      %v3160 = vpop.permute.xlu0 %3159
      %3161 = vrot.lane.b32.xlu0 %v2002, 6
      %v3162 = vpop.permute.xlu0 %3161
      %3163 = vrot.lane.b32.xlu0 %v2007, 6
      %v3164 = vpop.permute.xlu0 %3163
      %3165 = vrot.lane.b32.xlu0 %v2010, 6
      %v3166 = vpop.permute.xlu0 %3165
      %3167 = vrot.lane.b32.xlu0 %v2015, 6
      %v3168 = vpop.permute.xlu0 %3167
      %3169 = vrot.lane.b32.xlu0 %v2018, 6
      %v3170 = vpop.permute.xlu0 %3169
      %3171 = vrot.lane.b32.xlu0 %v2023, 6
      %v3172 = vpop.permute.xlu0 %3171
      %3173 = vrot.lane.b32.xlu0 %v2026, 6
      %v3174 = vpop.permute.xlu0 %3173
      %3175 = vrot.lane.b32.xlu0 %v2031, 6
      %v3176 = vpop.permute.xlu0 %3175
      %3177 = vrot.lane.b32.xlu0 %v2034, 6
      %v3178 = vpop.permute.xlu0 %3177
      %3179 = vrot.lane.b32.xlu0 %v2039, 6
      %v3180 = vpop.permute.xlu0 %3179
      %3181 = vrot.lane.b32.xlu0 %v2042, 6
      %v3182 = vpop.permute.xlu0 %3181
      %3183 = vrot.lane.b32.xlu0 %v2047, 6
      %v3184 = vpop.permute.xlu0 %3183
      %3185 = vrot.lane.b32.xlu0 %v2050, 6
      %v3186 = vpop.permute.xlu0 %3185
      %3187 = vrot.lane.b32.xlu0 %v2055, 6
      %v3188 = vpop.permute.xlu0 %3187
      %3189 = vrot.lane.b32.xlu0 %v2058, 6
      %v3190 = vpop.permute.xlu0 %3189
      %3191 = vrot.lane.b32.xlu0 %v2063, 6
      %v3192 = vpop.permute.xlu0 %3191
      %3193 = vrot.lane.b32.xlu0 %v2066, 6
      %v3194 = vpop.permute.xlu0 %3193
      %3195 = vrot.lane.b32.xlu0 %v2071, 6
      %v3196 = vpop.permute.xlu0 %3195
      %3197 = vrot.lane.b32.xlu0 %v2074, 6
      %v3198 = vpop.permute.xlu0 %3197
      %3199 = vrot.lane.b32.xlu0 %v2079, 6
      %v3200 = vpop.permute.xlu0 %3199
      %3201 = vrot.lane.b32.xlu0 %v2082, 6
      %v3202 = vpop.permute.xlu0 %3201
      %3203 = vrot.lane.b32.xlu0 %v2087, 6
      %v3204 = vpop.permute.xlu0 %3203
      %3205 = vrot.lane.b32.xlu0 %v2090, 6
      %v3206 = vpop.permute.xlu0 %3205
      %3207 = vrot.lane.b32.xlu0 %v2095, 6
      %v3208 = vpop.permute.xlu0 %3207
      %3209 = vrot.lane.b32.xlu0 %v2098, 6
      %v3210 = vpop.permute.xlu0 %3209
      %3211 = vrot.lane.b32.xlu0 %v2103, 6
      %v3212 = vpop.permute.xlu0 %3211
      %3213 = vrot.lane.b32.xlu0 %v2106, 6
      %v3214 = vpop.permute.xlu0 %3213
      %3215 = vrot.lane.b32.xlu0 %v2111, 6
      %v3216 = vpop.permute.xlu0 %3215
      %3217 = vrot.lane.b32.xlu0 %v2114, 6
      %v3218 = vpop.permute.xlu0 %3217
      %3219 = vrot.lane.b32.xlu0 %v2119, 6
      %v3220 = vpop.permute.xlu0 %3219
      %3221 = vrot.lane.b32.xlu0 %v2122, 6
      %v3222 = vpop.permute.xlu0 %3221
      %3223 = vrot.lane.b32.xlu0 %v2127, 6
      %v3224 = vpop.permute.xlu0 %3223
      %3225 = vrot.lane.b32.xlu0 %v2130, 6
      %v3226 = vpop.permute.xlu0 %3225
      %3227 = vrot.lane.b32.xlu0 %v2135, 6
      %v3228 = vpop.permute.xlu0 %3227
      %3229 = vrot.lane.b32.xlu0 %v2138, 6
      %v3230 = vpop.permute.xlu0 %3229
      %3231 = vrot.lane.b32.xlu0 %v2143, 6
      %v3232 = vpop.permute.xlu0 %3231
      %3233 = vrot.lane.b32.xlu0 %v2146, 6
      %v3234 = vpop.permute.xlu0 %3233
      %3235 = vrot.lane.b32.xlu0 %v2151, 6
      %v3236 = vpop.permute.xlu0 %3235
      %3237 = vrot.lane.b32.xlu0 %v2154, 6
      %v3238 = vpop.permute.xlu0 %3237
      %3239 = vrot.lane.b32.xlu0 %v2159, 6
      %v3240 = vpop.permute.xlu0 %3239
      %3241 = vrot.lane.b32.xlu0 %v2162, 6
      %v3242 = vpop.permute.xlu0 %3241
      %3243 = vrot.lane.b32.xlu0 %v2167, 6
      %v3244 = vpop.permute.xlu0 %3243
      %3245 = vrot.lane.b32.xlu0 %v2170, 6
      %v3246 = vpop.permute.xlu0 %3245
      %3375 = vrot.lane.b32.xlu0 %v2545, 9
      %v3376 = vpop.permute.xlu0 %3375
      %3377 = vrot.lane.b32.xlu0 %v2548, 9
      %v3378 = vpop.permute.xlu0 %3377
      %3379 = vrot.lane.b32.xlu0 %v2553, 9
      %v3380 = vpop.permute.xlu0 %3379
      %3381 = vrot.lane.b32.xlu0 %v2556, 9
      %v3382 = vpop.permute.xlu0 %3381
      %3383 = vrot.lane.b32.xlu0 %v2561, 9
      %v3384 = vpop.permute.xlu0 %3383
      %3385 = vrot.lane.b32.xlu0 %v2564, 9
      %v3386 = vpop.permute.xlu0 %3385
      %3387 = vrot.lane.b32.xlu0 %v2569, 9
      %v3388 = vpop.permute.xlu0 %3387
      %3389 = vrot.lane.b32.xlu0 %v2572, 9
      %v3390 = vpop.permute.xlu0 %3389
      %3391 = vrot.lane.b32.xlu0 %v2577, 9
      %v3392 = vpop.permute.xlu0 %3391
      %3393 = vrot.lane.b32.xlu0 %v2580, 9
      %v3394 = vpop.permute.xlu0 %3393
      %3395 = vrot.lane.b32.xlu0 %v2585, 9
      %v3396 = vpop.permute.xlu0 %3395
      %3397 = vrot.lane.b32.xlu0 %v2588, 9
      %v3398 = vpop.permute.xlu0 %3397
      %3399 = vrot.lane.b32.xlu0 %v2593, 9
      %v3400 = vpop.permute.xlu0 %3399
      %3401 = vrot.lane.b32.xlu0 %v2596, 9
      %v3402 = vpop.permute.xlu0 %3401
      %3403 = vrot.lane.b32.xlu0 %v2601, 9
      %v3404 = vpop.permute.xlu0 %3403
      %3405 = vrot.lane.b32.xlu0 %v2604, 9
      %v3406 = vpop.permute.xlu0 %3405
      %3407 = vrot.lane.b32.xlu0 %v2609, 9
      %v3408 = vpop.permute.xlu0 %3407
      %3409 = vrot.lane.b32.xlu0 %v2612, 9
      %v3410 = vpop.permute.xlu0 %3409
      %3411 = vrot.lane.b32.xlu0 %v2617, 9
      %v3412 = vpop.permute.xlu0 %3411
      %3413 = vrot.lane.b32.xlu0 %v2620, 9
      %v3414 = vpop.permute.xlu0 %3413
      %3415 = vrot.lane.b32.xlu0 %v2625, 9
      %v3416 = vpop.permute.xlu0 %3415
      %3417 = vrot.lane.b32.xlu0 %v2628, 9
      %v3418 = vpop.permute.xlu0 %3417
      %3419 = vrot.lane.b32.xlu0 %v2633, 9
      %v3420 = vpop.permute.xlu0 %3419
      %3421 = vrot.lane.b32.xlu0 %v2636, 9
      %v3422 = vpop.permute.xlu0 %3421
      %3423 = vrot.lane.b32.xlu0 %v2641, 9
      %v3424 = vpop.permute.xlu0 %3423
      %3425 = vrot.lane.b32.xlu0 %v2644, 9
      %v3426 = vpop.permute.xlu0 %3425
      %3427 = vrot.lane.b32.xlu0 %v2649, 9
      %v3428 = vpop.permute.xlu0 %3427
      %3429 = vrot.lane.b32.xlu0 %v2652, 9
      %v3430 = vpop.permute.xlu0 %3429
      %3431 = vrot.lane.b32.xlu0 %v2657, 9
      %v3432 = vpop.permute.xlu0 %3431
      %3433 = vrot.lane.b32.xlu0 %v2660, 9
      %v3434 = vpop.permute.xlu0 %3433
      %3435 = vrot.lane.b32.xlu0 %v2665, 9
      %v3436 = vpop.permute.xlu0 %3435
      %3437 = vrot.lane.b32.xlu0 %v2668, 9
      %v3438 = vpop.permute.xlu0 %3437
      %3439 = vrot.lane.b32.xlu0 %v2673, 9
      %v3440 = vpop.permute.xlu0 %3439
      %3441 = vrot.lane.b32.xlu0 %v2676, 9
      %v3442 = vpop.permute.xlu0 %3441
      %3443 = vrot.lane.b32.xlu0 %v2681, 9
      %v3444 = vpop.permute.xlu0 %3443
      %3445 = vrot.lane.b32.xlu0 %v2684, 9
      %v3446 = vpop.permute.xlu0 %3445
      %3447 = vrot.lane.b32.xlu0 %v2689, 9
      %v3448 = vpop.permute.xlu0 %3447
      %3449 = vrot.lane.b32.xlu0 %v2692, 9
      %v3450 = vpop.permute.xlu0 %3449
      %3451 = vrot.lane.b32.xlu0 %v2697, 9
      %v3452 = vpop.permute.xlu0 %3451
      %3453 = vrot.lane.b32.xlu0 %v2700, 9
      %v3454 = vpop.permute.xlu0 %3453
      %3455 = vrot.lane.b32.xlu0 %v2705, 9
      %v3456 = vpop.permute.xlu0 %3455
      %3457 = vrot.lane.b32.xlu0 %v2708, 9
      %v3458 = vpop.permute.xlu0 %3457
      %3459 = vrot.lane.b32.xlu0 %v2713, 9
      %v3460 = vpop.permute.xlu0 %3459
      %3461 = vrot.lane.b32.xlu0 %v2716, 9
      %v3462 = vpop.permute.xlu0 %3461
      %3463 = vrot.lane.b32.xlu0 %v2721, 9
      %v3464 = vpop.permute.xlu0 %3463
      %3465 = vrot.lane.b32.xlu0 %v2724, 9
      %v3466 = vpop.permute.xlu0 %3465
      %3467 = vrot.lane.b32.xlu0 %v2729, 9
      %v3468 = vpop.permute.xlu0 %3467
      %3469 = vrot.lane.b32.xlu0 %v2732, 9
      %v3470 = vpop.permute.xlu0 %3469
      %3471 = vrot.lane.b32.xlu0 %v2737, 9
      %v3472 = vpop.permute.xlu0 %3471
      %3473 = vrot.lane.b32.xlu0 %v2740, 9
      %v3474 = vpop.permute.xlu0 %3473
      %3475 = vrot.lane.b32.xlu0 %v2745, 9
      %v3476 = vpop.permute.xlu0 %3475
      %3477 = vrot.lane.b32.xlu0 %v2748, 9
      %v3478 = vpop.permute.xlu0 %3477
      %3479 = vrot.lane.b32.xlu0 %v2753, 9
      %v3480 = vpop.permute.xlu0 %3479
      %3481 = vrot.lane.b32.xlu0 %v2756, 9
      %v3482 = vpop.permute.xlu0 %3481
      %3483 = vrot.lane.b32.xlu0 %v2761, 9
      %v3484 = vpop.permute.xlu0 %3483
      %3485 = vrot.lane.b32.xlu0 %v2764, 9
      %v3486 = vpop.permute.xlu0 %3485
      %3487 = vrot.lane.b32.xlu0 %v2769, 9
      %v3488 = vpop.permute.xlu0 %3487
      %3489 = vrot.lane.b32.xlu0 %v2772, 9
      %v3490 = vpop.permute.xlu0 %3489
      %3491 = vrot.lane.b32.xlu0 %v2777, 9
      %v3492 = vpop.permute.xlu0 %3491
      %3493 = vrot.lane.b32.xlu0 %v2780, 9
      %v3494 = vpop.permute.xlu0 %3493
      %3495 = vrot.lane.b32.xlu0 %v2785, 9
      %v3496 = vpop.permute.xlu0 %3495
      %3497 = vrot.lane.b32.xlu0 %v2788, 9
      %v3498 = vpop.permute.xlu0 %3497
      %3499 = vrot.lane.b32.xlu0 %v2793, 9
      %v3500 = vpop.permute.xlu0 %3499
      %3501 = vrot.lane.b32.xlu0 %v2796, 9
      %v3502 = vpop.permute.xlu0 %3501
      %vm3567 = vcmask 23552
      %v3568 = vsel %vm3567, %v667, %v2864
      %v3569 = vsel %vm3567, %v670, %v2866
      %v3570 = vsel %vm3567, %v675, %v2868
      %v3571 = vsel %vm3567, %v678, %v2870
      %v3572 = vsel %vm3567, %v683, %v2872
      %v3573 = vsel %vm3567, %v686, %v2874
      %v3574 = vsel %vm3567, %v691, %v2876
      %v3575 = vsel %vm3567, %v694, %v2878
      %v3576 = vsel %vm3567, %v699, %v2880
      %v3577 = vsel %vm3567, %v702, %v2882
      %v3578 = vsel %vm3567, %v707, %v2884
      %v3579 = vsel %vm3567, %v710, %v2886
      %v3580 = vsel %vm3567, %v715, %v2888
      %v3581 = vsel %vm3567, %v718, %v2890
      %v3582 = vsel %vm3567, %v723, %v2892
      %v3583 = vsel %vm3567, %v726, %v2894
      %v3584 = vsel %vm3567, %v731, %v2896
      %v3585 = vsel %vm3567, %v734, %v2898
      %v3586 = vsel %vm3567, %v739, %v2900
      %v3587 = vsel %vm3567, %v742, %v2902
      %v3588 = vsel %vm3567, %v747, %v2904
      %v3589 = vsel %vm3567, %v750, %v2906
      %v3590 = vsel %vm3567, %v755, %v2908
      %v3591 = vsel %vm3567, %v758, %v2910
      %v3592 = vsel %vm3567, %v763, %v2912
      %v3593 = vsel %vm3567, %v766, %v2914
      %v3594 = vsel %vm3567, %v771, %v2916
      %v3595 = vsel %vm3567, %v774, %v2918
      %v3596 = vsel %vm3567, %v779, %v2920
      %v3597 = vsel %vm3567, %v782, %v2922
      %v3598 = vsel %vm3567, %v787, %v2924
      %v3599 = vsel %vm3567, %v790, %v2926
      %v3600 = vsel %vm3567, %v795, %v2928
      %v3601 = vsel %vm3567, %v798, %v2930
      %v3602 = vsel %vm3567, %v803, %v2932
      %v3603 = vsel %vm3567, %v806, %v2934
      %v3604 = vsel %vm3567, %v811, %v2936
      %v3605 = vsel %vm3567, %v814, %v2938
      %v3606 = vsel %vm3567, %v819, %v2940
      %v3607 = vsel %vm3567, %v822, %v2942
      %v3608 = vsel %vm3567, %v827, %v2944
      %v3609 = vsel %vm3567, %v830, %v2946
      %v3610 = vsel %vm3567, %v835, %v2948
      %v3611 = vsel %vm3567, %v838, %v2950
      %v3612 = vsel %vm3567, %v843, %v2952
      %v3613 = vsel %vm3567, %v846, %v2954
      %v3614 = vsel %vm3567, %v851, %v2956
      %v3615 = vsel %vm3567, %v854, %v2958
      %v3616 = vsel %vm3567, %v859, %v2960
      %v3617 = vsel %vm3567, %v862, %v2962
      %v3618 = vsel %vm3567, %v867, %v2964
      %v3619 = vsel %vm3567, %v870, %v2966
      %v3620 = vsel %vm3567, %v875, %v2968
      %v3621 = vsel %vm3567, %v878, %v2970
      %v3622 = vsel %vm3567, %v883, %v2972
      %v3623 = vsel %vm3567, %v886, %v2974
      %v3624 = vsel %vm3567, %v891, %v2976
      %v3625 = vsel %vm3567, %v894, %v2978
      %v3626 = vsel %vm3567, %v899, %v2980
      %v3627 = vsel %vm3567, %v902, %v2982
      %v3628 = vsel %vm3567, %v907, %v2984
      %v3629 = vsel %vm3567, %v910, %v2986
      %v3630 = vsel %vm3567, %v915, %v2988
      %v3631 = vsel %vm3567, %v918, %v2990
      %vm3632 = vcmask 48128
      %v3633 = vsel %vm3632, %v3568, %v3120
      %v3634 = vsel %vm3632, %v3569, %v3122
      %v3635 = vsel %vm3632, %v3570, %v3124
      %v3636 = vsel %vm3632, %v3571, %v3126
      %v3637 = vsel %vm3632, %v3572, %v3128
      %v3638 = vsel %vm3632, %v3573, %v3130
      %v3639 = vsel %vm3632, %v3574, %v3132
      %v3640 = vsel %vm3632, %v3575, %v3134
      %v3641 = vsel %vm3632, %v3576, %v3136
      %v3642 = vsel %vm3632, %v3577, %v3138
      %v3643 = vsel %vm3632, %v3578, %v3140
      %v3644 = vsel %vm3632, %v3579, %v3142
      %v3645 = vsel %vm3632, %v3580, %v3144
      %v3646 = vsel %vm3632, %v3581, %v3146
      %v3647 = vsel %vm3632, %v3582, %v3148
      %v3648 = vsel %vm3632, %v3583, %v3150
      %v3649 = vsel %vm3632, %v3584, %v3152
      %v3650 = vsel %vm3632, %v3585, %v3154
      %v3651 = vsel %vm3632, %v3586, %v3156
      %v3652 = vsel %vm3632, %v3587, %v3158
      %v3653 = vsel %vm3632, %v3588, %v3160
      %v3654 = vsel %vm3632, %v3589, %v3162
      %v3655 = vsel %vm3632, %v3590, %v3164
      %v3656 = vsel %vm3632, %v3591, %v3166
      %v3657 = vsel %vm3632, %v3592, %v3168
      %v3658 = vsel %vm3632, %v3593, %v3170
      %v3659 = vsel %vm3632, %v3594, %v3172
      %v3660 = vsel %vm3632, %v3595, %v3174
      %v3661 = vsel %vm3632, %v3596, %v3176
      %v3662 = vsel %vm3632, %v3597, %v3178
      %v3663 = vsel %vm3632, %v3598, %v3180
      %v3664 = vsel %vm3632, %v3599, %v3182
      %v3665 = vsel %vm3632, %v3600, %v3184
      %v3666 = vsel %vm3632, %v3601, %v3186
      %v3667 = vsel %vm3632, %v3602, %v3188
      %v3668 = vsel %vm3632, %v3603, %v3190
      %v3669 = vsel %vm3632, %v3604, %v3192
      %v3670 = vsel %vm3632, %v3605, %v3194
      %v3671 = vsel %vm3632, %v3606, %v3196
      %v3672 = vsel %vm3632, %v3607, %v3198
      %v3673 = vsel %vm3632, %v3608, %v3200
      %v3674 = vsel %vm3632, %v3609, %v3202
      %v3675 = vsel %vm3632, %v3610, %v3204
      %v3676 = vsel %vm3632, %v3611, %v3206
      %v3677 = vsel %vm3632, %v3612, %v3208
      %v3678 = vsel %vm3632, %v3613, %v3210
      %v3679 = vsel %vm3632, %v3614, %v3212
      %v3680 = vsel %vm3632, %v3615, %v3214
      %v3681 = vsel %vm3632, %v3616, %v3216
      %v3682 = vsel %vm3632, %v3617, %v3218
      %v3683 = vsel %vm3632, %v3618, %v3220
      %v3684 = vsel %vm3632, %v3619, %v3222
      %v3685 = vsel %vm3632, %v3620, %v3224
      %v3686 = vsel %vm3632, %v3621, %v3226
      %v3687 = vsel %vm3632, %v3622, %v3228
      %v3688 = vsel %vm3632, %v3623, %v3230
      %v3689 = vsel %vm3632, %v3624, %v3232
      %v3690 = vsel %vm3632, %v3625, %v3234
      %v3691 = vsel %vm3632, %v3626, %v3236
      %v3692 = vsel %vm3632, %v3627, %v3238
      %v3693 = vsel %vm3632, %v3628, %v3240
      %v3694 = vsel %vm3632, %v3629, %v3242
      %v3695 = vsel %vm3632, %v3630, %v3244
      %v3696 = vsel %vm3632, %v3631, %v3246
      %vm3697 = vcmask 72704
      %v3698 = vsel %vm3697, %v3633, %v3376
      %v3699 = vsel %vm3697, %v3634, %v3378
      %v3700 = vsel %vm3697, %v3635, %v3380
      %v3701 = vsel %vm3697, %v3636, %v3382
      %v3702 = vsel %vm3697, %v3637, %v3384
      %v3703 = vsel %vm3697, %v3638, %v3386
      %v3704 = vsel %vm3697, %v3639, %v3388
      %v3705 = vsel %vm3697, %v3640, %v3390
      %v3706 = vsel %vm3697, %v3641, %v3392
      %v3707 = vsel %vm3697, %v3642, %v3394
      %v3708 = vsel %vm3697, %v3643, %v3396
      %v3709 = vsel %vm3697, %v3644, %v3398
      %v3710 = vsel %vm3697, %v3645, %v3400
      %v3711 = vsel %vm3697, %v3646, %v3402
      %v3712 = vsel %vm3697, %v3647, %v3404
      %v3713 = vsel %vm3697, %v3648, %v3406
      %v3714 = vsel %vm3697, %v3649, %v3408
      %v3715 = vsel %vm3697, %v3650, %v3410
      %v3716 = vsel %vm3697, %v3651, %v3412
      %v3717 = vsel %vm3697, %v3652, %v3414
      %v3718 = vsel %vm3697, %v3653, %v3416
      %v3719 = vsel %vm3697, %v3654, %v3418
      %v3720 = vsel %vm3697, %v3655, %v3420
      %v3721 = vsel %vm3697, %v3656, %v3422
      %v3722 = vsel %vm3697, %v3657, %v3424
      %v3723 = vsel %vm3697, %v3658, %v3426
      %v3724 = vsel %vm3697, %v3659, %v3428
      %v3725 = vsel %vm3697, %v3660, %v3430
      %v3726 = vsel %vm3697, %v3661, %v3432
      %v3727 = vsel %vm3697, %v3662, %v3434
      %v3728 = vsel %vm3697, %v3663, %v3436
      %v3729 = vsel %vm3697, %v3664, %v3438
      %v3730 = vsel %vm3697, %v3665, %v3440
      %v3731 = vsel %vm3697, %v3666, %v3442
      %v3732 = vsel %vm3697, %v3667, %v3444
      %v3733 = vsel %vm3697, %v3668, %v3446
      %v3734 = vsel %vm3697, %v3669, %v3448
      %v3735 = vsel %vm3697, %v3670, %v3450
      %v3736 = vsel %vm3697, %v3671, %v3452
      %v3737 = vsel %vm3697, %v3672, %v3454
      %v3738 = vsel %vm3697, %v3673, %v3456
      %v3739 = vsel %vm3697, %v3674, %v3458
      %v3740 = vsel %vm3697, %v3675, %v3460
      %v3741 = vsel %vm3697, %v3676, %v3462
      %v3742 = vsel %vm3697, %v3677, %v3464
      %v3743 = vsel %vm3697, %v3678, %v3466
      %v3744 = vsel %vm3697, %v3679, %v3468
      %v3745 = vsel %vm3697, %v3680, %v3470
      %v3746 = vsel %vm3697, %v3681, %v3472
      %v3747 = vsel %vm3697, %v3682, %v3474
      %v3748 = vsel %vm3697, %v3683, %v3476
      %v3749 = vsel %vm3697, %v3684, %v3478
      %v3750 = vsel %vm3697, %v3685, %v3480
      %v3751 = vsel %vm3697, %v3686, %v3482
      %v3752 = vsel %vm3697, %v3687, %v3484
      %v3753 = vsel %vm3697, %v3688, %v3486
      %v3754 = vsel %vm3697, %v3689, %v3488
      %v3755 = vsel %vm3697, %v3690, %v3490
      %v3756 = vsel %vm3697, %v3691, %v3492
      %v3757 = vsel %vm3697, %v3692, %v3494
      %v3758 = vsel %vm3697, %v3693, %v3496
      %v3759 = vsel %vm3697, %v3694, %v3498
      %v3760 = vsel %vm3697, %v3695, %v3500
      %v3761 = vsel %vm3697, %v3696, %v3502
      %v3762 = vtanh.pop %v3698
      %v3763 = vtanh.pop %v3699
      %v3764 = vtanh.pop %v3700
      %v3765 = vtanh.pop %v3701
      %v3766 = vtanh.pop %v3702
      %v3767 = vtanh.pop %v3703
      %v3768 = vtanh.pop %v3704
      %v3769 = vtanh.pop %v3705
      %v3770 = vtanh.pop %v3706
      %v3771 = vtanh.pop %v3707
      %v3772 = vtanh.pop %v3708
      %v3773 = vtanh.pop %v3709
      %v3774 = vtanh.pop %v3710
      %v3775 = vtanh.pop %v3711
      %v3776 = vtanh.pop %v3712
      %v3777 = vtanh.pop %v3713
      %v3778 = vtanh.pop %v3714
      %v3779 = vtanh.pop %v3715
      %v3780 = vtanh.pop %v3716
      %v3781 = vtanh.pop %v3717
      %v3782 = vtanh.pop %v3718
      %v3783 = vtanh.pop %v3719
      %v3784 = vtanh.pop %v3720
      %v3785 = vtanh.pop %v3721
      %v3786 = vtanh.pop %v3722
      %v3787 = vtanh.pop %v3723
      %v3788 = vtanh.pop %v3724
      %v3789 = vtanh.pop %v3725
      %v3790 = vtanh.pop %v3726
      %v3791 = vtanh.pop %v3727
      %v3792 = vtanh.pop %v3728
      %v3793 = vtanh.pop %v3729
      %v3794 = vtanh.pop %v3730
      %v3795 = vtanh.pop %v3731
      %v3796 = vtanh.pop %v3732
      %v3797 = vtanh.pop %v3733
      %v3798 = vtanh.pop %v3734
      %v3799 = vtanh.pop %v3735
      %v3800 = vtanh.pop %v3736
      %v3801 = vtanh.pop %v3737
      %v3802 = vtanh.pop %v3738
      %v3803 = vtanh.pop %v3739
      %v3804 = vtanh.pop %v3740
      %v3805 = vtanh.pop %v3741
      %v3806 = vtanh.pop %v3742
      %v3807 = vtanh.pop %v3743
      %v3808 = vtanh.pop %v3744
      %v3809 = vtanh.pop %v3745
      %v3810 = vtanh.pop %v3746
      %v3811 = vtanh.pop %v3747
      %v3812 = vtanh.pop %v3748
      %v3813 = vtanh.pop %v3749
      %v3814 = vtanh.pop %v3750
      %v3815 = vtanh.pop %v3751
      %v3816 = vtanh.pop %v3752
      %v3817 = vtanh.pop %v3753
      %v3818 = vtanh.pop %v3754
      %v3819 = vtanh.pop %v3755
      %v3820 = vtanh.pop %v3756
      %v3821 = vtanh.pop %v3757
      %v3822 = vtanh.pop %v3758
      %v3823 = vtanh.pop %v3759
      %v3824 = vtanh.pop %v3760
      %v3825 = vtanh.pop %v3761
      %vm3826 = vcmask 97280
      %3827 = vst.msk [vmem:[%s292] sm:$0xff] %vm3826, %v3762
      %3828 = vst.msk [vmem:[%s292 + $0x8] sm:$0xff] %vm3826, %v3763
      %3829 = vst.msk [vmem:[%s292 + $0x10] sm:$0xff] %vm3826, %v3764
      %3830 = vst.msk [vmem:[%s292 + $0x18] sm:$0xff] %vm3826, %v3765
      %3831 = vst.msk [vmem:[%s292 + $0x20] sm:$0xff] %vm3826, %v3766
      %3832 = vst.msk [vmem:[%s292 + $0x28] sm:$0xff] %vm3826, %v3767
      %3833 = vst.msk [vmem:[%s292 + $0x30] sm:$0xff] %vm3826, %v3768
      %3834 = vst.msk [vmem:[%s292 + $0x38] sm:$0xff] %vm3826, %v3769
      %3835 = vst.msk [vmem:[%s292 + $0x40] sm:$0xff] %vm3826, %v3770
      %3836 = vst.msk [vmem:[%s292 + $0x48] sm:$0xff] %vm3826, %v3771
      %3837 = vst.msk [vmem:[%s292 + $0x50] sm:$0xff] %vm3826, %v3772
      %3838 = vst.msk [vmem:[%s292 + $0x58] sm:$0xff] %vm3826, %v3773
      %3839 = vst.msk [vmem:[%s292 + $0x60] sm:$0xff] %vm3826, %v3774
      %3840 = vst.msk [vmem:[%s292 + $0x68] sm:$0xff] %vm3826, %v3775
      %3841 = vst.msk [vmem:[%s292 + $0x70] sm:$0xff] %vm3826, %v3776
      %3842 = vst.msk [vmem:[%s292 + $0x78] sm:$0xff] %vm3826, %v3777
      %3843 = vst.msk [vmem:[%s292 + $0x80] sm:$0xff] %vm3826, %v3778
      %3844 = vst.msk [vmem:[%s292 + $0x88] sm:$0xff] %vm3826, %v3779
      %3845 = vst.msk [vmem:[%s292 + $0x90] sm:$0xff] %vm3826, %v3780
      %3846 = vst.msk [vmem:[%s292 + $0x98] sm:$0xff] %vm3826, %v3781
      %3847 = vst.msk [vmem:[%s292 + $0xa0] sm:$0xff] %vm3826, %v3782
      %3848 = vst.msk [vmem:[%s292 + $0xa8] sm:$0xff] %vm3826, %v3783
      %3849 = vst.msk [vmem:[%s292 + $0xb0] sm:$0xff] %vm3826, %v3784
      %3850 = vst.msk [vmem:[%s292 + $0xb8] sm:$0xff] %vm3826, %v3785
      %3851 = vst.msk [vmem:[%s292 + $0xc0] sm:$0xff] %vm3826, %v3786
      %3852 = vst.msk [vmem:[%s292 + $0xc8] sm:$0xff] %vm3826, %v3787
      %3853 = vst.msk [vmem:[%s292 + $0xd0] sm:$0xff] %vm3826, %v3788
      %3854 = vst.msk [vmem:[%s292 + $0xd8] sm:$0xff] %vm3826, %v3789
      %3855 = vst.msk [vmem:[%s292 + $0xe0] sm:$0xff] %vm3826, %v3790
      %3856 = vst.msk [vmem:[%s292 + $0xe8] sm:$0xff] %vm3826, %v3791
      %3857 = vst.msk [vmem:[%s292 + $0xf0] sm:$0xff] %vm3826, %v3792
      %3858 = vst.msk [vmem:[%s292 + $0xf8] sm:$0xff] %vm3826, %v3793
      %3859 = vst.msk [vmem:[%s292 + $0x100] sm:$0xff] %vm3826, %v3794
      %3860 = vst.msk [vmem:[%s292 + $0x108] sm:$0xff] %vm3826, %v3795
      %3861 = vst.msk [vmem:[%s292 + $0x110] sm:$0xff] %vm3826, %v3796
      %3862 = vst.msk [vmem:[%s292 + $0x118] sm:$0xff] %vm3826, %v3797
      %3863 = vst.msk [vmem:[%s292 + $0x120] sm:$0xff] %vm3826, %v3798
      %3864 = vst.msk [vmem:[%s292 + $0x128] sm:$0xff] %vm3826, %v3799
      %3865 = vst.msk [vmem:[%s292 + $0x130] sm:$0xff] %vm3826, %v3800
      %3866 = vst.msk [vmem:[%s292 + $0x138] sm:$0xff] %vm3826, %v3801
      %3867 = vst.msk [vmem:[%s292 + $0x140] sm:$0xff] %vm3826, %v3802
      %3868 = vst.msk [vmem:[%s292 + $0x148] sm:$0xff] %vm3826, %v3803
      %3869 = vst.msk [vmem:[%s292 + $0x150] sm:$0xff] %vm3826, %v3804
      %3870 = vst.msk [vmem:[%s292 + $0x158] sm:$0xff] %vm3826, %v3805
      %3871 = vst.msk [vmem:[%s292 + $0x160] sm:$0xff] %vm3826, %v3806
      %3872 = vst.msk [vmem:[%s292 + $0x168] sm:$0xff] %vm3826, %v3807
      %3873 = vst.msk [vmem:[%s292 + $0x170] sm:$0xff] %vm3826, %v3808
      %3874 = vst.msk [vmem:[%s292 + $0x178] sm:$0xff] %vm3826, %v3809
      %3875 = vst.msk [vmem:[%s292 + $0x180] sm:$0xff] %vm3826, %v3810
      %3876 = vst.msk [vmem:[%s292 + $0x188] sm:$0xff] %vm3826, %v3811
      %3877 = vst.msk [vmem:[%s292 + $0x190] sm:$0xff] %vm3826, %v3812
      %3878 = vst.msk [vmem:[%s292 + $0x198] sm:$0xff] %vm3826, %v3813
      %3879 = vst.msk [vmem:[%s292 + $0x1a0] sm:$0xff] %vm3826, %v3814
      %3880 = vst.msk [vmem:[%s292 + $0x1a8] sm:$0xff] %vm3826, %v3815
      %3881 = vst.msk [vmem:[%s292 + $0x1b0] sm:$0xff] %vm3826, %v3816
      %3882 = vst.msk [vmem:[%s292 + $0x1b8] sm:$0xff] %vm3826, %v3817
      %3883 = vst.msk [vmem:[%s292 + $0x1c0] sm:$0xff] %vm3826, %v3818
      %3884 = vst.msk [vmem:[%s292 + $0x1c8] sm:$0xff] %vm3826, %v3819
      %3885 = vst.msk [vmem:[%s292 + $0x1d0] sm:$0xff] %vm3826, %v3820
      %3886 = vst.msk [vmem:[%s292 + $0x1d8] sm:$0xff] %vm3826, %v3821
      %3887 = vst.msk [vmem:[%s292 + $0x1e0] sm:$0xff] %vm3826, %v3822
      %3888 = vst.msk [vmem:[%s292 + $0x1e8] sm:$0xff] %vm3826, %v3823
      %3889 = vst.msk [vmem:[%s292 + $0x1f0] sm:$0xff] %vm3826, %v3824
      %3890 = vst.msk [vmem:[%s292 + $0x1f8] sm:$0xff] %vm3826, %v3825
      %s3891 = smul.u32 64, %s16
      %p3892 = scmp.lt.s32.totalorder %s3891, 255
      %s3893 = scalar_select %p3892, %s3891, 255
      %s3894 = smul.addr %s3893, 8
      %s3895 = scalar_lea.vmem %s5, %s3894
      // Predicated region
      $region41: #{generator_forward.17} parent=39 // pred_check
        %p3896 = pneg %p159
      $region42: #{generator_forward.17} parent=39 // pred_check_branch
        %3898 = sbr.rel (%p3896) target = $region44
      $region43: #{generator_forward.17} parent=39 // pred_region
        %s3899 = smul.u32 64, %s16
      $region44: #{generator_forward.17} parent=39 // pred_fallthru
        _
    $region40: #{generator_forward.17} parent=5 // pred_fallthru
      _
    %p3900 = scmp.le.s32.totalorder 2, %s11
    // Predicated region
    $region45: #{generator_forward.17} parent=5 // pred_check
      %p3901 = pneg %p3900
    $region46: #{generator_forward.17} parent=5 // pred_check_branch
      %3903 = sbr.rel (%p3901) target = $region48
    $region47: #{generator_forward.17} parent=5 // pred_region
      %s3904 = ssub.s32 %s11, 2
      // Predicated region
      $region49: #{generator_forward.17} parent=47 // pred_check
        %p3905 = pneg %p165
      $region50: #{generator_forward.17} parent=47 // pred_check_branch
        %3907 = sbr.rel (%p3905) target = $region52
      $region51: #{generator_forward.17} parent=47 // pred_region
        %s3908 = smul.u32 64, %s17
        %p3909 = scmp.lt.s32.totalorder %s3908, 255
        %s3910 = scalar_select %p3909, %s3908, 255
        %s3911 = smul.addr %s3910, 8
        %s3912 = scalar_lea.vmem %s5, %s3911
      $region52: #{generator_forward.17} parent=47 // pred_fallthru
        _
    $region48: #{generator_forward.17} parent=5 // pred_fallthru
      _
  $region6: #{generator_forward.17} parent=0 // loop_footer
    %s15 = sadd.s32 1, %s11
  $region7: #{generator_forward.17} parent=0 // loop_footer_branch
    %10 = sbr.rel target = $region3
  $region8: #{generator_forward.17} parent=0 // loop_exit
    _

</llo_original>
